<compile_context>
chip_gen: v6e
topology: v6e:2x2x1
jax: 0.10.0
libtpu: 0.0.40
codegen_flags: <defaults>
</compile_context>

<pallas_src>
import jax
import jax.numpy as jnp
from jax.experimental import pallas as pl
from jax.experimental.pallas import tpu as pltpu

VMEM = pltpu.MemorySpace.VMEM
BN_EPS = 1e-5
LEAKY_SLOPE = 0.01                    # nn.LeakyReLU() default negative_slope

# MXU input dtype for the expanded conv weights / conv activations.
CONV_MATMUL_DTYPE = jnp.bfloat16      # jnp.float32 for strict PyTorch parity

# Architecture constants hard-coded by DuelCNN (Linear(in_features=16) forces
# a (4, 64, 80) input).  NOTE: the reference `representation` Sequential has
# NO activation between the conv blocks (conv1+BN, conv2, conv3+BN, conv4+BN),
# so the fused trunk applies none either.
INPUT_HW = (64, 80)
CONV_CFG = (                          # (Cin, Cout, kernel, stride, bn_key)
    (4, 32, 8, 4, "bn1"),
    (32, 24, 4, 2, None),
    (24, 24, 4, 2, "bn2"),
    (24, 8, 2, 1, "bn3"),
)


def _conv_geometry():
    geo = []
    h, w = INPUT_HW
    for cin, cout, k, s, _ in CONV_CFG:
        ho = (h - k) // s + 1
        wo = (w - k) // s + 1
        geo.append(dict(H=h, W=w, Cin=cin, Cout=cout, K=k, S=s, Ho=ho, Wo=wo))
        h, w = ho, wo
    return tuple(geo)


GEO = _conv_geometry()                # 64x80 -> 15x19 -> 6x8 -> 2x3 -> 1x2
assert GEO[-1]["Ho"] == 1             # head relies on one output row / sample
FEAT = GEO[-1]["Ho"] * GEO[-1]["Wo"] * GEO[-1]["Cout"]        # 16

# Layer 1's strided row gather becomes static block slices because the
# wrapper packs S0 = 4 consecutive rows into the lane dim.  Needs S0 | K0 and
# S0 | H0, and the block count must equal H0/S0 exactly.
_K0, _S0 = GEO[0]["K"], GEO[0]["S"]
assert _K0 % _S0 == 0 and INPUT_HW[0] % _S0 == 0
NB1 = GEO[0]["Ho"] + _K0 // _S0 - 1   # 16 row-blocks per sample
assert NB1 == INPUT_HW[0] // _S0


def _round_up(x, m):
    return ((x + m - 1) // m) * m


# ----------------------------------------------------------------------------
# The single fused Pallas kernel
# ----------------------------------------------------------------------------
def _duelcnn_kernel(x_ref,
                    bw1, sh1, bw2, sh2, bw3, sh3, bw4, sh4,
                    hw1, hb1, hw2, hb2,
                    q_ref):
    """Whole DuelCNN forward for one (small) batch, entirely in VMEM."""
    n_batch, n_actions = q_ref.shape
    conv_ops = ((bw1, sh1), (bw2, sh2), (bw3, sh3), (bw4, sh4))

    out = None
    for li, (g, (bw_ref, sh_ref)) in enumerate(zip(GEO, conv_ops)):
        k, s, ho = g["K"], g["S"], g["Ho"]

        # Build the "band" matrix: row (b, ho) holds the K input rows of that
        # output row, side by side in lanes (columns ordered (i, w, ci)).
        # Static slices + aligned lane concats only; batch samples stacked
        # along rows so the MXU sees M = B*Ho.
        band_list = []
        for b in range(n_batch):
            if li == 0:
                # Wrapper-packed input: NB1 blocks of S0 rows merged into
                # lanes; the window of output row `oh` is blocks [oh, oh+K/S).
                blk = x_ref[b * NB1:(b + 1) * NB1, :]
                parts = [blk[gi:gi + ho, :] for gi in range(k // s)]
                band_list.append(jnp.concatenate(parts, axis=1))
            else:
                ho_prev = GEO[li - 1]["Ho"]
                ob = out[b * ho_prev:(b + 1) * ho_prev, :]
                rows = [jnp.concatenate(
                            [ob[s * oh + i:s * oh + i + 1, :] for i in range(k)],
                            axis=1)
                        for oh in range(ho)]
                band_list.append(rows[0] if ho == 1
                                 else jnp.concatenate(rows, axis=0))
        bands = (band_list[0] if n_batch == 1
                 else jnp.concatenate(band_list, axis=0))     # (B*Ho, K*row_w)

        # One MXU contraction per layer; W stride / kernel-col offsets, conv
        # bias and the (eval-mode) BatchNorm are pre-folded into bw / sh.
        w = bw_ref[...]
        out = jnp.dot(bands.astype(w.dtype), w,
                      preferred_element_type=jnp.float32) + sh_ref[...]
        # out: (B*Ho, padded Wo*Cout), rows ordered (b, ho), f32

    feat = out                                   # (B, 16): final Ho == 1, unpadded

    # Dueling head: A / V first layers fused into one (16, 160) matmul, second
    # layers into one block-diagonal (160, n_actions+1) matmul.
    h = jnp.dot(feat, hw1[...], preferred_element_type=jnp.float32) + hb1[...]
    h = jnp.where(h >= 0, h, LEAKY_SLOPE * h)    # LeakyReLU on both branches
    av = jnp.dot(h, hw2[...], preferred_element_type=jnp.float32) + hb2[...]
    a = av[:, :n_actions]
    v = av[:, n_actions:n_actions + 1]
    # Global scalar mean over batch AND actions: matches `Ax.mean()` in the
    # PyTorch forward exactly (not the usual per-row dueling mean).
    q_ref[...] = v + (a - jnp.mean(a))


# ----------------------------------------------------------------------------
# One-time parameter folding / expansion (trace-time JAX, outside the kernel)
# ----------------------------------------------------------------------------
def prepare_kernel_params(params, weight_dtype=CONV_MATMUL_DTYPE):
    """Fold BN + bias into the conv weights and expand them into the operands
    the fused kernel consumes.  Call once per weight set."""
    conv_keys = (("c1_w", "c1_b"), ("c2_w", "c2_b"), ("c3_w", "c3_b"), ("c4_w", "c4_b"))
    conv_ops = []
    in_width = GEO[0]["W"] * GEO[0]["Cin"]       # width of one input row (320)
    n_layers = len(GEO)
    for li, (g, (wk, bk), (_, _, _, _, bn_key)) in enumerate(
            zip(GEO, conv_keys, CONV_CFG)):
        w = params[wk].astype(jnp.float32)       # (Cout, Cin, kh, kw) torch layout
        bias = params[bk].astype(jnp.float32)
        if bn_key is None:
            scale = jnp.ones((g["Cout"],), jnp.float32)
            shift = bias
        else:
            gamma, beta, mean, var = params[bn_key]
            scale = gamma / jnp.sqrt(var + BN_EPS)
            shift = beta + (bias - mean) * scale     # BN(conv + b) = conv*scale + shift
        wp = jnp.transpose(w, (2, 3, 1, 0)) * scale  # (kh, kw, Cin, Cout), BN-scaled

        k, s, wdt = g["K"], g["S"], g["W"]
        wo, cin, cout = g["Wo"], g["Cin"], g["Cout"]

        # BigW[(i, w, ci), (wo, co)] = wp[i, w - s*wo, ci, co]  (zero outside
        # [0, kw)) -> W stride / kernel-column offsets baked in; wo stays in
        # the lane dimension so no activation relayout is ever needed.
        sel = (jnp.arange(wdt)[None, :, None] ==
               (s * jnp.arange(wo)[None, None, :] +
                jnp.arange(k)[:, None, None])).astype(jnp.float32)     # (kw, W, Wo)
        bigw = jnp.einsum("jwq,ijcd->iwcqd", sel, wp)        # (K, W, Cin, Wo, Cout)
        bigw = bigw.reshape(k, wdt * cin, wo * cout)
        shift_row = jnp.tile(shift, (wo,))

        # Lane-pad intermediate activation widths to multiples of 128 so the
        # in-kernel concatenates stay tile-aligned; zero rows absorb the
        # padding of the previous layer.  The final 16-feature layer stays
        # exact so the head needs no slicing.
        out_width = wo * cout if li == n_layers - 1 else _round_up(wo * cout, 128)
        bigw = jnp.pad(bigw, ((0, 0),
                              (0, in_width - wdt * cin),
                              (0, out_width - wo * cout)))
        bigw = bigw.reshape(k * in_width, out_width)
        shift_row = jnp.pad(shift_row, (0, out_width - wo * cout)).reshape(1, out_width)
        conv_ops.append((bigw.astype(weight_dtype), shift_row.astype(jnp.float32)))
        in_width = out_width

    # Dueling head: fold the PyTorch NCHW flatten order into the first-layer
    # weights, fuse the A / V branches into two matrices (kept f32, tiny).
    c4, wo4 = GEO[-1]["Cout"], GEO[-1]["Wo"]
    n_actions = params["a2_w"].shape[0]
    hidden = params["a1_w"].shape[0]
    # kernel feature column k = wo*C4 + co  <->  torch flatten index co*Wo4 + wo
    perm = jnp.array([(kk % c4) * wo4 + (kk // c4) for kk in range(wo4 * c4)],
                     jnp.int32)
    w1 = jnp.concatenate([params["a1_w"].T, params["v1_w"].T], axis=1)[perm, :]
    b1 = jnp.concatenate([params["a1_b"], params["v1_b"]]).reshape(1, -1)
    w2 = jnp.zeros((2 * hidden, n_actions + 1), jnp.float32)
    w2 = w2.at[:hidden, :n_actions].set(params["a2_w"].T)
    w2 = w2.at[hidden:, n_actions:].set(params["v2_w"].T)
    b2 = jnp.concatenate([params["a2_b"], params["v2_b"]]).reshape(1, -1)

    return dict(conv=tuple(conv_ops),
                hw1=w1.astype(jnp.float32), hb1=b1.astype(jnp.float32),
                hw2=w2, hb2=b2.astype(jnp.float32))


# ----------------------------------------------------------------------------
# Forward wrapper (one pallas_call)
# ----------------------------------------------------------------------------
def duel_cnn_forward(prep, x_nchw):
    n_batch = x_nchw.shape[0]
    n_actions = prep["hw2"].shape[1] - 1
    h0, w0 = INPUT_HW
    c0 = CONV_CFG[0][0]
    s0 = CONV_CFG[0][3]

    # NCHW -> NHWC -> row-blocked 2-D layout: rows = (b, block of S0=4 input
    # rows), cols = (row-in-block, w, c).  The only XLA-side data movement in
    # the whole forward; it is what turns the layer-1 strided row gather into
    # static block slices inside the kernel.
    x_blk = jnp.transpose(x_nchw.astype(jnp.float32), (0, 2, 3, 1))
    x_blk = x_blk.reshape(n_batch * NB1, s0 * w0 * c0)

    operands = [x_blk]
    for bigw, shift_row in prep["conv"]:
        operands.extend((bigw, shift_row))
    operands.extend((prep["hw1"], prep["hb1"], prep["hw2"], prep["hb2"]))

    flops = 0
    for g, (bigw, _) in zip(GEO, prep["conv"]):
        flops += 2 * n_batch * g["Ho"] * int(bigw.shape[0]) * int(bigw.shape[1])
    flops += 2 * n_batch * FEAT * int(prep["hw1"].shape[1])
    flops += 2 * n_batch * int(prep["hw2"].shape[0]) * int(prep["hw2"].shape[1])
    bytes_accessed = sum(int(op.size) * int(op.dtype.itemsize) for op in operands) \
        + n_batch * n_actions * 4

    return pl.pallas_call(
        _duelcnn_kernel,
        out_shape=jax.ShapeDtypeStruct((n_batch, n_actions), jnp.float32),
        in_specs=[pl.BlockSpec(memory_space=VMEM)] * len(operands),
        out_specs=pl.BlockSpec(memory_space=VMEM),
        compiler_params=pltpu.CompilerParams(vmem_limit_bytes=16 * 1024 * 1024),
        cost_estimate=pl.CostEstimate(flops=flops, transcendentals=0,
                                      bytes_accessed=bytes_accessed),
    )(*operands)


# ----------------------------------------------------------------------------
# Deterministic parameter initialization (shapes from DuelCNN.__init__)
# ----------------------------------------------------------------------------
def init_params(key, output_size):
    keys = iter(jax.random.split(key, 32))

    def rnd(shape, s=0.05):
        return s * jax.random.normal(next(keys), shape, jnp.float32)

    def bn(c):
        gamma = 1.0 + 0.1 * jax.random.normal(next(keys), (c,), jnp.float32)
        beta = 0.05 * jax.random.normal(next(keys), (c,), jnp.float32)
        mean = 0.05 * jax.random.normal(next(keys), (c,), jnp.float32)
        var = 1.0 + 0.1 * jnp.abs(jax.random.normal(next(keys), (c,), jnp.float32))
        return (gamma, beta, mean, var)

    p = {
        "c1_w": rnd((32, 4, 8, 8)),  "c1_b": rnd((32,)), "bn1": bn(32),
        "c2_w": rnd((24, 32, 4, 4)), "c2_b": rnd((24,)),
        "c3_w": rnd((24, 24, 4, 4)), "c3_b": rnd((24,)), "bn2": bn(24),
        "c4_w": rnd((8, 24, 2, 2)),  "c4_b": rnd((8,)),  "bn3": bn(8),
        "a1_w": rnd((80, 16)),  "a1_b": rnd((80,)),
        "a2_w": rnd((output_size, 80)), "a2_b": rnd((output_size,)),
        "v1_w": rnd((80, 16)),  "v1_b": rnd((80,)),
        "v2_w": rnd((1, 80)),   "v2_b": rnd((1,)),
    }
    return p


if __name__ == "__main__":
    OUTPUT_SIZE = 6   # Pong action space
    BATCH = 2

    key = jax.random.PRNGKey(0)
    k_params, k_x = jax.random.split(key)
    params = init_params(k_params, OUTPUT_SIZE)
    prep = prepare_kernel_params(params)     # one-time weight folding/expansion

    # The architecture hard-codes a (4, 64, 80) input (so the flattened
    # representation has 16 features, per Linear(in_features=16)).
    x = jax.random.normal(k_x, (BATCH, 4, 64, 80), jnp.float32)   # NCHW

    fwd = jax.jit(duel_cnn_forward)
    q = jax.block_until_ready(fwd(prep, x))
    assert q.shape == (BATCH, OUTPUT_SIZE), q.shape
    assert bool(jnp.all(jnp.isfinite(q)))
    print("KERNEL_OK")
</pallas_src>

<mosaic_0001>
module attributes {stable_mosaic.version = 11 : i64} {
  func.func @_duelcnn_kernel(%arg0: memref<32x1280xf32, #tpu.memory_space<vmem>>, %arg1: memref<2560x640xbf16, #tpu.memory_space<vmem>>, %arg2: memref<1x640xf32, #tpu.memory_space<vmem>>, %arg3: memref<2560x256xbf16, #tpu.memory_space<vmem>>, %arg4: memref<1x256xf32, #tpu.memory_space<vmem>>, %arg5: memref<1024x128xbf16, #tpu.memory_space<vmem>>, %arg6: memref<1x128xf32, #tpu.memory_space<vmem>>, %arg7: memref<256x16xbf16, #tpu.memory_space<vmem>>, %arg8: memref<1x16xf32, #tpu.memory_space<vmem>>, %arg9: memref<16x160xf32, #tpu.memory_space<vmem>>, %arg10: memref<1x160xf32, #tpu.memory_space<vmem>>, %arg11: memref<160x7xf32, #tpu.memory_space<vmem>>, %arg12: memref<1x7xf32, #tpu.memory_space<vmem>>, %arg13: memref<2x6xf32, #tpu.memory_space<vmem>>) attributes {dimension_semantics = [], scalar_prefetch = 0 : i64, scratch_operands = 0 : i64, tpu.core_type = #tpu.core_type<tc>} {
    %c0 = arith.constant 0 : index
    %c0_0 = arith.constant 0 : index
    %0 = vector.load %arg0[%c0, %c0_0] : memref<32x1280xf32, #tpu.memory_space<vmem>>, vector<16x1280xf32>
    %1 = vector.extract_strided_slice %0 {offsets = [0, 0], sizes = [15, 1280], strides = [1, 1]} : vector<16x1280xf32> to vector<15x1280xf32>
    %2 = vector.extract_strided_slice %0 {offsets = [1, 0], sizes = [15, 1280], strides = [1, 1]} : vector<16x1280xf32> to vector<15x1280xf32>
    %3 = tpu.concatenate %1, %2 in 1 : vector<15x1280xf32>, vector<15x1280xf32> -> vector<15x2560xf32>
    %c16 = arith.constant 16 : index
    %c0_1 = arith.constant 0 : index
    %4 = vector.load %arg0[%c16, %c0_1] : memref<32x1280xf32, #tpu.memory_space<vmem>>, vector<16x1280xf32>
    %5 = vector.extract_strided_slice %4 {offsets = [0, 0], sizes = [15, 1280], strides = [1, 1]} : vector<16x1280xf32> to vector<15x1280xf32>
    %6 = vector.extract_strided_slice %4 {offsets = [1, 0], sizes = [15, 1280], strides = [1, 1]} : vector<16x1280xf32> to vector<15x1280xf32>
    %7 = tpu.concatenate %5, %6 in 1 : vector<15x1280xf32>, vector<15x1280xf32> -> vector<15x2560xf32>
    %8 = tpu.concatenate %3, %7 in 0 : vector<15x2560xf32>, vector<15x2560xf32> -> vector<30x2560xf32>
    %c0_2 = arith.constant 0 : index
    %c0_3 = arith.constant 0 : index
    %9 = vector.load %arg1[%c0_2, %c0_3] : memref<2560x640xbf16, #tpu.memory_space<vmem>>, vector<2560x640xbf16>
    %10 = arith.truncf %8 : vector<30x2560xf32> to vector<30x2560xbf16>
    %cst = arith.constant dense<0.000000e+00> : vector<30x640xf32>
    %11 = tpu.matmul %10, %9, %cst {dimension_numbers = #tpu.dot_dimension_numbers<[1], [0], [0], [1], [0, 0, 1, 1], [], []>} : vector<30x2560xbf16>, vector<2560x640xbf16>, vector<30x640xf32> -> vector<30x640xf32>
    %c0_4 = arith.constant 0 : index
    %c0_5 = arith.constant 0 : index
    %12 = vector.load %arg2[%c0_4, %c0_5] : memref<1x640xf32, #tpu.memory_space<vmem>>, vector<1x640xf32>
    %13 = vector.broadcast %12 : vector<1x640xf32> to vector<30x640xf32>
    %14 = arith.addf %11, %13 : vector<30x640xf32>
    %15 = vector.extract_strided_slice %14 {offsets = [0, 0], sizes = [15, 640], strides = [1, 1]} : vector<30x640xf32> to vector<15x640xf32>
    %16 = vector.extract_strided_slice %15 {offsets = [0, 0], sizes = [1, 640], strides = [1, 1]} : vector<15x640xf32> to vector<1x640xf32>
    %17 = vector.extract_strided_slice %15 {offsets = [1, 0], sizes = [1, 640], strides = [1, 1]} : vector<15x640xf32> to vector<1x640xf32>
    %18 = vector.extract_strided_slice %15 {offsets = [2, 0], sizes = [1, 640], strides = [1, 1]} : vector<15x640xf32> to vector<1x640xf32>
    %19 = vector.extract_strided_slice %15 {offsets = [3, 0], sizes = [1, 640], strides = [1, 1]} : vector<15x640xf32> to vector<1x640xf32>
    %20 = tpu.concatenate %16, %17, %18, %19 in 1 : vector<1x640xf32>, vector<1x640xf32>, vector<1x640xf32>, vector<1x640xf32> -> vector<1x2560xf32>
    %21 = vector.extract_strided_slice %15 {offsets = [2, 0], sizes = [1, 640], strides = [1, 1]} : vector<15x640xf32> to vector<1x640xf32>
    %22 = vector.extract_strided_slice %15 {offsets = [3, 0], sizes = [1, 640], strides = [1, 1]} : vector<15x640xf32> to vector<1x640xf32>
    %23 = vector.extract_strided_slice %15 {offsets = [4, 0], sizes = [1, 640], strides = [1, 1]} : vector<15x640xf32> to vector<1x640xf32>
    %24 = vector.extract_strided_slice %15 {offsets = [5, 0], sizes = [1, 640], strides = [1, 1]} : vector<15x640xf32> to vector<1x640xf32>
    %25 = tpu.concatenate %21, %22, %23, %24 in 1 : vector<1x640xf32>, vector<1x640xf32>, vector<1x640xf32>, vector<1x640xf32> -> vector<1x2560xf32>
    %26 = vector.extract_strided_slice %15 {offsets = [4, 0], sizes = [1, 640], strides = [1, 1]} : vector<15x640xf32> to vector<1x640xf32>
    %27 = vector.extract_strided_slice %15 {offsets = [5, 0], sizes = [1, 640], strides = [1, 1]} : vector<15x640xf32> to vector<1x640xf32>
    %28 = vector.extract_strided_slice %15 {offsets = [6, 0], sizes = [1, 640], strides = [1, 1]} : vector<15x640xf32> to vector<1x640xf32>
    %29 = vector.extract_strided_slice %15 {offsets = [7, 0], sizes = [1, 640], strides = [1, 1]} : vector<15x640xf32> to vector<1x640xf32>
    %30 = tpu.concatenate %26, %27, %28, %29 in 1 : vector<1x640xf32>, vector<1x640xf32>, vector<1x640xf32>, vector<1x640xf32> -> vector<1x2560xf32>
    %31 = vector.extract_strided_slice %15 {offsets = [6, 0], sizes = [1, 640], strides = [1, 1]} : vector<15x640xf32> to vector<1x640xf32>
    %32 = vector.extract_strided_slice %15 {offsets = [7, 0], sizes = [1, 640], strides = [1, 1]} : vector<15x640xf32> to vector<1x640xf32>
    %33 = vector.extract_strided_slice %15 {offsets = [8, 0], sizes = [1, 640], strides = [1, 1]} : vector<15x640xf32> to vector<1x640xf32>
    %34 = vector.extract_strided_slice %15 {offsets = [9, 0], sizes = [1, 640], strides = [1, 1]} : vector<15x640xf32> to vector<1x640xf32>
    %35 = tpu.concatenate %31, %32, %33, %34 in 1 : vector<1x640xf32>, vector<1x640xf32>, vector<1x640xf32>, vector<1x640xf32> -> vector<1x2560xf32>
    %36 = vector.extract_strided_slice %15 {offsets = [8, 0], sizes = [1, 640], strides = [1, 1]} : vector<15x640xf32> to vector<1x640xf32>
    %37 = vector.extract_strided_slice %15 {offsets = [9, 0], sizes = [1, 640], strides = [1, 1]} : vector<15x640xf32> to vector<1x640xf32>
    %38 = vector.extract_strided_slice %15 {offsets = [10, 0], sizes = [1, 640], strides = [1, 1]} : vector<15x640xf32> to vector<1x640xf32>
    %39 = vector.extract_strided_slice %15 {offsets = [11, 0], sizes = [1, 640], strides = [1, 1]} : vector<15x640xf32> to vector<1x640xf32>
    %40 = tpu.concatenate %36, %37, %38, %39 in 1 : vector<1x640xf32>, vector<1x640xf32>, vector<1x640xf32>, vector<1x640xf32> -> vector<1x2560xf32>
    %41 = vector.extract_strided_slice %15 {offsets = [10, 0], sizes = [1, 640], strides = [1, 1]} : vector<15x640xf32> to vector<1x640xf32>
    %42 = vector.extract_strided_slice %15 {offsets = [11, 0], sizes = [1, 640], strides = [1, 1]} : vector<15x640xf32> to vector<1x640xf32>
    %43 = vector.extract_strided_slice %15 {offsets = [12, 0], sizes = [1, 640], strides = [1, 1]} : vector<15x640xf32> to vector<1x640xf32>
    %44 = vector.extract_strided_slice %15 {offsets = [13, 0], sizes = [1, 640], strides = [1, 1]} : vector<15x640xf32> to vector<1x640xf32>
    %45 = tpu.concatenate %41, %42, %43, %44 in 1 : vector<1x640xf32>, vector<1x640xf32>, vector<1x640xf32>, vector<1x640xf32> -> vector<1x2560xf32>
    %46 = tpu.concatenate %20, %25, %30, %35, %40, %45 in 0 : vector<1x2560xf32>, vector<1x2560xf32>, vector<1x2560xf32>, vector<1x2560xf32>, vector<1x2560xf32>, vector<1x2560xf32> -> vector<6x2560xf32>
    %47 = vector.extract_strided_slice %14 {offsets = [15, 0], sizes = [15, 640], strides = [1, 1]} : vector<30x640xf32> to vector<15x640xf32>
    %48 = vector.extract_strided_slice %47 {offsets = [0, 0], sizes = [1, 640], strides = [1, 1]} : vector<15x640xf32> to vector<1x640xf32>
    %49 = vector.extract_strided_slice %47 {offsets = [1, 0], sizes = [1, 640], strides = [1, 1]} : vector<15x640xf32> to vector<1x640xf32>
    %50 = vector.extract_strided_slice %47 {offsets = [2, 0], sizes = [1, 640], strides = [1, 1]} : vector<15x640xf32> to vector<1x640xf32>
    %51 = vector.extract_strided_slice %47 {offsets = [3, 0], sizes = [1, 640], strides = [1, 1]} : vector<15x640xf32> to vector<1x640xf32>
    %52 = tpu.concatenate %48, %49, %50, %51 in 1 : vector<1x640xf32>, vector<1x640xf32>, vector<1x640xf32>, vector<1x640xf32> -> vector<1x2560xf32>
    %53 = vector.extract_strided_slice %47 {offsets = [2, 0], sizes = [1, 640], strides = [1, 1]} : vector<15x640xf32> to vector<1x640xf32>
    %54 = vector.extract_strided_slice %47 {offsets = [3, 0], sizes = [1, 640], strides = [1, 1]} : vector<15x640xf32> to vector<1x640xf32>
    %55 = vector.extract_strided_slice %47 {offsets = [4, 0], sizes = [1, 640], strides = [1, 1]} : vector<15x640xf32> to vector<1x640xf32>
    %56 = vector.extract_strided_slice %47 {offsets = [5, 0], sizes = [1, 640], strides = [1, 1]} : vector<15x640xf32> to vector<1x640xf32>
    %57 = tpu.concatenate %53, %54, %55, %56 in 1 : vector<1x640xf32>, vector<1x640xf32>, vector<1x640xf32>, vector<1x640xf32> -> vector<1x2560xf32>
    %58 = vector.extract_strided_slice %47 {offsets = [4, 0], sizes = [1, 640], strides = [1, 1]} : vector<15x640xf32> to vector<1x640xf32>
    %59 = vector.extract_strided_slice %47 {offsets = [5, 0], sizes = [1, 640], strides = [1, 1]} : vector<15x640xf32> to vector<1x640xf32>
    %60 = vector.extract_strided_slice %47 {offsets = [6, 0], sizes = [1, 640], strides = [1, 1]} : vector<15x640xf32> to vector<1x640xf32>
    %61 = vector.extract_strided_slice %47 {offsets = [7, 0], sizes = [1, 640], strides = [1, 1]} : vector<15x640xf32> to vector<1x640xf32>
    %62 = tpu.concatenate %58, %59, %60, %61 in 1 : vector<1x640xf32>, vector<1x640xf32>, vector<1x640xf32>, vector<1x640xf32> -> vector<1x2560xf32>
    %63 = vector.extract_strided_slice %47 {offsets = [6, 0], sizes = [1, 640], strides = [1, 1]} : vector<15x640xf32> to vector<1x640xf32>
    %64 = vector.extract_strided_slice %47 {offsets = [7, 0], sizes = [1, 640], strides = [1, 1]} : vector<15x640xf32> to vector<1x640xf32>
    %65 = vector.extract_strided_slice %47 {offsets = [8, 0], sizes = [1, 640], strides = [1, 1]} : vector<15x640xf32> to vector<1x640xf32>
    %66 = vector.extract_strided_slice %47 {offsets = [9, 0], sizes = [1, 640], strides = [1, 1]} : vector<15x640xf32> to vector<1x640xf32>
    %67 = tpu.concatenate %63, %64, %65, %66 in 1 : vector<1x640xf32>, vector<1x640xf32>, vector<1x640xf32>, vector<1x640xf32> -> vector<1x2560xf32>
    %68 = vector.extract_strided_slice %47 {offsets = [8, 0], sizes = [1, 640], strides = [1, 1]} : vector<15x640xf32> to vector<1x640xf32>
    %69 = vector.extract_strided_slice %47 {offsets = [9, 0], sizes = [1, 640], strides = [1, 1]} : vector<15x640xf32> to vector<1x640xf32>
    %70 = vector.extract_strided_slice %47 {offsets = [10, 0], sizes = [1, 640], strides = [1, 1]} : vector<15x640xf32> to vector<1x640xf32>
    %71 = vector.extract_strided_slice %47 {offsets = [11, 0], sizes = [1, 640], strides = [1, 1]} : vector<15x640xf32> to vector<1x640xf32>
    %72 = tpu.concatenate %68, %69, %70, %71 in 1 : vector<1x640xf32>, vector<1x640xf32>, vector<1x640xf32>, vector<1x640xf32> -> vector<1x2560xf32>
    %73 = vector.extract_strided_slice %47 {offsets = [10, 0], sizes = [1, 640], strides = [1, 1]} : vector<15x640xf32> to vector<1x640xf32>
    %74 = vector.extract_strided_slice %47 {offsets = [11, 0], sizes = [1, 640], strides = [1, 1]} : vector<15x640xf32> to vector<1x640xf32>
    %75 = vector.extract_strided_slice %47 {offsets = [12, 0], sizes = [1, 640], strides = [1, 1]} : vector<15x640xf32> to vector<1x640xf32>
    %76 = vector.extract_strided_slice %47 {offsets = [13, 0], sizes = [1, 640], strides = [1, 1]} : vector<15x640xf32> to vector<1x640xf32>
    %77 = tpu.concatenate %73, %74, %75, %76 in 1 : vector<1x640xf32>, vector<1x640xf32>, vector<1x640xf32>, vector<1x640xf32> -> vector<1x2560xf32>
    %78 = tpu.concatenate %52, %57, %62, %67, %72, %77 in 0 : vector<1x2560xf32>, vector<1x2560xf32>, vector<1x2560xf32>, vector<1x2560xf32>, vector<1x2560xf32>, vector<1x2560xf32> -> vector<6x2560xf32>
    %79 = tpu.concatenate %46, %78 in 0 : vector<6x2560xf32>, vector<6x2560xf32> -> vector<12x2560xf32>
    %c0_6 = arith.constant 0 : index
    %c0_7 = arith.constant 0 : index
    %80 = vector.load %arg3[%c0_6, %c0_7] : memref<2560x256xbf16, #tpu.memory_space<vmem>>, vector<2560x256xbf16>
    %81 = arith.truncf %79 : vector<12x2560xf32> to vector<12x2560xbf16>
    %cst_8 = arith.constant dense<0.000000e+00> : vector<12x256xf32>
    %82 = tpu.matmul %81, %80, %cst_8 {dimension_numbers = #tpu.dot_dimension_numbers<[1], [0], [0], [1], [0, 0, 1, 1], [], []>} : vector<12x2560xbf16>, vector<2560x256xbf16>, vector<12x256xf32> -> vector<12x256xf32>
    %c0_9 = arith.constant 0 : index
    %c0_10 = arith.constant 0 : index
    %83 = vector.load %arg4[%c0_9, %c0_10] : memref<1x256xf32, #tpu.memory_space<vmem>>, vector<1x256xf32>
    %84 = vector.broadcast %83 : vector<1x256xf32> to vector<12x256xf32>
    %85 = arith.addf %82, %84 : vector<12x256xf32>
    %86 = vector.extract_strided_slice %85 {offsets = [0, 0], sizes = [6, 256], strides = [1, 1]} : vector<12x256xf32> to vector<6x256xf32>
    %87 = vector.extract_strided_slice %86 {offsets = [0, 0], sizes = [1, 256], strides = [1, 1]} : vector<6x256xf32> to vector<1x256xf32>
    %88 = vector.extract_strided_slice %86 {offsets = [1, 0], sizes = [1, 256], strides = [1, 1]} : vector<6x256xf32> to vector<1x256xf32>
    %89 = vector.extract_strided_slice %86 {offsets = [2, 0], sizes = [1, 256], strides = [1, 1]} : vector<6x256xf32> to vector<1x256xf32>
    %90 = vector.extract_strided_slice %86 {offsets = [3, 0], sizes = [1, 256], strides = [1, 1]} : vector<6x256xf32> to vector<1x256xf32>
    %91 = tpu.concatenate %87, %88, %89, %90 in 1 : vector<1x256xf32>, vector<1x256xf32>, vector<1x256xf32>, vector<1x256xf32> -> vector<1x1024xf32>
    %92 = vector.extract_strided_slice %86 {offsets = [2, 0], sizes = [1, 256], strides = [1, 1]} : vector<6x256xf32> to vector<1x256xf32>
    %93 = vector.extract_strided_slice %86 {offsets = [3, 0], sizes = [1, 256], strides = [1, 1]} : vector<6x256xf32> to vector<1x256xf32>
    %94 = vector.extract_strided_slice %86 {offsets = [4, 0], sizes = [1, 256], strides = [1, 1]} : vector<6x256xf32> to vector<1x256xf32>
    %95 = vector.extract_strided_slice %86 {offsets = [5, 0], sizes = [1, 256], strides = [1, 1]} : vector<6x256xf32> to vector<1x256xf32>
    %96 = tpu.concatenate %92, %93, %94, %95 in 1 : vector<1x256xf32>, vector<1x256xf32>, vector<1x256xf32>, vector<1x256xf32> -> vector<1x1024xf32>
    %97 = tpu.concatenate %91, %96 in 0 : vector<1x1024xf32>, vector<1x1024xf32> -> vector<2x1024xf32>
    %98 = vector.extract_strided_slice %85 {offsets = [6, 0], sizes = [6, 256], strides = [1, 1]} : vector<12x256xf32> to vector<6x256xf32>
    %99 = vector.extract_strided_slice %98 {offsets = [0, 0], sizes = [1, 256], strides = [1, 1]} : vector<6x256xf32> to vector<1x256xf32>
    %100 = vector.extract_strided_slice %98 {offsets = [1, 0], sizes = [1, 256], strides = [1, 1]} : vector<6x256xf32> to vector<1x256xf32>
    %101 = vector.extract_strided_slice %98 {offsets = [2, 0], sizes = [1, 256], strides = [1, 1]} : vector<6x256xf32> to vector<1x256xf32>
    %102 = vector.extract_strided_slice %98 {offsets = [3, 0], sizes = [1, 256], strides = [1, 1]} : vector<6x256xf32> to vector<1x256xf32>
    %103 = tpu.concatenate %99, %100, %101, %102 in 1 : vector<1x256xf32>, vector<1x256xf32>, vector<1x256xf32>, vector<1x256xf32> -> vector<1x1024xf32>
    %104 = vector.extract_strided_slice %98 {offsets = [2, 0], sizes = [1, 256], strides = [1, 1]} : vector<6x256xf32> to vector<1x256xf32>
    %105 = vector.extract_strided_slice %98 {offsets = [3, 0], sizes = [1, 256], strides = [1, 1]} : vector<6x256xf32> to vector<1x256xf32>
    %106 = vector.extract_strided_slice %98 {offsets = [4, 0], sizes = [1, 256], strides = [1, 1]} : vector<6x256xf32> to vector<1x256xf32>
    %107 = vector.extract_strided_slice %98 {offsets = [5, 0], sizes = [1, 256], strides = [1, 1]} : vector<6x256xf32> to vector<1x256xf32>
    %108 = tpu.concatenate %104, %105, %106, %107 in 1 : vector<1x256xf32>, vector<1x256xf32>, vector<1x256xf32>, vector<1x256xf32> -> vector<1x1024xf32>
    %109 = tpu.concatenate %103, %108 in 0 : vector<1x1024xf32>, vector<1x1024xf32> -> vector<2x1024xf32>
    %110 = tpu.concatenate %97, %109 in 0 : vector<2x1024xf32>, vector<2x1024xf32> -> vector<4x1024xf32>
    %c0_11 = arith.constant 0 : index
    %c0_12 = arith.constant 0 : index
    %111 = vector.load %arg5[%c0_11, %c0_12] : memref<1024x128xbf16, #tpu.memory_space<vmem>>, vector<1024x128xbf16>
    %112 = arith.truncf %110 : vector<4x1024xf32> to vector<4x1024xbf16>
    %cst_13 = arith.constant dense<0.000000e+00> : vector<4x128xf32>
    %113 = tpu.matmul %112, %111, %cst_13 {dimension_numbers = #tpu.dot_dimension_numbers<[1], [0], [0], [1], [0, 0, 1, 1], [], []>} : vector<4x1024xbf16>, vector<1024x128xbf16>, vector<4x128xf32> -> vector<4x128xf32>
    %c0_14 = arith.constant 0 : index
    %c0_15 = arith.constant 0 : index
    %114 = vector.load %arg6[%c0_14, %c0_15] : memref<1x128xf32, #tpu.memory_space<vmem>>, vector<1x128xf32>
    %115 = vector.broadcast %114 : vector<1x128xf32> to vector<4x128xf32>
    %116 = arith.addf %113, %115 : vector<4x128xf32>
    %117 = vector.extract_strided_slice %116 {offsets = [0, 0], sizes = [2, 128], strides = [1, 1]} : vector<4x128xf32> to vector<2x128xf32>
    %118 = vector.extract_strided_slice %117 {offsets = [0, 0], sizes = [1, 128], strides = [1, 1]} : vector<2x128xf32> to vector<1x128xf32>
    %119 = vector.extract_strided_slice %117 {offsets = [1, 0], sizes = [1, 128], strides = [1, 1]} : vector<2x128xf32> to vector<1x128xf32>
    %120 = tpu.concatenate %118, %119 in 1 : vector<1x128xf32>, vector<1x128xf32> -> vector<1x256xf32>
    %121 = vector.extract_strided_slice %116 {offsets = [2, 0], sizes = [2, 128], strides = [1, 1]} : vector<4x128xf32> to vector<2x128xf32>
    %122 = vector.extract_strided_slice %121 {offsets = [0, 0], sizes = [1, 128], strides = [1, 1]} : vector<2x128xf32> to vector<1x128xf32>
    %123 = vector.extract_strided_slice %121 {offsets = [1, 0], sizes = [1, 128], strides = [1, 1]} : vector<2x128xf32> to vector<1x128xf32>
    %124 = tpu.concatenate %122, %123 in 1 : vector<1x128xf32>, vector<1x128xf32> -> vector<1x256xf32>
    %125 = tpu.concatenate %120, %124 in 0 : vector<1x256xf32>, vector<1x256xf32> -> vector<2x256xf32>
    %c0_16 = arith.constant 0 : index
    %c0_17 = arith.constant 0 : index
    %126 = vector.load %arg7[%c0_16, %c0_17] : memref<256x16xbf16, #tpu.memory_space<vmem>>, vector<256x16xbf16>
    %127 = arith.truncf %125 : vector<2x256xf32> to vector<2x256xbf16>
    %cst_18 = arith.constant dense<0.000000e+00> : vector<2x16xf32>
    %128 = tpu.matmul %127, %126, %cst_18 {dimension_numbers = #tpu.dot_dimension_numbers<[1], [0], [0], [1], [0, 0, 1, 1], [], []>} : vector<2x256xbf16>, vector<256x16xbf16>, vector<2x16xf32> -> vector<2x16xf32>
    %c0_19 = arith.constant 0 : index
    %c0_20 = arith.constant 0 : index
    %129 = vector.load %arg8[%c0_19, %c0_20] : memref<1x16xf32, #tpu.memory_space<vmem>>, vector<1x16xf32>
    %130 = vector.broadcast %129 : vector<1x16xf32> to vector<2x16xf32>
    %131 = arith.addf %128, %130 : vector<2x16xf32>
    %c0_21 = arith.constant 0 : index
    %c0_22 = arith.constant 0 : index
    %132 = vector.load %arg9[%c0_21, %c0_22] : memref<16x160xf32, #tpu.memory_space<vmem>>, vector<16x160xf32>
    %cst_23 = arith.constant dense<0.000000e+00> : vector<2x160xf32>
    %133 = tpu.matmul %131, %132, %cst_23 {dimension_numbers = #tpu.dot_dimension_numbers<[1], [0], [0], [1], [0, 0, 1, 1], [], []>} : vector<2x16xf32>, vector<16x160xf32>, vector<2x160xf32> -> vector<2x160xf32>
    %c0_24 = arith.constant 0 : index
    %c0_25 = arith.constant 0 : index
    %134 = vector.load %arg10[%c0_24, %c0_25] : memref<1x160xf32, #tpu.memory_space<vmem>>, vector<1x160xf32>
    %135 = vector.broadcast %134 : vector<1x160xf32> to vector<2x160xf32>
    %136 = arith.addf %133, %135 : vector<2x160xf32>
    %cst_26 = arith.constant 0.000000e+00 : f32
    %137 = vector.broadcast %cst_26 : f32 to vector<2x160xf32>
    %138 = arith.cmpf oge, %136, %137 : vector<2x160xf32>
    %cst_27 = arith.constant 0.00999999977 : f32
    %139 = vector.broadcast %cst_27 : f32 to vector<2x160xf32>
    %140 = arith.mulf %139, %136 : vector<2x160xf32>
    %141 = arith.select %138, %136, %140 : vector<2x160xi1>, vector<2x160xf32>
    %c0_28 = arith.constant 0 : index
    %c0_29 = arith.constant 0 : index
    %142 = vector.load %arg11[%c0_28, %c0_29] : memref<160x7xf32, #tpu.memory_space<vmem>>, vector<160x7xf32>
    %cst_30 = arith.constant dense<0.000000e+00> : vector<2x7xf32>
    %143 = tpu.matmul %141, %142, %cst_30 {dimension_numbers = #tpu.dot_dimension_numbers<[1], [0], [0], [1], [0, 0, 1, 1], [], []>} : vector<2x160xf32>, vector<160x7xf32>, vector<2x7xf32> -> vector<2x7xf32>
    %c0_31 = arith.constant 0 : index
    %c0_32 = arith.constant 0 : index
    %144 = vector.load %arg12[%c0_31, %c0_32] : memref<1x7xf32, #tpu.memory_space<vmem>>, vector<1x7xf32>
    %145 = vector.broadcast %144 : vector<1x7xf32> to vector<2x7xf32>
    %146 = arith.addf %143, %145 : vector<2x7xf32>
    %147 = vector.extract_strided_slice %146 {offsets = [0, 0], sizes = [2, 6], strides = [1, 1]} : vector<2x7xf32> to vector<2x6xf32>
    %148 = vector.extract_strided_slice %146 {offsets = [0, 6], sizes = [2, 1], strides = [1, 1]} : vector<2x7xf32> to vector<2x1xf32>
    %149 = vector.shape_cast %147 : vector<2x6xf32> to vector<1x2x6xf32>
    %cst_33 = arith.constant dense<0.000000e+00> : vector<1xf32>
    %150 = vector.multi_reduction <add>, %149, %cst_33 [1, 2] : vector<1x2x6xf32> to vector<1xf32>
    %151 = vector.shape_cast %150 : vector<1xf32> to vector<1x1x1xf32>
    %152 = vector.extract %151[0, 0, 0] : f32 from vector<1x1x1xf32>
    %cst_34 = arith.constant 1.200000e+01 : f32
    %153 = arith.divf %152, %cst_34 : f32
    %154 = vector.broadcast %153 : f32 to vector<2x6xf32>
    %155 = arith.subf %147, %154 : vector<2x6xf32>
    %156 = vector.broadcast %148 : vector<2x1xf32> to vector<2x6xf32>
    %157 = arith.addf %156, %155 : vector<2x6xf32>
    %c0_35 = arith.constant 0 : index
    %c0_36 = arith.constant 0 : index
    %158 = vector.load %arg13[%c0_35, %c0_36] : memref<2x6xf32, #tpu.memory_space<vmem>>, vector<2x6xf32>
    tpu.vector_store %arg13[%c0_35, %c0_36], %157 {strides = array<i32>} : memref<2x6xf32, #tpu.memory_space<vmem>>, vector<2x6xf32>,
    return
  }
}

</mosaic_0001>

<llo_original>
// kernel: duel_cnn_forward.1
$region0: #{duel_cnn_forward.1}
  #allocation0 [shape = 'u32[]', space=smem, size = 0x4, offset = 0x4, fixed_abs, tag = 'smem constant byte address 0x4 - core index']
  #allocation1 [shape = 'u32[144,128]{1,0:T(1,128)}', space=vmem, size = 0x12000, scoped, tag = 'internal scratch']
  %s0 = inlined_call_operand.vmem [shape: f32[32,1280], index: 0, kind: input, shape index: {}]
  %s1 = inlined_call_operand.vmem [shape: bf16[2560,640], index: 1, kind: input, shape index: {}]
  %s2 = inlined_call_operand.vmem [shape: f32[1,640], index: 2, kind: input, shape index: {}]
  %s3 = inlined_call_operand.vmem [shape: bf16[2560,256], index: 3, kind: input, shape index: {}]
  %s4 = inlined_call_operand.vmem [shape: f32[1,256], index: 4, kind: input, shape index: {}]
  %s5 = inlined_call_operand.vmem [shape: bf16[1024,128], index: 5, kind: input, shape index: {}]
  %s6 = inlined_call_operand.vmem [shape: f32[1,128], index: 6, kind: input, shape index: {}]
  %s7 = inlined_call_operand.vmem [shape: bf16[256,16], index: 7, kind: input, shape index: {}]
  %s8 = inlined_call_operand.vmem [shape: f32[1,16], index: 8, kind: input, shape index: {}]
  %s9 = inlined_call_operand.vmem [shape: f32[16,160], index: 9, kind: input, shape index: {}]
  %s10 = inlined_call_operand.vmem [shape: f32[1,160], index: 10, kind: input, shape index: {}]
  %s11 = inlined_call_operand.vmem [shape: f32[160,7], index: 11, kind: input, shape index: {}]
  %s12 = inlined_call_operand.vmem [shape: f32[1,7], index: 12, kind: input, shape index: {}]
  %s13 = inlined_call_operand.hbm [shape: f32[2,6], index: 13, kind: output, shape index: {}]
  %s14 = sld [smem:[#allocation0]]
  $region62: #{duel_cnn_forward.1} parent=0
    _
  %s16 = ssub.s32 1, %s14
  %s17 = scalar_select 0, %s16, %s14
  $region1: #{duel_cnn_forward.1} parent=0
    #allocation2 [shape = 'u8[1024]{0}', space=vmem, size = 0x400, scoped, tag = 'output window, operand 0, single buffered']
    #allocation3 [shape = 's32[1]{0}', space=sflag, size = 0x4, scoped, tag = 'scoped memory for duel_cnn_forward.1']
    %18 = vsyncpa [#allocation3], 0
    // Predicated region
    $region2: #{duel_cnn_forward.1} parent=1 // pred_check
      _
    $region3: #{duel_cnn_forward.1} parent=1 // pred_check_branch
      %20 = sbr.rel (0) target = $region5
    $region4: #{duel_cnn_forward.1} parent=1 // pred_region
      _
    $region5: #{duel_cnn_forward.1} parent=1 // pred_fallthru
      _
    // Predicated region
    $region6: #{duel_cnn_forward.1} parent=1 // pred_check
      _
    $region7: #{duel_cnn_forward.1} parent=1 // pred_check_branch
      %22 = sbr.rel (0) target = $region9
    $region8: #{duel_cnn_forward.1} parent=1 // pred_region
      _
    $region9: #{duel_cnn_forward.1} parent=1 // pred_fallthru
      _
    // Predicated region
    $region10: #{duel_cnn_forward.1} parent=1 // pred_check
      _
    $region11: #{duel_cnn_forward.1} parent=1 // pred_check_branch
      %24 = sbr.rel (0) target = $region13
    $region12: #{duel_cnn_forward.1} parent=1 // pred_region
      _
    $region13: #{duel_cnn_forward.1} parent=1 // pred_fallthru
      _
    // Predicated region
    $region14: #{duel_cnn_forward.1} parent=1 // pred_check
      _
    $region15: #{duel_cnn_forward.1} parent=1 // pred_check_branch
      %26 = sbr.rel (0) target = $region17
    $region16: #{duel_cnn_forward.1} parent=1 // pred_region
      _
    $region17: #{duel_cnn_forward.1} parent=1 // pred_fallthru
      _
    // Predicated region
    $region18: #{duel_cnn_forward.1} parent=1 // pred_check
      _
    $region19: #{duel_cnn_forward.1} parent=1 // pred_check_branch
      %28 = sbr.rel (0) target = $region21
    $region20: #{duel_cnn_forward.1} parent=1 // pred_region
      _
    $region21: #{duel_cnn_forward.1} parent=1 // pred_fallthru
      _
    // Predicated region
    $region22: #{duel_cnn_forward.1} parent=1 // pred_check
      _
    $region23: #{duel_cnn_forward.1} parent=1 // pred_check_branch
      %30 = sbr.rel (0) target = $region25
    $region24: #{duel_cnn_forward.1} parent=1 // pred_region
      _
    $region25: #{duel_cnn_forward.1} parent=1 // pred_fallthru
      _
    // Predicated region
    $region26: #{duel_cnn_forward.1} parent=1 // pred_check
      _
    $region27: #{duel_cnn_forward.1} parent=1 // pred_check_branch
      %32 = sbr.rel (0) target = $region29
    $region28: #{duel_cnn_forward.1} parent=1 // pred_region
      _
    $region29: #{duel_cnn_forward.1} parent=1 // pred_fallthru
      _
    // Predicated region
    $region30: #{duel_cnn_forward.1} parent=1 // pred_check
      _
    $region31: #{duel_cnn_forward.1} parent=1 // pred_check_branch
      %34 = sbr.rel (0) target = $region33
    $region32: #{duel_cnn_forward.1} parent=1 // pred_region
      _
    $region33: #{duel_cnn_forward.1} parent=1 // pred_fallthru
      _
    // Predicated region
    $region34: #{duel_cnn_forward.1} parent=1 // pred_check
      _
    $region35: #{duel_cnn_forward.1} parent=1 // pred_check_branch
      %36 = sbr.rel (0) target = $region37
    $region36: #{duel_cnn_forward.1} parent=1 // pred_region
      _
    $region37: #{duel_cnn_forward.1} parent=1 // pred_fallthru
      _
    // Predicated region
    $region38: #{duel_cnn_forward.1} parent=1 // pred_check
      _
    $region39: #{duel_cnn_forward.1} parent=1 // pred_check_branch
      %38 = sbr.rel (0) target = $region41
    $region40: #{duel_cnn_forward.1} parent=1 // pred_region
      _
    $region41: #{duel_cnn_forward.1} parent=1 // pred_fallthru
      _
    // Predicated region
    $region42: #{duel_cnn_forward.1} parent=1 // pred_check
      _
    $region43: #{duel_cnn_forward.1} parent=1 // pred_check_branch
      %40 = sbr.rel (0) target = $region45
    $region44: #{duel_cnn_forward.1} parent=1 // pred_region
      _
    $region45: #{duel_cnn_forward.1} parent=1 // pred_fallthru
      _
    // Predicated region
    $region46: #{duel_cnn_forward.1} parent=1 // pred_check
      _
    $region47: #{duel_cnn_forward.1} parent=1 // pred_check_branch
      %42 = sbr.rel (0) target = $region49
    $region48: #{duel_cnn_forward.1} parent=1 // pred_region
      _
    $region49: #{duel_cnn_forward.1} parent=1 // pred_fallthru
      _
    // Predicated region
    $region50: #{duel_cnn_forward.1} parent=1 // pred_check
      _
    $region51: #{duel_cnn_forward.1} parent=1 // pred_check_branch
      %44 = sbr.rel (0) target = $region53
    $region52: #{duel_cnn_forward.1} parent=1 // pred_region
      _
    $region53: #{duel_cnn_forward.1} parent=1 // pred_fallthru
      _
    %v46 = vld [vmem:[%s0] sm:$0xff]
    %v47 = vld [vmem:[%s0 + $0x8] sm:$0xff]
    %v48 = vld [vmem:[%s0 + $0x10] sm:$0xff]
    %v49 = vld [vmem:[%s0 + $0x18] sm:$0xff]
    %v50 = vld [vmem:[%s0 + $0x20] sm:$0xff]
    %v51 = vld [vmem:[%s0 + $0x28] sm:$0xff]
    %v52 = vld [vmem:[%s0 + $0x30] sm:$0xff]
    %v53 = vld [vmem:[%s0 + $0x38] sm:$0xff]
    %v54 = vld [vmem:[%s0 + $0x40] sm:$0xff]
    %v55 = vld [vmem:[%s0 + $0x48] sm:$0xff]
    %v56 = vld [vmem:[%s0 + $0x50] sm:$0xff]
    %v57 = vld [vmem:[%s0 + $0x58] sm:$0xff]
    %v58 = vld [vmem:[%s0 + $0x60] sm:$0xff]
    %v59 = vld [vmem:[%s0 + $0x68] sm:$0xff]
    %v60 = vld [vmem:[%s0 + $0x70] sm:$0xff]
    %v61 = vld [vmem:[%s0 + $0x78] sm:$0xff]
    %v62 = vld [vmem:[%s0 + $0x80] sm:$0xff]
    %v63 = vld [vmem:[%s0 + $0x88] sm:$0xff]
    %v64 = vld [vmem:[%s0 + $0x90] sm:$0xff]
    %v65 = vld [vmem:[%s0 + $0x98] sm:$0xff]
    %vm86 = vcmask 1046528
    %v87 = vrot.slane %v46, 1
    %v88 = vrot.slane %v56, 1
    %v89 = vsel %vm86, %v87, %v88
    %v90 = vrot.slane %v47, 1
    %v91 = vrot.slane %v57, 1
    %v92 = vsel %vm86, %v90, %v91
    %v93 = vrot.slane %v48, 1
    %v94 = vrot.slane %v58, 1
    %v95 = vsel %vm86, %v93, %v94
    %v96 = vrot.slane %v49, 1
    %v97 = vrot.slane %v59, 1
    %v98 = vsel %vm86, %v96, %v97
    %v99 = vrot.slane %v50, 1
    %v100 = vrot.slane %v60, 1
    %v101 = vsel %vm86, %v99, %v100
    %v102 = vrot.slane %v51, 1
    %v103 = vrot.slane %v61, 1
    %v104 = vsel %vm86, %v102, %v103
    %v105 = vrot.slane %v52, 1
    %v106 = vrot.slane %v62, 1
    %v107 = vsel %vm86, %v105, %v106
    %v108 = vrot.slane %v53, 1
    %v109 = vrot.slane %v63, 1
    %v110 = vsel %vm86, %v108, %v109
    %v111 = vrot.slane %v54, 1
    %v112 = vrot.slane %v64, 1
    %v113 = vsel %vm86, %v111, %v112
    %v114 = vrot.slane %v55, 1
    %v115 = vrot.slane %v65, 1
    %v116 = vsel %vm86, %v114, %v115
    %v137 = vld [vmem:[%s0 + $0xa0] sm:$0xff]
    %v138 = vld [vmem:[%s0 + $0xa8] sm:$0xff]
    %v139 = vld [vmem:[%s0 + $0xb0] sm:$0xff]
    %v140 = vld [vmem:[%s0 + $0xb8] sm:$0xff]
    %v141 = vld [vmem:[%s0 + $0xc0] sm:$0xff]
    %v142 = vld [vmem:[%s0 + $0xc8] sm:$0xff]
    %v143 = vld [vmem:[%s0 + $0xd0] sm:$0xff]
    %v144 = vld [vmem:[%s0 + $0xd8] sm:$0xff]
    %v145 = vld [vmem:[%s0 + $0xe0] sm:$0xff]
    %v146 = vld [vmem:[%s0 + $0xe8] sm:$0xff]
    %v147 = vld [vmem:[%s0 + $0xf0] sm:$0xff]
    %v148 = vld [vmem:[%s0 + $0xf8] sm:$0xff]
    %v149 = vld [vmem:[%s0 + $0x100] sm:$0xff]
    %v150 = vld [vmem:[%s0 + $0x108] sm:$0xff]
    %v151 = vld [vmem:[%s0 + $0x110] sm:$0xff]
    %v152 = vld [vmem:[%s0 + $0x118] sm:$0xff]
    %v153 = vld [vmem:[%s0 + $0x120] sm:$0xff]
    %v154 = vld [vmem:[%s0 + $0x128] sm:$0xff]
    %v155 = vld [vmem:[%s0 + $0x130] sm:$0xff]
    %v156 = vld [vmem:[%s0 + $0x138] sm:$0xff]
    %v177 = vrot.slane %v137, 1
    %v178 = vrot.slane %v147, 1
    %v179 = vsel %vm86, %v177, %v178
    %v180 = vrot.slane %v138, 1
    %v181 = vrot.slane %v148, 1
    %v182 = vsel %vm86, %v180, %v181
    %v183 = vrot.slane %v139, 1
    %v184 = vrot.slane %v149, 1
    %v185 = vsel %vm86, %v183, %v184
    %v186 = vrot.slane %v140, 1
    %v187 = vrot.slane %v150, 1
    %v188 = vsel %vm86, %v186, %v187
    %v189 = vrot.slane %v141, 1
    %v190 = vrot.slane %v151, 1
    %v191 = vsel %vm86, %v189, %v190
    %v192 = vrot.slane %v142, 1
    %v193 = vrot.slane %v152, 1
    %v194 = vsel %vm86, %v192, %v193
    %v195 = vrot.slane %v143, 1
    %v196 = vrot.slane %v153, 1
    %v197 = vsel %vm86, %v195, %v196
    %v198 = vrot.slane %v144, 1
    %v199 = vrot.slane %v154, 1
    %v200 = vsel %vm86, %v198, %v199
    %v201 = vrot.slane %v145, 1
    %v202 = vrot.slane %v155, 1
    %v203 = vsel %vm86, %v201, %v202
    %v204 = vrot.slane %v146, 1
    %v205 = vrot.slane %v156, 1
    %v206 = vsel %vm86, %v204, %v205
    %v207 = vrot.slane %v179, 1
    %v208 = vrot.slane %v182, 1
    %v209 = vrot.slane %v185, 1
    %v210 = vrot.slane %v188, 1
    %v211 = vrot.slane %v191, 1
    %v212 = vrot.slane %v194, 1
    %v213 = vrot.slane %v197, 1
    %v214 = vrot.slane %v200, 1
    %v215 = vrot.slane %v203, 1
    %v216 = vrot.slane %v206, 1
    %v217 = vrot.slane %v178, 1
    %v218 = vsel %vm86, %v207, %v217
    %v219 = vrot.slane %v181, 1
    %v220 = vsel %vm86, %v208, %v219
    %v221 = vrot.slane %v184, 1
    %v222 = vsel %vm86, %v209, %v221
    %v223 = vrot.slane %v187, 1
    %v224 = vsel %vm86, %v210, %v223
    %v225 = vrot.slane %v190, 1
    %v226 = vsel %vm86, %v211, %v225
    %v227 = vrot.slane %v193, 1
    %v228 = vsel %vm86, %v212, %v227
    %v229 = vrot.slane %v196, 1
    %v230 = vsel %vm86, %v213, %v229
    %v231 = vrot.slane %v199, 1
    %v232 = vsel %vm86, %v214, %v231
    %v233 = vrot.slane %v202, 1
    %v234 = vsel %vm86, %v215, %v233
    %v235 = vrot.slane %v205, 1
    %v236 = vsel %vm86, %v216, %v235
    %v297 = vsel %vm86, %v56, %v177
    %v298 = vsel %vm86, %v57, %v180
    %v299 = vsel %vm86, %v58, %v183
    %v300 = vsel %vm86, %v59, %v186
    %v301 = vsel %vm86, %v60, %v189
    %v302 = vsel %vm86, %v61, %v192
    %v303 = vsel %vm86, %v62, %v195
    %v304 = vsel %vm86, %v63, %v198
    %v305 = vsel %vm86, %v64, %v201
    %v306 = vsel %vm86, %v65, %v204
    %v307 = vsel %vm86, %v88, %v207
    %v308 = vsel %vm86, %v91, %v208
    %v309 = vsel %vm86, %v94, %v209
    %v310 = vsel %vm86, %v97, %v210
    %v311 = vsel %vm86, %v100, %v211
    %v312 = vsel %vm86, %v103, %v212
    %v313 = vsel %vm86, %v106, %v213
    %v314 = vsel %vm86, %v109, %v214
    %v315 = vsel %vm86, %v112, %v215
    %v316 = vsel %vm86, %v115, %v216
    %v317 = vld [vmem:[%s1] sm:$0xff]
    %v318 = vld [vmem:[%s1 + $0x8] sm:$0xff]
    %v319 = vld [vmem:[%s1 + $0x10] sm:$0xf]
    %v320 = vld [vmem:[%s1 + $0x14] sm:$0xff]
    %v321 = vld [vmem:[%s1 + $0x1c] sm:$0xff]
    %v322 = vld [vmem:[%s1 + $0x24] sm:$0xf]
    %v323 = vld [vmem:[%s1 + $0x28] sm:$0xff]
    %v324 = vld [vmem:[%s1 + $0x30] sm:$0xff]
    %v325 = vld [vmem:[%s1 + $0x38] sm:$0xf]
    %v326 = vld [vmem:[%s1 + $0x3c] sm:$0xff]
    %v327 = vld [vmem:[%s1 + $0x44] sm:$0xff]
    %v328 = vld [vmem:[%s1 + $0x4c] sm:$0xf]
    %v329 = vld [vmem:[%s1 + $0x50] sm:$0xff]
    %v330 = vld [vmem:[%s1 + $0x58] sm:$0xff]
    %v331 = vld [vmem:[%s1 + $0x60] sm:$0xf]
    %v332 = vld [vmem:[%s1 + $0x64] sm:$0xff]
    %v333 = vld [vmem:[%s1 + $0x6c] sm:$0xff]
    %v334 = vld [vmem:[%s1 + $0x74] sm:$0xf]
    %v335 = vld [vmem:[%s1 + $0x78] sm:$0xff]
    %v336 = vld [vmem:[%s1 + $0x80] sm:$0xff]
    %v337 = vld [vmem:[%s1 + $0x88] sm:$0xf]
    %v338 = vld [vmem:[%s1 + $0x8c] sm:$0xff]
    %v339 = vld [vmem:[%s1 + $0x94] sm:$0xff]
    %v340 = vld [vmem:[%s1 + $0x9c] sm:$0xf]
    %v341 = vld [vmem:[%s1 + $0xa0] sm:$0xff]
    %v342 = vld [vmem:[%s1 + $0xa8] sm:$0xff]
    %v343 = vld [vmem:[%s1 + $0xb0] sm:$0xf]
    %v344 = vld [vmem:[%s1 + $0xb4] sm:$0xff]
    %v345 = vld [vmem:[%s1 + $0xbc] sm:$0xff]
    %v346 = vld [vmem:[%s1 + $0xc4] sm:$0xf]
    %v347 = vld [vmem:[%s1 + $0xc8] sm:$0xff]
    %v348 = vld [vmem:[%s1 + $0xd0] sm:$0xff]
    %v349 = vld [vmem:[%s1 + $0xd8] sm:$0xf]
    %v350 = vld [vmem:[%s1 + $0xdc] sm:$0xff]
    %v351 = vld [vmem:[%s1 + $0xe4] sm:$0xff]
    %v352 = vld [vmem:[%s1 + $0xec] sm:$0xf]
    %v353 = vld [vmem:[%s1 + $0xf0] sm:$0xff]
    %v354 = vld [vmem:[%s1 + $0xf8] sm:$0xff]
    %v355 = vld [vmem:[%s1 + $0x100] sm:$0xf]
    %v356 = vld [vmem:[%s1 + $0x104] sm:$0xff]
    %v357 = vld [vmem:[%s1 + $0x10c] sm:$0xff]
    %v358 = vld [vmem:[%s1 + $0x114] sm:$0xf]
    %v359 = vld [vmem:[%s1 + $0x118] sm:$0xff]
    %v360 = vld [vmem:[%s1 + $0x120] sm:$0xff]
    %v361 = vld [vmem:[%s1 + $0x128] sm:$0xf]
    %v362 = vld [vmem:[%s1 + $0x12c] sm:$0xff]
    %v363 = vld [vmem:[%s1 + $0x134] sm:$0xff]
    %v364 = vld [vmem:[%s1 + $0x13c] sm:$0xf]
    %v365 = vld [vmem:[%s1 + $0x140] sm:$0xff]
    %v366 = vld [vmem:[%s1 + $0x148] sm:$0xff]
    %v367 = vld [vmem:[%s1 + $0x150] sm:$0xf]
    %v368 = vld [vmem:[%s1 + $0x154] sm:$0xff]
    %v369 = vld [vmem:[%s1 + $0x15c] sm:$0xff]
    %v370 = vld [vmem:[%s1 + $0x164] sm:$0xf]
    %v371 = vld [vmem:[%s1 + $0x168] sm:$0xff]
    %v372 = vld [vmem:[%s1 + $0x170] sm:$0xff]
    %v373 = vld [vmem:[%s1 + $0x178] sm:$0xf]
    %v374 = vld [vmem:[%s1 + $0x17c] sm:$0xff]
    %v375 = vld [vmem:[%s1 + $0x184] sm:$0xff]
    %v376 = vld [vmem:[%s1 + $0x18c] sm:$0xf]
    %v377 = vld [vmem:[%s1 + $0x190] sm:$0xff]
    %v378 = vld [vmem:[%s1 + $0x198] sm:$0xff]
    %v379 = vld [vmem:[%s1 + $0x1a0] sm:$0xf]
    %v380 = vld [vmem:[%s1 + $0x1a4] sm:$0xff]
    %v381 = vld [vmem:[%s1 + $0x1ac] sm:$0xff]
    %v382 = vld [vmem:[%s1 + $0x1b4] sm:$0xf]
    %v383 = vld [vmem:[%s1 + $0x1b8] sm:$0xff]
    %v384 = vld [vmem:[%s1 + $0x1c0] sm:$0xff]
    %v385 = vld [vmem:[%s1 + $0x1c8] sm:$0xf]
    %v386 = vld [vmem:[%s1 + $0x1cc] sm:$0xff]
    %v387 = vld [vmem:[%s1 + $0x1d4] sm:$0xff]
    %v388 = vld [vmem:[%s1 + $0x1dc] sm:$0xf]
    %v389 = vld [vmem:[%s1 + $0x1e0] sm:$0xff]
    %v390 = vld [vmem:[%s1 + $0x1e8] sm:$0xff]
    %v391 = vld [vmem:[%s1 + $0x1f0] sm:$0xf]
    %v392 = vld [vmem:[%s1 + $0x1f4] sm:$0xff]
    %v393 = vld [vmem:[%s1 + $0x1fc] sm:$0xff]
    %v394 = vld [vmem:[%s1 + $0x204] sm:$0xf]
    %v395 = vld [vmem:[%s1 + $0x208] sm:$0xff]
    %v396 = vld [vmem:[%s1 + $0x210] sm:$0xff]
    %v397 = vld [vmem:[%s1 + $0x218] sm:$0xf]
    %v398 = vld [vmem:[%s1 + $0x21c] sm:$0xff]
    %v399 = vld [vmem:[%s1 + $0x224] sm:$0xff]
    %v400 = vld [vmem:[%s1 + $0x22c] sm:$0xf]
    %v401 = vld [vmem:[%s1 + $0x230] sm:$0xff]
    %v402 = vld [vmem:[%s1 + $0x238] sm:$0xff]
    %v403 = vld [vmem:[%s1 + $0x240] sm:$0xf]
    %v404 = vld [vmem:[%s1 + $0x244] sm:$0xff]
    %v405 = vld [vmem:[%s1 + $0x24c] sm:$0xff]
    %v406 = vld [vmem:[%s1 + $0x254] sm:$0xf]
    %v407 = vld [vmem:[%s1 + $0x258] sm:$0xff]
    %v408 = vld [vmem:[%s1 + $0x260] sm:$0xff]
    %v409 = vld [vmem:[%s1 + $0x268] sm:$0xf]
    %v410 = vld [vmem:[%s1 + $0x26c] sm:$0xff]
    %v411 = vld [vmem:[%s1 + $0x274] sm:$0xff]
    %v412 = vld [vmem:[%s1 + $0x27c] sm:$0xf]
    %v413 = vld [vmem:[%s1 + $0x280] sm:$0xff]
    %v414 = vld [vmem:[%s1 + $0x288] sm:$0xff]
    %v415 = vld [vmem:[%s1 + $0x290] sm:$0xf]
    %v416 = vld [vmem:[%s1 + $0x294] sm:$0xff]
    %v417 = vld [vmem:[%s1 + $0x29c] sm:$0xff]
    %v418 = vld [vmem:[%s1 + $0x2a4] sm:$0xf]
    %v419 = vld [vmem:[%s1 + $0x2a8] sm:$0xff]
    %v420 = vld [vmem:[%s1 + $0x2b0] sm:$0xff]
    %v421 = vld [vmem:[%s1 + $0x2b8] sm:$0xf]
    %v422 = vld [vmem:[%s1 + $0x2bc] sm:$0xff]
    %v423 = vld [vmem:[%s1 + $0x2c4] sm:$0xff]
    %v424 = vld [vmem:[%s1 + $0x2cc] sm:$0xf]
    %v425 = vld [vmem:[%s1 + $0x2d0] sm:$0xff]
    %v426 = vld [vmem:[%s1 + $0x2d8] sm:$0xff]
    %v427 = vld [vmem:[%s1 + $0x2e0] sm:$0xf]
    %v428 = vld [vmem:[%s1 + $0x2e4] sm:$0xff]
    %v429 = vld [vmem:[%s1 + $0x2ec] sm:$0xff]
    %v430 = vld [vmem:[%s1 + $0x2f4] sm:$0xf]
    %v431 = vld [vmem:[%s1 + $0x2f8] sm:$0xff]
    %v432 = vld [vmem:[%s1 + $0x300] sm:$0xff]
    %v433 = vld [vmem:[%s1 + $0x308] sm:$0xf]
    %v434 = vld [vmem:[%s1 + $0x30c] sm:$0xff]
    %v435 = vld [vmem:[%s1 + $0x314] sm:$0xff]
    %v436 = vld [vmem:[%s1 + $0x31c] sm:$0xf]
    %v437 = vld [vmem:[%s1 + $0x320] sm:$0xff]
    %v438 = vld [vmem:[%s1 + $0x328] sm:$0xff]
    %v439 = vld [vmem:[%s1 + $0x330] sm:$0xf]
    %v440 = vld [vmem:[%s1 + $0x334] sm:$0xff]
    %v441 = vld [vmem:[%s1 + $0x33c] sm:$0xff]
    %v442 = vld [vmem:[%s1 + $0x344] sm:$0xf]
    %v443 = vld [vmem:[%s1 + $0x348] sm:$0xff]
    %v444 = vld [vmem:[%s1 + $0x350] sm:$0xff]
    %v445 = vld [vmem:[%s1 + $0x358] sm:$0xf]
    %v446 = vld [vmem:[%s1 + $0x35c] sm:$0xff]
    %v447 = vld [vmem:[%s1 + $0x364] sm:$0xff]
    %v448 = vld [vmem:[%s1 + $0x36c] sm:$0xf]
    %v449 = vld [vmem:[%s1 + $0x370] sm:$0xff]
    %v450 = vld [vmem:[%s1 + $0x378] sm:$0xff]
    %v451 = vld [vmem:[%s1 + $0x380] sm:$0xf]
    %v452 = vld [vmem:[%s1 + $0x384] sm:$0xff]
    %v453 = vld [vmem:[%s1 + $0x38c] sm:$0xff]
    %v454 = vld [vmem:[%s1 + $0x394] sm:$0xf]
    %v455 = vld [vmem:[%s1 + $0x398] sm:$0xff]
    %v456 = vld [vmem:[%s1 + $0x3a0] sm:$0xff]
    %v457 = vld [vmem:[%s1 + $0x3a8] sm:$0xf]
    %v458 = vld [vmem:[%s1 + $0x3ac] sm:$0xff]
    %v459 = vld [vmem:[%s1 + $0x3b4] sm:$0xff]
    %v460 = vld [vmem:[%s1 + $0x3bc] sm:$0xf]
    %v461 = vld [vmem:[%s1 + $0x3c0] sm:$0xff]
    %v462 = vld [vmem:[%s1 + $0x3c8] sm:$0xff]
    %v463 = vld [vmem:[%s1 + $0x3d0] sm:$0xf]
    %v464 = vld [vmem:[%s1 + $0x3d4] sm:$0xff]
    %v465 = vld [vmem:[%s1 + $0x3dc] sm:$0xff]
    %v466 = vld [vmem:[%s1 + $0x3e4] sm:$0xf]
    %v467 = vld [vmem:[%s1 + $0x3e8] sm:$0xff]
    %v468 = vld [vmem:[%s1 + $0x3f0] sm:$0xff]
    %v469 = vld [vmem:[%s1 + $0x3f8] sm:$0xf]
    %v470 = vld [vmem:[%s1 + $0x3fc] sm:$0xff]
    %v471 = vld [vmem:[%s1 + $0x404] sm:$0xff]
    %v472 = vld [vmem:[%s1 + $0x40c] sm:$0xf]
    %v473 = vld [vmem:[%s1 + $0x410] sm:$0xff]
    %v474 = vld [vmem:[%s1 + $0x418] sm:$0xff]
    %v475 = vld [vmem:[%s1 + $0x420] sm:$0xf]
    %v476 = vld [vmem:[%s1 + $0x424] sm:$0xff]
    %v477 = vld [vmem:[%s1 + $0x42c] sm:$0xff]
    %v478 = vld [vmem:[%s1 + $0x434] sm:$0xf]
    %v479 = vld [vmem:[%s1 + $0x438] sm:$0xff]
    %v480 = vld [vmem:[%s1 + $0x440] sm:$0xff]
    %v481 = vld [vmem:[%s1 + $0x448] sm:$0xf]
    %v482 = vld [vmem:[%s1 + $0x44c] sm:$0xff]
    %v483 = vld [vmem:[%s1 + $0x454] sm:$0xff]
    %v484 = vld [vmem:[%s1 + $0x45c] sm:$0xf]
    %v485 = vld [vmem:[%s1 + $0x460] sm:$0xff]
    %v486 = vld [vmem:[%s1 + $0x468] sm:$0xff]
    %v487 = vld [vmem:[%s1 + $0x470] sm:$0xf]
    %v488 = vld [vmem:[%s1 + $0x474] sm:$0xff]
    %v489 = vld [vmem:[%s1 + $0x47c] sm:$0xff]
    %v490 = vld [vmem:[%s1 + $0x484] sm:$0xf]
    %v491 = vld [vmem:[%s1 + $0x488] sm:$0xff]
    %v492 = vld [vmem:[%s1 + $0x490] sm:$0xff]
    %v493 = vld [vmem:[%s1 + $0x498] sm:$0xf]
    %v494 = vld [vmem:[%s1 + $0x49c] sm:$0xff]
    %v495 = vld [vmem:[%s1 + $0x4a4] sm:$0xff]
    %v496 = vld [vmem:[%s1 + $0x4ac] sm:$0xf]
    %v497 = vld [vmem:[%s1 + $0x4b0] sm:$0xff]
    %v498 = vld [vmem:[%s1 + $0x4b8] sm:$0xff]
    %v499 = vld [vmem:[%s1 + $0x4c0] sm:$0xf]
    %v500 = vld [vmem:[%s1 + $0x4c4] sm:$0xff]
    %v501 = vld [vmem:[%s1 + $0x4cc] sm:$0xff]
    %v502 = vld [vmem:[%s1 + $0x4d4] sm:$0xf]
    %v503 = vld [vmem:[%s1 + $0x4d8] sm:$0xff]
    %v504 = vld [vmem:[%s1 + $0x4e0] sm:$0xff]
    %v505 = vld [vmem:[%s1 + $0x4e8] sm:$0xf]
    %v506 = vld [vmem:[%s1 + $0x4ec] sm:$0xff]
    %v507 = vld [vmem:[%s1 + $0x4f4] sm:$0xff]
    %v508 = vld [vmem:[%s1 + $0x4fc] sm:$0xf]
    %v509 = vld [vmem:[%s1 + $0x500] sm:$0xff]
    %v510 = vld [vmem:[%s1 + $0x508] sm:$0xff]
    %v511 = vld [vmem:[%s1 + $0x510] sm:$0xf]
    %v512 = vld [vmem:[%s1 + $0x514] sm:$0xff]
    %v513 = vld [vmem:[%s1 + $0x51c] sm:$0xff]
    %v514 = vld [vmem:[%s1 + $0x524] sm:$0xf]
    %v515 = vld [vmem:[%s1 + $0x528] sm:$0xff]
    %v516 = vld [vmem:[%s1 + $0x530] sm:$0xff]
    %v517 = vld [vmem:[%s1 + $0x538] sm:$0xf]
    %v518 = vld [vmem:[%s1 + $0x53c] sm:$0xff]
    %v519 = vld [vmem:[%s1 + $0x544] sm:$0xff]
    %v520 = vld [vmem:[%s1 + $0x54c] sm:$0xf]
    %v521 = vld [vmem:[%s1 + $0x550] sm:$0xff]
    %v522 = vld [vmem:[%s1 + $0x558] sm:$0xff]
    %v523 = vld [vmem:[%s1 + $0x560] sm:$0xf]
    %v524 = vld [vmem:[%s1 + $0x564] sm:$0xff]
    %v525 = vld [vmem:[%s1 + $0x56c] sm:$0xff]
    %v526 = vld [vmem:[%s1 + $0x574] sm:$0xf]
    %v527 = vld [vmem:[%s1 + $0x578] sm:$0xff]
    %v528 = vld [vmem:[%s1 + $0x580] sm:$0xff]
    %v529 = vld [vmem:[%s1 + $0x588] sm:$0xf]
    %v530 = vld [vmem:[%s1 + $0x58c] sm:$0xff]
    %v531 = vld [vmem:[%s1 + $0x594] sm:$0xff]
    %v532 = vld [vmem:[%s1 + $0x59c] sm:$0xf]
    %v533 = vld [vmem:[%s1 + $0x5a0] sm:$0xff]
    %v534 = vld [vmem:[%s1 + $0x5a8] sm:$0xff]
    %v535 = vld [vmem:[%s1 + $0x5b0] sm:$0xf]
    %v536 = vld [vmem:[%s1 + $0x5b4] sm:$0xff]
    %v537 = vld [vmem:[%s1 + $0x5bc] sm:$0xff]
    %v538 = vld [vmem:[%s1 + $0x5c4] sm:$0xf]
    %v539 = vld [vmem:[%s1 + $0x5c8] sm:$0xff]
    %v540 = vld [vmem:[%s1 + $0x5d0] sm:$0xff]
    %v541 = vld [vmem:[%s1 + $0x5d8] sm:$0xf]
    %v542 = vld [vmem:[%s1 + $0x5dc] sm:$0xff]
    %v543 = vld [vmem:[%s1 + $0x5e4] sm:$0xff]
    %v544 = vld [vmem:[%s1 + $0x5ec] sm:$0xf]
    %v545 = vld [vmem:[%s1 + $0x5f0] sm:$0xff]
    %v546 = vld [vmem:[%s1 + $0x5f8] sm:$0xff]
    %v547 = vld [vmem:[%s1 + $0x600] sm:$0xf]
    %v548 = vld [vmem:[%s1 + $0x604] sm:$0xff]
    %v549 = vld [vmem:[%s1 + $0x60c] sm:$0xff]
    %v550 = vld [vmem:[%s1 + $0x614] sm:$0xf]
    %v551 = vld [vmem:[%s1 + $0x618] sm:$0xff]
    %v552 = vld [vmem:[%s1 + $0x620] sm:$0xff]
    %v553 = vld [vmem:[%s1 + $0x628] sm:$0xf]
    %v554 = vld [vmem:[%s1 + $0x62c] sm:$0xff]
    %v555 = vld [vmem:[%s1 + $0x634] sm:$0xff]
    %v556 = vld [vmem:[%s1 + $0x63c] sm:$0xf]
    %v557 = vld [vmem:[%s1 + $0x640] sm:$0xff]
    %v558 = vld [vmem:[%s1 + $0x648] sm:$0xff]
    %v559 = vld [vmem:[%s1 + $0x650] sm:$0xf]
    %v560 = vld [vmem:[%s1 + $0x654] sm:$0xff]
    %v561 = vld [vmem:[%s1 + $0x65c] sm:$0xff]
    %v562 = vld [vmem:[%s1 + $0x664] sm:$0xf]
    %v563 = vld [vmem:[%s1 + $0x668] sm:$0xff]
    %v564 = vld [vmem:[%s1 + $0x670] sm:$0xff]
    %v565 = vld [vmem:[%s1 + $0x678] sm:$0xf]
    %v566 = vld [vmem:[%s1 + $0x67c] sm:$0xff]
    %v567 = vld [vmem:[%s1 + $0x684] sm:$0xff]
    %v568 = vld [vmem:[%s1 + $0x68c] sm:$0xf]
    %v569 = vld [vmem:[%s1 + $0x690] sm:$0xff]
    %v570 = vld [vmem:[%s1 + $0x698] sm:$0xff]
    %v571 = vld [vmem:[%s1 + $0x6a0] sm:$0xf]
    %v572 = vld [vmem:[%s1 + $0x6a4] sm:$0xff]
    %v573 = vld [vmem:[%s1 + $0x6ac] sm:$0xff]
    %v574 = vld [vmem:[%s1 + $0x6b4] sm:$0xf]
    %v575 = vld [vmem:[%s1 + $0x6b8] sm:$0xff]
    %v576 = vld [vmem:[%s1 + $0x6c0] sm:$0xff]
    %v577 = vld [vmem:[%s1 + $0x6c8] sm:$0xf]
    %v578 = vld [vmem:[%s1 + $0x6cc] sm:$0xff]
    %v579 = vld [vmem:[%s1 + $0x6d4] sm:$0xff]
    %v580 = vld [vmem:[%s1 + $0x6dc] sm:$0xf]
    %v581 = vld [vmem:[%s1 + $0x6e0] sm:$0xff]
    %v582 = vld [vmem:[%s1 + $0x6e8] sm:$0xff]
    %v583 = vld [vmem:[%s1 + $0x6f0] sm:$0xf]
    %v584 = vld [vmem:[%s1 + $0x6f4] sm:$0xff]
    %v585 = vld [vmem:[%s1 + $0x6fc] sm:$0xff]
    %v586 = vld [vmem:[%s1 + $0x704] sm:$0xf]
    %v587 = vld [vmem:[%s1 + $0x708] sm:$0xff]
    %v588 = vld [vmem:[%s1 + $0x710] sm:$0xff]
    %v589 = vld [vmem:[%s1 + $0x718] sm:$0xf]
    %v590 = vld [vmem:[%s1 + $0x71c] sm:$0xff]
    %v591 = vld [vmem:[%s1 + $0x724] sm:$0xff]
    %v592 = vld [vmem:[%s1 + $0x72c] sm:$0xf]
    %v593 = vld [vmem:[%s1 + $0x730] sm:$0xff]
    %v594 = vld [vmem:[%s1 + $0x738] sm:$0xff]
    %v595 = vld [vmem:[%s1 + $0x740] sm:$0xf]
    %v596 = vld [vmem:[%s1 + $0x744] sm:$0xff]
    %v597 = vld [vmem:[%s1 + $0x74c] sm:$0xff]
    %v598 = vld [vmem:[%s1 + $0x754] sm:$0xf]
    %v599 = vld [vmem:[%s1 + $0x758] sm:$0xff]
    %v600 = vld [vmem:[%s1 + $0x760] sm:$0xff]
    %v601 = vld [vmem:[%s1 + $0x768] sm:$0xf]
    %v602 = vld [vmem:[%s1 + $0x76c] sm:$0xff]
    %v603 = vld [vmem:[%s1 + $0x774] sm:$0xff]
    %v604 = vld [vmem:[%s1 + $0x77c] sm:$0xf]
    %v605 = vld [vmem:[%s1 + $0x780] sm:$0xff]
    %v606 = vld [vmem:[%s1 + $0x788] sm:$0xff]
    %v607 = vld [vmem:[%s1 + $0x790] sm:$0xf]
    %v608 = vld [vmem:[%s1 + $0x794] sm:$0xff]
    %v609 = vld [vmem:[%s1 + $0x79c] sm:$0xff]
    %v610 = vld [vmem:[%s1 + $0x7a4] sm:$0xf]
    %v611 = vld [vmem:[%s1 + $0x7a8] sm:$0xff]
    %v612 = vld [vmem:[%s1 + $0x7b0] sm:$0xff]
    %v613 = vld [vmem:[%s1 + $0x7b8] sm:$0xf]
    %v614 = vld [vmem:[%s1 + $0x7bc] sm:$0xff]
    %v615 = vld [vmem:[%s1 + $0x7c4] sm:$0xff]
    %v616 = vld [vmem:[%s1 + $0x7cc] sm:$0xf]
    %v617 = vld [vmem:[%s1 + $0x7d0] sm:$0xff]
    %v618 = vld [vmem:[%s1 + $0x7d8] sm:$0xff]
    %v619 = vld [vmem:[%s1 + $0x7e0] sm:$0xf]
    %v620 = vld [vmem:[%s1 + $0x7e4] sm:$0xff]
    %v621 = vld [vmem:[%s1 + $0x7ec] sm:$0xff]
    %v622 = vld [vmem:[%s1 + $0x7f4] sm:$0xf]
    %v623 = vld [vmem:[%s1 + $0x7f8] sm:$0xff]
    %v624 = vld [vmem:[%s1 + $0x800] sm:$0xff]
    %v625 = vld [vmem:[%s1 + $0x808] sm:$0xf]
    %v626 = vld [vmem:[%s1 + $0x80c] sm:$0xff]
    %v627 = vld [vmem:[%s1 + $0x814] sm:$0xff]
    %v628 = vld [vmem:[%s1 + $0x81c] sm:$0xf]
    %v629 = vld [vmem:[%s1 + $0x820] sm:$0xff]
    %v630 = vld [vmem:[%s1 + $0x828] sm:$0xff]
    %v631 = vld [vmem:[%s1 + $0x830] sm:$0xf]
    %v632 = vld [vmem:[%s1 + $0x834] sm:$0xff]
    %v633 = vld [vmem:[%s1 + $0x83c] sm:$0xff]
    %v634 = vld [vmem:[%s1 + $0x844] sm:$0xf]
    %v635 = vld [vmem:[%s1 + $0x848] sm:$0xff]
    %v636 = vld [vmem:[%s1 + $0x850] sm:$0xff]
    %v637 = vld [vmem:[%s1 + $0x858] sm:$0xf]
    %v638 = vld [vmem:[%s1 + $0x85c] sm:$0xff]
    %v639 = vld [vmem:[%s1 + $0x864] sm:$0xff]
    %v640 = vld [vmem:[%s1 + $0x86c] sm:$0xf]
    %v641 = vld [vmem:[%s1 + $0x870] sm:$0xff]
    %v642 = vld [vmem:[%s1 + $0x878] sm:$0xff]
    %v643 = vld [vmem:[%s1 + $0x880] sm:$0xf]
    %v644 = vld [vmem:[%s1 + $0x884] sm:$0xff]
    %v645 = vld [vmem:[%s1 + $0x88c] sm:$0xff]
    %v646 = vld [vmem:[%s1 + $0x894] sm:$0xf]
    %v647 = vld [vmem:[%s1 + $0x898] sm:$0xff]
    %v648 = vld [vmem:[%s1 + $0x8a0] sm:$0xff]
    %v649 = vld [vmem:[%s1 + $0x8a8] sm:$0xf]
    %v650 = vld [vmem:[%s1 + $0x8ac] sm:$0xff]
    %v651 = vld [vmem:[%s1 + $0x8b4] sm:$0xff]
    %v652 = vld [vmem:[%s1 + $0x8bc] sm:$0xf]
    %v653 = vld [vmem:[%s1 + $0x8c0] sm:$0xff]
    %v654 = vld [vmem:[%s1 + $0x8c8] sm:$0xff]
    %v655 = vld [vmem:[%s1 + $0x8d0] sm:$0xf]
    %v656 = vld [vmem:[%s1 + $0x8d4] sm:$0xff]
    %v657 = vld [vmem:[%s1 + $0x8dc] sm:$0xff]
    %v658 = vld [vmem:[%s1 + $0x8e4] sm:$0xf]
    %v659 = vld [vmem:[%s1 + $0x8e8] sm:$0xff]
    %v660 = vld [vmem:[%s1 + $0x8f0] sm:$0xff]
    %v661 = vld [vmem:[%s1 + $0x8f8] sm:$0xf]
    %v662 = vld [vmem:[%s1 + $0x8fc] sm:$0xff]
    %v663 = vld [vmem:[%s1 + $0x904] sm:$0xff]
    %v664 = vld [vmem:[%s1 + $0x90c] sm:$0xf]
    %v665 = vld [vmem:[%s1 + $0x910] sm:$0xff]
    %v666 = vld [vmem:[%s1 + $0x918] sm:$0xff]
    %v667 = vld [vmem:[%s1 + $0x920] sm:$0xf]
    %v668 = vld [vmem:[%s1 + $0x924] sm:$0xff]
    %v669 = vld [vmem:[%s1 + $0x92c] sm:$0xff]
    %v670 = vld [vmem:[%s1 + $0x934] sm:$0xf]
    %v671 = vld [vmem:[%s1 + $0x938] sm:$0xff]
    %v672 = vld [vmem:[%s1 + $0x940] sm:$0xff]
    %v673 = vld [vmem:[%s1 + $0x948] sm:$0xf]
    %v674 = vld [vmem:[%s1 + $0x94c] sm:$0xff]
    %v675 = vld [vmem:[%s1 + $0x954] sm:$0xff]
    %v676 = vld [vmem:[%s1 + $0x95c] sm:$0xf]
    %v677 = vld [vmem:[%s1 + $0x960] sm:$0xff]
    %v678 = vld [vmem:[%s1 + $0x968] sm:$0xff]
    %v679 = vld [vmem:[%s1 + $0x970] sm:$0xf]
    %v680 = vld [vmem:[%s1 + $0x974] sm:$0xff]
    %v681 = vld [vmem:[%s1 + $0x97c] sm:$0xff]
    %v682 = vld [vmem:[%s1 + $0x984] sm:$0xf]
    %v683 = vld [vmem:[%s1 + $0x988] sm:$0xff]
    %v684 = vld [vmem:[%s1 + $0x990] sm:$0xff]
    %v685 = vld [vmem:[%s1 + $0x998] sm:$0xf]
    %v686 = vld [vmem:[%s1 + $0x99c] sm:$0xff]
    %v687 = vld [vmem:[%s1 + $0x9a4] sm:$0xff]
    %v688 = vld [vmem:[%s1 + $0x9ac] sm:$0xf]
    %v689 = vld [vmem:[%s1 + $0x9b0] sm:$0xff]
    %v690 = vld [vmem:[%s1 + $0x9b8] sm:$0xff]
    %v691 = vld [vmem:[%s1 + $0x9c0] sm:$0xf]
    %v692 = vld [vmem:[%s1 + $0x9c4] sm:$0xff]
    %v693 = vld [vmem:[%s1 + $0x9cc] sm:$0xff]
    %v694 = vld [vmem:[%s1 + $0x9d4] sm:$0xf]
    %v695 = vld [vmem:[%s1 + $0x9d8] sm:$0xff]
    %v696 = vld [vmem:[%s1 + $0x9e0] sm:$0xff]
    %v697 = vld [vmem:[%s1 + $0x9e8] sm:$0xf]
    %v698 = vld [vmem:[%s1 + $0x9ec] sm:$0xff]
    %v699 = vld [vmem:[%s1 + $0x9f4] sm:$0xff]
    %v700 = vld [vmem:[%s1 + $0x9fc] sm:$0xf]
    %v701 = vld [vmem:[%s1 + $0xa00] sm:$0xff]
    %v702 = vld [vmem:[%s1 + $0xa08] sm:$0xff]
    %v703 = vld [vmem:[%s1 + $0xa10] sm:$0xf]
    %v704 = vld [vmem:[%s1 + $0xa14] sm:$0xff]
    %v705 = vld [vmem:[%s1 + $0xa1c] sm:$0xff]
    %v706 = vld [vmem:[%s1 + $0xa24] sm:$0xf]
    %v707 = vld [vmem:[%s1 + $0xa28] sm:$0xff]
    %v708 = vld [vmem:[%s1 + $0xa30] sm:$0xff]
    %v709 = vld [vmem:[%s1 + $0xa38] sm:$0xf]
    %v710 = vld [vmem:[%s1 + $0xa3c] sm:$0xff]
    %v711 = vld [vmem:[%s1 + $0xa44] sm:$0xff]
    %v712 = vld [vmem:[%s1 + $0xa4c] sm:$0xf]
    %v713 = vld [vmem:[%s1 + $0xa50] sm:$0xff]
    %v714 = vld [vmem:[%s1 + $0xa58] sm:$0xff]
    %v715 = vld [vmem:[%s1 + $0xa60] sm:$0xf]
    %v716 = vld [vmem:[%s1 + $0xa64] sm:$0xff]
    %v717 = vld [vmem:[%s1 + $0xa6c] sm:$0xff]
    %v718 = vld [vmem:[%s1 + $0xa74] sm:$0xf]
    %v719 = vld [vmem:[%s1 + $0xa78] sm:$0xff]
    %v720 = vld [vmem:[%s1 + $0xa80] sm:$0xff]
    %v721 = vld [vmem:[%s1 + $0xa88] sm:$0xf]
    %v722 = vld [vmem:[%s1 + $0xa8c] sm:$0xff]
    %v723 = vld [vmem:[%s1 + $0xa94] sm:$0xff]
    %v724 = vld [vmem:[%s1 + $0xa9c] sm:$0xf]
    %v725 = vld [vmem:[%s1 + $0xaa0] sm:$0xff]
    %v726 = vld [vmem:[%s1 + $0xaa8] sm:$0xff]
    %v727 = vld [vmem:[%s1 + $0xab0] sm:$0xf]
    %v728 = vld [vmem:[%s1 + $0xab4] sm:$0xff]
    %v729 = vld [vmem:[%s1 + $0xabc] sm:$0xff]
    %v730 = vld [vmem:[%s1 + $0xac4] sm:$0xf]
    %v731 = vld [vmem:[%s1 + $0xac8] sm:$0xff]
    %v732 = vld [vmem:[%s1 + $0xad0] sm:$0xff]
    %v733 = vld [vmem:[%s1 + $0xad8] sm:$0xf]
    %v734 = vld [vmem:[%s1 + $0xadc] sm:$0xff]
    %v735 = vld [vmem:[%s1 + $0xae4] sm:$0xff]
    %v736 = vld [vmem:[%s1 + $0xaec] sm:$0xf]
    %v737 = vld [vmem:[%s1 + $0xaf0] sm:$0xff]
    %v738 = vld [vmem:[%s1 + $0xaf8] sm:$0xff]
    %v739 = vld [vmem:[%s1 + $0xb00] sm:$0xf]
    %v740 = vld [vmem:[%s1 + $0xb04] sm:$0xff]
    %v741 = vld [vmem:[%s1 + $0xb0c] sm:$0xff]
    %v742 = vld [vmem:[%s1 + $0xb14] sm:$0xf]
    %v743 = vld [vmem:[%s1 + $0xb18] sm:$0xff]
    %v744 = vld [vmem:[%s1 + $0xb20] sm:$0xff]
    %v745 = vld [vmem:[%s1 + $0xb28] sm:$0xf]
    %v746 = vld [vmem:[%s1 + $0xb2c] sm:$0xff]
    %v747 = vld [vmem:[%s1 + $0xb34] sm:$0xff]
    %v748 = vld [vmem:[%s1 + $0xb3c] sm:$0xf]
    %v749 = vld [vmem:[%s1 + $0xb40] sm:$0xff]
    %v750 = vld [vmem:[%s1 + $0xb48] sm:$0xff]
    %v751 = vld [vmem:[%s1 + $0xb50] sm:$0xf]
    %v752 = vld [vmem:[%s1 + $0xb54] sm:$0xff]
    %v753 = vld [vmem:[%s1 + $0xb5c] sm:$0xff]
    %v754 = vld [vmem:[%s1 + $0xb64] sm:$0xf]
    %v755 = vld [vmem:[%s1 + $0xb68] sm:$0xff]
    %v756 = vld [vmem:[%s1 + $0xb70] sm:$0xff]
    %v757 = vld [vmem:[%s1 + $0xb78] sm:$0xf]
    %v758 = vld [vmem:[%s1 + $0xb7c] sm:$0xff]
    %v759 = vld [vmem:[%s1 + $0xb84] sm:$0xff]
    %v760 = vld [vmem:[%s1 + $0xb8c] sm:$0xf]
    %v761 = vld [vmem:[%s1 + $0xb90] sm:$0xff]
    %v762 = vld [vmem:[%s1 + $0xb98] sm:$0xff]
    %v763 = vld [vmem:[%s1 + $0xba0] sm:$0xf]
    %v764 = vld [vmem:[%s1 + $0xba4] sm:$0xff]
    %v765 = vld [vmem:[%s1 + $0xbac] sm:$0xff]
    %v766 = vld [vmem:[%s1 + $0xbb4] sm:$0xf]
    %v767 = vld [vmem:[%s1 + $0xbb8] sm:$0xff]
    %v768 = vld [vmem:[%s1 + $0xbc0] sm:$0xff]
    %v769 = vld [vmem:[%s1 + $0xbc8] sm:$0xf]
    %v770 = vld [vmem:[%s1 + $0xbcc] sm:$0xff]
    %v771 = vld [vmem:[%s1 + $0xbd4] sm:$0xff]
    %v772 = vld [vmem:[%s1 + $0xbdc] sm:$0xf]
    %v773 = vld [vmem:[%s1 + $0xbe0] sm:$0xff]
    %v774 = vld [vmem:[%s1 + $0xbe8] sm:$0xff]
    %v775 = vld [vmem:[%s1 + $0xbf0] sm:$0xf]
    %v776 = vld [vmem:[%s1 + $0xbf4] sm:$0xff]
    %v777 = vld [vmem:[%s1 + $0xbfc] sm:$0xff]
    %v778 = vld [vmem:[%s1 + $0xc04] sm:$0xf]
    %v779 = vld [vmem:[%s1 + $0xc08] sm:$0xff]
    %v780 = vld [vmem:[%s1 + $0xc10] sm:$0xff]
    %v781 = vld [vmem:[%s1 + $0xc18] sm:$0xf]
    %v782 = vld [vmem:[%s1 + $0xc1c] sm:$0xff]
    %v783 = vld [vmem:[%s1 + $0xc24] sm:$0xff]
    %v784 = vld [vmem:[%s1 + $0xc2c] sm:$0xf]
    %v785 = vld [vmem:[%s1 + $0xc30] sm:$0xff]
    %v786 = vld [vmem:[%s1 + $0xc38] sm:$0xff]
    %v787 = vld [vmem:[%s1 + $0xc40] sm:$0xf]
    %v788 = vld [vmem:[%s1 + $0xc44] sm:$0xff]
    %v789 = vld [vmem:[%s1 + $0xc4c] sm:$0xff]
    %v790 = vld [vmem:[%s1 + $0xc54] sm:$0xf]
    %v791 = vld [vmem:[%s1 + $0xc58] sm:$0xff]
    %v792 = vld [vmem:[%s1 + $0xc60] sm:$0xff]
    %v793 = vld [vmem:[%s1 + $0xc68] sm:$0xf]
    %v794 = vld [vmem:[%s1 + $0xc6c] sm:$0xff]
    %v795 = vld [vmem:[%s1 + $0xc74] sm:$0xff]
    %v796 = vld [vmem:[%s1 + $0xc7c] sm:$0xf]
    %v797 = vld [vmem:[%s1 + $0xc80] sm:$0xff]
    %v798 = vld [vmem:[%s1 + $0xc88] sm:$0xff]
    %v799 = vld [vmem:[%s1 + $0xc90] sm:$0xf]
    %v800 = vld [vmem:[%s1 + $0xc94] sm:$0xff]
    %v801 = vld [vmem:[%s1 + $0xc9c] sm:$0xff]
    %v802 = vld [vmem:[%s1 + $0xca4] sm:$0xf]
    %v803 = vld [vmem:[%s1 + $0xca8] sm:$0xff]
    %v804 = vld [vmem:[%s1 + $0xcb0] sm:$0xff]
    %v805 = vld [vmem:[%s1 + $0xcb8] sm:$0xf]
    %v806 = vld [vmem:[%s1 + $0xcbc] sm:$0xff]
    %v807 = vld [vmem:[%s1 + $0xcc4] sm:$0xff]
    %v808 = vld [vmem:[%s1 + $0xccc] sm:$0xf]
    %v809 = vld [vmem:[%s1 + $0xcd0] sm:$0xff]
    %v810 = vld [vmem:[%s1 + $0xcd8] sm:$0xff]
    %v811 = vld [vmem:[%s1 + $0xce0] sm:$0xf]
    %v812 = vld [vmem:[%s1 + $0xce4] sm:$0xff]
    %v813 = vld [vmem:[%s1 + $0xcec] sm:$0xff]
    %v814 = vld [vmem:[%s1 + $0xcf4] sm:$0xf]
    %v815 = vld [vmem:[%s1 + $0xcf8] sm:$0xff]
    %v816 = vld [vmem:[%s1 + $0xd00] sm:$0xff]
    %v817 = vld [vmem:[%s1 + $0xd08] sm:$0xf]
    %v818 = vld [vmem:[%s1 + $0xd0c] sm:$0xff]
    %v819 = vld [vmem:[%s1 + $0xd14] sm:$0xff]
    %v820 = vld [vmem:[%s1 + $0xd1c] sm:$0xf]
    %v821 = vld [vmem:[%s1 + $0xd20] sm:$0xff]
    %v822 = vld [vmem:[%s1 + $0xd28] sm:$0xff]
    %v823 = vld [vmem:[%s1 + $0xd30] sm:$0xf]
    %v824 = vld [vmem:[%s1 + $0xd34] sm:$0xff]
    %v825 = vld [vmem:[%s1 + $0xd3c] sm:$0xff]
    %v826 = vld [vmem:[%s1 + $0xd44] sm:$0xf]
    %v827 = vld [vmem:[%s1 + $0xd48] sm:$0xff]
    %v828 = vld [vmem:[%s1 + $0xd50] sm:$0xff]
    %v829 = vld [vmem:[%s1 + $0xd58] sm:$0xf]
    %v830 = vld [vmem:[%s1 + $0xd5c] sm:$0xff]
    %v831 = vld [vmem:[%s1 + $0xd64] sm:$0xff]
    %v832 = vld [vmem:[%s1 + $0xd6c] sm:$0xf]
    %v833 = vld [vmem:[%s1 + $0xd70] sm:$0xff]
    %v834 = vld [vmem:[%s1 + $0xd78] sm:$0xff]
    %v835 = vld [vmem:[%s1 + $0xd80] sm:$0xf]
    %v836 = vld [vmem:[%s1 + $0xd84] sm:$0xff]
    %v837 = vld [vmem:[%s1 + $0xd8c] sm:$0xff]
    %v838 = vld [vmem:[%s1 + $0xd94] sm:$0xf]
    %v839 = vld [vmem:[%s1 + $0xd98] sm:$0xff]
    %v840 = vld [vmem:[%s1 + $0xda0] sm:$0xff]
    %v841 = vld [vmem:[%s1 + $0xda8] sm:$0xf]
    %v842 = vld [vmem:[%s1 + $0xdac] sm:$0xff]
    %v843 = vld [vmem:[%s1 + $0xdb4] sm:$0xff]
    %v844 = vld [vmem:[%s1 + $0xdbc] sm:$0xf]
    %v845 = vld [vmem:[%s1 + $0xdc0] sm:$0xff]
    %v846 = vld [vmem:[%s1 + $0xdc8] sm:$0xff]
    %v847 = vld [vmem:[%s1 + $0xdd0] sm:$0xf]
    %v848 = vld [vmem:[%s1 + $0xdd4] sm:$0xff]
    %v849 = vld [vmem:[%s1 + $0xddc] sm:$0xff]
    %v850 = vld [vmem:[%s1 + $0xde4] sm:$0xf]
    %v851 = vld [vmem:[%s1 + $0xde8] sm:$0xff]
    %v852 = vld [vmem:[%s1 + $0xdf0] sm:$0xff]
    %v853 = vld [vmem:[%s1 + $0xdf8] sm:$0xf]
    %v854 = vld [vmem:[%s1 + $0xdfc] sm:$0xff]
    %v855 = vld [vmem:[%s1 + $0xe04] sm:$0xff]
    %v856 = vld [vmem:[%s1 + $0xe0c] sm:$0xf]
    %v857 = vld [vmem:[%s1 + $0xe10] sm:$0xff]
    %v858 = vld [vmem:[%s1 + $0xe18] sm:$0xff]
    %v859 = vld [vmem:[%s1 + $0xe20] sm:$0xf]
    %v860 = vld [vmem:[%s1 + $0xe24] sm:$0xff]
    %v861 = vld [vmem:[%s1 + $0xe2c] sm:$0xff]
    %v862 = vld [vmem:[%s1 + $0xe34] sm:$0xf]
    %v863 = vld [vmem:[%s1 + $0xe38] sm:$0xff]
    %v864 = vld [vmem:[%s1 + $0xe40] sm:$0xff]
    %v865 = vld [vmem:[%s1 + $0xe48] sm:$0xf]
    %v866 = vld [vmem:[%s1 + $0xe4c] sm:$0xff]
    %v867 = vld [vmem:[%s1 + $0xe54] sm:$0xff]
    %v868 = vld [vmem:[%s1 + $0xe5c] sm:$0xf]
    %v869 = vld [vmem:[%s1 + $0xe60] sm:$0xff]
    %v870 = vld [vmem:[%s1 + $0xe68] sm:$0xff]
    %v871 = vld [vmem:[%s1 + $0xe70] sm:$0xf]
    %v872 = vld [vmem:[%s1 + $0xe74] sm:$0xff]
    %v873 = vld [vmem:[%s1 + $0xe7c] sm:$0xff]
    %v874 = vld [vmem:[%s1 + $0xe84] sm:$0xf]
    %v875 = vld [vmem:[%s1 + $0xe88] sm:$0xff]
    %v876 = vld [vmem:[%s1 + $0xe90] sm:$0xff]
    %v877 = vld [vmem:[%s1 + $0xe98] sm:$0xf]
    %v878 = vld [vmem:[%s1 + $0xe9c] sm:$0xff]
    %v879 = vld [vmem:[%s1 + $0xea4] sm:$0xff]
    %v880 = vld [vmem:[%s1 + $0xeac] sm:$0xf]
    %v881 = vld [vmem:[%s1 + $0xeb0] sm:$0xff]
    %v882 = vld [vmem:[%s1 + $0xeb8] sm:$0xff]
    %v883 = vld [vmem:[%s1 + $0xec0] sm:$0xf]
    %v884 = vld [vmem:[%s1 + $0xec4] sm:$0xff]
    %v885 = vld [vmem:[%s1 + $0xecc] sm:$0xff]
    %v886 = vld [vmem:[%s1 + $0xed4] sm:$0xf]
    %v887 = vld [vmem:[%s1 + $0xed8] sm:$0xff]
    %v888 = vld [vmem:[%s1 + $0xee0] sm:$0xff]
    %v889 = vld [vmem:[%s1 + $0xee8] sm:$0xf]
    %v890 = vld [vmem:[%s1 + $0xeec] sm:$0xff]
    %v891 = vld [vmem:[%s1 + $0xef4] sm:$0xff]
    %v892 = vld [vmem:[%s1 + $0xefc] sm:$0xf]
    %v893 = vld [vmem:[%s1 + $0xf00] sm:$0xff]
    %v894 = vld [vmem:[%s1 + $0xf08] sm:$0xff]
    %v895 = vld [vmem:[%s1 + $0xf10] sm:$0xf]
    %v896 = vld [vmem:[%s1 + $0xf14] sm:$0xff]
    %v897 = vld [vmem:[%s1 + $0xf1c] sm:$0xff]
    %v898 = vld [vmem:[%s1 + $0xf24] sm:$0xf]
    %v899 = vld [vmem:[%s1 + $0xf28] sm:$0xff]
    %v900 = vld [vmem:[%s1 + $0xf30] sm:$0xff]
    %v901 = vld [vmem:[%s1 + $0xf38] sm:$0xf]
    %v902 = vld [vmem:[%s1 + $0xf3c] sm:$0xff]
    %v903 = vld [vmem:[%s1 + $0xf44] sm:$0xff]
    %v904 = vld [vmem:[%s1 + $0xf4c] sm:$0xf]
    %v905 = vld [vmem:[%s1 + $0xf50] sm:$0xff]
    %v906 = vld [vmem:[%s1 + $0xf58] sm:$0xff]
    %v907 = vld [vmem:[%s1 + $0xf60] sm:$0xf]
    %v908 = vld [vmem:[%s1 + $0xf64] sm:$0xff]
    %v909 = vld [vmem:[%s1 + $0xf6c] sm:$0xff]
    %v910 = vld [vmem:[%s1 + $0xf74] sm:$0xf]
    %v911 = vld [vmem:[%s1 + $0xf78] sm:$0xff]
    %v912 = vld [vmem:[%s1 + $0xf80] sm:$0xff]
    %v913 = vld [vmem:[%s1 + $0xf88] sm:$0xf]
    %v914 = vld [vmem:[%s1 + $0xf8c] sm:$0xff]
    %v915 = vld [vmem:[%s1 + $0xf94] sm:$0xff]
    %v916 = vld [vmem:[%s1 + $0xf9c] sm:$0xf]
    %v917 = vld [vmem:[%s1 + $0xfa0] sm:$0xff]
    %v918 = vld [vmem:[%s1 + $0xfa8] sm:$0xff]
    %v919 = vld [vmem:[%s1 + $0xfb0] sm:$0xf]
    %v920 = vld [vmem:[%s1 + $0xfb4] sm:$0xff]
    %v921 = vld [vmem:[%s1 + $0xfbc] sm:$0xff]
    %v922 = vld [vmem:[%s1 + $0xfc4] sm:$0xf]
    %v923 = vld [vmem:[%s1 + $0xfc8] sm:$0xff]
    %v924 = vld [vmem:[%s1 + $0xfd0] sm:$0xff]
    %v925 = vld [vmem:[%s1 + $0xfd8] sm:$0xf]
    %v926 = vld [vmem:[%s1 + $0xfdc] sm:$0xff]
    %v927 = vld [vmem:[%s1 + $0xfe4] sm:$0xff]
    %v928 = vld [vmem:[%s1 + $0xfec] sm:$0xf]
    %v929 = vld [vmem:[%s1 + $0xff0] sm:$0xff]
    %v930 = vld [vmem:[%s1 + $0xff8] sm:$0xff]
    %v931 = vld [vmem:[%s1 + $0x1000] sm:$0xf]
    %v932 = vld [vmem:[%s1 + $0x1004] sm:$0xff]
    %v933 = vld [vmem:[%s1 + $0x100c] sm:$0xff]
    %v934 = vld [vmem:[%s1 + $0x1014] sm:$0xf]
    %v935 = vld [vmem:[%s1 + $0x1018] sm:$0xff]
    %v936 = vld [vmem:[%s1 + $0x1020] sm:$0xff]
    %v937 = vld [vmem:[%s1 + $0x1028] sm:$0xf]
    %v938 = vld [vmem:[%s1 + $0x102c] sm:$0xff]
    %v939 = vld [vmem:[%s1 + $0x1034] sm:$0xff]
    %v940 = vld [vmem:[%s1 + $0x103c] sm:$0xf]
    %v941 = vld [vmem:[%s1 + $0x1040] sm:$0xff]
    %v942 = vld [vmem:[%s1 + $0x1048] sm:$0xff]
    %v943 = vld [vmem:[%s1 + $0x1050] sm:$0xf]
    %v944 = vld [vmem:[%s1 + $0x1054] sm:$0xff]
    %v945 = vld [vmem:[%s1 + $0x105c] sm:$0xff]
    %v946 = vld [vmem:[%s1 + $0x1064] sm:$0xf]
    %v947 = vld [vmem:[%s1 + $0x1068] sm:$0xff]
    %v948 = vld [vmem:[%s1 + $0x1070] sm:$0xff]
    %v949 = vld [vmem:[%s1 + $0x1078] sm:$0xf]
    %v950 = vld [vmem:[%s1 + $0x107c] sm:$0xff]
    %v951 = vld [vmem:[%s1 + $0x1084] sm:$0xff]
    %v952 = vld [vmem:[%s1 + $0x108c] sm:$0xf]
    %v953 = vld [vmem:[%s1 + $0x1090] sm:$0xff]
    %v954 = vld [vmem:[%s1 + $0x1098] sm:$0xff]
    %v955 = vld [vmem:[%s1 + $0x10a0] sm:$0xf]
    %v956 = vld [vmem:[%s1 + $0x10a4] sm:$0xff]
    %v957 = vld [vmem:[%s1 + $0x10ac] sm:$0xff]
    %v958 = vld [vmem:[%s1 + $0x10b4] sm:$0xf]
    %v959 = vld [vmem:[%s1 + $0x10b8] sm:$0xff]
    %v960 = vld [vmem:[%s1 + $0x10c0] sm:$0xff]
    %v961 = vld [vmem:[%s1 + $0x10c8] sm:$0xf]
    %v962 = vld [vmem:[%s1 + $0x10cc] sm:$0xff]
    %v963 = vld [vmem:[%s1 + $0x10d4] sm:$0xff]
    %v964 = vld [vmem:[%s1 + $0x10dc] sm:$0xf]
    %v965 = vld [vmem:[%s1 + $0x10e0] sm:$0xff]
    %v966 = vld [vmem:[%s1 + $0x10e8] sm:$0xff]
    %v967 = vld [vmem:[%s1 + $0x10f0] sm:$0xf]
    %v968 = vld [vmem:[%s1 + $0x10f4] sm:$0xff]
    %v969 = vld [vmem:[%s1 + $0x10fc] sm:$0xff]
    %v970 = vld [vmem:[%s1 + $0x1104] sm:$0xf]
    %v971 = vld [vmem:[%s1 + $0x1108] sm:$0xff]
    %v972 = vld [vmem:[%s1 + $0x1110] sm:$0xff]
    %v973 = vld [vmem:[%s1 + $0x1118] sm:$0xf]
    %v974 = vld [vmem:[%s1 + $0x111c] sm:$0xff]
    %v975 = vld [vmem:[%s1 + $0x1124] sm:$0xff]
    %v976 = vld [vmem:[%s1 + $0x112c] sm:$0xf]
    %v977 = vld [vmem:[%s1 + $0x1130] sm:$0xff]
    %v978 = vld [vmem:[%s1 + $0x1138] sm:$0xff]
    %v979 = vld [vmem:[%s1 + $0x1140] sm:$0xf]
    %v980 = vld [vmem:[%s1 + $0x1144] sm:$0xff]
    %v981 = vld [vmem:[%s1 + $0x114c] sm:$0xff]
    %v982 = vld [vmem:[%s1 + $0x1154] sm:$0xf]
    %v983 = vld [vmem:[%s1 + $0x1158] sm:$0xff]
    %v984 = vld [vmem:[%s1 + $0x1160] sm:$0xff]
    %v985 = vld [vmem:[%s1 + $0x1168] sm:$0xf]
    %v986 = vld [vmem:[%s1 + $0x116c] sm:$0xff]
    %v987 = vld [vmem:[%s1 + $0x1174] sm:$0xff]
    %v988 = vld [vmem:[%s1 + $0x117c] sm:$0xf]
    %v989 = vld [vmem:[%s1 + $0x1180] sm:$0xff]
    %v990 = vld [vmem:[%s1 + $0x1188] sm:$0xff]
    %v991 = vld [vmem:[%s1 + $0x1190] sm:$0xf]
    %v992 = vld [vmem:[%s1 + $0x1194] sm:$0xff]
    %v993 = vld [vmem:[%s1 + $0x119c] sm:$0xff]
    %v994 = vld [vmem:[%s1 + $0x11a4] sm:$0xf]
    %v995 = vld [vmem:[%s1 + $0x11a8] sm:$0xff]
    %v996 = vld [vmem:[%s1 + $0x11b0] sm:$0xff]
    %v997 = vld [vmem:[%s1 + $0x11b8] sm:$0xf]
    %v998 = vld [vmem:[%s1 + $0x11bc] sm:$0xff]
    %v999 = vld [vmem:[%s1 + $0x11c4] sm:$0xff]
    %v1000 = vld [vmem:[%s1 + $0x11cc] sm:$0xf]
    %v1001 = vld [vmem:[%s1 + $0x11d0] sm:$0xff]
    %v1002 = vld [vmem:[%s1 + $0x11d8] sm:$0xff]
    %v1003 = vld [vmem:[%s1 + $0x11e0] sm:$0xf]
    %v1004 = vld [vmem:[%s1 + $0x11e4] sm:$0xff]
    %v1005 = vld [vmem:[%s1 + $0x11ec] sm:$0xff]
    %v1006 = vld [vmem:[%s1 + $0x11f4] sm:$0xf]
    %v1007 = vld [vmem:[%s1 + $0x11f8] sm:$0xff]
    %v1008 = vld [vmem:[%s1 + $0x1200] sm:$0xff]
    %v1009 = vld [vmem:[%s1 + $0x1208] sm:$0xf]
    %v1010 = vld [vmem:[%s1 + $0x120c] sm:$0xff]
    %v1011 = vld [vmem:[%s1 + $0x1214] sm:$0xff]
    %v1012 = vld [vmem:[%s1 + $0x121c] sm:$0xf]
    %v1013 = vld [vmem:[%s1 + $0x1220] sm:$0xff]
    %v1014 = vld [vmem:[%s1 + $0x1228] sm:$0xff]
    %v1015 = vld [vmem:[%s1 + $0x1230] sm:$0xf]
    %v1016 = vld [vmem:[%s1 + $0x1234] sm:$0xff]
    %v1017 = vld [vmem:[%s1 + $0x123c] sm:$0xff]
    %v1018 = vld [vmem:[%s1 + $0x1244] sm:$0xf]
    %v1019 = vld [vmem:[%s1 + $0x1248] sm:$0xff]
    %v1020 = vld [vmem:[%s1 + $0x1250] sm:$0xff]
    %v1021 = vld [vmem:[%s1 + $0x1258] sm:$0xf]
    %v1022 = vld [vmem:[%s1 + $0x125c] sm:$0xff]
    %v1023 = vld [vmem:[%s1 + $0x1264] sm:$0xff]
    %v1024 = vld [vmem:[%s1 + $0x126c] sm:$0xf]
    %v1025 = vld [vmem:[%s1 + $0x1270] sm:$0xff]
    %v1026 = vld [vmem:[%s1 + $0x1278] sm:$0xff]
    %v1027 = vld [vmem:[%s1 + $0x1280] sm:$0xf]
    %v1028 = vld [vmem:[%s1 + $0x1284] sm:$0xff]
    %v1029 = vld [vmem:[%s1 + $0x128c] sm:$0xff]
    %v1030 = vld [vmem:[%s1 + $0x1294] sm:$0xf]
    %v1031 = vld [vmem:[%s1 + $0x1298] sm:$0xff]
    %v1032 = vld [vmem:[%s1 + $0x12a0] sm:$0xff]
    %v1033 = vld [vmem:[%s1 + $0x12a8] sm:$0xf]
    %v1034 = vld [vmem:[%s1 + $0x12ac] sm:$0xff]
    %v1035 = vld [vmem:[%s1 + $0x12b4] sm:$0xff]
    %v1036 = vld [vmem:[%s1 + $0x12bc] sm:$0xf]
    %v1037 = vld [vmem:[%s1 + $0x12c0] sm:$0xff]
    %v1038 = vld [vmem:[%s1 + $0x12c8] sm:$0xff]
    %v1039 = vld [vmem:[%s1 + $0x12d0] sm:$0xf]
    %v1040 = vld [vmem:[%s1 + $0x12d4] sm:$0xff]
    %v1041 = vld [vmem:[%s1 + $0x12dc] sm:$0xff]
    %v1042 = vld [vmem:[%s1 + $0x12e4] sm:$0xf]
    %v1043 = vld [vmem:[%s1 + $0x12e8] sm:$0xff]
    %v1044 = vld [vmem:[%s1 + $0x12f0] sm:$0xff]
    %v1045 = vld [vmem:[%s1 + $0x12f8] sm:$0xf]
    %v1046 = vld [vmem:[%s1 + $0x12fc] sm:$0xff]
    %v1047 = vld [vmem:[%s1 + $0x1304] sm:$0xff]
    %v1048 = vld [vmem:[%s1 + $0x130c] sm:$0xf]
    %v1049 = vld [vmem:[%s1 + $0x1310] sm:$0xff]
    %v1050 = vld [vmem:[%s1 + $0x1318] sm:$0xff]
    %v1051 = vld [vmem:[%s1 + $0x1320] sm:$0xf]
    %v1052 = vld [vmem:[%s1 + $0x1324] sm:$0xff]
    %v1053 = vld [vmem:[%s1 + $0x132c] sm:$0xff]
    %v1054 = vld [vmem:[%s1 + $0x1334] sm:$0xf]
    %v1055 = vld [vmem:[%s1 + $0x1338] sm:$0xff]
    %v1056 = vld [vmem:[%s1 + $0x1340] sm:$0xff]
    %v1057 = vld [vmem:[%s1 + $0x1348] sm:$0xf]
    %v1058 = vld [vmem:[%s1 + $0x134c] sm:$0xff]
    %v1059 = vld [vmem:[%s1 + $0x1354] sm:$0xff]
    %v1060 = vld [vmem:[%s1 + $0x135c] sm:$0xf]
    %v1061 = vld [vmem:[%s1 + $0x1360] sm:$0xff]
    %v1062 = vld [vmem:[%s1 + $0x1368] sm:$0xff]
    %v1063 = vld [vmem:[%s1 + $0x1370] sm:$0xf]
    %v1064 = vld [vmem:[%s1 + $0x1374] sm:$0xff]
    %v1065 = vld [vmem:[%s1 + $0x137c] sm:$0xff]
    %v1066 = vld [vmem:[%s1 + $0x1384] sm:$0xf]
    %v1067 = vld [vmem:[%s1 + $0x1388] sm:$0xff]
    %v1068 = vld [vmem:[%s1 + $0x1390] sm:$0xff]
    %v1069 = vld [vmem:[%s1 + $0x1398] sm:$0xf]
    %v1070 = vld [vmem:[%s1 + $0x139c] sm:$0xff]
    %v1071 = vld [vmem:[%s1 + $0x13a4] sm:$0xff]
    %v1072 = vld [vmem:[%s1 + $0x13ac] sm:$0xf]
    %v1073 = vld [vmem:[%s1 + $0x13b0] sm:$0xff]
    %v1074 = vld [vmem:[%s1 + $0x13b8] sm:$0xff]
    %v1075 = vld [vmem:[%s1 + $0x13c0] sm:$0xf]
    %v1076 = vld [vmem:[%s1 + $0x13c4] sm:$0xff]
    %v1077 = vld [vmem:[%s1 + $0x13cc] sm:$0xff]
    %v1078 = vld [vmem:[%s1 + $0x13d4] sm:$0xf]
    %v1079 = vld [vmem:[%s1 + $0x13d8] sm:$0xff]
    %v1080 = vld [vmem:[%s1 + $0x13e0] sm:$0xff]
    %v1081 = vld [vmem:[%s1 + $0x13e8] sm:$0xf]
    %v1082 = vld [vmem:[%s1 + $0x13ec] sm:$0xff]
    %v1083 = vld [vmem:[%s1 + $0x13f4] sm:$0xff]
    %v1084 = vld [vmem:[%s1 + $0x13fc] sm:$0xf]
    %v1085 = vld [vmem:[%s1 + $0x1400] sm:$0xff]
    %v1086 = vld [vmem:[%s1 + $0x1408] sm:$0xff]
    %v1087 = vld [vmem:[%s1 + $0x1410] sm:$0xf]
    %v1088 = vld [vmem:[%s1 + $0x1414] sm:$0xff]
    %v1089 = vld [vmem:[%s1 + $0x141c] sm:$0xff]
    %v1090 = vld [vmem:[%s1 + $0x1424] sm:$0xf]
    %v1091 = vld [vmem:[%s1 + $0x1428] sm:$0xff]
    %v1092 = vld [vmem:[%s1 + $0x1430] sm:$0xff]
    %v1093 = vld [vmem:[%s1 + $0x1438] sm:$0xf]
    %v1094 = vld [vmem:[%s1 + $0x143c] sm:$0xff]
    %v1095 = vld [vmem:[%s1 + $0x1444] sm:$0xff]
    %v1096 = vld [vmem:[%s1 + $0x144c] sm:$0xf]
    %v1097 = vld [vmem:[%s1 + $0x1450] sm:$0xff]
    %v1098 = vld [vmem:[%s1 + $0x1458] sm:$0xff]
    %v1099 = vld [vmem:[%s1 + $0x1460] sm:$0xf]
    %v1100 = vld [vmem:[%s1 + $0x1464] sm:$0xff]
    %v1101 = vld [vmem:[%s1 + $0x146c] sm:$0xff]
    %v1102 = vld [vmem:[%s1 + $0x1474] sm:$0xf]
    %v1103 = vld [vmem:[%s1 + $0x1478] sm:$0xff]
    %v1104 = vld [vmem:[%s1 + $0x1480] sm:$0xff]
    %v1105 = vld [vmem:[%s1 + $0x1488] sm:$0xf]
    %v1106 = vld [vmem:[%s1 + $0x148c] sm:$0xff]
    %v1107 = vld [vmem:[%s1 + $0x1494] sm:$0xff]
    %v1108 = vld [vmem:[%s1 + $0x149c] sm:$0xf]
    %v1109 = vld [vmem:[%s1 + $0x14a0] sm:$0xff]
    %v1110 = vld [vmem:[%s1 + $0x14a8] sm:$0xff]
    %v1111 = vld [vmem:[%s1 + $0x14b0] sm:$0xf]
    %v1112 = vld [vmem:[%s1 + $0x14b4] sm:$0xff]
    %v1113 = vld [vmem:[%s1 + $0x14bc] sm:$0xff]
    %v1114 = vld [vmem:[%s1 + $0x14c4] sm:$0xf]
    %v1115 = vld [vmem:[%s1 + $0x14c8] sm:$0xff]
    %v1116 = vld [vmem:[%s1 + $0x14d0] sm:$0xff]
    %v1117 = vld [vmem:[%s1 + $0x14d8] sm:$0xf]
    %v1118 = vld [vmem:[%s1 + $0x14dc] sm:$0xff]
    %v1119 = vld [vmem:[%s1 + $0x14e4] sm:$0xff]
    %v1120 = vld [vmem:[%s1 + $0x14ec] sm:$0xf]
    %v1121 = vld [vmem:[%s1 + $0x14f0] sm:$0xff]
    %v1122 = vld [vmem:[%s1 + $0x14f8] sm:$0xff]
    %v1123 = vld [vmem:[%s1 + $0x1500] sm:$0xf]
    %v1124 = vld [vmem:[%s1 + $0x1504] sm:$0xff]
    %v1125 = vld [vmem:[%s1 + $0x150c] sm:$0xff]
    %v1126 = vld [vmem:[%s1 + $0x1514] sm:$0xf]
    %v1127 = vld [vmem:[%s1 + $0x1518] sm:$0xff]
    %v1128 = vld [vmem:[%s1 + $0x1520] sm:$0xff]
    %v1129 = vld [vmem:[%s1 + $0x1528] sm:$0xf]
    %v1130 = vld [vmem:[%s1 + $0x152c] sm:$0xff]
    %v1131 = vld [vmem:[%s1 + $0x1534] sm:$0xff]
    %v1132 = vld [vmem:[%s1 + $0x153c] sm:$0xf]
    %v1133 = vld [vmem:[%s1 + $0x1540] sm:$0xff]
    %v1134 = vld [vmem:[%s1 + $0x1548] sm:$0xff]
    %v1135 = vld [vmem:[%s1 + $0x1550] sm:$0xf]
    %v1136 = vld [vmem:[%s1 + $0x1554] sm:$0xff]
    %v1137 = vld [vmem:[%s1 + $0x155c] sm:$0xff]
    %v1138 = vld [vmem:[%s1 + $0x1564] sm:$0xf]
    %v1139 = vld [vmem:[%s1 + $0x1568] sm:$0xff]
    %v1140 = vld [vmem:[%s1 + $0x1570] sm:$0xff]
    %v1141 = vld [vmem:[%s1 + $0x1578] sm:$0xf]
    %v1142 = vld [vmem:[%s1 + $0x157c] sm:$0xff]
    %v1143 = vld [vmem:[%s1 + $0x1584] sm:$0xff]
    %v1144 = vld [vmem:[%s1 + $0x158c] sm:$0xf]
    %v1145 = vld [vmem:[%s1 + $0x1590] sm:$0xff]
    %v1146 = vld [vmem:[%s1 + $0x1598] sm:$0xff]
    %v1147 = vld [vmem:[%s1 + $0x15a0] sm:$0xf]
    %v1148 = vld [vmem:[%s1 + $0x15a4] sm:$0xff]
    %v1149 = vld [vmem:[%s1 + $0x15ac] sm:$0xff]
    %v1150 = vld [vmem:[%s1 + $0x15b4] sm:$0xf]
    %v1151 = vld [vmem:[%s1 + $0x15b8] sm:$0xff]
    %v1152 = vld [vmem:[%s1 + $0x15c0] sm:$0xff]
    %v1153 = vld [vmem:[%s1 + $0x15c8] sm:$0xf]
    %v1154 = vld [vmem:[%s1 + $0x15cc] sm:$0xff]
    %v1155 = vld [vmem:[%s1 + $0x15d4] sm:$0xff]
    %v1156 = vld [vmem:[%s1 + $0x15dc] sm:$0xf]
    %v1157 = vld [vmem:[%s1 + $0x15e0] sm:$0xff]
    %v1158 = vld [vmem:[%s1 + $0x15e8] sm:$0xff]
    %v1159 = vld [vmem:[%s1 + $0x15f0] sm:$0xf]
    %v1160 = vld [vmem:[%s1 + $0x15f4] sm:$0xff]
    %v1161 = vld [vmem:[%s1 + $0x15fc] sm:$0xff]
    %v1162 = vld [vmem:[%s1 + $0x1604] sm:$0xf]
    %v1163 = vld [vmem:[%s1 + $0x1608] sm:$0xff]
    %v1164 = vld [vmem:[%s1 + $0x1610] sm:$0xff]
    %v1165 = vld [vmem:[%s1 + $0x1618] sm:$0xf]
    %v1166 = vld [vmem:[%s1 + $0x161c] sm:$0xff]
    %v1167 = vld [vmem:[%s1 + $0x1624] sm:$0xff]
    %v1168 = vld [vmem:[%s1 + $0x162c] sm:$0xf]
    %v1169 = vld [vmem:[%s1 + $0x1630] sm:$0xff]
    %v1170 = vld [vmem:[%s1 + $0x1638] sm:$0xff]
    %v1171 = vld [vmem:[%s1 + $0x1640] sm:$0xf]
    %v1172 = vld [vmem:[%s1 + $0x1644] sm:$0xff]
    %v1173 = vld [vmem:[%s1 + $0x164c] sm:$0xff]
    %v1174 = vld [vmem:[%s1 + $0x1654] sm:$0xf]
    %v1175 = vld [vmem:[%s1 + $0x1658] sm:$0xff]
    %v1176 = vld [vmem:[%s1 + $0x1660] sm:$0xff]
    %v1177 = vld [vmem:[%s1 + $0x1668] sm:$0xf]
    %v1178 = vld [vmem:[%s1 + $0x166c] sm:$0xff]
    %v1179 = vld [vmem:[%s1 + $0x1674] sm:$0xff]
    %v1180 = vld [vmem:[%s1 + $0x167c] sm:$0xf]
    %v1181 = vld [vmem:[%s1 + $0x1680] sm:$0xff]
    %v1182 = vld [vmem:[%s1 + $0x1688] sm:$0xff]
    %v1183 = vld [vmem:[%s1 + $0x1690] sm:$0xf]
    %v1184 = vld [vmem:[%s1 + $0x1694] sm:$0xff]
    %v1185 = vld [vmem:[%s1 + $0x169c] sm:$0xff]
    %v1186 = vld [vmem:[%s1 + $0x16a4] sm:$0xf]
    %v1187 = vld [vmem:[%s1 + $0x16a8] sm:$0xff]
    %v1188 = vld [vmem:[%s1 + $0x16b0] sm:$0xff]
    %v1189 = vld [vmem:[%s1 + $0x16b8] sm:$0xf]
    %v1190 = vld [vmem:[%s1 + $0x16bc] sm:$0xff]
    %v1191 = vld [vmem:[%s1 + $0x16c4] sm:$0xff]
    %v1192 = vld [vmem:[%s1 + $0x16cc] sm:$0xf]
    %v1193 = vld [vmem:[%s1 + $0x16d0] sm:$0xff]
    %v1194 = vld [vmem:[%s1 + $0x16d8] sm:$0xff]
    %v1195 = vld [vmem:[%s1 + $0x16e0] sm:$0xf]
    %v1196 = vld [vmem:[%s1 + $0x16e4] sm:$0xff]
    %v1197 = vld [vmem:[%s1 + $0x16ec] sm:$0xff]
    %v1198 = vld [vmem:[%s1 + $0x16f4] sm:$0xf]
    %v1199 = vld [vmem:[%s1 + $0x16f8] sm:$0xff]
    %v1200 = vld [vmem:[%s1 + $0x1700] sm:$0xff]
    %v1201 = vld [vmem:[%s1 + $0x1708] sm:$0xf]
    %v1202 = vld [vmem:[%s1 + $0x170c] sm:$0xff]
    %v1203 = vld [vmem:[%s1 + $0x1714] sm:$0xff]
    %v1204 = vld [vmem:[%s1 + $0x171c] sm:$0xf]
    %v1205 = vld [vmem:[%s1 + $0x1720] sm:$0xff]
    %v1206 = vld [vmem:[%s1 + $0x1728] sm:$0xff]
    %v1207 = vld [vmem:[%s1 + $0x1730] sm:$0xf]
    %v1208 = vld [vmem:[%s1 + $0x1734] sm:$0xff]
    %v1209 = vld [vmem:[%s1 + $0x173c] sm:$0xff]
    %v1210 = vld [vmem:[%s1 + $0x1744] sm:$0xf]
    %v1211 = vld [vmem:[%s1 + $0x1748] sm:$0xff]
    %v1212 = vld [vmem:[%s1 + $0x1750] sm:$0xff]
    %v1213 = vld [vmem:[%s1 + $0x1758] sm:$0xf]
    %v1214 = vld [vmem:[%s1 + $0x175c] sm:$0xff]
    %v1215 = vld [vmem:[%s1 + $0x1764] sm:$0xff]
    %v1216 = vld [vmem:[%s1 + $0x176c] sm:$0xf]
    %v1217 = vld [vmem:[%s1 + $0x1770] sm:$0xff]
    %v1218 = vld [vmem:[%s1 + $0x1778] sm:$0xff]
    %v1219 = vld [vmem:[%s1 + $0x1780] sm:$0xf]
    %v1220 = vld [vmem:[%s1 + $0x1784] sm:$0xff]
    %v1221 = vld [vmem:[%s1 + $0x178c] sm:$0xff]
    %v1222 = vld [vmem:[%s1 + $0x1794] sm:$0xf]
    %v1223 = vld [vmem:[%s1 + $0x1798] sm:$0xff]
    %v1224 = vld [vmem:[%s1 + $0x17a0] sm:$0xff]
    %v1225 = vld [vmem:[%s1 + $0x17a8] sm:$0xf]
    %v1226 = vld [vmem:[%s1 + $0x17ac] sm:$0xff]
    %v1227 = vld [vmem:[%s1 + $0x17b4] sm:$0xff]
    %v1228 = vld [vmem:[%s1 + $0x17bc] sm:$0xf]
    %v1229 = vld [vmem:[%s1 + $0x17c0] sm:$0xff]
    %v1230 = vld [vmem:[%s1 + $0x17c8] sm:$0xff]
    %v1231 = vld [vmem:[%s1 + $0x17d0] sm:$0xf]
    %v1232 = vld [vmem:[%s1 + $0x17d4] sm:$0xff]
    %v1233 = vld [vmem:[%s1 + $0x17dc] sm:$0xff]
    %v1234 = vld [vmem:[%s1 + $0x17e4] sm:$0xf]
    %v1235 = vld [vmem:[%s1 + $0x17e8] sm:$0xff]
    %v1236 = vld [vmem:[%s1 + $0x17f0] sm:$0xff]
    %v1237 = vld [vmem:[%s1 + $0x17f8] sm:$0xf]
    %v1238 = vld [vmem:[%s1 + $0x17fc] sm:$0xff]
    %v1239 = vld [vmem:[%s1 + $0x1804] sm:$0xff]
    %v1240 = vld [vmem:[%s1 + $0x180c] sm:$0xf]
    %v1241 = vld [vmem:[%s1 + $0x1810] sm:$0xff]
    %v1242 = vld [vmem:[%s1 + $0x1818] sm:$0xff]
    %v1243 = vld [vmem:[%s1 + $0x1820] sm:$0xf]
    %v1244 = vld [vmem:[%s1 + $0x1824] sm:$0xff]
    %v1245 = vld [vmem:[%s1 + $0x182c] sm:$0xff]
    %v1246 = vld [vmem:[%s1 + $0x1834] sm:$0xf]
    %v1247 = vld [vmem:[%s1 + $0x1838] sm:$0xff]
    %v1248 = vld [vmem:[%s1 + $0x1840] sm:$0xff]
    %v1249 = vld [vmem:[%s1 + $0x1848] sm:$0xf]
    %v1250 = vld [vmem:[%s1 + $0x184c] sm:$0xff]
    %v1251 = vld [vmem:[%s1 + $0x1854] sm:$0xff]
    %v1252 = vld [vmem:[%s1 + $0x185c] sm:$0xf]
    %v1253 = vld [vmem:[%s1 + $0x1860] sm:$0xff]
    %v1254 = vld [vmem:[%s1 + $0x1868] sm:$0xff]
    %v1255 = vld [vmem:[%s1 + $0x1870] sm:$0xf]
    %v1256 = vld [vmem:[%s1 + $0x1874] sm:$0xff]
    %v1257 = vld [vmem:[%s1 + $0x187c] sm:$0xff]
    %v1258 = vld [vmem:[%s1 + $0x1884] sm:$0xf]
    %v1259 = vld [vmem:[%s1 + $0x1888] sm:$0xff]
    %v1260 = vld [vmem:[%s1 + $0x1890] sm:$0xff]
    %v1261 = vld [vmem:[%s1 + $0x1898] sm:$0xf]
    %v1262 = vld [vmem:[%s1 + $0x189c] sm:$0xff]
    %v1263 = vld [vmem:[%s1 + $0x18a4] sm:$0xff]
    %v1264 = vld [vmem:[%s1 + $0x18ac] sm:$0xf]
    %v1265 = vld [vmem:[%s1 + $0x18b0] sm:$0xff]
    %v1266 = vld [vmem:[%s1 + $0x18b8] sm:$0xff]
    %v1267 = vld [vmem:[%s1 + $0x18c0] sm:$0xf]
    %v1268 = vld [vmem:[%s1 + $0x18c4] sm:$0xff]
    %v1269 = vld [vmem:[%s1 + $0x18cc] sm:$0xff]
    %v1270 = vld [vmem:[%s1 + $0x18d4] sm:$0xf]
    %v1271 = vld [vmem:[%s1 + $0x18d8] sm:$0xff]
    %v1272 = vld [vmem:[%s1 + $0x18e0] sm:$0xff]
    %v1273 = vld [vmem:[%s1 + $0x18e8] sm:$0xf]
    %v1274 = vld [vmem:[%s1 + $0x18ec] sm:$0xff]
    %v1275 = vld [vmem:[%s1 + $0x18f4] sm:$0xff]
    %v1276 = vld [vmem:[%s1 + $0x18fc] sm:$0xf]
    %v1277 = vpack.c.bf16 %v297, %v46
    %v1278 = vpack.c.bf16 %v298, %v47
    %v1279 = vpack.c.bf16 %v299, %v48
    %v1280 = vpack.c.bf16 %v300, %v49
    %v1281 = vpack.c.bf16 %v301, %v50
    %v1282 = vpack.c.bf16 %v302, %v51
    %v1283 = vpack.c.bf16 %v303, %v52
    %v1284 = vpack.c.bf16 %v304, %v53
    %v1285 = vpack.c.bf16 %v305, %v54
    %v1286 = vpack.c.bf16 %v306, %v55
    %v1287 = vpack.c.bf16 %v307, %v89
    %v1288 = vpack.c.bf16 %v308, %v92
    %v1289 = vpack.c.bf16 %v309, %v95
    %v1290 = vpack.c.bf16 %v310, %v98
    %v1291 = vpack.c.bf16 %v311, %v101
    %v1292 = vpack.c.bf16 %v312, %v104
    %v1293 = vpack.c.bf16 %v313, %v107
    %v1294 = vpack.c.bf16 %v314, %v110
    %v1295 = vpack.c.bf16 %v315, %v113
    %v1296 = vpack.c.bf16 %v316, %v116
    %v1297 = vpack.c.bf16 %v178, %v179
    %v1298 = vpack.c.bf16 %v181, %v182
    %v1299 = vpack.c.bf16 %v184, %v185
    %v1300 = vpack.c.bf16 %v187, %v188
    %v1301 = vpack.c.bf16 %v190, %v191
    %v1302 = vpack.c.bf16 %v193, %v194
    %v1303 = vpack.c.bf16 %v196, %v197
    %v1304 = vpack.c.bf16 %v199, %v200
    %v1305 = vpack.c.bf16 %v202, %v203
    %v1306 = vpack.c.bf16 %v205, %v206
    %v1307 = vpack.c.bf16 %v217, %v218
    %v1308 = vpack.c.bf16 %v219, %v220
    %v1309 = vpack.c.bf16 %v221, %v222
    %v1310 = vpack.c.bf16 %v223, %v224
    %v1311 = vpack.c.bf16 %v225, %v226
    %v1312 = vpack.c.bf16 %v227, %v228
    %v1313 = vpack.c.bf16 %v229, %v230
    %v1314 = vpack.c.bf16 %v231, %v232
    %v1315 = vpack.c.bf16 %v233, %v234
    %v1316 = vpack.c.bf16 %v235, %v236
    %v1317 = vld [vmem:[%s2] sm:$0x1f]
    %v1319 = vlaneseq
    %v1320 = vshrl.u32 %v1319, 7
    %v1321 = vsub.s32 0, %v1320
    %v1322 = vrot.slane %v1317, %v1321
    %v1323 = vlaneseq
    %v1324 = vshrl.u32 %v1323, 7
    %v1325 = vsub.s32 1, %v1324
    %v1326 = vrot.slane %v1317, %v1325
    %v1327 = vlaneseq
    %v1328 = vshrl.u32 %v1327, 7
    %v1329 = vsub.s32 2, %v1328
    %v1330 = vrot.slane %v1317, %v1329
    %v1331 = vlaneseq
    %v1332 = vshrl.u32 %v1331, 7
    %v1333 = vsub.s32 3, %v1332
    %v1334 = vrot.slane %v1317, %v1333
    %v1335 = vlaneseq
    %v1336 = vshrl.u32 %v1335, 7
    %v1337 = vsub.s32 4, %v1336
    %v1338 = vrot.slane %v1317, %v1337
    %v2304 = vunpack.c.l.b16 %v317
    %v2305 = vunpack.c.h.b16 %v317
    %v2306 = vunpack.c.l.b16 %v318
    %v2307 = vunpack.c.h.b16 %v318
    %v2308 = vunpack.c.l.b16 %v319
    %v2309 = vunpack.c.l.b16 %v320
    %v2310 = vunpack.c.h.b16 %v320
    %v2311 = vunpack.c.l.b16 %v321
    %v2312 = vunpack.c.h.b16 %v321
    %v2313 = vunpack.c.l.b16 %v322
    %v2314 = vunpack.c.l.b16 %v323
    %v2315 = vunpack.c.h.b16 %v323
    %v2316 = vunpack.c.l.b16 %v324
    %v2317 = vunpack.c.h.b16 %v324
    %v2318 = vunpack.c.l.b16 %v325
    %v2319 = vunpack.c.l.b16 %v326
    %v2320 = vunpack.c.h.b16 %v326
    %v2321 = vunpack.c.l.b16 %v327
    %v2322 = vunpack.c.h.b16 %v327
    %v2323 = vunpack.c.l.b16 %v328
    %v2324 = vunpack.c.l.b16 %v329
    %v2325 = vunpack.c.h.b16 %v329
    %v2326 = vunpack.c.l.b16 %v330
    %v2327 = vunpack.c.h.b16 %v330
    %v2328 = vunpack.c.l.b16 %v331
    %v2329 = vunpack.c.l.b16 %v332
    %v2330 = vunpack.c.h.b16 %v332
    %v2331 = vunpack.c.l.b16 %v333
    %v2332 = vunpack.c.h.b16 %v333
    %v2333 = vunpack.c.l.b16 %v334
    %v2334 = vunpack.c.l.b16 %v335
    %v2335 = vunpack.c.h.b16 %v335
    %v2336 = vunpack.c.l.b16 %v336
    %v2337 = vunpack.c.h.b16 %v336
    %v2338 = vunpack.c.l.b16 %v337
    %v2339 = vunpack.c.l.b16 %v338
    %v2340 = vunpack.c.h.b16 %v338
    %v2341 = vunpack.c.l.b16 %v339
    %v2342 = vunpack.c.h.b16 %v339
    %v2343 = vunpack.c.l.b16 %v340
    %v2344 = vunpack.c.l.b16 %v341
    %v2345 = vunpack.c.h.b16 %v341
    %v2346 = vunpack.c.l.b16 %v342
    %v2347 = vunpack.c.h.b16 %v342
    %v2348 = vunpack.c.l.b16 %v343
    %v2349 = vunpack.c.l.b16 %v344
    %v2350 = vunpack.c.h.b16 %v344
    %v2351 = vunpack.c.l.b16 %v345
    %v2352 = vunpack.c.h.b16 %v345
    %v2353 = vunpack.c.l.b16 %v346
    %v2354 = vunpack.c.l.b16 %v347
    %v2355 = vunpack.c.h.b16 %v347
    %v2356 = vunpack.c.l.b16 %v348
    %v2357 = vunpack.c.h.b16 %v348
    %v2358 = vunpack.c.l.b16 %v349
    %v2359 = vunpack.c.l.b16 %v350
    %v2360 = vunpack.c.h.b16 %v350
    %v2361 = vunpack.c.l.b16 %v351
    %v2362 = vunpack.c.h.b16 %v351
    %v2363 = vunpack.c.l.b16 %v352
    %v2364 = vunpack.c.l.b16 %v353
    %v2365 = vunpack.c.h.b16 %v353
    %v2366 = vunpack.c.l.b16 %v354
    %v2367 = vunpack.c.h.b16 %v354
    %v2368 = vunpack.c.l.b16 %v355
    %v2369 = vunpack.c.l.b16 %v356
    %v2370 = vunpack.c.h.b16 %v356
    %v2371 = vunpack.c.l.b16 %v357
    %v2372 = vunpack.c.h.b16 %v357
    %v2373 = vunpack.c.l.b16 %v358
    %v2374 = vunpack.c.l.b16 %v359
    %v2375 = vunpack.c.h.b16 %v359
    %v2376 = vunpack.c.l.b16 %v360
    %v2377 = vunpack.c.h.b16 %v360
    %v2378 = vunpack.c.l.b16 %v361
    %v2379 = vunpack.c.l.b16 %v362
    %v2380 = vunpack.c.h.b16 %v362
    %v2381 = vunpack.c.l.b16 %v363
    %v2382 = vunpack.c.h.b16 %v363
    %v2383 = vunpack.c.l.b16 %v364
    %v2384 = vunpack.c.l.b16 %v365
    %v2385 = vunpack.c.h.b16 %v365
    %v2386 = vunpack.c.l.b16 %v366
    %v2387 = vunpack.c.h.b16 %v366
    %v2388 = vunpack.c.l.b16 %v367
    %v2389 = vunpack.c.l.b16 %v368
    %v2390 = vunpack.c.h.b16 %v368
    %v2391 = vunpack.c.l.b16 %v369
    %v2392 = vunpack.c.h.b16 %v369
    %v2393 = vunpack.c.l.b16 %v370
    %v2394 = vunpack.c.l.b16 %v371
    %v2395 = vunpack.c.h.b16 %v371
    %v2396 = vunpack.c.l.b16 %v372
    %v2397 = vunpack.c.h.b16 %v372
    %v2398 = vunpack.c.l.b16 %v373
    %v2399 = vunpack.c.l.b16 %v374
    %v2400 = vunpack.c.h.b16 %v374
    %v2401 = vunpack.c.l.b16 %v375
    %v2402 = vunpack.c.h.b16 %v375
    %v2403 = vunpack.c.l.b16 %v376
    %v2404 = vunpack.c.l.b16 %v377
    %v2405 = vunpack.c.h.b16 %v377
    %v2406 = vunpack.c.l.b16 %v378
    %v2407 = vunpack.c.h.b16 %v378
    %v2408 = vunpack.c.l.b16 %v379
    %v2409 = vunpack.c.l.b16 %v380
    %v2410 = vunpack.c.h.b16 %v380
    %v2411 = vunpack.c.l.b16 %v381
    %v2412 = vunpack.c.h.b16 %v381
    %v2413 = vunpack.c.l.b16 %v382
    %v2414 = vunpack.c.l.b16 %v383
    %v2415 = vunpack.c.h.b16 %v383
    %v2416 = vunpack.c.l.b16 %v384
    %v2417 = vunpack.c.h.b16 %v384
    %v2418 = vunpack.c.l.b16 %v385
    %v2419 = vunpack.c.l.b16 %v386
    %v2420 = vunpack.c.h.b16 %v386
    %v2421 = vunpack.c.l.b16 %v387
    %v2422 = vunpack.c.h.b16 %v387
    %v2423 = vunpack.c.l.b16 %v388
    %v2424 = vunpack.c.l.b16 %v389
    %v2425 = vunpack.c.h.b16 %v389
    %v2426 = vunpack.c.l.b16 %v390
    %v2427 = vunpack.c.h.b16 %v390
    %v2428 = vunpack.c.l.b16 %v391
    %v2429 = vunpack.c.l.b16 %v392
    %v2430 = vunpack.c.h.b16 %v392
    %v2431 = vunpack.c.l.b16 %v393
    %v2432 = vunpack.c.h.b16 %v393
    %v2433 = vunpack.c.l.b16 %v394
    %v2434 = vunpack.c.l.b16 %v395
    %v2435 = vunpack.c.h.b16 %v395
    %v2436 = vunpack.c.l.b16 %v396
    %v2437 = vunpack.c.h.b16 %v396
    %v2438 = vunpack.c.l.b16 %v397
    %v2439 = vunpack.c.l.b16 %v398
    %v2440 = vunpack.c.h.b16 %v398
    %v2441 = vunpack.c.l.b16 %v399
    %v2442 = vunpack.c.h.b16 %v399
    %v2443 = vunpack.c.l.b16 %v400
    %v2444 = vunpack.c.l.b16 %v401
    %v2445 = vunpack.c.h.b16 %v401
    %v2446 = vunpack.c.l.b16 %v402
    %v2447 = vunpack.c.h.b16 %v402
    %v2448 = vunpack.c.l.b16 %v403
    %v2449 = vunpack.c.l.b16 %v404
    %v2450 = vunpack.c.h.b16 %v404
    %v2451 = vunpack.c.l.b16 %v405
    %v2452 = vunpack.c.h.b16 %v405
    %v2453 = vunpack.c.l.b16 %v406
    %v2454 = vunpack.c.l.b16 %v407
    %v2455 = vunpack.c.h.b16 %v407
    %v2456 = vunpack.c.l.b16 %v408
    %v2457 = vunpack.c.h.b16 %v408
    %v2458 = vunpack.c.l.b16 %v409
    %v2459 = vunpack.c.l.b16 %v410
    %v2460 = vunpack.c.h.b16 %v410
    %v2461 = vunpack.c.l.b16 %v411
    %v2462 = vunpack.c.h.b16 %v411
    %v2463 = vunpack.c.l.b16 %v412
    %v2464 = vunpack.c.l.b16 %v413
    %v2465 = vunpack.c.h.b16 %v413
    %v2466 = vunpack.c.l.b16 %v414
    %v2467 = vunpack.c.h.b16 %v414
    %v2468 = vunpack.c.l.b16 %v415
    %v2469 = vunpack.c.l.b16 %v416
    %v2470 = vunpack.c.h.b16 %v416
    %v2471 = vunpack.c.l.b16 %v417
    %v2472 = vunpack.c.h.b16 %v417
    %v2473 = vunpack.c.l.b16 %v418
    %v2474 = vunpack.c.l.b16 %v419
    %v2475 = vunpack.c.h.b16 %v419
    %v2476 = vunpack.c.l.b16 %v420
    %v2477 = vunpack.c.h.b16 %v420
    %v2478 = vunpack.c.l.b16 %v421
    %v2479 = vunpack.c.l.b16 %v422
    %v2480 = vunpack.c.h.b16 %v422
    %v2481 = vunpack.c.l.b16 %v423
    %v2482 = vunpack.c.h.b16 %v423
    %v2483 = vunpack.c.l.b16 %v424
    %v2484 = vunpack.c.l.b16 %v425
    %v2485 = vunpack.c.h.b16 %v425
    %v2486 = vunpack.c.l.b16 %v426
    %v2487 = vunpack.c.h.b16 %v426
    %v2488 = vunpack.c.l.b16 %v427
    %v2489 = vunpack.c.l.b16 %v428
    %v2490 = vunpack.c.h.b16 %v428
    %v2491 = vunpack.c.l.b16 %v429
    %v2492 = vunpack.c.h.b16 %v429
    %v2493 = vunpack.c.l.b16 %v430
    %v2494 = vunpack.c.l.b16 %v431
    %v2495 = vunpack.c.h.b16 %v431
    %v2496 = vunpack.c.l.b16 %v432
    %v2497 = vunpack.c.h.b16 %v432
    %v2498 = vunpack.c.l.b16 %v433
    %v2499 = vunpack.c.l.b16 %v434
    %v2500 = vunpack.c.h.b16 %v434
    %v2501 = vunpack.c.l.b16 %v435
    %v2502 = vunpack.c.h.b16 %v435
    %v2503 = vunpack.c.l.b16 %v436
    %v2504 = vunpack.c.l.b16 %v437
    %v2505 = vunpack.c.h.b16 %v437
    %v2506 = vunpack.c.l.b16 %v438
    %v2507 = vunpack.c.h.b16 %v438
    %v2508 = vunpack.c.l.b16 %v439
    %v2509 = vunpack.c.l.b16 %v440
    %v2510 = vunpack.c.h.b16 %v440
    %v2511 = vunpack.c.l.b16 %v441
    %v2512 = vunpack.c.h.b16 %v441
    %v2513 = vunpack.c.l.b16 %v442
    %v2514 = vunpack.c.l.b16 %v443
    %v2515 = vunpack.c.h.b16 %v443
    %v2516 = vunpack.c.l.b16 %v444
    %v2517 = vunpack.c.h.b16 %v444
    %v2518 = vunpack.c.l.b16 %v445
    %v2519 = vunpack.c.l.b16 %v446
    %v2520 = vunpack.c.h.b16 %v446
    %v2521 = vunpack.c.l.b16 %v447
    %v2522 = vunpack.c.h.b16 %v447
    %v2523 = vunpack.c.l.b16 %v448
    %v2524 = vunpack.c.l.b16 %v449
    %v2525 = vunpack.c.h.b16 %v449
    %v2526 = vunpack.c.l.b16 %v450
    %v2527 = vunpack.c.h.b16 %v450
    %v2528 = vunpack.c.l.b16 %v451
    %v2529 = vunpack.c.l.b16 %v452
    %v2530 = vunpack.c.h.b16 %v452
    %v2531 = vunpack.c.l.b16 %v453
    %v2532 = vunpack.c.h.b16 %v453
    %v2533 = vunpack.c.l.b16 %v454
    %v2534 = vunpack.c.l.b16 %v455
    %v2535 = vunpack.c.h.b16 %v455
    %v2536 = vunpack.c.l.b16 %v456
    %v2537 = vunpack.c.h.b16 %v456
    %v2538 = vunpack.c.l.b16 %v457
    %v2539 = vunpack.c.l.b16 %v458
    %v2540 = vunpack.c.h.b16 %v458
    %v2541 = vunpack.c.l.b16 %v459
    %v2542 = vunpack.c.h.b16 %v459
    %v2543 = vunpack.c.l.b16 %v460
    %v2544 = vunpack.c.l.b16 %v461
    %v2545 = vunpack.c.h.b16 %v461
    %v2546 = vunpack.c.l.b16 %v462
    %v2547 = vunpack.c.h.b16 %v462
    %v2548 = vunpack.c.l.b16 %v463
    %v2549 = vunpack.c.l.b16 %v464
    %v2550 = vunpack.c.h.b16 %v464
    %v2551 = vunpack.c.l.b16 %v465
    %v2552 = vunpack.c.h.b16 %v465
    %v2553 = vunpack.c.l.b16 %v466
    %v2554 = vunpack.c.l.b16 %v467
    %v2555 = vunpack.c.h.b16 %v467
    %v2556 = vunpack.c.l.b16 %v468
    %v2557 = vunpack.c.h.b16 %v468
    %v2558 = vunpack.c.l.b16 %v469
    %v2559 = vunpack.c.l.b16 %v470
    %v2560 = vunpack.c.h.b16 %v470
    %v2561 = vunpack.c.l.b16 %v471
    %v2562 = vunpack.c.h.b16 %v471
    %v2563 = vunpack.c.l.b16 %v472
    %v2564 = vunpack.c.l.b16 %v473
    %v2565 = vunpack.c.h.b16 %v473
    %v2566 = vunpack.c.l.b16 %v474
    %v2567 = vunpack.c.h.b16 %v474
    %v2568 = vunpack.c.l.b16 %v475
    %v2569 = vunpack.c.l.b16 %v476
    %v2570 = vunpack.c.h.b16 %v476
    %v2571 = vunpack.c.l.b16 %v477
    %v2572 = vunpack.c.h.b16 %v477
    %v2573 = vunpack.c.l.b16 %v478
    %v2574 = vunpack.c.l.b16 %v479
    %v2575 = vunpack.c.h.b16 %v479
    %v2576 = vunpack.c.l.b16 %v480
    %v2577 = vunpack.c.h.b16 %v480
    %v2578 = vunpack.c.l.b16 %v481
    %v2579 = vunpack.c.l.b16 %v482
    %v2580 = vunpack.c.h.b16 %v482
    %v2581 = vunpack.c.l.b16 %v483
    %v2582 = vunpack.c.h.b16 %v483
    %v2583 = vunpack.c.l.b16 %v484
    %v2584 = vunpack.c.l.b16 %v485
    %v2585 = vunpack.c.h.b16 %v485
    %v2586 = vunpack.c.l.b16 %v486
    %v2587 = vunpack.c.h.b16 %v486
    %v2588 = vunpack.c.l.b16 %v487
    %v2589 = vunpack.c.l.b16 %v488
    %v2590 = vunpack.c.h.b16 %v488
    %v2591 = vunpack.c.l.b16 %v489
    %v2592 = vunpack.c.h.b16 %v489
    %v2593 = vunpack.c.l.b16 %v490
    %v2594 = vunpack.c.l.b16 %v491
    %v2595 = vunpack.c.h.b16 %v491
    %v2596 = vunpack.c.l.b16 %v492
    %v2597 = vunpack.c.h.b16 %v492
    %v2598 = vunpack.c.l.b16 %v493
    %v2599 = vunpack.c.l.b16 %v494
    %v2600 = vunpack.c.h.b16 %v494
    %v2601 = vunpack.c.l.b16 %v495
    %v2602 = vunpack.c.h.b16 %v495
    %v2603 = vunpack.c.l.b16 %v496
    %v2604 = vunpack.c.l.b16 %v497
    %v2605 = vunpack.c.h.b16 %v497
    %v2606 = vunpack.c.l.b16 %v498
    %v2607 = vunpack.c.h.b16 %v498
    %v2608 = vunpack.c.l.b16 %v499
    %v2609 = vunpack.c.l.b16 %v500
    %v2610 = vunpack.c.h.b16 %v500
    %v2611 = vunpack.c.l.b16 %v501
    %v2612 = vunpack.c.h.b16 %v501
    %v2613 = vunpack.c.l.b16 %v502
    %v2614 = vunpack.c.l.b16 %v503
    %v2615 = vunpack.c.h.b16 %v503
    %v2616 = vunpack.c.l.b16 %v504
    %v2617 = vunpack.c.h.b16 %v504
    %v2618 = vunpack.c.l.b16 %v505
    %v2619 = vunpack.c.l.b16 %v506
    %v2620 = vunpack.c.h.b16 %v506
    %v2621 = vunpack.c.l.b16 %v507
    %v2622 = vunpack.c.h.b16 %v507
    %v2623 = vunpack.c.l.b16 %v508
    %v2624 = vunpack.c.l.b16 %v509
    %v2625 = vunpack.c.h.b16 %v509
    %v2626 = vunpack.c.l.b16 %v510
    %v2627 = vunpack.c.h.b16 %v510
    %v2628 = vunpack.c.l.b16 %v511
    %v2629 = vunpack.c.l.b16 %v512
    %v2630 = vunpack.c.h.b16 %v512
    %v2631 = vunpack.c.l.b16 %v513
    %v2632 = vunpack.c.h.b16 %v513
    %v2633 = vunpack.c.l.b16 %v514
    %v2634 = vunpack.c.l.b16 %v515
    %v2635 = vunpack.c.h.b16 %v515
    %v2636 = vunpack.c.l.b16 %v516
    %v2637 = vunpack.c.h.b16 %v516
    %v2638 = vunpack.c.l.b16 %v517
    %v2639 = vunpack.c.l.b16 %v518
    %v2640 = vunpack.c.h.b16 %v518
    %v2641 = vunpack.c.l.b16 %v519
    %v2642 = vunpack.c.h.b16 %v519
    %v2643 = vunpack.c.l.b16 %v520
    %v2644 = vunpack.c.l.b16 %v521
    %v2645 = vunpack.c.h.b16 %v521
    %v2646 = vunpack.c.l.b16 %v522
    %v2647 = vunpack.c.h.b16 %v522
    %v2648 = vunpack.c.l.b16 %v523
    %v2649 = vunpack.c.l.b16 %v524
    %v2650 = vunpack.c.h.b16 %v524
    %v2651 = vunpack.c.l.b16 %v525
    %v2652 = vunpack.c.h.b16 %v525
    %v2653 = vunpack.c.l.b16 %v526
    %v2654 = vunpack.c.l.b16 %v527
    %v2655 = vunpack.c.h.b16 %v527
    %v2656 = vunpack.c.l.b16 %v528
    %v2657 = vunpack.c.h.b16 %v528
    %v2658 = vunpack.c.l.b16 %v529
    %v2659 = vunpack.c.l.b16 %v530
    %v2660 = vunpack.c.h.b16 %v530
    %v2661 = vunpack.c.l.b16 %v531
    %v2662 = vunpack.c.h.b16 %v531
    %v2663 = vunpack.c.l.b16 %v532
    %v2664 = vunpack.c.l.b16 %v533
    %v2665 = vunpack.c.h.b16 %v533
    %v2666 = vunpack.c.l.b16 %v534
    %v2667 = vunpack.c.h.b16 %v534
    %v2668 = vunpack.c.l.b16 %v535
    %v2669 = vunpack.c.l.b16 %v536
    %v2670 = vunpack.c.h.b16 %v536
    %v2671 = vunpack.c.l.b16 %v537
    %v2672 = vunpack.c.h.b16 %v537
    %v2673 = vunpack.c.l.b16 %v538
    %v2674 = vunpack.c.l.b16 %v539
    %v2675 = vunpack.c.h.b16 %v539
    %v2676 = vunpack.c.l.b16 %v540
    %v2677 = vunpack.c.h.b16 %v540
    %v2678 = vunpack.c.l.b16 %v541
    %v2679 = vunpack.c.l.b16 %v542
    %v2680 = vunpack.c.h.b16 %v542
    %v2681 = vunpack.c.l.b16 %v543
    %v2682 = vunpack.c.h.b16 %v543
    %v2683 = vunpack.c.l.b16 %v544
    %v2684 = vunpack.c.l.b16 %v545
    %v2685 = vunpack.c.h.b16 %v545
    %v2686 = vunpack.c.l.b16 %v546
    %v2687 = vunpack.c.h.b16 %v546
    %v2688 = vunpack.c.l.b16 %v547
    %v2689 = vunpack.c.l.b16 %v548
    %v2690 = vunpack.c.h.b16 %v548
    %v2691 = vunpack.c.l.b16 %v549
    %v2692 = vunpack.c.h.b16 %v549
    %v2693 = vunpack.c.l.b16 %v550
    %v2694 = vunpack.c.l.b16 %v551
    %v2695 = vunpack.c.h.b16 %v551
    %v2696 = vunpack.c.l.b16 %v552
    %v2697 = vunpack.c.h.b16 %v552
    %v2698 = vunpack.c.l.b16 %v553
    %v2699 = vunpack.c.l.b16 %v554
    %v2700 = vunpack.c.h.b16 %v554
    %v2701 = vunpack.c.l.b16 %v555
    %v2702 = vunpack.c.h.b16 %v555
    %v2703 = vunpack.c.l.b16 %v556
    %v2704 = vunpack.c.l.b16 %v557
    %v2705 = vunpack.c.h.b16 %v557
    %v2706 = vunpack.c.l.b16 %v558
    %v2707 = vunpack.c.h.b16 %v558
    %v2708 = vunpack.c.l.b16 %v559
    %v2709 = vunpack.c.l.b16 %v560
    %v2710 = vunpack.c.h.b16 %v560
    %v2711 = vunpack.c.l.b16 %v561
    %v2712 = vunpack.c.h.b16 %v561
    %v2713 = vunpack.c.l.b16 %v562
    %v2714 = vunpack.c.l.b16 %v563
    %v2715 = vunpack.c.h.b16 %v563
    %v2716 = vunpack.c.l.b16 %v564
    %v2717 = vunpack.c.h.b16 %v564
    %v2718 = vunpack.c.l.b16 %v565
    %v2719 = vunpack.c.l.b16 %v566
    %v2720 = vunpack.c.h.b16 %v566
    %v2721 = vunpack.c.l.b16 %v567
    %v2722 = vunpack.c.h.b16 %v567
    %v2723 = vunpack.c.l.b16 %v568
    %v2724 = vunpack.c.l.b16 %v569
    %v2725 = vunpack.c.h.b16 %v569
    %v2726 = vunpack.c.l.b16 %v570
    %v2727 = vunpack.c.h.b16 %v570
    %v2728 = vunpack.c.l.b16 %v571
    %v2729 = vunpack.c.l.b16 %v572
    %v2730 = vunpack.c.h.b16 %v572
    %v2731 = vunpack.c.l.b16 %v573
    %v2732 = vunpack.c.h.b16 %v573
    %v2733 = vunpack.c.l.b16 %v574
    %v2734 = vunpack.c.l.b16 %v575
    %v2735 = vunpack.c.h.b16 %v575
    %v2736 = vunpack.c.l.b16 %v576
    %v2737 = vunpack.c.h.b16 %v576
    %v2738 = vunpack.c.l.b16 %v577
    %v2739 = vunpack.c.l.b16 %v578
    %v2740 = vunpack.c.h.b16 %v578
    %v2741 = vunpack.c.l.b16 %v579
    %v2742 = vunpack.c.h.b16 %v579
    %v2743 = vunpack.c.l.b16 %v580
    %v2744 = vunpack.c.l.b16 %v581
    %v2745 = vunpack.c.h.b16 %v581
    %v2746 = vunpack.c.l.b16 %v582
    %v2747 = vunpack.c.h.b16 %v582
    %v2748 = vunpack.c.l.b16 %v583
    %v2749 = vunpack.c.l.b16 %v584
    %v2750 = vunpack.c.h.b16 %v584
    %v2751 = vunpack.c.l.b16 %v585
    %v2752 = vunpack.c.h.b16 %v585
    %v2753 = vunpack.c.l.b16 %v586
    %v2754 = vunpack.c.l.b16 %v587
    %v2755 = vunpack.c.h.b16 %v587
    %v2756 = vunpack.c.l.b16 %v588
    %v2757 = vunpack.c.h.b16 %v588
    %v2758 = vunpack.c.l.b16 %v589
    %v2759 = vunpack.c.l.b16 %v590
    %v2760 = vunpack.c.h.b16 %v590
    %v2761 = vunpack.c.l.b16 %v591
    %v2762 = vunpack.c.h.b16 %v591
    %v2763 = vunpack.c.l.b16 %v592
    %v2764 = vunpack.c.l.b16 %v593
    %v2765 = vunpack.c.h.b16 %v593
    %v2766 = vunpack.c.l.b16 %v594
    %v2767 = vunpack.c.h.b16 %v594
    %v2768 = vunpack.c.l.b16 %v595
    %v2769 = vunpack.c.l.b16 %v596
    %v2770 = vunpack.c.h.b16 %v596
    %v2771 = vunpack.c.l.b16 %v597
    %v2772 = vunpack.c.h.b16 %v597
    %v2773 = vunpack.c.l.b16 %v598
    %v2774 = vunpack.c.l.b16 %v599
    %v2775 = vunpack.c.h.b16 %v599
    %v2776 = vunpack.c.l.b16 %v600
    %v2777 = vunpack.c.h.b16 %v600
    %v2778 = vunpack.c.l.b16 %v601
    %v2779 = vunpack.c.l.b16 %v602
    %v2780 = vunpack.c.h.b16 %v602
    %v2781 = vunpack.c.l.b16 %v603
    %v2782 = vunpack.c.h.b16 %v603
    %v2783 = vunpack.c.l.b16 %v604
    %v2784 = vunpack.c.l.b16 %v605
    %v2785 = vunpack.c.h.b16 %v605
    %v2786 = vunpack.c.l.b16 %v606
    %v2787 = vunpack.c.h.b16 %v606
    %v2788 = vunpack.c.l.b16 %v607
    %v2789 = vunpack.c.l.b16 %v608
    %v2790 = vunpack.c.h.b16 %v608
    %v2791 = vunpack.c.l.b16 %v609
    %v2792 = vunpack.c.h.b16 %v609
    %v2793 = vunpack.c.l.b16 %v610
    %v2794 = vunpack.c.l.b16 %v611
    %v2795 = vunpack.c.h.b16 %v611
    %v2796 = vunpack.c.l.b16 %v612
    %v2797 = vunpack.c.h.b16 %v612
    %v2798 = vunpack.c.l.b16 %v613
    %v2799 = vunpack.c.l.b16 %v614
    %v2800 = vunpack.c.h.b16 %v614
    %v2801 = vunpack.c.l.b16 %v615
    %v2802 = vunpack.c.h.b16 %v615
    %v2803 = vunpack.c.l.b16 %v616
    %v2804 = vunpack.c.l.b16 %v617
    %v2805 = vunpack.c.h.b16 %v617
    %v2806 = vunpack.c.l.b16 %v618
    %v2807 = vunpack.c.h.b16 %v618
    %v2808 = vunpack.c.l.b16 %v619
    %v2809 = vunpack.c.l.b16 %v620
    %v2810 = vunpack.c.h.b16 %v620
    %v2811 = vunpack.c.l.b16 %v621
    %v2812 = vunpack.c.h.b16 %v621
    %v2813 = vunpack.c.l.b16 %v622
    %v2814 = vunpack.c.l.b16 %v623
    %v2815 = vunpack.c.h.b16 %v623
    %v2816 = vunpack.c.l.b16 %v624
    %v2817 = vunpack.c.h.b16 %v624
    %v2818 = vunpack.c.l.b16 %v625
    %v2819 = vunpack.c.l.b16 %v626
    %v2820 = vunpack.c.h.b16 %v626
    %v2821 = vunpack.c.l.b16 %v627
    %v2822 = vunpack.c.h.b16 %v627
    %v2823 = vunpack.c.l.b16 %v628
    %v2824 = vunpack.c.l.b16 %v629
    %v2825 = vunpack.c.h.b16 %v629
    %v2826 = vunpack.c.l.b16 %v630
    %v2827 = vunpack.c.h.b16 %v630
    %v2828 = vunpack.c.l.b16 %v631
    %v2829 = vunpack.c.l.b16 %v632
    %v2830 = vunpack.c.h.b16 %v632
    %v2831 = vunpack.c.l.b16 %v633
    %v2832 = vunpack.c.h.b16 %v633
    %v2833 = vunpack.c.l.b16 %v634
    %v2834 = vunpack.c.l.b16 %v635
    %v2835 = vunpack.c.h.b16 %v635
    %v2836 = vunpack.c.l.b16 %v636
    %v2837 = vunpack.c.h.b16 %v636
    %v2838 = vunpack.c.l.b16 %v637
    %v2839 = vunpack.c.l.b16 %v638
    %v2840 = vunpack.c.h.b16 %v638
    %v2841 = vunpack.c.l.b16 %v639
    %v2842 = vunpack.c.h.b16 %v639
    %v2843 = vunpack.c.l.b16 %v640
    %v2844 = vunpack.c.l.b16 %v641
    %v2845 = vunpack.c.h.b16 %v641
    %v2846 = vunpack.c.l.b16 %v642
    %v2847 = vunpack.c.h.b16 %v642
    %v2848 = vunpack.c.l.b16 %v643
    %v2849 = vunpack.c.l.b16 %v644
    %v2850 = vunpack.c.h.b16 %v644
    %v2851 = vunpack.c.l.b16 %v645
    %v2852 = vunpack.c.h.b16 %v645
    %v2853 = vunpack.c.l.b16 %v646
    %v2854 = vunpack.c.l.b16 %v647
    %v2855 = vunpack.c.h.b16 %v647
    %v2856 = vunpack.c.l.b16 %v648
    %v2857 = vunpack.c.h.b16 %v648
    %v2858 = vunpack.c.l.b16 %v649
    %v2859 = vunpack.c.l.b16 %v650
    %v2860 = vunpack.c.h.b16 %v650
    %v2861 = vunpack.c.l.b16 %v651
    %v2862 = vunpack.c.h.b16 %v651
    %v2863 = vunpack.c.l.b16 %v652
    %v2864 = vunpack.c.l.b16 %v653
    %v2865 = vunpack.c.h.b16 %v653
    %v2866 = vunpack.c.l.b16 %v654
    %v2867 = vunpack.c.h.b16 %v654
    %v2868 = vunpack.c.l.b16 %v655
    %v2869 = vunpack.c.l.b16 %v656
    %v2870 = vunpack.c.h.b16 %v656
    %v2871 = vunpack.c.l.b16 %v657
    %v2872 = vunpack.c.h.b16 %v657
    %v2873 = vunpack.c.l.b16 %v658
    %v2874 = vunpack.c.l.b16 %v659
    %v2875 = vunpack.c.h.b16 %v659
    %v2876 = vunpack.c.l.b16 %v660
    %v2877 = vunpack.c.h.b16 %v660
    %v2878 = vunpack.c.l.b16 %v661
    %v2879 = vunpack.c.l.b16 %v662
    %v2880 = vunpack.c.h.b16 %v662
    %v2881 = vunpack.c.l.b16 %v663
    %v2882 = vunpack.c.h.b16 %v663
    %v2883 = vunpack.c.l.b16 %v664
    %v2884 = vunpack.c.l.b16 %v665
    %v2885 = vunpack.c.h.b16 %v665
    %v2886 = vunpack.c.l.b16 %v666
    %v2887 = vunpack.c.h.b16 %v666
    %v2888 = vunpack.c.l.b16 %v667
    %v2889 = vunpack.c.l.b16 %v668
    %v2890 = vunpack.c.h.b16 %v668
    %v2891 = vunpack.c.l.b16 %v669
    %v2892 = vunpack.c.h.b16 %v669
    %v2893 = vunpack.c.l.b16 %v670
    %v2894 = vunpack.c.l.b16 %v671
    %v2895 = vunpack.c.h.b16 %v671
    %v2896 = vunpack.c.l.b16 %v672
    %v2897 = vunpack.c.h.b16 %v672
    %v2898 = vunpack.c.l.b16 %v673
    %v2899 = vunpack.c.l.b16 %v674
    %v2900 = vunpack.c.h.b16 %v674
    %v2901 = vunpack.c.l.b16 %v675
    %v2902 = vunpack.c.h.b16 %v675
    %v2903 = vunpack.c.l.b16 %v676
    %v2904 = vunpack.c.l.b16 %v677
    %v2905 = vunpack.c.h.b16 %v677
    %v2906 = vunpack.c.l.b16 %v678
    %v2907 = vunpack.c.h.b16 %v678
    %v2908 = vunpack.c.l.b16 %v679
    %v2909 = vunpack.c.l.b16 %v680
    %v2910 = vunpack.c.h.b16 %v680
    %v2911 = vunpack.c.l.b16 %v681
    %v2912 = vunpack.c.h.b16 %v681
    %v2913 = vunpack.c.l.b16 %v682
    %v2914 = vunpack.c.l.b16 %v683
    %v2915 = vunpack.c.h.b16 %v683
    %v2916 = vunpack.c.l.b16 %v684
    %v2917 = vunpack.c.h.b16 %v684
    %v2918 = vunpack.c.l.b16 %v685
    %v2919 = vunpack.c.l.b16 %v686
    %v2920 = vunpack.c.h.b16 %v686
    %v2921 = vunpack.c.l.b16 %v687
    %v2922 = vunpack.c.h.b16 %v687
    %v2923 = vunpack.c.l.b16 %v688
    %v2924 = vunpack.c.l.b16 %v689
    %v2925 = vunpack.c.h.b16 %v689
    %v2926 = vunpack.c.l.b16 %v690
    %v2927 = vunpack.c.h.b16 %v690
    %v2928 = vunpack.c.l.b16 %v691
    %v2929 = vunpack.c.l.b16 %v692
    %v2930 = vunpack.c.h.b16 %v692
    %v2931 = vunpack.c.l.b16 %v693
    %v2932 = vunpack.c.h.b16 %v693
    %v2933 = vunpack.c.l.b16 %v694
    %v2934 = vunpack.c.l.b16 %v695
    %v2935 = vunpack.c.h.b16 %v695
    %v2936 = vunpack.c.l.b16 %v696
    %v2937 = vunpack.c.h.b16 %v696
    %v2938 = vunpack.c.l.b16 %v697
    %v2939 = vunpack.c.l.b16 %v698
    %v2940 = vunpack.c.h.b16 %v698
    %v2941 = vunpack.c.l.b16 %v699
    %v2942 = vunpack.c.h.b16 %v699
    %v2943 = vunpack.c.l.b16 %v700
    %v2944 = vunpack.c.l.b16 %v701
    %v2945 = vunpack.c.h.b16 %v701
    %v2946 = vunpack.c.l.b16 %v702
    %v2947 = vunpack.c.h.b16 %v702
    %v2948 = vunpack.c.l.b16 %v703
    %v2949 = vunpack.c.l.b16 %v704
    %v2950 = vunpack.c.h.b16 %v704
    %v2951 = vunpack.c.l.b16 %v705
    %v2952 = vunpack.c.h.b16 %v705
    %v2953 = vunpack.c.l.b16 %v706
    %v2954 = vunpack.c.l.b16 %v707
    %v2955 = vunpack.c.h.b16 %v707
    %v2956 = vunpack.c.l.b16 %v708
    %v2957 = vunpack.c.h.b16 %v708
    %v2958 = vunpack.c.l.b16 %v709
    %v2959 = vunpack.c.l.b16 %v710
    %v2960 = vunpack.c.h.b16 %v710
    %v2961 = vunpack.c.l.b16 %v711
    %v2962 = vunpack.c.h.b16 %v711
    %v2963 = vunpack.c.l.b16 %v712
    %v2964 = vunpack.c.l.b16 %v713
    %v2965 = vunpack.c.h.b16 %v713
    %v2966 = vunpack.c.l.b16 %v714
    %v2967 = vunpack.c.h.b16 %v714
    %v2968 = vunpack.c.l.b16 %v715
    %v2969 = vunpack.c.l.b16 %v716
    %v2970 = vunpack.c.h.b16 %v716
    %v2971 = vunpack.c.l.b16 %v717
    %v2972 = vunpack.c.h.b16 %v717
    %v2973 = vunpack.c.l.b16 %v718
    %v2974 = vunpack.c.l.b16 %v719
    %v2975 = vunpack.c.h.b16 %v719
    %v2976 = vunpack.c.l.b16 %v720
    %v2977 = vunpack.c.h.b16 %v720
    %v2978 = vunpack.c.l.b16 %v721
    %v2979 = vunpack.c.l.b16 %v722
    %v2980 = vunpack.c.h.b16 %v722
    %v2981 = vunpack.c.l.b16 %v723
    %v2982 = vunpack.c.h.b16 %v723
    %v2983 = vunpack.c.l.b16 %v724
    %v2984 = vunpack.c.l.b16 %v725
    %v2985 = vunpack.c.h.b16 %v725
    %v2986 = vunpack.c.l.b16 %v726
    %v2987 = vunpack.c.h.b16 %v726
    %v2988 = vunpack.c.l.b16 %v727
    %v2989 = vunpack.c.l.b16 %v728
    %v2990 = vunpack.c.h.b16 %v728
    %v2991 = vunpack.c.l.b16 %v729
    %v2992 = vunpack.c.h.b16 %v729
    %v2993 = vunpack.c.l.b16 %v730
    %v2994 = vunpack.c.l.b16 %v731
    %v2995 = vunpack.c.h.b16 %v731
    %v2996 = vunpack.c.l.b16 %v732
    %v2997 = vunpack.c.h.b16 %v732
    %v2998 = vunpack.c.l.b16 %v733
    %v2999 = vunpack.c.l.b16 %v734
    %v3000 = vunpack.c.h.b16 %v734
    %v3001 = vunpack.c.l.b16 %v735
    %v3002 = vunpack.c.h.b16 %v735
    %v3003 = vunpack.c.l.b16 %v736
    %v3004 = vunpack.c.l.b16 %v737
    %v3005 = vunpack.c.h.b16 %v737
    %v3006 = vunpack.c.l.b16 %v738
    %v3007 = vunpack.c.h.b16 %v738
    %v3008 = vunpack.c.l.b16 %v739
    %v3009 = vunpack.c.l.b16 %v740
    %v3010 = vunpack.c.h.b16 %v740
    %v3011 = vunpack.c.l.b16 %v741
    %v3012 = vunpack.c.h.b16 %v741
    %v3013 = vunpack.c.l.b16 %v742
    %v3014 = vunpack.c.l.b16 %v743
    %v3015 = vunpack.c.h.b16 %v743
    %v3016 = vunpack.c.l.b16 %v744
    %v3017 = vunpack.c.h.b16 %v744
    %v3018 = vunpack.c.l.b16 %v745
    %v3019 = vunpack.c.l.b16 %v746
    %v3020 = vunpack.c.h.b16 %v746
    %v3021 = vunpack.c.l.b16 %v747
    %v3022 = vunpack.c.h.b16 %v747
    %v3023 = vunpack.c.l.b16 %v748
    %v3024 = vunpack.c.l.b16 %v749
    %v3025 = vunpack.c.h.b16 %v749
    %v3026 = vunpack.c.l.b16 %v750
    %v3027 = vunpack.c.h.b16 %v750
    %v3028 = vunpack.c.l.b16 %v751
    %v3029 = vunpack.c.l.b16 %v752
    %v3030 = vunpack.c.h.b16 %v752
    %v3031 = vunpack.c.l.b16 %v753
    %v3032 = vunpack.c.h.b16 %v753
    %v3033 = vunpack.c.l.b16 %v754
    %v3034 = vunpack.c.l.b16 %v755
    %v3035 = vunpack.c.h.b16 %v755
    %v3036 = vunpack.c.l.b16 %v756
    %v3037 = vunpack.c.h.b16 %v756
    %v3038 = vunpack.c.l.b16 %v757
    %v3039 = vunpack.c.l.b16 %v758
    %v3040 = vunpack.c.h.b16 %v758
    %v3041 = vunpack.c.l.b16 %v759
    %v3042 = vunpack.c.h.b16 %v759
    %v3043 = vunpack.c.l.b16 %v760
    %v3044 = vunpack.c.l.b16 %v761
    %v3045 = vunpack.c.h.b16 %v761
    %v3046 = vunpack.c.l.b16 %v762
    %v3047 = vunpack.c.h.b16 %v762
    %v3048 = vunpack.c.l.b16 %v763
    %v3049 = vunpack.c.l.b16 %v764
    %v3050 = vunpack.c.h.b16 %v764
    %v3051 = vunpack.c.l.b16 %v765
    %v3052 = vunpack.c.h.b16 %v765
    %v3053 = vunpack.c.l.b16 %v766
    %v3054 = vunpack.c.l.b16 %v767
    %v3055 = vunpack.c.h.b16 %v767
    %v3056 = vunpack.c.l.b16 %v768
    %v3057 = vunpack.c.h.b16 %v768
    %v3058 = vunpack.c.l.b16 %v769
    %v3059 = vunpack.c.l.b16 %v770
    %v3060 = vunpack.c.h.b16 %v770
    %v3061 = vunpack.c.l.b16 %v771
    %v3062 = vunpack.c.h.b16 %v771
    %v3063 = vunpack.c.l.b16 %v772
    %v3064 = vunpack.c.l.b16 %v773
    %v3065 = vunpack.c.h.b16 %v773
    %v3066 = vunpack.c.l.b16 %v774
    %v3067 = vunpack.c.h.b16 %v774
    %v3068 = vunpack.c.l.b16 %v775
    %v3069 = vunpack.c.l.b16 %v776
    %v3070 = vunpack.c.h.b16 %v776
    %v3071 = vunpack.c.l.b16 %v777
    %v3072 = vunpack.c.h.b16 %v777
    %v3073 = vunpack.c.l.b16 %v778
    %v3074 = vunpack.c.l.b16 %v779
    %v3075 = vunpack.c.h.b16 %v779
    %v3076 = vunpack.c.l.b16 %v780
    %v3077 = vunpack.c.h.b16 %v780
    %v3078 = vunpack.c.l.b16 %v781
    %v3079 = vunpack.c.l.b16 %v782
    %v3080 = vunpack.c.h.b16 %v782
    %v3081 = vunpack.c.l.b16 %v783
    %v3082 = vunpack.c.h.b16 %v783
    %v3083 = vunpack.c.l.b16 %v784
    %v3084 = vunpack.c.l.b16 %v785
    %v3085 = vunpack.c.h.b16 %v785
    %v3086 = vunpack.c.l.b16 %v786
    %v3087 = vunpack.c.h.b16 %v786
    %v3088 = vunpack.c.l.b16 %v787
    %v3089 = vunpack.c.l.b16 %v788
    %v3090 = vunpack.c.h.b16 %v788
    %v3091 = vunpack.c.l.b16 %v789
    %v3092 = vunpack.c.h.b16 %v789
    %v3093 = vunpack.c.l.b16 %v790
    %v3094 = vunpack.c.l.b16 %v791
    %v3095 = vunpack.c.h.b16 %v791
    %v3096 = vunpack.c.l.b16 %v792
    %v3097 = vunpack.c.h.b16 %v792
    %v3098 = vunpack.c.l.b16 %v793
    %v3099 = vunpack.c.l.b16 %v794
    %v3100 = vunpack.c.h.b16 %v794
    %v3101 = vunpack.c.l.b16 %v795
    %v3102 = vunpack.c.h.b16 %v795
    %v3103 = vunpack.c.l.b16 %v796
    %v3104 = vunpack.c.l.b16 %v797
    %v3105 = vunpack.c.h.b16 %v797
    %v3106 = vunpack.c.l.b16 %v798
    %v3107 = vunpack.c.h.b16 %v798
    %v3108 = vunpack.c.l.b16 %v799
    %v3109 = vunpack.c.l.b16 %v800
    %v3110 = vunpack.c.h.b16 %v800
    %v3111 = vunpack.c.l.b16 %v801
    %v3112 = vunpack.c.h.b16 %v801
    %v3113 = vunpack.c.l.b16 %v802
    %v3114 = vunpack.c.l.b16 %v803
    %v3115 = vunpack.c.h.b16 %v803
    %v3116 = vunpack.c.l.b16 %v804
    %v3117 = vunpack.c.h.b16 %v804
    %v3118 = vunpack.c.l.b16 %v805
    %v3119 = vunpack.c.l.b16 %v806
    %v3120 = vunpack.c.h.b16 %v806
    %v3121 = vunpack.c.l.b16 %v807
    %v3122 = vunpack.c.h.b16 %v807
    %v3123 = vunpack.c.l.b16 %v808
    %v3124 = vunpack.c.l.b16 %v809
    %v3125 = vunpack.c.h.b16 %v809
    %v3126 = vunpack.c.l.b16 %v810
    %v3127 = vunpack.c.h.b16 %v810
    %v3128 = vunpack.c.l.b16 %v811
    %v3129 = vunpack.c.l.b16 %v812
    %v3130 = vunpack.c.h.b16 %v812
    %v3131 = vunpack.c.l.b16 %v813
    %v3132 = vunpack.c.h.b16 %v813
    %v3133 = vunpack.c.l.b16 %v814
    %v3134 = vunpack.c.l.b16 %v815
    %v3135 = vunpack.c.h.b16 %v815
    %v3136 = vunpack.c.l.b16 %v816
    %v3137 = vunpack.c.h.b16 %v816
    %v3138 = vunpack.c.l.b16 %v817
    %v3139 = vunpack.c.l.b16 %v818
    %v3140 = vunpack.c.h.b16 %v818
    %v3141 = vunpack.c.l.b16 %v819
    %v3142 = vunpack.c.h.b16 %v819
    %v3143 = vunpack.c.l.b16 %v820
    %v3144 = vunpack.c.l.b16 %v821
    %v3145 = vunpack.c.h.b16 %v821
    %v3146 = vunpack.c.l.b16 %v822
    %v3147 = vunpack.c.h.b16 %v822
    %v3148 = vunpack.c.l.b16 %v823
    %v3149 = vunpack.c.l.b16 %v824
    %v3150 = vunpack.c.h.b16 %v824
    %v3151 = vunpack.c.l.b16 %v825
    %v3152 = vunpack.c.h.b16 %v825
    %v3153 = vunpack.c.l.b16 %v826
    %v3154 = vunpack.c.l.b16 %v827
    %v3155 = vunpack.c.h.b16 %v827
    %v3156 = vunpack.c.l.b16 %v828
    %v3157 = vunpack.c.h.b16 %v828
    %v3158 = vunpack.c.l.b16 %v829
    %v3159 = vunpack.c.l.b16 %v830
    %v3160 = vunpack.c.h.b16 %v830
    %v3161 = vunpack.c.l.b16 %v831
    %v3162 = vunpack.c.h.b16 %v831
    %v3163 = vunpack.c.l.b16 %v832
    %v3164 = vunpack.c.l.b16 %v833
    %v3165 = vunpack.c.h.b16 %v833
    %v3166 = vunpack.c.l.b16 %v834
    %v3167 = vunpack.c.h.b16 %v834
    %v3168 = vunpack.c.l.b16 %v835
    %v3169 = vunpack.c.l.b16 %v836
    %v3170 = vunpack.c.h.b16 %v836
    %v3171 = vunpack.c.l.b16 %v837
    %v3172 = vunpack.c.h.b16 %v837
    %v3173 = vunpack.c.l.b16 %v838
    %v3174 = vunpack.c.l.b16 %v839
    %v3175 = vunpack.c.h.b16 %v839
    %v3176 = vunpack.c.l.b16 %v840
    %v3177 = vunpack.c.h.b16 %v840
    %v3178 = vunpack.c.l.b16 %v841
    %v3179 = vunpack.c.l.b16 %v842
    %v3180 = vunpack.c.h.b16 %v842
    %v3181 = vunpack.c.l.b16 %v843
    %v3182 = vunpack.c.h.b16 %v843
    %v3183 = vunpack.c.l.b16 %v844
    %v3184 = vunpack.c.l.b16 %v845
    %v3185 = vunpack.c.h.b16 %v845
    %v3186 = vunpack.c.l.b16 %v846
    %v3187 = vunpack.c.h.b16 %v846
    %v3188 = vunpack.c.l.b16 %v847
    %v3189 = vunpack.c.l.b16 %v848
    %v3190 = vunpack.c.h.b16 %v848
    %v3191 = vunpack.c.l.b16 %v849
    %v3192 = vunpack.c.h.b16 %v849
    %v3193 = vunpack.c.l.b16 %v850
    %v3194 = vunpack.c.l.b16 %v851
    %v3195 = vunpack.c.h.b16 %v851
    %v3196 = vunpack.c.l.b16 %v852
    %v3197 = vunpack.c.h.b16 %v852
    %v3198 = vunpack.c.l.b16 %v853
    %v3199 = vunpack.c.l.b16 %v854
    %v3200 = vunpack.c.h.b16 %v854
    %v3201 = vunpack.c.l.b16 %v855
    %v3202 = vunpack.c.h.b16 %v855
    %v3203 = vunpack.c.l.b16 %v856
    %v3204 = vunpack.c.l.b16 %v857
    %v3205 = vunpack.c.h.b16 %v857
    %v3206 = vunpack.c.l.b16 %v858
    %v3207 = vunpack.c.h.b16 %v858
    %v3208 = vunpack.c.l.b16 %v859
    %v3209 = vunpack.c.l.b16 %v860
    %v3210 = vunpack.c.h.b16 %v860
    %v3211 = vunpack.c.l.b16 %v861
    %v3212 = vunpack.c.h.b16 %v861
    %v3213 = vunpack.c.l.b16 %v862
    %v3214 = vunpack.c.l.b16 %v863
    %v3215 = vunpack.c.h.b16 %v863
    %v3216 = vunpack.c.l.b16 %v864
    %v3217 = vunpack.c.h.b16 %v864
    %v3218 = vunpack.c.l.b16 %v865
    %v3219 = vunpack.c.l.b16 %v866
    %v3220 = vunpack.c.h.b16 %v866
    %v3221 = vunpack.c.l.b16 %v867
    %v3222 = vunpack.c.h.b16 %v867
    %v3223 = vunpack.c.l.b16 %v868
    %v3224 = vunpack.c.l.b16 %v869
    %v3225 = vunpack.c.h.b16 %v869
    %v3226 = vunpack.c.l.b16 %v870
    %v3227 = vunpack.c.h.b16 %v870
    %v3228 = vunpack.c.l.b16 %v871
    %v3229 = vunpack.c.l.b16 %v872
    %v3230 = vunpack.c.h.b16 %v872
    %v3231 = vunpack.c.l.b16 %v873
    %v3232 = vunpack.c.h.b16 %v873
    %v3233 = vunpack.c.l.b16 %v874
    %v3234 = vunpack.c.l.b16 %v875
    %v3235 = vunpack.c.h.b16 %v875
    %v3236 = vunpack.c.l.b16 %v876
    %v3237 = vunpack.c.h.b16 %v876
    %v3238 = vunpack.c.l.b16 %v877
    %v3239 = vunpack.c.l.b16 %v878
    %v3240 = vunpack.c.h.b16 %v878
    %v3241 = vunpack.c.l.b16 %v879
    %v3242 = vunpack.c.h.b16 %v879
    %v3243 = vunpack.c.l.b16 %v880
    %v3244 = vunpack.c.l.b16 %v881
    %v3245 = vunpack.c.h.b16 %v881
    %v3246 = vunpack.c.l.b16 %v882
    %v3247 = vunpack.c.h.b16 %v882
    %v3248 = vunpack.c.l.b16 %v883
    %v3249 = vunpack.c.l.b16 %v884
    %v3250 = vunpack.c.h.b16 %v884
    %v3251 = vunpack.c.l.b16 %v885
    %v3252 = vunpack.c.h.b16 %v885
    %v3253 = vunpack.c.l.b16 %v886
    %v3254 = vunpack.c.l.b16 %v887
    %v3255 = vunpack.c.h.b16 %v887
    %v3256 = vunpack.c.l.b16 %v888
    %v3257 = vunpack.c.h.b16 %v888
    %v3258 = vunpack.c.l.b16 %v889
    %v3259 = vunpack.c.l.b16 %v890
    %v3260 = vunpack.c.h.b16 %v890
    %v3261 = vunpack.c.l.b16 %v891
    %v3262 = vunpack.c.h.b16 %v891
    %v3263 = vunpack.c.l.b16 %v892
    %v3264 = vunpack.c.l.b16 %v893
    %v3265 = vunpack.c.h.b16 %v893
    %v3266 = vunpack.c.l.b16 %v894
    %v3267 = vunpack.c.h.b16 %v894
    %v3268 = vunpack.c.l.b16 %v895
    %v3269 = vunpack.c.l.b16 %v896
    %v3270 = vunpack.c.h.b16 %v896
    %v3271 = vunpack.c.l.b16 %v897
    %v3272 = vunpack.c.h.b16 %v897
    %v3273 = vunpack.c.l.b16 %v898
    %v3274 = vunpack.c.l.b16 %v899
    %v3275 = vunpack.c.h.b16 %v899
    %v3276 = vunpack.c.l.b16 %v900
    %v3277 = vunpack.c.h.b16 %v900
    %v3278 = vunpack.c.l.b16 %v901
    %v3279 = vunpack.c.l.b16 %v902
    %v3280 = vunpack.c.h.b16 %v902
    %v3281 = vunpack.c.l.b16 %v903
    %v3282 = vunpack.c.h.b16 %v903
    %v3283 = vunpack.c.l.b16 %v904
    %v3284 = vunpack.c.l.b16 %v905
    %v3285 = vunpack.c.h.b16 %v905
    %v3286 = vunpack.c.l.b16 %v906
    %v3287 = vunpack.c.h.b16 %v906
    %v3288 = vunpack.c.l.b16 %v907
    %v3289 = vunpack.c.l.b16 %v908
    %v3290 = vunpack.c.h.b16 %v908
    %v3291 = vunpack.c.l.b16 %v909
    %v3292 = vunpack.c.h.b16 %v909
    %v3293 = vunpack.c.l.b16 %v910
    %v3294 = vunpack.c.l.b16 %v911
    %v3295 = vunpack.c.h.b16 %v911
    %v3296 = vunpack.c.l.b16 %v912
    %v3297 = vunpack.c.h.b16 %v912
    %v3298 = vunpack.c.l.b16 %v913
    %v3299 = vunpack.c.l.b16 %v914
    %v3300 = vunpack.c.h.b16 %v914
    %v3301 = vunpack.c.l.b16 %v915
    %v3302 = vunpack.c.h.b16 %v915
    %v3303 = vunpack.c.l.b16 %v916
    %v3304 = vunpack.c.l.b16 %v917
    %v3305 = vunpack.c.h.b16 %v917
    %v3306 = vunpack.c.l.b16 %v918
    %v3307 = vunpack.c.h.b16 %v918
    %v3308 = vunpack.c.l.b16 %v919
    %v3309 = vunpack.c.l.b16 %v920
    %v3310 = vunpack.c.h.b16 %v920
    %v3311 = vunpack.c.l.b16 %v921
    %v3312 = vunpack.c.h.b16 %v921
    %v3313 = vunpack.c.l.b16 %v922
    %v3314 = vunpack.c.l.b16 %v923
    %v3315 = vunpack.c.h.b16 %v923
    %v3316 = vunpack.c.l.b16 %v924
    %v3317 = vunpack.c.h.b16 %v924
    %v3318 = vunpack.c.l.b16 %v925
    %v3319 = vunpack.c.l.b16 %v926
    %v3320 = vunpack.c.h.b16 %v926
    %v3321 = vunpack.c.l.b16 %v927
    %v3322 = vunpack.c.h.b16 %v927
    %v3323 = vunpack.c.l.b16 %v928
    %v3324 = vunpack.c.l.b16 %v929
    %v3325 = vunpack.c.h.b16 %v929
    %v3326 = vunpack.c.l.b16 %v930
    %v3327 = vunpack.c.h.b16 %v930
    %v3328 = vunpack.c.l.b16 %v931
    %v3329 = vunpack.c.l.b16 %v932
    %v3330 = vunpack.c.h.b16 %v932
    %v3331 = vunpack.c.l.b16 %v933
    %v3332 = vunpack.c.h.b16 %v933
    %v3333 = vunpack.c.l.b16 %v934
    %v3334 = vunpack.c.l.b16 %v935
    %v3335 = vunpack.c.h.b16 %v935
    %v3336 = vunpack.c.l.b16 %v936
    %v3337 = vunpack.c.h.b16 %v936
    %v3338 = vunpack.c.l.b16 %v937
    %v3339 = vunpack.c.l.b16 %v938
    %v3340 = vunpack.c.h.b16 %v938
    %v3341 = vunpack.c.l.b16 %v939
    %v3342 = vunpack.c.h.b16 %v939
    %v3343 = vunpack.c.l.b16 %v940
    %v3344 = vunpack.c.l.b16 %v941
    %v3345 = vunpack.c.h.b16 %v941
    %v3346 = vunpack.c.l.b16 %v942
    %v3347 = vunpack.c.h.b16 %v942
    %v3348 = vunpack.c.l.b16 %v943
    %v3349 = vunpack.c.l.b16 %v944
    %v3350 = vunpack.c.h.b16 %v944
    %v3351 = vunpack.c.l.b16 %v945
    %v3352 = vunpack.c.h.b16 %v945
    %v3353 = vunpack.c.l.b16 %v946
    %v3354 = vunpack.c.l.b16 %v947
    %v3355 = vunpack.c.h.b16 %v947
    %v3356 = vunpack.c.l.b16 %v948
    %v3357 = vunpack.c.h.b16 %v948
    %v3358 = vunpack.c.l.b16 %v949
    %v3359 = vunpack.c.l.b16 %v950
    %v3360 = vunpack.c.h.b16 %v950
    %v3361 = vunpack.c.l.b16 %v951
    %v3362 = vunpack.c.h.b16 %v951
    %v3363 = vunpack.c.l.b16 %v952
    %v3364 = vunpack.c.l.b16 %v953
    %v3365 = vunpack.c.h.b16 %v953
    %v3366 = vunpack.c.l.b16 %v954
    %v3367 = vunpack.c.h.b16 %v954
    %v3368 = vunpack.c.l.b16 %v955
    %v3369 = vunpack.c.l.b16 %v956
    %v3370 = vunpack.c.h.b16 %v956
    %v3371 = vunpack.c.l.b16 %v957
    %v3372 = vunpack.c.h.b16 %v957
    %v3373 = vunpack.c.l.b16 %v958
    %v3374 = vunpack.c.l.b16 %v959
    %v3375 = vunpack.c.h.b16 %v959
    %v3376 = vunpack.c.l.b16 %v960
    %v3377 = vunpack.c.h.b16 %v960
    %v3378 = vunpack.c.l.b16 %v961
    %v3379 = vunpack.c.l.b16 %v962
    %v3380 = vunpack.c.h.b16 %v962
    %v3381 = vunpack.c.l.b16 %v963
    %v3382 = vunpack.c.h.b16 %v963
    %v3383 = vunpack.c.l.b16 %v964
    %v3384 = vunpack.c.l.b16 %v965
    %v3385 = vunpack.c.h.b16 %v965
    %v3386 = vunpack.c.l.b16 %v966
    %v3387 = vunpack.c.h.b16 %v966
    %v3388 = vunpack.c.l.b16 %v967
    %v3389 = vunpack.c.l.b16 %v968
    %v3390 = vunpack.c.h.b16 %v968
    %v3391 = vunpack.c.l.b16 %v969
    %v3392 = vunpack.c.h.b16 %v969
    %v3393 = vunpack.c.l.b16 %v970
    %v3394 = vunpack.c.l.b16 %v971
    %v3395 = vunpack.c.h.b16 %v971
    %v3396 = vunpack.c.l.b16 %v972
    %v3397 = vunpack.c.h.b16 %v972
    %v3398 = vunpack.c.l.b16 %v973
    %v3399 = vunpack.c.l.b16 %v974
    %v3400 = vunpack.c.h.b16 %v974
    %v3401 = vunpack.c.l.b16 %v975
    %v3402 = vunpack.c.h.b16 %v975
    %v3403 = vunpack.c.l.b16 %v976
    %v3404 = vunpack.c.l.b16 %v977
    %v3405 = vunpack.c.h.b16 %v977
    %v3406 = vunpack.c.l.b16 %v978
    %v3407 = vunpack.c.h.b16 %v978
    %v3408 = vunpack.c.l.b16 %v979
    %v3409 = vunpack.c.l.b16 %v980
    %v3410 = vunpack.c.h.b16 %v980
    %v3411 = vunpack.c.l.b16 %v981
    %v3412 = vunpack.c.h.b16 %v981
    %v3413 = vunpack.c.l.b16 %v982
    %v3414 = vunpack.c.l.b16 %v983
    %v3415 = vunpack.c.h.b16 %v983
    %v3416 = vunpack.c.l.b16 %v984
    %v3417 = vunpack.c.h.b16 %v984
    %v3418 = vunpack.c.l.b16 %v985
    %v3419 = vunpack.c.l.b16 %v986
    %v3420 = vunpack.c.h.b16 %v986
    %v3421 = vunpack.c.l.b16 %v987
    %v3422 = vunpack.c.h.b16 %v987
    %v3423 = vunpack.c.l.b16 %v988
    %v3424 = vunpack.c.l.b16 %v989
    %v3425 = vunpack.c.h.b16 %v989
    %v3426 = vunpack.c.l.b16 %v990
    %v3427 = vunpack.c.h.b16 %v990
    %v3428 = vunpack.c.l.b16 %v991
    %v3429 = vunpack.c.l.b16 %v992
    %v3430 = vunpack.c.h.b16 %v992
    %v3431 = vunpack.c.l.b16 %v993
    %v3432 = vunpack.c.h.b16 %v993
    %v3433 = vunpack.c.l.b16 %v994
    %v3434 = vunpack.c.l.b16 %v995
    %v3435 = vunpack.c.h.b16 %v995
    %v3436 = vunpack.c.l.b16 %v996
    %v3437 = vunpack.c.h.b16 %v996
    %v3438 = vunpack.c.l.b16 %v997
    %v3439 = vunpack.c.l.b16 %v998
    %v3440 = vunpack.c.h.b16 %v998
    %v3441 = vunpack.c.l.b16 %v999
    %v3442 = vunpack.c.h.b16 %v999
    %v3443 = vunpack.c.l.b16 %v1000
    %v3444 = vunpack.c.l.b16 %v1001
    %v3445 = vunpack.c.h.b16 %v1001
    %v3446 = vunpack.c.l.b16 %v1002
    %v3447 = vunpack.c.h.b16 %v1002
    %v3448 = vunpack.c.l.b16 %v1003
    %v3449 = vunpack.c.l.b16 %v1004
    %v3450 = vunpack.c.h.b16 %v1004
    %v3451 = vunpack.c.l.b16 %v1005
    %v3452 = vunpack.c.h.b16 %v1005
    %v3453 = vunpack.c.l.b16 %v1006
    %v3454 = vunpack.c.l.b16 %v1007
    %v3455 = vunpack.c.h.b16 %v1007
    %v3456 = vunpack.c.l.b16 %v1008
    %v3457 = vunpack.c.h.b16 %v1008
    %v3458 = vunpack.c.l.b16 %v1009
    %v3459 = vunpack.c.l.b16 %v1010
    %v3460 = vunpack.c.h.b16 %v1010
    %v3461 = vunpack.c.l.b16 %v1011
    %v3462 = vunpack.c.h.b16 %v1011
    %v3463 = vunpack.c.l.b16 %v1012
    %v3464 = vunpack.c.l.b16 %v1013
    %v3465 = vunpack.c.h.b16 %v1013
    %v3466 = vunpack.c.l.b16 %v1014
    %v3467 = vunpack.c.h.b16 %v1014
    %v3468 = vunpack.c.l.b16 %v1015
    %v3469 = vunpack.c.l.b16 %v1016
    %v3470 = vunpack.c.h.b16 %v1016
    %v3471 = vunpack.c.l.b16 %v1017
    %v3472 = vunpack.c.h.b16 %v1017
    %v3473 = vunpack.c.l.b16 %v1018
    %v3474 = vunpack.c.l.b16 %v1019
    %v3475 = vunpack.c.h.b16 %v1019
    %v3476 = vunpack.c.l.b16 %v1020
    %v3477 = vunpack.c.h.b16 %v1020
    %v3478 = vunpack.c.l.b16 %v1021
    %v3479 = vunpack.c.l.b16 %v1022
    %v3480 = vunpack.c.h.b16 %v1022
    %v3481 = vunpack.c.l.b16 %v1023
    %v3482 = vunpack.c.h.b16 %v1023
    %v3483 = vunpack.c.l.b16 %v1024
    %v3484 = vunpack.c.l.b16 %v1025
    %v3485 = vunpack.c.h.b16 %v1025
    %v3486 = vunpack.c.l.b16 %v1026
    %v3487 = vunpack.c.h.b16 %v1026
    %v3488 = vunpack.c.l.b16 %v1027
    %v3489 = vunpack.c.l.b16 %v1028
    %v3490 = vunpack.c.h.b16 %v1028
    %v3491 = vunpack.c.l.b16 %v1029
    %v3492 = vunpack.c.h.b16 %v1029
    %v3493 = vunpack.c.l.b16 %v1030
    %v3494 = vunpack.c.l.b16 %v1031
    %v3495 = vunpack.c.h.b16 %v1031
    %v3496 = vunpack.c.l.b16 %v1032
    %v3497 = vunpack.c.h.b16 %v1032
    %v3498 = vunpack.c.l.b16 %v1033
    %v3499 = vunpack.c.l.b16 %v1034
    %v3500 = vunpack.c.h.b16 %v1034
    %v3501 = vunpack.c.l.b16 %v1035
    %v3502 = vunpack.c.h.b16 %v1035
    %v3503 = vunpack.c.l.b16 %v1036
    %v3504 = vunpack.c.l.b16 %v1037
    %v3505 = vunpack.c.h.b16 %v1037
    %v3506 = vunpack.c.l.b16 %v1038
    %v3507 = vunpack.c.h.b16 %v1038
    %v3508 = vunpack.c.l.b16 %v1039
    %v3509 = vunpack.c.l.b16 %v1040
    %v3510 = vunpack.c.h.b16 %v1040
    %v3511 = vunpack.c.l.b16 %v1041
    %v3512 = vunpack.c.h.b16 %v1041
    %v3513 = vunpack.c.l.b16 %v1042
    %v3514 = vunpack.c.l.b16 %v1043
    %v3515 = vunpack.c.h.b16 %v1043
    %v3516 = vunpack.c.l.b16 %v1044
    %v3517 = vunpack.c.h.b16 %v1044
    %v3518 = vunpack.c.l.b16 %v1045
    %v3519 = vunpack.c.l.b16 %v1046
    %v3520 = vunpack.c.h.b16 %v1046
    %v3521 = vunpack.c.l.b16 %v1047
    %v3522 = vunpack.c.h.b16 %v1047
    %v3523 = vunpack.c.l.b16 %v1048
    %v3524 = vunpack.c.l.b16 %v1049
    %v3525 = vunpack.c.h.b16 %v1049
    %v3526 = vunpack.c.l.b16 %v1050
    %v3527 = vunpack.c.h.b16 %v1050
    %v3528 = vunpack.c.l.b16 %v1051
    %v3529 = vunpack.c.l.b16 %v1052
    %v3530 = vunpack.c.h.b16 %v1052
    %v3531 = vunpack.c.l.b16 %v1053
    %v3532 = vunpack.c.h.b16 %v1053
    %v3533 = vunpack.c.l.b16 %v1054
    %v3534 = vunpack.c.l.b16 %v1055
    %v3535 = vunpack.c.h.b16 %v1055
    %v3536 = vunpack.c.l.b16 %v1056
    %v3537 = vunpack.c.h.b16 %v1056
    %v3538 = vunpack.c.l.b16 %v1057
    %v3539 = vunpack.c.l.b16 %v1058
    %v3540 = vunpack.c.h.b16 %v1058
    %v3541 = vunpack.c.l.b16 %v1059
    %v3542 = vunpack.c.h.b16 %v1059
    %v3543 = vunpack.c.l.b16 %v1060
    %v3544 = vunpack.c.l.b16 %v1061
    %v3545 = vunpack.c.h.b16 %v1061
    %v3546 = vunpack.c.l.b16 %v1062
    %v3547 = vunpack.c.h.b16 %v1062
    %v3548 = vunpack.c.l.b16 %v1063
    %v3549 = vunpack.c.l.b16 %v1064
    %v3550 = vunpack.c.h.b16 %v1064
    %v3551 = vunpack.c.l.b16 %v1065
    %v3552 = vunpack.c.h.b16 %v1065
    %v3553 = vunpack.c.l.b16 %v1066
    %v3554 = vunpack.c.l.b16 %v1067
    %v3555 = vunpack.c.h.b16 %v1067
    %v3556 = vunpack.c.l.b16 %v1068
    %v3557 = vunpack.c.h.b16 %v1068
    %v3558 = vunpack.c.l.b16 %v1069
    %v3559 = vunpack.c.l.b16 %v1070
    %v3560 = vunpack.c.h.b16 %v1070
    %v3561 = vunpack.c.l.b16 %v1071
    %v3562 = vunpack.c.h.b16 %v1071
    %v3563 = vunpack.c.l.b16 %v1072
    %v3564 = vunpack.c.l.b16 %v1073
    %v3565 = vunpack.c.h.b16 %v1073
    %v3566 = vunpack.c.l.b16 %v1074
    %v3567 = vunpack.c.h.b16 %v1074
    %v3568 = vunpack.c.l.b16 %v1075
    %v3569 = vunpack.c.l.b16 %v1076
    %v3570 = vunpack.c.h.b16 %v1076
    %v3571 = vunpack.c.l.b16 %v1077
    %v3572 = vunpack.c.h.b16 %v1077
    %v3573 = vunpack.c.l.b16 %v1078
    %v3574 = vunpack.c.l.b16 %v1079
    %v3575 = vunpack.c.h.b16 %v1079
    %v3576 = vunpack.c.l.b16 %v1080
    %v3577 = vunpack.c.h.b16 %v1080
    %v3578 = vunpack.c.l.b16 %v1081
    %v3579 = vunpack.c.l.b16 %v1082
    %v3580 = vunpack.c.h.b16 %v1082
    %v3581 = vunpack.c.l.b16 %v1083
    %v3582 = vunpack.c.h.b16 %v1083
    %v3583 = vunpack.c.l.b16 %v1084
    %v3584 = vunpack.c.l.b16 %v1085
    %v3585 = vunpack.c.h.b16 %v1085
    %v3586 = vunpack.c.l.b16 %v1086
    %v3587 = vunpack.c.h.b16 %v1086
    %v3588 = vunpack.c.l.b16 %v1087
    %v3589 = vunpack.c.l.b16 %v1088
    %v3590 = vunpack.c.h.b16 %v1088
    %v3591 = vunpack.c.l.b16 %v1089
    %v3592 = vunpack.c.h.b16 %v1089
    %v3593 = vunpack.c.l.b16 %v1090
    %v3594 = vunpack.c.l.b16 %v1091
    %v3595 = vunpack.c.h.b16 %v1091
    %v3596 = vunpack.c.l.b16 %v1092
    %v3597 = vunpack.c.h.b16 %v1092
    %v3598 = vunpack.c.l.b16 %v1093
    %v3599 = vunpack.c.l.b16 %v1094
    %v3600 = vunpack.c.h.b16 %v1094
    %v3601 = vunpack.c.l.b16 %v1095
    %v3602 = vunpack.c.h.b16 %v1095
    %v3603 = vunpack.c.l.b16 %v1096
    %v3604 = vunpack.c.l.b16 %v1097
    %v3605 = vunpack.c.h.b16 %v1097
    %v3606 = vunpack.c.l.b16 %v1098
    %v3607 = vunpack.c.h.b16 %v1098
    %v3608 = vunpack.c.l.b16 %v1099
    %v3609 = vunpack.c.l.b16 %v1100
    %v3610 = vunpack.c.h.b16 %v1100
    %v3611 = vunpack.c.l.b16 %v1101
    %v3612 = vunpack.c.h.b16 %v1101
    %v3613 = vunpack.c.l.b16 %v1102
    %v3614 = vunpack.c.l.b16 %v1103
    %v3615 = vunpack.c.h.b16 %v1103
    %v3616 = vunpack.c.l.b16 %v1104
    %v3617 = vunpack.c.h.b16 %v1104
    %v3618 = vunpack.c.l.b16 %v1105
    %v3619 = vunpack.c.l.b16 %v1106
    %v3620 = vunpack.c.h.b16 %v1106
    %v3621 = vunpack.c.l.b16 %v1107
    %v3622 = vunpack.c.h.b16 %v1107
    %v3623 = vunpack.c.l.b16 %v1108
    %v3624 = vunpack.c.l.b16 %v1109
    %v3625 = vunpack.c.h.b16 %v1109
    %v3626 = vunpack.c.l.b16 %v1110
    %v3627 = vunpack.c.h.b16 %v1110
    %v3628 = vunpack.c.l.b16 %v1111
    %v3629 = vunpack.c.l.b16 %v1112
    %v3630 = vunpack.c.h.b16 %v1112
    %v3631 = vunpack.c.l.b16 %v1113
    %v3632 = vunpack.c.h.b16 %v1113
    %v3633 = vunpack.c.l.b16 %v1114
    %v3634 = vunpack.c.l.b16 %v1115
    %v3635 = vunpack.c.h.b16 %v1115
    %v3636 = vunpack.c.l.b16 %v1116
    %v3637 = vunpack.c.h.b16 %v1116
    %v3638 = vunpack.c.l.b16 %v1117
    %v3639 = vunpack.c.l.b16 %v1118
    %v3640 = vunpack.c.h.b16 %v1118
    %v3641 = vunpack.c.l.b16 %v1119
    %v3642 = vunpack.c.h.b16 %v1119
    %v3643 = vunpack.c.l.b16 %v1120
    %v3644 = vunpack.c.l.b16 %v1121
    %v3645 = vunpack.c.h.b16 %v1121
    %v3646 = vunpack.c.l.b16 %v1122
    %v3647 = vunpack.c.h.b16 %v1122
    %v3648 = vunpack.c.l.b16 %v1123
    %v3649 = vunpack.c.l.b16 %v1124
    %v3650 = vunpack.c.h.b16 %v1124
    %v3651 = vunpack.c.l.b16 %v1125
    %v3652 = vunpack.c.h.b16 %v1125
    %v3653 = vunpack.c.l.b16 %v1126
    %v3654 = vunpack.c.l.b16 %v1127
    %v3655 = vunpack.c.h.b16 %v1127
    %v3656 = vunpack.c.l.b16 %v1128
    %v3657 = vunpack.c.h.b16 %v1128
    %v3658 = vunpack.c.l.b16 %v1129
    %v3659 = vunpack.c.l.b16 %v1130
    %v3660 = vunpack.c.h.b16 %v1130
    %v3661 = vunpack.c.l.b16 %v1131
    %v3662 = vunpack.c.h.b16 %v1131
    %v3663 = vunpack.c.l.b16 %v1132
    %v3664 = vunpack.c.l.b16 %v1133
    %v3665 = vunpack.c.h.b16 %v1133
    %v3666 = vunpack.c.l.b16 %v1134
    %v3667 = vunpack.c.h.b16 %v1134
    %v3668 = vunpack.c.l.b16 %v1135
    %v3669 = vunpack.c.l.b16 %v1136
    %v3670 = vunpack.c.h.b16 %v1136
    %v3671 = vunpack.c.l.b16 %v1137
    %v3672 = vunpack.c.h.b16 %v1137
    %v3673 = vunpack.c.l.b16 %v1138
    %v3674 = vunpack.c.l.b16 %v1139
    %v3675 = vunpack.c.h.b16 %v1139
    %v3676 = vunpack.c.l.b16 %v1140
    %v3677 = vunpack.c.h.b16 %v1140
    %v3678 = vunpack.c.l.b16 %v1141
    %v3679 = vunpack.c.l.b16 %v1142
    %v3680 = vunpack.c.h.b16 %v1142
    %v3681 = vunpack.c.l.b16 %v1143
    %v3682 = vunpack.c.h.b16 %v1143
    %v3683 = vunpack.c.l.b16 %v1144
    %v3684 = vunpack.c.l.b16 %v1145
    %v3685 = vunpack.c.h.b16 %v1145
    %v3686 = vunpack.c.l.b16 %v1146
    %v3687 = vunpack.c.h.b16 %v1146
    %v3688 = vunpack.c.l.b16 %v1147
    %v3689 = vunpack.c.l.b16 %v1148
    %v3690 = vunpack.c.h.b16 %v1148
    %v3691 = vunpack.c.l.b16 %v1149
    %v3692 = vunpack.c.h.b16 %v1149
    %v3693 = vunpack.c.l.b16 %v1150
    %v3694 = vunpack.c.l.b16 %v1151
    %v3695 = vunpack.c.h.b16 %v1151
    %v3696 = vunpack.c.l.b16 %v1152
    %v3697 = vunpack.c.h.b16 %v1152
    %v3698 = vunpack.c.l.b16 %v1153
    %v3699 = vunpack.c.l.b16 %v1154
    %v3700 = vunpack.c.h.b16 %v1154
    %v3701 = vunpack.c.l.b16 %v1155
    %v3702 = vunpack.c.h.b16 %v1155
    %v3703 = vunpack.c.l.b16 %v1156
    %v3704 = vunpack.c.l.b16 %v1157
    %v3705 = vunpack.c.h.b16 %v1157
    %v3706 = vunpack.c.l.b16 %v1158
    %v3707 = vunpack.c.h.b16 %v1158
    %v3708 = vunpack.c.l.b16 %v1159
    %v3709 = vunpack.c.l.b16 %v1160
    %v3710 = vunpack.c.h.b16 %v1160
    %v3711 = vunpack.c.l.b16 %v1161
    %v3712 = vunpack.c.h.b16 %v1161
    %v3713 = vunpack.c.l.b16 %v1162
    %v3714 = vunpack.c.l.b16 %v1163
    %v3715 = vunpack.c.h.b16 %v1163
    %v3716 = vunpack.c.l.b16 %v1164
    %v3717 = vunpack.c.h.b16 %v1164
    %v3718 = vunpack.c.l.b16 %v1165
    %v3719 = vunpack.c.l.b16 %v1166
    %v3720 = vunpack.c.h.b16 %v1166
    %v3721 = vunpack.c.l.b16 %v1167
    %v3722 = vunpack.c.h.b16 %v1167
    %v3723 = vunpack.c.l.b16 %v1168
    %v3724 = vunpack.c.l.b16 %v1169
    %v3725 = vunpack.c.h.b16 %v1169
    %v3726 = vunpack.c.l.b16 %v1170
    %v3727 = vunpack.c.h.b16 %v1170
    %v3728 = vunpack.c.l.b16 %v1171
    %v3729 = vunpack.c.l.b16 %v1172
    %v3730 = vunpack.c.h.b16 %v1172
    %v3731 = vunpack.c.l.b16 %v1173
    %v3732 = vunpack.c.h.b16 %v1173
    %v3733 = vunpack.c.l.b16 %v1174
    %v3734 = vunpack.c.l.b16 %v1175
    %v3735 = vunpack.c.h.b16 %v1175
    %v3736 = vunpack.c.l.b16 %v1176
    %v3737 = vunpack.c.h.b16 %v1176
    %v3738 = vunpack.c.l.b16 %v1177
    %v3739 = vunpack.c.l.b16 %v1178
    %v3740 = vunpack.c.h.b16 %v1178
    %v3741 = vunpack.c.l.b16 %v1179
    %v3742 = vunpack.c.h.b16 %v1179
    %v3743 = vunpack.c.l.b16 %v1180
    %v3744 = vunpack.c.l.b16 %v1181
    %v3745 = vunpack.c.h.b16 %v1181
    %v3746 = vunpack.c.l.b16 %v1182
    %v3747 = vunpack.c.h.b16 %v1182
    %v3748 = vunpack.c.l.b16 %v1183
    %v3749 = vunpack.c.l.b16 %v1184
    %v3750 = vunpack.c.h.b16 %v1184
    %v3751 = vunpack.c.l.b16 %v1185
    %v3752 = vunpack.c.h.b16 %v1185
    %v3753 = vunpack.c.l.b16 %v1186
    %v3754 = vunpack.c.l.b16 %v1187
    %v3755 = vunpack.c.h.b16 %v1187
    %v3756 = vunpack.c.l.b16 %v1188
    %v3757 = vunpack.c.h.b16 %v1188
    %v3758 = vunpack.c.l.b16 %v1189
    %v3759 = vunpack.c.l.b16 %v1190
    %v3760 = vunpack.c.h.b16 %v1190
    %v3761 = vunpack.c.l.b16 %v1191
    %v3762 = vunpack.c.h.b16 %v1191
    %v3763 = vunpack.c.l.b16 %v1192
    %v3764 = vunpack.c.l.b16 %v1193
    %v3765 = vunpack.c.h.b16 %v1193
    %v3766 = vunpack.c.l.b16 %v1194
    %v3767 = vunpack.c.h.b16 %v1194
    %v3768 = vunpack.c.l.b16 %v1195
    %v3769 = vunpack.c.l.b16 %v1196
    %v3770 = vunpack.c.h.b16 %v1196
    %v3771 = vunpack.c.l.b16 %v1197
    %v3772 = vunpack.c.h.b16 %v1197
    %v3773 = vunpack.c.l.b16 %v1198
    %v3774 = vunpack.c.l.b16 %v1199
    %v3775 = vunpack.c.h.b16 %v1199
    %v3776 = vunpack.c.l.b16 %v1200
    %v3777 = vunpack.c.h.b16 %v1200
    %v3778 = vunpack.c.l.b16 %v1201
    %v3779 = vunpack.c.l.b16 %v1202
    %v3780 = vunpack.c.h.b16 %v1202
    %v3781 = vunpack.c.l.b16 %v1203
    %v3782 = vunpack.c.h.b16 %v1203
    %v3783 = vunpack.c.l.b16 %v1204
    %v3784 = vunpack.c.l.b16 %v1205
    %v3785 = vunpack.c.h.b16 %v1205
    %v3786 = vunpack.c.l.b16 %v1206
    %v3787 = vunpack.c.h.b16 %v1206
    %v3788 = vunpack.c.l.b16 %v1207
    %v3789 = vunpack.c.l.b16 %v1208
    %v3790 = vunpack.c.h.b16 %v1208
    %v3791 = vunpack.c.l.b16 %v1209
    %v3792 = vunpack.c.h.b16 %v1209
    %v3793 = vunpack.c.l.b16 %v1210
    %v3794 = vunpack.c.l.b16 %v1211
    %v3795 = vunpack.c.h.b16 %v1211
    %v3796 = vunpack.c.l.b16 %v1212
    %v3797 = vunpack.c.h.b16 %v1212
    %v3798 = vunpack.c.l.b16 %v1213
    %v3799 = vunpack.c.l.b16 %v1214
    %v3800 = vunpack.c.h.b16 %v1214
    %v3801 = vunpack.c.l.b16 %v1215
    %v3802 = vunpack.c.h.b16 %v1215
    %v3803 = vunpack.c.l.b16 %v1216
    %v3804 = vunpack.c.l.b16 %v1217
    %v3805 = vunpack.c.h.b16 %v1217
    %v3806 = vunpack.c.l.b16 %v1218
    %v3807 = vunpack.c.h.b16 %v1218
    %v3808 = vunpack.c.l.b16 %v1219
    %v3809 = vunpack.c.l.b16 %v1220
    %v3810 = vunpack.c.h.b16 %v1220
    %v3811 = vunpack.c.l.b16 %v1221
    %v3812 = vunpack.c.h.b16 %v1221
    %v3813 = vunpack.c.l.b16 %v1222
    %v3814 = vunpack.c.l.b16 %v1223
    %v3815 = vunpack.c.h.b16 %v1223
    %v3816 = vunpack.c.l.b16 %v1224
    %v3817 = vunpack.c.h.b16 %v1224
    %v3818 = vunpack.c.l.b16 %v1225
    %v3819 = vunpack.c.l.b16 %v1226
    %v3820 = vunpack.c.h.b16 %v1226
    %v3821 = vunpack.c.l.b16 %v1227
    %v3822 = vunpack.c.h.b16 %v1227
    %v3823 = vunpack.c.l.b16 %v1228
    %v3824 = vunpack.c.l.b16 %v1229
    %v3825 = vunpack.c.h.b16 %v1229
    %v3826 = vunpack.c.l.b16 %v1230
    %v3827 = vunpack.c.h.b16 %v1230
    %v3828 = vunpack.c.l.b16 %v1231
    %v3829 = vunpack.c.l.b16 %v1232
    %v3830 = vunpack.c.h.b16 %v1232
    %v3831 = vunpack.c.l.b16 %v1233
    %v3832 = vunpack.c.h.b16 %v1233
    %v3833 = vunpack.c.l.b16 %v1234
    %v3834 = vunpack.c.l.b16 %v1235
    %v3835 = vunpack.c.h.b16 %v1235
    %v3836 = vunpack.c.l.b16 %v1236
    %v3837 = vunpack.c.h.b16 %v1236
    %v3838 = vunpack.c.l.b16 %v1237
    %v3839 = vunpack.c.l.b16 %v1238
    %v3840 = vunpack.c.h.b16 %v1238
    %v3841 = vunpack.c.l.b16 %v1239
    %v3842 = vunpack.c.h.b16 %v1239
    %v3843 = vunpack.c.l.b16 %v1240
    %v3844 = vunpack.c.l.b16 %v1241
    %v3845 = vunpack.c.h.b16 %v1241
    %v3846 = vunpack.c.l.b16 %v1242
    %v3847 = vunpack.c.h.b16 %v1242
    %v3848 = vunpack.c.l.b16 %v1243
    %v3849 = vunpack.c.l.b16 %v1244
    %v3850 = vunpack.c.h.b16 %v1244
    %v3851 = vunpack.c.l.b16 %v1245
    %v3852 = vunpack.c.h.b16 %v1245
    %v3853 = vunpack.c.l.b16 %v1246
    %v3854 = vunpack.c.l.b16 %v1247
    %v3855 = vunpack.c.h.b16 %v1247
    %v3856 = vunpack.c.l.b16 %v1248
    %v3857 = vunpack.c.h.b16 %v1248
    %v3858 = vunpack.c.l.b16 %v1249
    %v3859 = vunpack.c.l.b16 %v1250
    %v3860 = vunpack.c.h.b16 %v1250
    %v3861 = vunpack.c.l.b16 %v1251
    %v3862 = vunpack.c.h.b16 %v1251
    %v3863 = vunpack.c.l.b16 %v1252
    %v3864 = vunpack.c.l.b16 %v1253
    %v3865 = vunpack.c.h.b16 %v1253
    %v3866 = vunpack.c.l.b16 %v1254
    %v3867 = vunpack.c.h.b16 %v1254
    %v3868 = vunpack.c.l.b16 %v1255
    %v3869 = vunpack.c.l.b16 %v1256
    %v3870 = vunpack.c.h.b16 %v1256
    %v3871 = vunpack.c.l.b16 %v1257
    %v3872 = vunpack.c.h.b16 %v1257
    %v3873 = vunpack.c.l.b16 %v1258
    %v3874 = vunpack.c.l.b16 %v1259
    %v3875 = vunpack.c.h.b16 %v1259
    %v3876 = vunpack.c.l.b16 %v1260
    %v3877 = vunpack.c.h.b16 %v1260
    %v3878 = vunpack.c.l.b16 %v1261
    %v3879 = vunpack.c.l.b16 %v1262
    %v3880 = vunpack.c.h.b16 %v1262
    %v3881 = vunpack.c.l.b16 %v1263
    %v3882 = vunpack.c.h.b16 %v1263
    %v3883 = vunpack.c.l.b16 %v1264
    %v3884 = vunpack.c.l.b16 %v1265
    %v3885 = vunpack.c.h.b16 %v1265
    %v3886 = vunpack.c.l.b16 %v1266
    %v3887 = vunpack.c.h.b16 %v1266
    %v3888 = vunpack.c.l.b16 %v1267
    %v3889 = vunpack.c.l.b16 %v1268
    %v3890 = vunpack.c.h.b16 %v1268
    %v3891 = vunpack.c.l.b16 %v1269
    %v3892 = vunpack.c.h.b16 %v1269
    %v3893 = vunpack.c.l.b16 %v1270
    %v3894 = vunpack.c.l.b16 %v1271
    %v3895 = vunpack.c.h.b16 %v1271
    %v3896 = vunpack.c.l.b16 %v1272
    %v3897 = vunpack.c.h.b16 %v1272
    %v3898 = vunpack.c.l.b16 %v1273
    %v3899 = vunpack.c.l.b16 %v1274
    %v3900 = vunpack.c.h.b16 %v1274
    %v3901 = vunpack.c.l.b16 %v1275
    %v3902 = vunpack.c.h.b16 %v1275
    %v3903 = vunpack.c.l.b16 %v1276
    %v3904 = vpack.c.b16 %v2309, %v2304
    %v3905 = vpack.c.b16 %v2310, %v2305
    %v3906 = vpack.c.b16 %v2311, %v2306
    %v3907 = vpack.c.b16 %v2312, %v2307
    %v3908 = vpack.c.b16 %v2313, %v2308
    %v3909 = vpack.c.b16 %v2319, %v2314
    %v3910 = vpack.c.b16 %v2320, %v2315
    %v3911 = vpack.c.b16 %v2321, %v2316
    %v3912 = vpack.c.b16 %v2322, %v2317
    %v3913 = vpack.c.b16 %v2323, %v2318
    %v3914 = vpack.c.b16 %v2329, %v2324
    %v3915 = vpack.c.b16 %v2330, %v2325
    %v3916 = vpack.c.b16 %v2331, %v2326
    %v3917 = vpack.c.b16 %v2332, %v2327
    %v3918 = vpack.c.b16 %v2333, %v2328
    %v3919 = vpack.c.b16 %v2339, %v2334
    %v3920 = vpack.c.b16 %v2340, %v2335
    %v3921 = vpack.c.b16 %v2341, %v2336
    %v3922 = vpack.c.b16 %v2342, %v2337
    %v3923 = vpack.c.b16 %v2343, %v2338
    %v3924 = vpack.c.b16 %v2349, %v2344
    %v3925 = vpack.c.b16 %v2350, %v2345
    %v3926 = vpack.c.b16 %v2351, %v2346
    %v3927 = vpack.c.b16 %v2352, %v2347
    %v3928 = vpack.c.b16 %v2353, %v2348
    %v3929 = vpack.c.b16 %v2359, %v2354
    %v3930 = vpack.c.b16 %v2360, %v2355
    %v3931 = vpack.c.b16 %v2361, %v2356
    %v3932 = vpack.c.b16 %v2362, %v2357
    %v3933 = vpack.c.b16 %v2363, %v2358
    %v3934 = vpack.c.b16 %v2369, %v2364
    %v3935 = vpack.c.b16 %v2370, %v2365
    %v3936 = vpack.c.b16 %v2371, %v2366
    %v3937 = vpack.c.b16 %v2372, %v2367
    %v3938 = vpack.c.b16 %v2373, %v2368
    %v3939 = vpack.c.b16 %v2379, %v2374
    %v3940 = vpack.c.b16 %v2380, %v2375
    %v3941 = vpack.c.b16 %v2381, %v2376
    %v3942 = vpack.c.b16 %v2382, %v2377
    %v3943 = vpack.c.b16 %v2383, %v2378
    %v3944 = vpack.c.b16 %v2389, %v2384
    %v3945 = vpack.c.b16 %v2390, %v2385
    %v3946 = vpack.c.b16 %v2391, %v2386
    %v3947 = vpack.c.b16 %v2392, %v2387
    %v3948 = vpack.c.b16 %v2393, %v2388
    %v3949 = vpack.c.b16 %v2399, %v2394
    %v3950 = vpack.c.b16 %v2400, %v2395
    %v3951 = vpack.c.b16 %v2401, %v2396
    %v3952 = vpack.c.b16 %v2402, %v2397
    %v3953 = vpack.c.b16 %v2403, %v2398
    %v3954 = vpack.c.b16 %v2409, %v2404
    %v3955 = vpack.c.b16 %v2410, %v2405
    %v3956 = vpack.c.b16 %v2411, %v2406
    %v3957 = vpack.c.b16 %v2412, %v2407
    %v3958 = vpack.c.b16 %v2413, %v2408
    %v3959 = vpack.c.b16 %v2419, %v2414
    %v3960 = vpack.c.b16 %v2420, %v2415
    %v3961 = vpack.c.b16 %v2421, %v2416
    %v3962 = vpack.c.b16 %v2422, %v2417
    %v3963 = vpack.c.b16 %v2423, %v2418
    %v3964 = vpack.c.b16 %v2429, %v2424
    %v3965 = vpack.c.b16 %v2430, %v2425
    %v3966 = vpack.c.b16 %v2431, %v2426
    %v3967 = vpack.c.b16 %v2432, %v2427
    %v3968 = vpack.c.b16 %v2433, %v2428
    %v3969 = vpack.c.b16 %v2439, %v2434
    %v3970 = vpack.c.b16 %v2440, %v2435
    %v3971 = vpack.c.b16 %v2441, %v2436
    %v3972 = vpack.c.b16 %v2442, %v2437
    %v3973 = vpack.c.b16 %v2443, %v2438
    %v3974 = vpack.c.b16 %v2449, %v2444
    %v3975 = vpack.c.b16 %v2450, %v2445
    %v3976 = vpack.c.b16 %v2451, %v2446
    %v3977 = vpack.c.b16 %v2452, %v2447
    %v3978 = vpack.c.b16 %v2453, %v2448
    %v3979 = vpack.c.b16 %v2459, %v2454
    %v3980 = vpack.c.b16 %v2460, %v2455
    %v3981 = vpack.c.b16 %v2461, %v2456
    %v3982 = vpack.c.b16 %v2462, %v2457
    %v3983 = vpack.c.b16 %v2463, %v2458
    %v3984 = vpack.c.b16 %v2469, %v2464
    %v3985 = vpack.c.b16 %v2470, %v2465
    %v3986 = vpack.c.b16 %v2471, %v2466
    %v3987 = vpack.c.b16 %v2472, %v2467
    %v3988 = vpack.c.b16 %v2473, %v2468
    %v3989 = vpack.c.b16 %v2479, %v2474
    %v3990 = vpack.c.b16 %v2480, %v2475
    %v3991 = vpack.c.b16 %v2481, %v2476
    %v3992 = vpack.c.b16 %v2482, %v2477
    %v3993 = vpack.c.b16 %v2483, %v2478
    %v3994 = vpack.c.b16 %v2489, %v2484
    %v3995 = vpack.c.b16 %v2490, %v2485
    %v3996 = vpack.c.b16 %v2491, %v2486
    %v3997 = vpack.c.b16 %v2492, %v2487
    %v3998 = vpack.c.b16 %v2493, %v2488
    %v3999 = vpack.c.b16 %v2499, %v2494
    %v4000 = vpack.c.b16 %v2500, %v2495
    %v4001 = vpack.c.b16 %v2501, %v2496
    %v4002 = vpack.c.b16 %v2502, %v2497
    %v4003 = vpack.c.b16 %v2503, %v2498
    %v4004 = vpack.c.b16 %v2509, %v2504
    %v4005 = vpack.c.b16 %v2510, %v2505
    %v4006 = vpack.c.b16 %v2511, %v2506
    %v4007 = vpack.c.b16 %v2512, %v2507
    %v4008 = vpack.c.b16 %v2513, %v2508
    %v4009 = vpack.c.b16 %v2519, %v2514
    %v4010 = vpack.c.b16 %v2520, %v2515
    %v4011 = vpack.c.b16 %v2521, %v2516
    %v4012 = vpack.c.b16 %v2522, %v2517
    %v4013 = vpack.c.b16 %v2523, %v2518
    %v4014 = vpack.c.b16 %v2529, %v2524
    %v4015 = vpack.c.b16 %v2530, %v2525
    %v4016 = vpack.c.b16 %v2531, %v2526
    %v4017 = vpack.c.b16 %v2532, %v2527
    %v4018 = vpack.c.b16 %v2533, %v2528
    %v4019 = vpack.c.b16 %v2539, %v2534
    %v4020 = vpack.c.b16 %v2540, %v2535
    %v4021 = vpack.c.b16 %v2541, %v2536
    %v4022 = vpack.c.b16 %v2542, %v2537
    %v4023 = vpack.c.b16 %v2543, %v2538
    %v4024 = vpack.c.b16 %v2549, %v2544
    %v4025 = vpack.c.b16 %v2550, %v2545
    %v4026 = vpack.c.b16 %v2551, %v2546
    %v4027 = vpack.c.b16 %v2552, %v2547
    %v4028 = vpack.c.b16 %v2553, %v2548
    %v4029 = vpack.c.b16 %v2559, %v2554
    %v4030 = vpack.c.b16 %v2560, %v2555
    %v4031 = vpack.c.b16 %v2561, %v2556
    %v4032 = vpack.c.b16 %v2562, %v2557
    %v4033 = vpack.c.b16 %v2563, %v2558
    %v4034 = vpack.c.b16 %v2569, %v2564
    %v4035 = vpack.c.b16 %v2570, %v2565
    %v4036 = vpack.c.b16 %v2571, %v2566
    %v4037 = vpack.c.b16 %v2572, %v2567
    %v4038 = vpack.c.b16 %v2573, %v2568
    %v4039 = vpack.c.b16 %v2579, %v2574
    %v4040 = vpack.c.b16 %v2580, %v2575
    %v4041 = vpack.c.b16 %v2581, %v2576
    %v4042 = vpack.c.b16 %v2582, %v2577
    %v4043 = vpack.c.b16 %v2583, %v2578
    %v4044 = vpack.c.b16 %v2589, %v2584
    %v4045 = vpack.c.b16 %v2590, %v2585
    %v4046 = vpack.c.b16 %v2591, %v2586
    %v4047 = vpack.c.b16 %v2592, %v2587
    %v4048 = vpack.c.b16 %v2593, %v2588
    %v4049 = vpack.c.b16 %v2599, %v2594
    %v4050 = vpack.c.b16 %v2600, %v2595
    %v4051 = vpack.c.b16 %v2601, %v2596
    %v4052 = vpack.c.b16 %v2602, %v2597
    %v4053 = vpack.c.b16 %v2603, %v2598
    %v4054 = vpack.c.b16 %v2609, %v2604
    %v4055 = vpack.c.b16 %v2610, %v2605
    %v4056 = vpack.c.b16 %v2611, %v2606
    %v4057 = vpack.c.b16 %v2612, %v2607
    %v4058 = vpack.c.b16 %v2613, %v2608
    %v4059 = vpack.c.b16 %v2619, %v2614
    %v4060 = vpack.c.b16 %v2620, %v2615
    %v4061 = vpack.c.b16 %v2621, %v2616
    %v4062 = vpack.c.b16 %v2622, %v2617
    %v4063 = vpack.c.b16 %v2623, %v2618
    %v4064 = vpack.c.b16 %v2629, %v2624
    %v4065 = vpack.c.b16 %v2630, %v2625
    %v4066 = vpack.c.b16 %v2631, %v2626
    %v4067 = vpack.c.b16 %v2632, %v2627
    %v4068 = vpack.c.b16 %v2633, %v2628
    %v4069 = vpack.c.b16 %v2639, %v2634
    %v4070 = vpack.c.b16 %v2640, %v2635
    %v4071 = vpack.c.b16 %v2641, %v2636
    %v4072 = vpack.c.b16 %v2642, %v2637
    %v4073 = vpack.c.b16 %v2643, %v2638
    %v4074 = vpack.c.b16 %v2649, %v2644
    %v4075 = vpack.c.b16 %v2650, %v2645
    %v4076 = vpack.c.b16 %v2651, %v2646
    %v4077 = vpack.c.b16 %v2652, %v2647
    %v4078 = vpack.c.b16 %v2653, %v2648
    %v4079 = vpack.c.b16 %v2659, %v2654
    %v4080 = vpack.c.b16 %v2660, %v2655
    %v4081 = vpack.c.b16 %v2661, %v2656
    %v4082 = vpack.c.b16 %v2662, %v2657
    %v4083 = vpack.c.b16 %v2663, %v2658
    %v4084 = vpack.c.b16 %v2669, %v2664
    %v4085 = vpack.c.b16 %v2670, %v2665
    %v4086 = vpack.c.b16 %v2671, %v2666
    %v4087 = vpack.c.b16 %v2672, %v2667
    %v4088 = vpack.c.b16 %v2673, %v2668
    %v4089 = vpack.c.b16 %v2679, %v2674
    %v4090 = vpack.c.b16 %v2680, %v2675
    %v4091 = vpack.c.b16 %v2681, %v2676
    %v4092 = vpack.c.b16 %v2682, %v2677
    %v4093 = vpack.c.b16 %v2683, %v2678
    %v4094 = vpack.c.b16 %v2689, %v2684
    %v4095 = vpack.c.b16 %v2690, %v2685
    %v4096 = vpack.c.b16 %v2691, %v2686
    %v4097 = vpack.c.b16 %v2692, %v2687
    %v4098 = vpack.c.b16 %v2693, %v2688
    %v4099 = vpack.c.b16 %v2699, %v2694
    %v4100 = vpack.c.b16 %v2700, %v2695
    %v4101 = vpack.c.b16 %v2701, %v2696
    %v4102 = vpack.c.b16 %v2702, %v2697
    %v4103 = vpack.c.b16 %v2703, %v2698
    %v4104 = vpack.c.b16 %v2709, %v2704
    %v4105 = vpack.c.b16 %v2710, %v2705
    %v4106 = vpack.c.b16 %v2711, %v2706
    %v4107 = vpack.c.b16 %v2712, %v2707
    %v4108 = vpack.c.b16 %v2713, %v2708
    %v4109 = vpack.c.b16 %v2719, %v2714
    %v4110 = vpack.c.b16 %v2720, %v2715
    %v4111 = vpack.c.b16 %v2721, %v2716
    %v4112 = vpack.c.b16 %v2722, %v2717
    %v4113 = vpack.c.b16 %v2723, %v2718
    %v4114 = vpack.c.b16 %v2729, %v2724
    %v4115 = vpack.c.b16 %v2730, %v2725
    %v4116 = vpack.c.b16 %v2731, %v2726
    %v4117 = vpack.c.b16 %v2732, %v2727
    %v4118 = vpack.c.b16 %v2733, %v2728
    %v4119 = vpack.c.b16 %v2739, %v2734
    %v4120 = vpack.c.b16 %v2740, %v2735
    %v4121 = vpack.c.b16 %v2741, %v2736
    %v4122 = vpack.c.b16 %v2742, %v2737
    %v4123 = vpack.c.b16 %v2743, %v2738
    %v4124 = vpack.c.b16 %v2749, %v2744
    %v4125 = vpack.c.b16 %v2750, %v2745
    %v4126 = vpack.c.b16 %v2751, %v2746
    %v4127 = vpack.c.b16 %v2752, %v2747
    %v4128 = vpack.c.b16 %v2753, %v2748
    %v4129 = vpack.c.b16 %v2759, %v2754
    %v4130 = vpack.c.b16 %v2760, %v2755
    %v4131 = vpack.c.b16 %v2761, %v2756
    %v4132 = vpack.c.b16 %v2762, %v2757
    %v4133 = vpack.c.b16 %v2763, %v2758
    %v4134 = vpack.c.b16 %v2769, %v2764
    %v4135 = vpack.c.b16 %v2770, %v2765
    %v4136 = vpack.c.b16 %v2771, %v2766
    %v4137 = vpack.c.b16 %v2772, %v2767
    %v4138 = vpack.c.b16 %v2773, %v2768
    %v4139 = vpack.c.b16 %v2779, %v2774
    %v4140 = vpack.c.b16 %v2780, %v2775
    %v4141 = vpack.c.b16 %v2781, %v2776
    %v4142 = vpack.c.b16 %v2782, %v2777
    %v4143 = vpack.c.b16 %v2783, %v2778
    %v4144 = vpack.c.b16 %v2789, %v2784
    %v4145 = vpack.c.b16 %v2790, %v2785
    %v4146 = vpack.c.b16 %v2791, %v2786
    %v4147 = vpack.c.b16 %v2792, %v2787
    %v4148 = vpack.c.b16 %v2793, %v2788
    %v4149 = vpack.c.b16 %v2799, %v2794
    %v4150 = vpack.c.b16 %v2800, %v2795
    %v4151 = vpack.c.b16 %v2801, %v2796
    %v4152 = vpack.c.b16 %v2802, %v2797
    %v4153 = vpack.c.b16 %v2803, %v2798
    %v4154 = vpack.c.b16 %v2809, %v2804
    %v4155 = vpack.c.b16 %v2810, %v2805
    %v4156 = vpack.c.b16 %v2811, %v2806
    %v4157 = vpack.c.b16 %v2812, %v2807
    %v4158 = vpack.c.b16 %v2813, %v2808
    %v4159 = vpack.c.b16 %v2819, %v2814
    %v4160 = vpack.c.b16 %v2820, %v2815
    %v4161 = vpack.c.b16 %v2821, %v2816
    %v4162 = vpack.c.b16 %v2822, %v2817
    %v4163 = vpack.c.b16 %v2823, %v2818
    %v4164 = vpack.c.b16 %v2829, %v2824
    %v4165 = vpack.c.b16 %v2830, %v2825
    %v4166 = vpack.c.b16 %v2831, %v2826
    %v4167 = vpack.c.b16 %v2832, %v2827
    %v4168 = vpack.c.b16 %v2833, %v2828
    %v4169 = vpack.c.b16 %v2839, %v2834
    %v4170 = vpack.c.b16 %v2840, %v2835
    %v4171 = vpack.c.b16 %v2841, %v2836
    %v4172 = vpack.c.b16 %v2842, %v2837
    %v4173 = vpack.c.b16 %v2843, %v2838
    %v4174 = vpack.c.b16 %v2849, %v2844
    %v4175 = vpack.c.b16 %v2850, %v2845
    %v4176 = vpack.c.b16 %v2851, %v2846
    %v4177 = vpack.c.b16 %v2852, %v2847
    %v4178 = vpack.c.b16 %v2853, %v2848
    %v4179 = vpack.c.b16 %v2859, %v2854
    %v4180 = vpack.c.b16 %v2860, %v2855
    %v4181 = vpack.c.b16 %v2861, %v2856
    %v4182 = vpack.c.b16 %v2862, %v2857
    %v4183 = vpack.c.b16 %v2863, %v2858
    %v4184 = vpack.c.b16 %v2869, %v2864
    %v4185 = vpack.c.b16 %v2870, %v2865
    %v4186 = vpack.c.b16 %v2871, %v2866
    %v4187 = vpack.c.b16 %v2872, %v2867
    %v4188 = vpack.c.b16 %v2873, %v2868
    %v4189 = vpack.c.b16 %v2879, %v2874
    %v4190 = vpack.c.b16 %v2880, %v2875
    %v4191 = vpack.c.b16 %v2881, %v2876
    %v4192 = vpack.c.b16 %v2882, %v2877
    %v4193 = vpack.c.b16 %v2883, %v2878
    %v4194 = vpack.c.b16 %v2889, %v2884
    %v4195 = vpack.c.b16 %v2890, %v2885
    %v4196 = vpack.c.b16 %v2891, %v2886
    %v4197 = vpack.c.b16 %v2892, %v2887
    %v4198 = vpack.c.b16 %v2893, %v2888
    %v4199 = vpack.c.b16 %v2899, %v2894
    %v4200 = vpack.c.b16 %v2900, %v2895
    %v4201 = vpack.c.b16 %v2901, %v2896
    %v4202 = vpack.c.b16 %v2902, %v2897
    %v4203 = vpack.c.b16 %v2903, %v2898
    %v4204 = vpack.c.b16 %v2909, %v2904
    %v4205 = vpack.c.b16 %v2910, %v2905
    %v4206 = vpack.c.b16 %v2911, %v2906
    %v4207 = vpack.c.b16 %v2912, %v2907
    %v4208 = vpack.c.b16 %v2913, %v2908
    %v4209 = vpack.c.b16 %v2919, %v2914
    %v4210 = vpack.c.b16 %v2920, %v2915
    %v4211 = vpack.c.b16 %v2921, %v2916
    %v4212 = vpack.c.b16 %v2922, %v2917
    %v4213 = vpack.c.b16 %v2923, %v2918
    %v4214 = vpack.c.b16 %v2929, %v2924
    %v4215 = vpack.c.b16 %v2930, %v2925
    %v4216 = vpack.c.b16 %v2931, %v2926
    %v4217 = vpack.c.b16 %v2932, %v2927
    %v4218 = vpack.c.b16 %v2933, %v2928
    %v4219 = vpack.c.b16 %v2939, %v2934
    %v4220 = vpack.c.b16 %v2940, %v2935
    %v4221 = vpack.c.b16 %v2941, %v2936
    %v4222 = vpack.c.b16 %v2942, %v2937
    %v4223 = vpack.c.b16 %v2943, %v2938
    %v4224 = vpack.c.b16 %v2949, %v2944
    %v4225 = vpack.c.b16 %v2950, %v2945
    %v4226 = vpack.c.b16 %v2951, %v2946
    %v4227 = vpack.c.b16 %v2952, %v2947
    %v4228 = vpack.c.b16 %v2953, %v2948
    %v4229 = vpack.c.b16 %v2959, %v2954
    %v4230 = vpack.c.b16 %v2960, %v2955
    %v4231 = vpack.c.b16 %v2961, %v2956
    %v4232 = vpack.c.b16 %v2962, %v2957
    %v4233 = vpack.c.b16 %v2963, %v2958
    %v4234 = vpack.c.b16 %v2969, %v2964
    %v4235 = vpack.c.b16 %v2970, %v2965
    %v4236 = vpack.c.b16 %v2971, %v2966
    %v4237 = vpack.c.b16 %v2972, %v2967
    %v4238 = vpack.c.b16 %v2973, %v2968
    %v4239 = vpack.c.b16 %v2979, %v2974
    %v4240 = vpack.c.b16 %v2980, %v2975
    %v4241 = vpack.c.b16 %v2981, %v2976
    %v4242 = vpack.c.b16 %v2982, %v2977
    %v4243 = vpack.c.b16 %v2983, %v2978
    %v4244 = vpack.c.b16 %v2989, %v2984
    %v4245 = vpack.c.b16 %v2990, %v2985
    %v4246 = vpack.c.b16 %v2991, %v2986
    %v4247 = vpack.c.b16 %v2992, %v2987
    %v4248 = vpack.c.b16 %v2993, %v2988
    %v4249 = vpack.c.b16 %v2999, %v2994
    %v4250 = vpack.c.b16 %v3000, %v2995
    %v4251 = vpack.c.b16 %v3001, %v2996
    %v4252 = vpack.c.b16 %v3002, %v2997
    %v4253 = vpack.c.b16 %v3003, %v2998
    %v4254 = vpack.c.b16 %v3009, %v3004
    %v4255 = vpack.c.b16 %v3010, %v3005
    %v4256 = vpack.c.b16 %v3011, %v3006
    %v4257 = vpack.c.b16 %v3012, %v3007
    %v4258 = vpack.c.b16 %v3013, %v3008
    %v4259 = vpack.c.b16 %v3019, %v3014
    %v4260 = vpack.c.b16 %v3020, %v3015
    %v4261 = vpack.c.b16 %v3021, %v3016
    %v4262 = vpack.c.b16 %v3022, %v3017
    %v4263 = vpack.c.b16 %v3023, %v3018
    %v4264 = vpack.c.b16 %v3029, %v3024
    %v4265 = vpack.c.b16 %v3030, %v3025
    %v4266 = vpack.c.b16 %v3031, %v3026
    %v4267 = vpack.c.b16 %v3032, %v3027
    %v4268 = vpack.c.b16 %v3033, %v3028
    %v4269 = vpack.c.b16 %v3039, %v3034
    %v4270 = vpack.c.b16 %v3040, %v3035
    %v4271 = vpack.c.b16 %v3041, %v3036
    %v4272 = vpack.c.b16 %v3042, %v3037
    %v4273 = vpack.c.b16 %v3043, %v3038
    %v4274 = vpack.c.b16 %v3049, %v3044
    %v4275 = vpack.c.b16 %v3050, %v3045
    %v4276 = vpack.c.b16 %v3051, %v3046
    %v4277 = vpack.c.b16 %v3052, %v3047
    %v4278 = vpack.c.b16 %v3053, %v3048
    %v4279 = vpack.c.b16 %v3059, %v3054
    %v4280 = vpack.c.b16 %v3060, %v3055
    %v4281 = vpack.c.b16 %v3061, %v3056
    %v4282 = vpack.c.b16 %v3062, %v3057
    %v4283 = vpack.c.b16 %v3063, %v3058
    %v4284 = vpack.c.b16 %v3069, %v3064
    %v4285 = vpack.c.b16 %v3070, %v3065
    %v4286 = vpack.c.b16 %v3071, %v3066
    %v4287 = vpack.c.b16 %v3072, %v3067
    %v4288 = vpack.c.b16 %v3073, %v3068
    %v4289 = vpack.c.b16 %v3079, %v3074
    %v4290 = vpack.c.b16 %v3080, %v3075
    %v4291 = vpack.c.b16 %v3081, %v3076
    %v4292 = vpack.c.b16 %v3082, %v3077
    %v4293 = vpack.c.b16 %v3083, %v3078
    %v4294 = vpack.c.b16 %v3089, %v3084
    %v4295 = vpack.c.b16 %v3090, %v3085
    %v4296 = vpack.c.b16 %v3091, %v3086
    %v4297 = vpack.c.b16 %v3092, %v3087
    %v4298 = vpack.c.b16 %v3093, %v3088
    %v4299 = vpack.c.b16 %v3099, %v3094
    %v4300 = vpack.c.b16 %v3100, %v3095
    %v4301 = vpack.c.b16 %v3101, %v3096
    %v4302 = vpack.c.b16 %v3102, %v3097
    %v4303 = vpack.c.b16 %v3103, %v3098
    %v4304 = vpack.c.b16 %v3109, %v3104
    %v4305 = vpack.c.b16 %v3110, %v3105
    %v4306 = vpack.c.b16 %v3111, %v3106
    %v4307 = vpack.c.b16 %v3112, %v3107
    %v4308 = vpack.c.b16 %v3113, %v3108
    %v4309 = vpack.c.b16 %v3119, %v3114
    %v4310 = vpack.c.b16 %v3120, %v3115
    %v4311 = vpack.c.b16 %v3121, %v3116
    %v4312 = vpack.c.b16 %v3122, %v3117
    %v4313 = vpack.c.b16 %v3123, %v3118
    %v4314 = vpack.c.b16 %v3129, %v3124
    %v4315 = vpack.c.b16 %v3130, %v3125
    %v4316 = vpack.c.b16 %v3131, %v3126
    %v4317 = vpack.c.b16 %v3132, %v3127
    %v4318 = vpack.c.b16 %v3133, %v3128
    %v4319 = vpack.c.b16 %v3139, %v3134
    %v4320 = vpack.c.b16 %v3140, %v3135
    %v4321 = vpack.c.b16 %v3141, %v3136
    %v4322 = vpack.c.b16 %v3142, %v3137
    %v4323 = vpack.c.b16 %v3143, %v3138
    %v4324 = vpack.c.b16 %v3149, %v3144
    %v4325 = vpack.c.b16 %v3150, %v3145
    %v4326 = vpack.c.b16 %v3151, %v3146
    %v4327 = vpack.c.b16 %v3152, %v3147
    %v4328 = vpack.c.b16 %v3153, %v3148
    %v4329 = vpack.c.b16 %v3159, %v3154
    %v4330 = vpack.c.b16 %v3160, %v3155
    %v4331 = vpack.c.b16 %v3161, %v3156
    %v4332 = vpack.c.b16 %v3162, %v3157
    %v4333 = vpack.c.b16 %v3163, %v3158
    %v4334 = vpack.c.b16 %v3169, %v3164
    %v4335 = vpack.c.b16 %v3170, %v3165
    %v4336 = vpack.c.b16 %v3171, %v3166
    %v4337 = vpack.c.b16 %v3172, %v3167
    %v4338 = vpack.c.b16 %v3173, %v3168
    %v4339 = vpack.c.b16 %v3179, %v3174
    %v4340 = vpack.c.b16 %v3180, %v3175
    %v4341 = vpack.c.b16 %v3181, %v3176
    %v4342 = vpack.c.b16 %v3182, %v3177
    %v4343 = vpack.c.b16 %v3183, %v3178
    %v4344 = vpack.c.b16 %v3189, %v3184
    %v4345 = vpack.c.b16 %v3190, %v3185
    %v4346 = vpack.c.b16 %v3191, %v3186
    %v4347 = vpack.c.b16 %v3192, %v3187
    %v4348 = vpack.c.b16 %v3193, %v3188
    %v4349 = vpack.c.b16 %v3199, %v3194
    %v4350 = vpack.c.b16 %v3200, %v3195
    %v4351 = vpack.c.b16 %v3201, %v3196
    %v4352 = vpack.c.b16 %v3202, %v3197
    %v4353 = vpack.c.b16 %v3203, %v3198
    %v4354 = vpack.c.b16 %v3209, %v3204
    %v4355 = vpack.c.b16 %v3210, %v3205
    %v4356 = vpack.c.b16 %v3211, %v3206
    %v4357 = vpack.c.b16 %v3212, %v3207
    %v4358 = vpack.c.b16 %v3213, %v3208
    %v4359 = vpack.c.b16 %v3219, %v3214
    %v4360 = vpack.c.b16 %v3220, %v3215
    %v4361 = vpack.c.b16 %v3221, %v3216
    %v4362 = vpack.c.b16 %v3222, %v3217
    %v4363 = vpack.c.b16 %v3223, %v3218
    %v4364 = vpack.c.b16 %v3229, %v3224
    %v4365 = vpack.c.b16 %v3230, %v3225
    %v4366 = vpack.c.b16 %v3231, %v3226
    %v4367 = vpack.c.b16 %v3232, %v3227
    %v4368 = vpack.c.b16 %v3233, %v3228
    %v4369 = vpack.c.b16 %v3239, %v3234
    %v4370 = vpack.c.b16 %v3240, %v3235
    %v4371 = vpack.c.b16 %v3241, %v3236
    %v4372 = vpack.c.b16 %v3242, %v3237
    %v4373 = vpack.c.b16 %v3243, %v3238
    %v4374 = vpack.c.b16 %v3249, %v3244
    %v4375 = vpack.c.b16 %v3250, %v3245
    %v4376 = vpack.c.b16 %v3251, %v3246
    %v4377 = vpack.c.b16 %v3252, %v3247
    %v4378 = vpack.c.b16 %v3253, %v3248
    %v4379 = vpack.c.b16 %v3259, %v3254
    %v4380 = vpack.c.b16 %v3260, %v3255
    %v4381 = vpack.c.b16 %v3261, %v3256
    %v4382 = vpack.c.b16 %v3262, %v3257
    %v4383 = vpack.c.b16 %v3263, %v3258
    %v4384 = vpack.c.b16 %v3269, %v3264
    %v4385 = vpack.c.b16 %v3270, %v3265
    %v4386 = vpack.c.b16 %v3271, %v3266
    %v4387 = vpack.c.b16 %v3272, %v3267
    %v4388 = vpack.c.b16 %v3273, %v3268
    %v4389 = vpack.c.b16 %v3279, %v3274
    %v4390 = vpack.c.b16 %v3280, %v3275
    %v4391 = vpack.c.b16 %v3281, %v3276
    %v4392 = vpack.c.b16 %v3282, %v3277
    %v4393 = vpack.c.b16 %v3283, %v3278
    %v4394 = vpack.c.b16 %v3289, %v3284
    %v4395 = vpack.c.b16 %v3290, %v3285
    %v4396 = vpack.c.b16 %v3291, %v3286
    %v4397 = vpack.c.b16 %v3292, %v3287
    %v4398 = vpack.c.b16 %v3293, %v3288
    %v4399 = vpack.c.b16 %v3299, %v3294
    %v4400 = vpack.c.b16 %v3300, %v3295
    %v4401 = vpack.c.b16 %v3301, %v3296
    %v4402 = vpack.c.b16 %v3302, %v3297
    %v4403 = vpack.c.b16 %v3303, %v3298
    %v4404 = vpack.c.b16 %v3309, %v3304
    %v4405 = vpack.c.b16 %v3310, %v3305
    %v4406 = vpack.c.b16 %v3311, %v3306
    %v4407 = vpack.c.b16 %v3312, %v3307
    %v4408 = vpack.c.b16 %v3313, %v3308
    %v4409 = vpack.c.b16 %v3319, %v3314
    %v4410 = vpack.c.b16 %v3320, %v3315
    %v4411 = vpack.c.b16 %v3321, %v3316
    %v4412 = vpack.c.b16 %v3322, %v3317
    %v4413 = vpack.c.b16 %v3323, %v3318
    %v4414 = vpack.c.b16 %v3329, %v3324
    %v4415 = vpack.c.b16 %v3330, %v3325
    %v4416 = vpack.c.b16 %v3331, %v3326
    %v4417 = vpack.c.b16 %v3332, %v3327
    %v4418 = vpack.c.b16 %v3333, %v3328
    %v4419 = vpack.c.b16 %v3339, %v3334
    %v4420 = vpack.c.b16 %v3340, %v3335
    %v4421 = vpack.c.b16 %v3341, %v3336
    %v4422 = vpack.c.b16 %v3342, %v3337
    %v4423 = vpack.c.b16 %v3343, %v3338
    %v4424 = vpack.c.b16 %v3349, %v3344
    %v4425 = vpack.c.b16 %v3350, %v3345
    %v4426 = vpack.c.b16 %v3351, %v3346
    %v4427 = vpack.c.b16 %v3352, %v3347
    %v4428 = vpack.c.b16 %v3353, %v3348
    %v4429 = vpack.c.b16 %v3359, %v3354
    %v4430 = vpack.c.b16 %v3360, %v3355
    %v4431 = vpack.c.b16 %v3361, %v3356
    %v4432 = vpack.c.b16 %v3362, %v3357
    %v4433 = vpack.c.b16 %v3363, %v3358
    %v4434 = vpack.c.b16 %v3369, %v3364
    %v4435 = vpack.c.b16 %v3370, %v3365
    %v4436 = vpack.c.b16 %v3371, %v3366
    %v4437 = vpack.c.b16 %v3372, %v3367
    %v4438 = vpack.c.b16 %v3373, %v3368
    %v4439 = vpack.c.b16 %v3379, %v3374
    %v4440 = vpack.c.b16 %v3380, %v3375
    %v4441 = vpack.c.b16 %v3381, %v3376
    %v4442 = vpack.c.b16 %v3382, %v3377
    %v4443 = vpack.c.b16 %v3383, %v3378
    %v4444 = vpack.c.b16 %v3389, %v3384
    %v4445 = vpack.c.b16 %v3390, %v3385
    %v4446 = vpack.c.b16 %v3391, %v3386
    %v4447 = vpack.c.b16 %v3392, %v3387
    %v4448 = vpack.c.b16 %v3393, %v3388
    %v4449 = vpack.c.b16 %v3399, %v3394
    %v4450 = vpack.c.b16 %v3400, %v3395
    %v4451 = vpack.c.b16 %v3401, %v3396
    %v4452 = vpack.c.b16 %v3402, %v3397
    %v4453 = vpack.c.b16 %v3403, %v3398
    %v4454 = vpack.c.b16 %v3409, %v3404
    %v4455 = vpack.c.b16 %v3410, %v3405
    %v4456 = vpack.c.b16 %v3411, %v3406
    %v4457 = vpack.c.b16 %v3412, %v3407
    %v4458 = vpack.c.b16 %v3413, %v3408
    %v4459 = vpack.c.b16 %v3419, %v3414
    %v4460 = vpack.c.b16 %v3420, %v3415
    %v4461 = vpack.c.b16 %v3421, %v3416
    %v4462 = vpack.c.b16 %v3422, %v3417
    %v4463 = vpack.c.b16 %v3423, %v3418
    %v4464 = vpack.c.b16 %v3429, %v3424
    %v4465 = vpack.c.b16 %v3430, %v3425
    %v4466 = vpack.c.b16 %v3431, %v3426
    %v4467 = vpack.c.b16 %v3432, %v3427
    %v4468 = vpack.c.b16 %v3433, %v3428
    %v4469 = vpack.c.b16 %v3439, %v3434
    %v4470 = vpack.c.b16 %v3440, %v3435
    %v4471 = vpack.c.b16 %v3441, %v3436
    %v4472 = vpack.c.b16 %v3442, %v3437
    %v4473 = vpack.c.b16 %v3443, %v3438
    %v4474 = vpack.c.b16 %v3449, %v3444
    %v4475 = vpack.c.b16 %v3450, %v3445
    %v4476 = vpack.c.b16 %v3451, %v3446
    %v4477 = vpack.c.b16 %v3452, %v3447
    %v4478 = vpack.c.b16 %v3453, %v3448
    %v4479 = vpack.c.b16 %v3459, %v3454
    %v4480 = vpack.c.b16 %v3460, %v3455
    %v4481 = vpack.c.b16 %v3461, %v3456
    %v4482 = vpack.c.b16 %v3462, %v3457
    %v4483 = vpack.c.b16 %v3463, %v3458
    %v4484 = vpack.c.b16 %v3469, %v3464
    %v4485 = vpack.c.b16 %v3470, %v3465
    %v4486 = vpack.c.b16 %v3471, %v3466
    %v4487 = vpack.c.b16 %v3472, %v3467
    %v4488 = vpack.c.b16 %v3473, %v3468
    %v4489 = vpack.c.b16 %v3479, %v3474
    %v4490 = vpack.c.b16 %v3480, %v3475
    %v4491 = vpack.c.b16 %v3481, %v3476
    %v4492 = vpack.c.b16 %v3482, %v3477
    %v4493 = vpack.c.b16 %v3483, %v3478
    %v4494 = vpack.c.b16 %v3489, %v3484
    %v4495 = vpack.c.b16 %v3490, %v3485
    %v4496 = vpack.c.b16 %v3491, %v3486
    %v4497 = vpack.c.b16 %v3492, %v3487
    %v4498 = vpack.c.b16 %v3493, %v3488
    %v4499 = vpack.c.b16 %v3499, %v3494
    %v4500 = vpack.c.b16 %v3500, %v3495
    %v4501 = vpack.c.b16 %v3501, %v3496
    %v4502 = vpack.c.b16 %v3502, %v3497
    %v4503 = vpack.c.b16 %v3503, %v3498
    %v4504 = vpack.c.b16 %v3509, %v3504
    %v4505 = vpack.c.b16 %v3510, %v3505
    %v4506 = vpack.c.b16 %v3511, %v3506
    %v4507 = vpack.c.b16 %v3512, %v3507
    %v4508 = vpack.c.b16 %v3513, %v3508
    %v4509 = vpack.c.b16 %v3519, %v3514
    %v4510 = vpack.c.b16 %v3520, %v3515
    %v4511 = vpack.c.b16 %v3521, %v3516
    %v4512 = vpack.c.b16 %v3522, %v3517
    %v4513 = vpack.c.b16 %v3523, %v3518
    %v4514 = vpack.c.b16 %v3529, %v3524
    %v4515 = vpack.c.b16 %v3530, %v3525
    %v4516 = vpack.c.b16 %v3531, %v3526
    %v4517 = vpack.c.b16 %v3532, %v3527
    %v4518 = vpack.c.b16 %v3533, %v3528
    %v4519 = vpack.c.b16 %v3539, %v3534
    %v4520 = vpack.c.b16 %v3540, %v3535
    %v4521 = vpack.c.b16 %v3541, %v3536
    %v4522 = vpack.c.b16 %v3542, %v3537
    %v4523 = vpack.c.b16 %v3543, %v3538
    %v4524 = vpack.c.b16 %v3549, %v3544
    %v4525 = vpack.c.b16 %v3550, %v3545
    %v4526 = vpack.c.b16 %v3551, %v3546
    %v4527 = vpack.c.b16 %v3552, %v3547
    %v4528 = vpack.c.b16 %v3553, %v3548
    %v4529 = vpack.c.b16 %v3559, %v3554
    %v4530 = vpack.c.b16 %v3560, %v3555
    %v4531 = vpack.c.b16 %v3561, %v3556
    %v4532 = vpack.c.b16 %v3562, %v3557
    %v4533 = vpack.c.b16 %v3563, %v3558
    %v4534 = vpack.c.b16 %v3569, %v3564
    %v4535 = vpack.c.b16 %v3570, %v3565
    %v4536 = vpack.c.b16 %v3571, %v3566
    %v4537 = vpack.c.b16 %v3572, %v3567
    %v4538 = vpack.c.b16 %v3573, %v3568
    %v4539 = vpack.c.b16 %v3579, %v3574
    %v4540 = vpack.c.b16 %v3580, %v3575
    %v4541 = vpack.c.b16 %v3581, %v3576
    %v4542 = vpack.c.b16 %v3582, %v3577
    %v4543 = vpack.c.b16 %v3583, %v3578
    %v4544 = vpack.c.b16 %v3589, %v3584
    %v4545 = vpack.c.b16 %v3590, %v3585
    %v4546 = vpack.c.b16 %v3591, %v3586
    %v4547 = vpack.c.b16 %v3592, %v3587
    %v4548 = vpack.c.b16 %v3593, %v3588
    %v4549 = vpack.c.b16 %v3599, %v3594
    %v4550 = vpack.c.b16 %v3600, %v3595
    %v4551 = vpack.c.b16 %v3601, %v3596
    %v4552 = vpack.c.b16 %v3602, %v3597
    %v4553 = vpack.c.b16 %v3603, %v3598
    %v4554 = vpack.c.b16 %v3609, %v3604
    %v4555 = vpack.c.b16 %v3610, %v3605
    %v4556 = vpack.c.b16 %v3611, %v3606
    %v4557 = vpack.c.b16 %v3612, %v3607
    %v4558 = vpack.c.b16 %v3613, %v3608
    %v4559 = vpack.c.b16 %v3619, %v3614
    %v4560 = vpack.c.b16 %v3620, %v3615
    %v4561 = vpack.c.b16 %v3621, %v3616
    %v4562 = vpack.c.b16 %v3622, %v3617
    %v4563 = vpack.c.b16 %v3623, %v3618
    %v4564 = vpack.c.b16 %v3629, %v3624
    %v4565 = vpack.c.b16 %v3630, %v3625
    %v4566 = vpack.c.b16 %v3631, %v3626
    %v4567 = vpack.c.b16 %v3632, %v3627
    %v4568 = vpack.c.b16 %v3633, %v3628
    %v4569 = vpack.c.b16 %v3639, %v3634
    %v4570 = vpack.c.b16 %v3640, %v3635
    %v4571 = vpack.c.b16 %v3641, %v3636
    %v4572 = vpack.c.b16 %v3642, %v3637
    %v4573 = vpack.c.b16 %v3643, %v3638
    %v4574 = vpack.c.b16 %v3649, %v3644
    %v4575 = vpack.c.b16 %v3650, %v3645
    %v4576 = vpack.c.b16 %v3651, %v3646
    %v4577 = vpack.c.b16 %v3652, %v3647
    %v4578 = vpack.c.b16 %v3653, %v3648
    %v4579 = vpack.c.b16 %v3659, %v3654
    %v4580 = vpack.c.b16 %v3660, %v3655
    %v4581 = vpack.c.b16 %v3661, %v3656
    %v4582 = vpack.c.b16 %v3662, %v3657
    %v4583 = vpack.c.b16 %v3663, %v3658
    %v4584 = vpack.c.b16 %v3669, %v3664
    %v4585 = vpack.c.b16 %v3670, %v3665
    %v4586 = vpack.c.b16 %v3671, %v3666
    %v4587 = vpack.c.b16 %v3672, %v3667
    %v4588 = vpack.c.b16 %v3673, %v3668
    %v4589 = vpack.c.b16 %v3679, %v3674
    %v4590 = vpack.c.b16 %v3680, %v3675
    %v4591 = vpack.c.b16 %v3681, %v3676
    %v4592 = vpack.c.b16 %v3682, %v3677
    %v4593 = vpack.c.b16 %v3683, %v3678
    %v4594 = vpack.c.b16 %v3689, %v3684
    %v4595 = vpack.c.b16 %v3690, %v3685
    %v4596 = vpack.c.b16 %v3691, %v3686
    %v4597 = vpack.c.b16 %v3692, %v3687
    %v4598 = vpack.c.b16 %v3693, %v3688
    %v4599 = vpack.c.b16 %v3699, %v3694
    %v4600 = vpack.c.b16 %v3700, %v3695
    %v4601 = vpack.c.b16 %v3701, %v3696
    %v4602 = vpack.c.b16 %v3702, %v3697
    %v4603 = vpack.c.b16 %v3703, %v3698
    %v4604 = vpack.c.b16 %v3709, %v3704
    %v4605 = vpack.c.b16 %v3710, %v3705
    %v4606 = vpack.c.b16 %v3711, %v3706
    %v4607 = vpack.c.b16 %v3712, %v3707
    %v4608 = vpack.c.b16 %v3713, %v3708
    %v4609 = vpack.c.b16 %v3719, %v3714
    %v4610 = vpack.c.b16 %v3720, %v3715
    %v4611 = vpack.c.b16 %v3721, %v3716
    %v4612 = vpack.c.b16 %v3722, %v3717
    %v4613 = vpack.c.b16 %v3723, %v3718
    %v4614 = vpack.c.b16 %v3729, %v3724
    %v4615 = vpack.c.b16 %v3730, %v3725
    %v4616 = vpack.c.b16 %v3731, %v3726
    %v4617 = vpack.c.b16 %v3732, %v3727
    %v4618 = vpack.c.b16 %v3733, %v3728
    %v4619 = vpack.c.b16 %v3739, %v3734
    %v4620 = vpack.c.b16 %v3740, %v3735
    %v4621 = vpack.c.b16 %v3741, %v3736
    %v4622 = vpack.c.b16 %v3742, %v3737
    %v4623 = vpack.c.b16 %v3743, %v3738
    %v4624 = vpack.c.b16 %v3749, %v3744
    %v4625 = vpack.c.b16 %v3750, %v3745
    %v4626 = vpack.c.b16 %v3751, %v3746
    %v4627 = vpack.c.b16 %v3752, %v3747
    %v4628 = vpack.c.b16 %v3753, %v3748
    %v4629 = vpack.c.b16 %v3759, %v3754
    %v4630 = vpack.c.b16 %v3760, %v3755
    %v4631 = vpack.c.b16 %v3761, %v3756
    %v4632 = vpack.c.b16 %v3762, %v3757
    %v4633 = vpack.c.b16 %v3763, %v3758
    %v4634 = vpack.c.b16 %v3769, %v3764
    %v4635 = vpack.c.b16 %v3770, %v3765
    %v4636 = vpack.c.b16 %v3771, %v3766
    %v4637 = vpack.c.b16 %v3772, %v3767
    %v4638 = vpack.c.b16 %v3773, %v3768
    %v4639 = vpack.c.b16 %v3779, %v3774
    %v4640 = vpack.c.b16 %v3780, %v3775
    %v4641 = vpack.c.b16 %v3781, %v3776
    %v4642 = vpack.c.b16 %v3782, %v3777
    %v4643 = vpack.c.b16 %v3783, %v3778
    %v4644 = vpack.c.b16 %v3789, %v3784
    %v4645 = vpack.c.b16 %v3790, %v3785
    %v4646 = vpack.c.b16 %v3791, %v3786
    %v4647 = vpack.c.b16 %v3792, %v3787
    %v4648 = vpack.c.b16 %v3793, %v3788
    %v4649 = vpack.c.b16 %v3799, %v3794
    %v4650 = vpack.c.b16 %v3800, %v3795
    %v4651 = vpack.c.b16 %v3801, %v3796
    %v4652 = vpack.c.b16 %v3802, %v3797
    %v4653 = vpack.c.b16 %v3803, %v3798
    %v4654 = vpack.c.b16 %v3809, %v3804
    %v4655 = vpack.c.b16 %v3810, %v3805
    %v4656 = vpack.c.b16 %v3811, %v3806
    %v4657 = vpack.c.b16 %v3812, %v3807
    %v4658 = vpack.c.b16 %v3813, %v3808
    %v4659 = vpack.c.b16 %v3819, %v3814
    %v4660 = vpack.c.b16 %v3820, %v3815
    %v4661 = vpack.c.b16 %v3821, %v3816
    %v4662 = vpack.c.b16 %v3822, %v3817
    %v4663 = vpack.c.b16 %v3823, %v3818
    %v4664 = vpack.c.b16 %v3829, %v3824
    %v4665 = vpack.c.b16 %v3830, %v3825
    %v4666 = vpack.c.b16 %v3831, %v3826
    %v4667 = vpack.c.b16 %v3832, %v3827
    %v4668 = vpack.c.b16 %v3833, %v3828
    %v4669 = vpack.c.b16 %v3839, %v3834
    %v4670 = vpack.c.b16 %v3840, %v3835
    %v4671 = vpack.c.b16 %v3841, %v3836
    %v4672 = vpack.c.b16 %v3842, %v3837
    %v4673 = vpack.c.b16 %v3843, %v3838
    %v4674 = vpack.c.b16 %v3849, %v3844
    %v4675 = vpack.c.b16 %v3850, %v3845
    %v4676 = vpack.c.b16 %v3851, %v3846
    %v4677 = vpack.c.b16 %v3852, %v3847
    %v4678 = vpack.c.b16 %v3853, %v3848
    %v4679 = vpack.c.b16 %v3859, %v3854
    %v4680 = vpack.c.b16 %v3860, %v3855
    %v4681 = vpack.c.b16 %v3861, %v3856
    %v4682 = vpack.c.b16 %v3862, %v3857
    %v4683 = vpack.c.b16 %v3863, %v3858
    %v4684 = vpack.c.b16 %v3869, %v3864
    %v4685 = vpack.c.b16 %v3870, %v3865
    %v4686 = vpack.c.b16 %v3871, %v3866
    %v4687 = vpack.c.b16 %v3872, %v3867
    %v4688 = vpack.c.b16 %v3873, %v3868
    %v4689 = vpack.c.b16 %v3879, %v3874
    %v4690 = vpack.c.b16 %v3880, %v3875
    %v4691 = vpack.c.b16 %v3881, %v3876
    %v4692 = vpack.c.b16 %v3882, %v3877
    %v4693 = vpack.c.b16 %v3883, %v3878
    %v4694 = vpack.c.b16 %v3889, %v3884
    %v4695 = vpack.c.b16 %v3890, %v3885
    %v4696 = vpack.c.b16 %v3891, %v3886
    %v4697 = vpack.c.b16 %v3892, %v3887
    %v4698 = vpack.c.b16 %v3893, %v3888
    %v4699 = vpack.c.b16 %v3899, %v3894
    %v4700 = vpack.c.b16 %v3900, %v3895
    %v4701 = vpack.c.b16 %v3901, %v3896
    %v4702 = vpack.c.b16 %v3902, %v3897
    %v4703 = vpack.c.b16 %v3903, %v3898
    %5504 = vmatprep.subr.bf16.mxu0 %v3940
    %5505 = vmatpush1.bf16.msra.mxu0 %v3939
    %5506 = vmatprep.subr.bf16.mxu0 %v3935
    %5507 = vmatpush1.bf16.msra.mxu0 %v3934
    %5508 = vmatprep.subr.bf16.mxu0 %v3930
    %5509 = vmatpush1.bf16.msra.mxu0 %v3929
    %5510 = vmatprep.subr.bf16.mxu0 %v3925
    %5511 = vmatpush1.bf16.msra.mxu0 %v3924
    %5512 = vmatprep.subr.bf16.mxu0 %v3920
    %5513 = vmatpush1.bf16.msra.mxu0 %v3919
    %5514 = vmatprep.subr.bf16.mxu0 %v3915
    %5515 = vmatpush1.bf16.msra.mxu0 %v3914
    %5516 = vmatprep.subr.bf16.mxu0 %v3910
    %5517 = vmatpush1.bf16.msra.mxu0 %v3909
    %5518 = vmatprep.subr.bf16.mxu0 %v3905
    %5519 = vmatpush1.bf16.msra.mxu0 %v3904
    %5520 = vmatprep.subr.bf16.mxu0 %v3980
    %5521 = vmatpush2.bf16.msra.mxu0 %v3979
    %5522 = vmatprep.subr.bf16.mxu0 %v3975
    %5523 = vmatpush2.bf16.msra.mxu0 %v3974
    %5524 = vmatprep.subr.bf16.mxu0 %v3970
    %5525 = vmatpush2.bf16.msra.mxu0 %v3969
    %5526 = vmatprep.subr.bf16.mxu0 %v3965
    %5527 = vmatpush2.bf16.msra.mxu0 %v3964
    %5528 = vmatprep.subr.bf16.mxu0 %v3960
    %5529 = vmatpush2.bf16.msra.mxu0 %v3959
    %5530 = vmatprep.subr.bf16.mxu0 %v3955
    %5531 = vmatpush2.bf16.msra.mxu0 %v3954
    %5532 = vmatprep.subr.bf16.mxu0 %v3950
    %5533 = vmatpush2.bf16.msra.mxu0 %v3949
    %5534 = vmatprep.subr.bf16.mxu0 %v3945
    %5535 = vmatpush2.bf16.msra.mxu0 %v3944
    %5536 = vmatprep.mubr.bf16.mxu0 %v1278
    %5537 = vmatmul.mubr.bf16.gmra.mxu0 %v1277
    %v5538 = vpop.f32.mrf.mxu0
    %v5539 = vadd.f32 %v1322, %v5538
    %v5540 = vpop.f32.mrf.mxu0
    %v5541 = vadd.f32 %v1326, %v5540
    %v5542 = vpop.f32.mrf.mxu0
    %v5543 = vadd.f32 %v1322, %v5542
    %v5544 = vpop.f32.mrf.mxu0
    %v5545 = vadd.f32 %v1326, %v5544
    %5546 = vmatprep.mubr.bf16.mxu0 %v1298
    %5547 = vmatmul.mubr.bf16.gmra.mxu0 %v1297
    %v5548 = vpop.f32.mrf.mxu0
    %v5549 = vadd.f32 %v1322, %v5548
    %v5550 = vpop.f32.mrf.mxu0
    %v5551 = vadd.f32 %v1326, %v5550
    %v5552 = vpop.f32.mrf.mxu0
    %v5553 = vadd.f32 %v1322, %v5552
    %v5554 = vpop.f32.mrf.mxu0
    %v5555 = vadd.f32 %v1326, %v5554
    %5556 = vdwg.mxu0
    %5557 = vmatprep.subr.bf16.mxu0 %v4020
    %5558 = vmatpush1.bf16.msra.mxu0 %v4019
    %5559 = vmatprep.subr.bf16.mxu0 %v4015
    %5560 = vmatpush1.bf16.msra.mxu0 %v4014
    %5561 = vmatprep.subr.bf16.mxu0 %v4010
    %5562 = vmatpush1.bf16.msra.mxu0 %v4009
    %5563 = vmatprep.subr.bf16.mxu0 %v4005
    %5564 = vmatpush1.bf16.msra.mxu0 %v4004
    %5565 = vmatprep.subr.bf16.mxu0 %v4000
    %5566 = vmatpush1.bf16.msra.mxu0 %v3999
    %5567 = vmatprep.subr.bf16.mxu0 %v3995
    %5568 = vmatpush1.bf16.msra.mxu0 %v3994
    %5569 = vmatprep.subr.bf16.mxu0 %v3990
    %5570 = vmatpush1.bf16.msra.mxu0 %v3989
    %5571 = vmatprep.subr.bf16.mxu0 %v3985
    %5572 = vmatpush1.bf16.msra.mxu0 %v3984
    %5573 = vmatprep.subr.bf16.mxu0 %v4060
    %5574 = vmatpush2.bf16.msra.mxu0 %v4059
    %5575 = vmatprep.subr.bf16.mxu0 %v4055
    %5576 = vmatpush2.bf16.msra.mxu0 %v4054
    %5577 = vmatprep.subr.bf16.mxu0 %v4050
    %5578 = vmatpush2.bf16.msra.mxu0 %v4049
    %5579 = vmatprep.subr.bf16.mxu0 %v4045
    %5580 = vmatpush2.bf16.msra.mxu0 %v4044
    %5581 = vmatprep.subr.bf16.mxu0 %v4040
    %5582 = vmatpush2.bf16.msra.mxu0 %v4039
    %5583 = vmatprep.subr.bf16.mxu0 %v4035
    %5584 = vmatpush2.bf16.msra.mxu0 %v4034
    %5585 = vmatprep.subr.bf16.mxu0 %v4030
    %5586 = vmatpush2.bf16.msra.mxu0 %v4029
    %5587 = vmatprep.subr.bf16.mxu0 %v4025
    %5588 = vmatpush2.bf16.msra.mxu0 %v4024
    %5589 = vmatprep.mubr.bf16.mxu0 %v1280
    %5590 = vmatmul.mubr.bf16.gmra.mxu0 %v1279
    %v5591 = vpop.f32.mrf.mxu0
    %v5592 = vadd.f32 %v5539, %v5591
    %v5593 = vpop.f32.mrf.mxu0
    %v5594 = vadd.f32 %v5541, %v5593
    %v5595 = vpop.f32.mrf.mxu0
    %v5596 = vadd.f32 %v5543, %v5595
    %v5597 = vpop.f32.mrf.mxu0
    %v5598 = vadd.f32 %v5545, %v5597
    %5599 = vmatprep.mubr.bf16.mxu0 %v1300
    %5600 = vmatmul.mubr.bf16.gmra.mxu0 %v1299
    %v5601 = vpop.f32.mrf.mxu0
    %v5602 = vadd.f32 %v5549, %v5601
    %v5603 = vpop.f32.mrf.mxu0
    %v5604 = vadd.f32 %v5551, %v5603
    %v5605 = vpop.f32.mrf.mxu0
    %v5606 = vadd.f32 %v5553, %v5605
    %v5607 = vpop.f32.mrf.mxu0
    %v5608 = vadd.f32 %v5555, %v5607
    %5609 = vdwg.mxu0
    %5610 = vmatprep.subr.bf16.mxu0 %v4100
    %5611 = vmatpush1.bf16.msra.mxu0 %v4099
    %5612 = vmatprep.subr.bf16.mxu0 %v4095
    %5613 = vmatpush1.bf16.msra.mxu0 %v4094
    %5614 = vmatprep.subr.bf16.mxu0 %v4090
    %5615 = vmatpush1.bf16.msra.mxu0 %v4089
    %5616 = vmatprep.subr.bf16.mxu0 %v4085
    %5617 = vmatpush1.bf16.msra.mxu0 %v4084
    %5618 = vmatprep.subr.bf16.mxu0 %v4080
    %5619 = vmatpush1.bf16.msra.mxu0 %v4079
    %5620 = vmatprep.subr.bf16.mxu0 %v4075
    %5621 = vmatpush1.bf16.msra.mxu0 %v4074
    %5622 = vmatprep.subr.bf16.mxu0 %v4070
    %5623 = vmatpush1.bf16.msra.mxu0 %v4069
    %5624 = vmatprep.subr.bf16.mxu0 %v4065
    %5625 = vmatpush1.bf16.msra.mxu0 %v4064
    %5626 = vmatprep.subr.bf16.mxu0 %v4140
    %5627 = vmatpush2.bf16.msra.mxu0 %v4139
    %5628 = vmatprep.subr.bf16.mxu0 %v4135
    %5629 = vmatpush2.bf16.msra.mxu0 %v4134
    %5630 = vmatprep.subr.bf16.mxu0 %v4130
    %5631 = vmatpush2.bf16.msra.mxu0 %v4129
    %5632 = vmatprep.subr.bf16.mxu0 %v4125
    %5633 = vmatpush2.bf16.msra.mxu0 %v4124
    %5634 = vmatprep.subr.bf16.mxu0 %v4120
    %5635 = vmatpush2.bf16.msra.mxu0 %v4119
    %5636 = vmatprep.subr.bf16.mxu0 %v4115
    %5637 = vmatpush2.bf16.msra.mxu0 %v4114
    %5638 = vmatprep.subr.bf16.mxu0 %v4110
    %5639 = vmatpush2.bf16.msra.mxu0 %v4109
    %5640 = vmatprep.subr.bf16.mxu0 %v4105
    %5641 = vmatpush2.bf16.msra.mxu0 %v4104
    %5642 = vmatprep.mubr.bf16.mxu0 %v1282
    %5643 = vmatmul.mubr.bf16.gmra.mxu0 %v1281
    %v5644 = vpop.f32.mrf.mxu0
    %v5645 = vadd.f32 %v5592, %v5644
    %v5646 = vpop.f32.mrf.mxu0
    %v5647 = vadd.f32 %v5594, %v5646
    %v5648 = vpop.f32.mrf.mxu0
    %v5649 = vadd.f32 %v5596, %v5648
    %v5650 = vpop.f32.mrf.mxu0
    %v5651 = vadd.f32 %v5598, %v5650
    %5652 = vmatprep.mubr.bf16.mxu0 %v1302
    %5653 = vmatmul.mubr.bf16.gmra.mxu0 %v1301
    %v5654 = vpop.f32.mrf.mxu0
    %v5655 = vadd.f32 %v5602, %v5654
    %v5656 = vpop.f32.mrf.mxu0
    %v5657 = vadd.f32 %v5604, %v5656
    %v5658 = vpop.f32.mrf.mxu0
    %v5659 = vadd.f32 %v5606, %v5658
    %v5660 = vpop.f32.mrf.mxu0
    %v5661 = vadd.f32 %v5608, %v5660
    %5662 = vdwg.mxu0
    %5663 = vmatprep.subr.bf16.mxu0 %v4180
    %5664 = vmatpush1.bf16.msra.mxu0 %v4179
    %5665 = vmatprep.subr.bf16.mxu0 %v4175
    %5666 = vmatpush1.bf16.msra.mxu0 %v4174
    %5667 = vmatprep.subr.bf16.mxu0 %v4170
    %5668 = vmatpush1.bf16.msra.mxu0 %v4169
    %5669 = vmatprep.subr.bf16.mxu0 %v4165
    %5670 = vmatpush1.bf16.msra.mxu0 %v4164
    %5671 = vmatprep.subr.bf16.mxu0 %v4160
    %5672 = vmatpush1.bf16.msra.mxu0 %v4159
    %5673 = vmatprep.subr.bf16.mxu0 %v4155
    %5674 = vmatpush1.bf16.msra.mxu0 %v4154
    %5675 = vmatprep.subr.bf16.mxu0 %v4150
    %5676 = vmatpush1.bf16.msra.mxu0 %v4149
    %5677 = vmatprep.subr.bf16.mxu0 %v4145
    %5678 = vmatpush1.bf16.msra.mxu0 %v4144
    %5679 = vmatprep.subr.bf16.mxu0 %v4220
    %5680 = vmatpush2.bf16.msra.mxu0 %v4219
    %5681 = vmatprep.subr.bf16.mxu0 %v4215
    %5682 = vmatpush2.bf16.msra.mxu0 %v4214
    %5683 = vmatprep.subr.bf16.mxu0 %v4210
    %5684 = vmatpush2.bf16.msra.mxu0 %v4209
    %5685 = vmatprep.subr.bf16.mxu0 %v4205
    %5686 = vmatpush2.bf16.msra.mxu0 %v4204
    %5687 = vmatprep.subr.bf16.mxu0 %v4200
    %5688 = vmatpush2.bf16.msra.mxu0 %v4199
    %5689 = vmatprep.subr.bf16.mxu0 %v4195
    %5690 = vmatpush2.bf16.msra.mxu0 %v4194
    %5691 = vmatprep.subr.bf16.mxu0 %v4190
    %5692 = vmatpush2.bf16.msra.mxu0 %v4189
    %5693 = vmatprep.subr.bf16.mxu0 %v4185
    %5694 = vmatpush2.bf16.msra.mxu0 %v4184
    %5695 = vmatprep.mubr.bf16.mxu0 %v1284
    %5696 = vmatmul.mubr.bf16.gmra.mxu0 %v1283
    %v5697 = vpop.f32.mrf.mxu0
    %v5698 = vadd.f32 %v5645, %v5697
    %v5699 = vpop.f32.mrf.mxu0
    %v5700 = vadd.f32 %v5647, %v5699
    %v5701 = vpop.f32.mrf.mxu0
    %v5702 = vadd.f32 %v5649, %v5701
    %v5703 = vpop.f32.mrf.mxu0
    %v5704 = vadd.f32 %v5651, %v5703
    %5705 = vmatprep.mubr.bf16.mxu0 %v1304
    %5706 = vmatmul.mubr.bf16.gmra.mxu0 %v1303
    %v5707 = vpop.f32.mrf.mxu0
    %v5708 = vadd.f32 %v5655, %v5707
    %v5709 = vpop.f32.mrf.mxu0
    %v5710 = vadd.f32 %v5657, %v5709
    %v5711 = vpop.f32.mrf.mxu0
    %v5712 = vadd.f32 %v5659, %v5711
    %v5713 = vpop.f32.mrf.mxu0
    %v5714 = vadd.f32 %v5661, %v5713
    %5715 = vdwg.mxu0
    %5716 = vmatprep.subr.bf16.mxu0 %v4260
    %5717 = vmatpush1.bf16.msra.mxu0 %v4259
    %5718 = vmatprep.subr.bf16.mxu0 %v4255
    %5719 = vmatpush1.bf16.msra.mxu0 %v4254
    %5720 = vmatprep.subr.bf16.mxu0 %v4250
    %5721 = vmatpush1.bf16.msra.mxu0 %v4249
    %5722 = vmatprep.subr.bf16.mxu0 %v4245
    %5723 = vmatpush1.bf16.msra.mxu0 %v4244
    %5724 = vmatprep.subr.bf16.mxu0 %v4240
    %5725 = vmatpush1.bf16.msra.mxu0 %v4239
    %5726 = vmatprep.subr.bf16.mxu0 %v4235
    %5727 = vmatpush1.bf16.msra.mxu0 %v4234
    %5728 = vmatprep.subr.bf16.mxu0 %v4230
    %5729 = vmatpush1.bf16.msra.mxu0 %v4229
    %5730 = vmatprep.subr.bf16.mxu0 %v4225
    %5731 = vmatpush1.bf16.msra.mxu0 %v4224
    %5732 = vmatprep.subr.bf16.mxu0 %v4300
    %5733 = vmatpush2.bf16.msra.mxu0 %v4299
    %5734 = vmatprep.subr.bf16.mxu0 %v4295
    %5735 = vmatpush2.bf16.msra.mxu0 %v4294
    %5736 = vmatprep.subr.bf16.mxu0 %v4290
    %5737 = vmatpush2.bf16.msra.mxu0 %v4289
    %5738 = vmatprep.subr.bf16.mxu0 %v4285
    %5739 = vmatpush2.bf16.msra.mxu0 %v4284
    %5740 = vmatprep.subr.bf16.mxu0 %v4280
    %5741 = vmatpush2.bf16.msra.mxu0 %v4279
    %5742 = vmatprep.subr.bf16.mxu0 %v4275
    %5743 = vmatpush2.bf16.msra.mxu0 %v4274
    %5744 = vmatprep.subr.bf16.mxu0 %v4270
    %5745 = vmatpush2.bf16.msra.mxu0 %v4269
    %5746 = vmatprep.subr.bf16.mxu0 %v4265
    %5747 = vmatpush2.bf16.msra.mxu0 %v4264
    %5748 = vmatprep.mubr.bf16.mxu0 %v1286
    %5749 = vmatmul.mubr.bf16.gmra.mxu0 %v1285
    %v5750 = vpop.f32.mrf.mxu0
    %v5751 = vadd.f32 %v5698, %v5750
    %v5752 = vpop.f32.mrf.mxu0
    %v5753 = vadd.f32 %v5700, %v5752
    %v5754 = vpop.f32.mrf.mxu0
    %v5755 = vadd.f32 %v5702, %v5754
    %v5756 = vpop.f32.mrf.mxu0
    %v5757 = vadd.f32 %v5704, %v5756
    %5758 = vmatprep.mubr.bf16.mxu0 %v1306
    %5759 = vmatmul.mubr.bf16.gmra.mxu0 %v1305
    %v5760 = vpop.f32.mrf.mxu0
    %v5761 = vadd.f32 %v5708, %v5760
    %v5762 = vpop.f32.mrf.mxu0
    %v5763 = vadd.f32 %v5710, %v5762
    %v5764 = vpop.f32.mrf.mxu0
    %v5765 = vadd.f32 %v5712, %v5764
    %v5766 = vpop.f32.mrf.mxu0
    %v5767 = vadd.f32 %v5714, %v5766
    %5768 = vdwg.mxu0
    %5769 = vmatprep.subr.bf16.mxu0 %v4340
    %5770 = vmatpush1.bf16.msra.mxu0 %v4339
    %5771 = vmatprep.subr.bf16.mxu0 %v4335
    %5772 = vmatpush1.bf16.msra.mxu0 %v4334
    %5773 = vmatprep.subr.bf16.mxu0 %v4330
    %5774 = vmatpush1.bf16.msra.mxu0 %v4329
    %5775 = vmatprep.subr.bf16.mxu0 %v4325
    %5776 = vmatpush1.bf16.msra.mxu0 %v4324
    %5777 = vmatprep.subr.bf16.mxu0 %v4320
    %5778 = vmatpush1.bf16.msra.mxu0 %v4319
    %5779 = vmatprep.subr.bf16.mxu0 %v4315
    %5780 = vmatpush1.bf16.msra.mxu0 %v4314
    %5781 = vmatprep.subr.bf16.mxu0 %v4310
    %5782 = vmatpush1.bf16.msra.mxu0 %v4309
    %5783 = vmatprep.subr.bf16.mxu0 %v4305
    %5784 = vmatpush1.bf16.msra.mxu0 %v4304
    %5785 = vmatprep.subr.bf16.mxu0 %v4380
    %5786 = vmatpush2.bf16.msra.mxu0 %v4379
    %5787 = vmatprep.subr.bf16.mxu0 %v4375
    %5788 = vmatpush2.bf16.msra.mxu0 %v4374
    %5789 = vmatprep.subr.bf16.mxu0 %v4370
    %5790 = vmatpush2.bf16.msra.mxu0 %v4369
    %5791 = vmatprep.subr.bf16.mxu0 %v4365
    %5792 = vmatpush2.bf16.msra.mxu0 %v4364
    %5793 = vmatprep.subr.bf16.mxu0 %v4360
    %5794 = vmatpush2.bf16.msra.mxu0 %v4359
    %5795 = vmatprep.subr.bf16.mxu0 %v4355
    %5796 = vmatpush2.bf16.msra.mxu0 %v4354
    %5797 = vmatprep.subr.bf16.mxu0 %v4350
    %5798 = vmatpush2.bf16.msra.mxu0 %v4349
    %5799 = vmatprep.subr.bf16.mxu0 %v4345
    %5800 = vmatpush2.bf16.msra.mxu0 %v4344
    %5801 = vmatprep.mubr.bf16.mxu0 %v1288
    %5802 = vmatmul.mubr.bf16.gmra.mxu0 %v1287
    %v5803 = vpop.f32.mrf.mxu0
    %v5804 = vadd.f32 %v5751, %v5803
    %v5805 = vpop.f32.mrf.mxu0
    %v5806 = vadd.f32 %v5753, %v5805
    %v5807 = vpop.f32.mrf.mxu0
    %v5808 = vadd.f32 %v5755, %v5807
    %v5809 = vpop.f32.mrf.mxu0
    %v5810 = vadd.f32 %v5757, %v5809
    %5811 = vmatprep.mubr.bf16.mxu0 %v1308
    %5812 = vmatmul.mubr.bf16.gmra.mxu0 %v1307
    %v5813 = vpop.f32.mrf.mxu0
    %v5814 = vadd.f32 %v5761, %v5813
    %v5815 = vpop.f32.mrf.mxu0
    %v5816 = vadd.f32 %v5763, %v5815
    %v5817 = vpop.f32.mrf.mxu0
    %v5818 = vadd.f32 %v5765, %v5817
    %v5819 = vpop.f32.mrf.mxu0
    %v5820 = vadd.f32 %v5767, %v5819
    %5821 = vdwg.mxu0
    %5822 = vmatprep.subr.bf16.mxu0 %v4420
    %5823 = vmatpush1.bf16.msra.mxu0 %v4419
    %5824 = vmatprep.subr.bf16.mxu0 %v4415
    %5825 = vmatpush1.bf16.msra.mxu0 %v4414
    %5826 = vmatprep.subr.bf16.mxu0 %v4410
    %5827 = vmatpush1.bf16.msra.mxu0 %v4409
    %5828 = vmatprep.subr.bf16.mxu0 %v4405
    %5829 = vmatpush1.bf16.msra.mxu0 %v4404
    %5830 = vmatprep.subr.bf16.mxu0 %v4400
    %5831 = vmatpush1.bf16.msra.mxu0 %v4399
    %5832 = vmatprep.subr.bf16.mxu0 %v4395
    %5833 = vmatpush1.bf16.msra.mxu0 %v4394
    %5834 = vmatprep.subr.bf16.mxu0 %v4390
    %5835 = vmatpush1.bf16.msra.mxu0 %v4389
    %5836 = vmatprep.subr.bf16.mxu0 %v4385
    %5837 = vmatpush1.bf16.msra.mxu0 %v4384
    %5838 = vmatprep.subr.bf16.mxu0 %v4460
    %5839 = vmatpush2.bf16.msra.mxu0 %v4459
    %5840 = vmatprep.subr.bf16.mxu0 %v4455
    %5841 = vmatpush2.bf16.msra.mxu0 %v4454
    %5842 = vmatprep.subr.bf16.mxu0 %v4450
    %5843 = vmatpush2.bf16.msra.mxu0 %v4449
    %5844 = vmatprep.subr.bf16.mxu0 %v4445
    %5845 = vmatpush2.bf16.msra.mxu0 %v4444
    %5846 = vmatprep.subr.bf16.mxu0 %v4440
    %5847 = vmatpush2.bf16.msra.mxu0 %v4439
    %5848 = vmatprep.subr.bf16.mxu0 %v4435
    %5849 = vmatpush2.bf16.msra.mxu0 %v4434
    %5850 = vmatprep.subr.bf16.mxu0 %v4430
    %5851 = vmatpush2.bf16.msra.mxu0 %v4429
    %5852 = vmatprep.subr.bf16.mxu0 %v4425
    %5853 = vmatpush2.bf16.msra.mxu0 %v4424
    %5854 = vmatprep.mubr.bf16.mxu0 %v1290
    %5855 = vmatmul.mubr.bf16.gmra.mxu0 %v1289
    %v5856 = vpop.f32.mrf.mxu0
    %v5857 = vadd.f32 %v5804, %v5856
    %v5858 = vpop.f32.mrf.mxu0
    %v5859 = vadd.f32 %v5806, %v5858
    %v5860 = vpop.f32.mrf.mxu0
    %v5861 = vadd.f32 %v5808, %v5860
    %v5862 = vpop.f32.mrf.mxu0
    %v5863 = vadd.f32 %v5810, %v5862
    %5864 = vmatprep.mubr.bf16.mxu0 %v1310
    %5865 = vmatmul.mubr.bf16.gmra.mxu0 %v1309
    %v5866 = vpop.f32.mrf.mxu0
    %v5867 = vadd.f32 %v5814, %v5866
    %v5868 = vpop.f32.mrf.mxu0
    %v5869 = vadd.f32 %v5816, %v5868
    %v5870 = vpop.f32.mrf.mxu0
    %v5871 = vadd.f32 %v5818, %v5870
    %v5872 = vpop.f32.mrf.mxu0
    %v5873 = vadd.f32 %v5820, %v5872
    %5874 = vdwg.mxu0
    %5875 = vmatprep.subr.bf16.mxu0 %v4500
    %5876 = vmatpush1.bf16.msra.mxu0 %v4499
    %5877 = vmatprep.subr.bf16.mxu0 %v4495
    %5878 = vmatpush1.bf16.msra.mxu0 %v4494
    %5879 = vmatprep.subr.bf16.mxu0 %v4490
    %5880 = vmatpush1.bf16.msra.mxu0 %v4489
    %5881 = vmatprep.subr.bf16.mxu0 %v4485
    %5882 = vmatpush1.bf16.msra.mxu0 %v4484
    %5883 = vmatprep.subr.bf16.mxu0 %v4480
    %5884 = vmatpush1.bf16.msra.mxu0 %v4479
    %5885 = vmatprep.subr.bf16.mxu0 %v4475
    %5886 = vmatpush1.bf16.msra.mxu0 %v4474
    %5887 = vmatprep.subr.bf16.mxu0 %v4470
    %5888 = vmatpush1.bf16.msra.mxu0 %v4469
    %5889 = vmatprep.subr.bf16.mxu0 %v4465
    %5890 = vmatpush1.bf16.msra.mxu0 %v4464
    %5891 = vmatprep.subr.bf16.mxu0 %v4540
    %5892 = vmatpush2.bf16.msra.mxu0 %v4539
    %5893 = vmatprep.subr.bf16.mxu0 %v4535
    %5894 = vmatpush2.bf16.msra.mxu0 %v4534
    %5895 = vmatprep.subr.bf16.mxu0 %v4530
    %5896 = vmatpush2.bf16.msra.mxu0 %v4529
    %5897 = vmatprep.subr.bf16.mxu0 %v4525
    %5898 = vmatpush2.bf16.msra.mxu0 %v4524
    %5899 = vmatprep.subr.bf16.mxu0 %v4520
    %5900 = vmatpush2.bf16.msra.mxu0 %v4519
    %5901 = vmatprep.subr.bf16.mxu0 %v4515
    %5902 = vmatpush2.bf16.msra.mxu0 %v4514
    %5903 = vmatprep.subr.bf16.mxu0 %v4510
    %5904 = vmatpush2.bf16.msra.mxu0 %v4509
    %5905 = vmatprep.subr.bf16.mxu0 %v4505
    %5906 = vmatpush2.bf16.msra.mxu0 %v4504
    %5907 = vmatprep.mubr.bf16.mxu0 %v1292
    %5908 = vmatmul.mubr.bf16.gmra.mxu0 %v1291
    %v5909 = vpop.f32.mrf.mxu0
    %v5910 = vadd.f32 %v5857, %v5909
    %v5911 = vpop.f32.mrf.mxu0
    %v5912 = vadd.f32 %v5859, %v5911
    %v5913 = vpop.f32.mrf.mxu0
    %v5914 = vadd.f32 %v5861, %v5913
    %v5915 = vpop.f32.mrf.mxu0
    %v5916 = vadd.f32 %v5863, %v5915
    %5917 = vmatprep.mubr.bf16.mxu0 %v1312
    %5918 = vmatmul.mubr.bf16.gmra.mxu0 %v1311
    %v5919 = vpop.f32.mrf.mxu0
    %v5920 = vadd.f32 %v5867, %v5919
    %v5921 = vpop.f32.mrf.mxu0
    %v5922 = vadd.f32 %v5869, %v5921
    %v5923 = vpop.f32.mrf.mxu0
    %v5924 = vadd.f32 %v5871, %v5923
    %v5925 = vpop.f32.mrf.mxu0
    %v5926 = vadd.f32 %v5873, %v5925
    %5927 = vdwg.mxu0
    %5928 = vmatprep.subr.bf16.mxu0 %v4580
    %5929 = vmatpush1.bf16.msra.mxu0 %v4579
    %5930 = vmatprep.subr.bf16.mxu0 %v4575
    %5931 = vmatpush1.bf16.msra.mxu0 %v4574
    %5932 = vmatprep.subr.bf16.mxu0 %v4570
    %5933 = vmatpush1.bf16.msra.mxu0 %v4569
    %5934 = vmatprep.subr.bf16.mxu0 %v4565
    %5935 = vmatpush1.bf16.msra.mxu0 %v4564
    %5936 = vmatprep.subr.bf16.mxu0 %v4560
    %5937 = vmatpush1.bf16.msra.mxu0 %v4559
    %5938 = vmatprep.subr.bf16.mxu0 %v4555
    %5939 = vmatpush1.bf16.msra.mxu0 %v4554
    %5940 = vmatprep.subr.bf16.mxu0 %v4550
    %5941 = vmatpush1.bf16.msra.mxu0 %v4549
    %5942 = vmatprep.subr.bf16.mxu0 %v4545
    %5943 = vmatpush1.bf16.msra.mxu0 %v4544
    %5944 = vmatprep.subr.bf16.mxu0 %v4620
    %5945 = vmatpush2.bf16.msra.mxu0 %v4619
    %5946 = vmatprep.subr.bf16.mxu0 %v4615
    %5947 = vmatpush2.bf16.msra.mxu0 %v4614
    %5948 = vmatprep.subr.bf16.mxu0 %v4610
    %5949 = vmatpush2.bf16.msra.mxu0 %v4609
    %5950 = vmatprep.subr.bf16.mxu0 %v4605
    %5951 = vmatpush2.bf16.msra.mxu0 %v4604
    %5952 = vmatprep.subr.bf16.mxu0 %v4600
    %5953 = vmatpush2.bf16.msra.mxu0 %v4599
    %5954 = vmatprep.subr.bf16.mxu0 %v4595
    %5955 = vmatpush2.bf16.msra.mxu0 %v4594
    %5956 = vmatprep.subr.bf16.mxu0 %v4590
    %5957 = vmatpush2.bf16.msra.mxu0 %v4589
    %5958 = vmatprep.subr.bf16.mxu0 %v4585
    %5959 = vmatpush2.bf16.msra.mxu0 %v4584
    %5960 = vmatprep.mubr.bf16.mxu0 %v1294
    %5961 = vmatmul.mubr.bf16.gmra.mxu0 %v1293
    %v5962 = vpop.f32.mrf.mxu0
    %v5963 = vadd.f32 %v5910, %v5962
    %v5964 = vpop.f32.mrf.mxu0
    %v5965 = vadd.f32 %v5912, %v5964
    %v5966 = vpop.f32.mrf.mxu0
    %v5967 = vadd.f32 %v5914, %v5966
    %v5968 = vpop.f32.mrf.mxu0
    %v5969 = vadd.f32 %v5916, %v5968
    %5970 = vmatprep.mubr.bf16.mxu0 %v1314
    %5971 = vmatmul.mubr.bf16.gmra.mxu0 %v1313
    %v5972 = vpop.f32.mrf.mxu0
    %v5973 = vadd.f32 %v5920, %v5972
    %v5974 = vpop.f32.mrf.mxu0
    %v5975 = vadd.f32 %v5922, %v5974
    %v5976 = vpop.f32.mrf.mxu0
    %v5977 = vadd.f32 %v5924, %v5976
    %v5978 = vpop.f32.mrf.mxu0
    %v5979 = vadd.f32 %v5926, %v5978
    %5980 = vdwg.mxu0
    %5981 = vmatprep.subr.bf16.mxu0 %v4660
    %5982 = vmatpush1.bf16.msra.mxu0 %v4659
    %5983 = vmatprep.subr.bf16.mxu0 %v4655
    %5984 = vmatpush1.bf16.msra.mxu0 %v4654
    %5985 = vmatprep.subr.bf16.mxu0 %v4650
    %5986 = vmatpush1.bf16.msra.mxu0 %v4649
    %5987 = vmatprep.subr.bf16.mxu0 %v4645
    %5988 = vmatpush1.bf16.msra.mxu0 %v4644
    %5989 = vmatprep.subr.bf16.mxu0 %v4640
    %5990 = vmatpush1.bf16.msra.mxu0 %v4639
    %5991 = vmatprep.subr.bf16.mxu0 %v4635
    %5992 = vmatpush1.bf16.msra.mxu0 %v4634
    %5993 = vmatprep.subr.bf16.mxu0 %v4630
    %5994 = vmatpush1.bf16.msra.mxu0 %v4629
    %5995 = vmatprep.subr.bf16.mxu0 %v4625
    %5996 = vmatpush1.bf16.msra.mxu0 %v4624
    %5997 = vmatprep.subr.bf16.mxu0 %v4700
    %5998 = vmatpush2.bf16.msra.mxu0 %v4699
    %5999 = vmatprep.subr.bf16.mxu0 %v4695
    %6000 = vmatpush2.bf16.msra.mxu0 %v4694
    %6001 = vmatprep.subr.bf16.mxu0 %v4690
    %6002 = vmatpush2.bf16.msra.mxu0 %v4689
    %6003 = vmatprep.subr.bf16.mxu0 %v4685
    %6004 = vmatpush2.bf16.msra.mxu0 %v4684
    %6005 = vmatprep.subr.bf16.mxu0 %v4680
    %6006 = vmatpush2.bf16.msra.mxu0 %v4679
    %6007 = vmatprep.subr.bf16.mxu0 %v4675
    %6008 = vmatpush2.bf16.msra.mxu0 %v4674
    %6009 = vmatprep.subr.bf16.mxu0 %v4670
    %6010 = vmatpush2.bf16.msra.mxu0 %v4669
    %6011 = vmatprep.subr.bf16.mxu0 %v4665
    %6012 = vmatpush2.bf16.msra.mxu0 %v4664
    %6013 = vmatprep.mubr.bf16.mxu0 %v1296
    %6014 = vmatmul.mubr.bf16.gmra.mxu0 %v1295
    %v6015 = vpop.f32.mrf.mxu0
    %v6016 = vadd.f32 %v5963, %v6015
    %v6017 = vpop.f32.mrf.mxu0
    %v6018 = vadd.f32 %v5965, %v6017
    %v6019 = vpop.f32.mrf.mxu0
    %v6020 = vadd.f32 %v5967, %v6019
    %v6021 = vpop.f32.mrf.mxu0
    %v6022 = vadd.f32 %v5969, %v6021
    %6023 = vmatprep.mubr.bf16.mxu0 %v1316
    %6024 = vmatmul.mubr.bf16.gmra.mxu0 %v1315
    %v6025 = vpop.f32.mrf.mxu0
    %v6026 = vadd.f32 %v5973, %v6025
    %v6027 = vpop.f32.mrf.mxu0
    %v6028 = vadd.f32 %v5975, %v6027
    %v6029 = vpop.f32.mrf.mxu0
    %v6030 = vadd.f32 %v5977, %v6029
    %v6031 = vpop.f32.mrf.mxu0
    %v6032 = vadd.f32 %v5979, %v6031
    %6033 = vdwg.mxu0
    %6034 = vmatprep.subr.bf16.mxu0 %v3942
    %6035 = vmatpush1.bf16.msra.mxu0 %v3941
    %6036 = vmatprep.subr.bf16.mxu0 %v3937
    %6037 = vmatpush1.bf16.msra.mxu0 %v3936
    %6038 = vmatprep.subr.bf16.mxu0 %v3932
    %6039 = vmatpush1.bf16.msra.mxu0 %v3931
    %6040 = vmatprep.subr.bf16.mxu0 %v3927
    %6041 = vmatpush1.bf16.msra.mxu0 %v3926
    %6042 = vmatprep.subr.bf16.mxu0 %v3922
    %6043 = vmatpush1.bf16.msra.mxu0 %v3921
    %6044 = vmatprep.subr.bf16.mxu0 %v3917
    %6045 = vmatpush1.bf16.msra.mxu0 %v3916
    %6046 = vmatprep.subr.bf16.mxu0 %v3912
    %6047 = vmatpush1.bf16.msra.mxu0 %v3911
    %6048 = vmatprep.subr.bf16.mxu0 %v3907
    %6049 = vmatpush1.bf16.msra.mxu0 %v3906
    %6050 = vmatprep.subr.bf16.mxu0 %v3982
    %6051 = vmatpush2.bf16.msra.mxu0 %v3981
    %6052 = vmatprep.subr.bf16.mxu0 %v3977
    %6053 = vmatpush2.bf16.msra.mxu0 %v3976
    %6054 = vmatprep.subr.bf16.mxu0 %v3972
    %6055 = vmatpush2.bf16.msra.mxu0 %v3971
    %6056 = vmatprep.subr.bf16.mxu0 %v3967
    %6057 = vmatpush2.bf16.msra.mxu0 %v3966
    %6058 = vmatprep.subr.bf16.mxu0 %v3962
    %6059 = vmatpush2.bf16.msra.mxu0 %v3961
    %6060 = vmatprep.subr.bf16.mxu0 %v3957
    %6061 = vmatpush2.bf16.msra.mxu0 %v3956
    %6062 = vmatprep.subr.bf16.mxu0 %v3952
    %6063 = vmatpush2.bf16.msra.mxu0 %v3951
    %6064 = vmatprep.subr.bf16.mxu0 %v3947
    %6065 = vmatpush2.bf16.msra.mxu0 %v3946
    %6066 = vmatprep.mubr.bf16.mxu0 %v1278
    %6067 = vmatmul.mubr.bf16.gmra.mxu0 %v1277
    %v6068 = vpop.f32.mrf.mxu0
    %v6069 = vadd.f32 %v1330, %v6068
    %v6070 = vpop.f32.mrf.mxu0
    %v6071 = vadd.f32 %v1334, %v6070
    %v6072 = vpop.f32.mrf.mxu0
    %v6073 = vadd.f32 %v1330, %v6072
    %v6074 = vpop.f32.mrf.mxu0
    %v6075 = vadd.f32 %v1334, %v6074
    %6076 = vmatprep.mubr.bf16.mxu0 %v1298
    %6077 = vmatmul.mubr.bf16.gmra.mxu0 %v1297
    %v6078 = vpop.f32.mrf.mxu0
    %v6079 = vadd.f32 %v1330, %v6078
    %v6080 = vpop.f32.mrf.mxu0
    %v6081 = vadd.f32 %v1334, %v6080
    %v6082 = vpop.f32.mrf.mxu0
    %v6083 = vadd.f32 %v1330, %v6082
    %v6084 = vpop.f32.mrf.mxu0
    %v6085 = vadd.f32 %v1334, %v6084
    %6086 = vdwg.mxu0
    %6087 = vmatprep.subr.bf16.mxu0 %v4022
    %6088 = vmatpush1.bf16.msra.mxu0 %v4021
    %6089 = vmatprep.subr.bf16.mxu0 %v4017
    %6090 = vmatpush1.bf16.msra.mxu0 %v4016
    %6091 = vmatprep.subr.bf16.mxu0 %v4012
    %6092 = vmatpush1.bf16.msra.mxu0 %v4011
    %6093 = vmatprep.subr.bf16.mxu0 %v4007
    %6094 = vmatpush1.bf16.msra.mxu0 %v4006
    %6095 = vmatprep.subr.bf16.mxu0 %v4002
    %6096 = vmatpush1.bf16.msra.mxu0 %v4001
    %6097 = vmatprep.subr.bf16.mxu0 %v3997
    %6098 = vmatpush1.bf16.msra.mxu0 %v3996
    %6099 = vmatprep.subr.bf16.mxu0 %v3992
    %6100 = vmatpush1.bf16.msra.mxu0 %v3991
    %6101 = vmatprep.subr.bf16.mxu0 %v3987
    %6102 = vmatpush1.bf16.msra.mxu0 %v3986
    %6103 = vmatprep.subr.bf16.mxu0 %v4062
    %6104 = vmatpush2.bf16.msra.mxu0 %v4061
    %6105 = vmatprep.subr.bf16.mxu0 %v4057
    %6106 = vmatpush2.bf16.msra.mxu0 %v4056
    %6107 = vmatprep.subr.bf16.mxu0 %v4052
    %6108 = vmatpush2.bf16.msra.mxu0 %v4051
    %6109 = vmatprep.subr.bf16.mxu0 %v4047
    %6110 = vmatpush2.bf16.msra.mxu0 %v4046
    %6111 = vmatprep.subr.bf16.mxu0 %v4042
    %6112 = vmatpush2.bf16.msra.mxu0 %v4041
    %6113 = vmatprep.subr.bf16.mxu0 %v4037
    %6114 = vmatpush2.bf16.msra.mxu0 %v4036
    %6115 = vmatprep.subr.bf16.mxu0 %v4032
    %6116 = vmatpush2.bf16.msra.mxu0 %v4031
    %6117 = vmatprep.subr.bf16.mxu0 %v4027
    %6118 = vmatpush2.bf16.msra.mxu0 %v4026
    %6119 = vmatprep.mubr.bf16.mxu0 %v1280
    %6120 = vmatmul.mubr.bf16.gmra.mxu0 %v1279
    %v6121 = vpop.f32.mrf.mxu0
    %v6122 = vadd.f32 %v6069, %v6121
    %v6123 = vpop.f32.mrf.mxu0
    %v6124 = vadd.f32 %v6071, %v6123
    %v6125 = vpop.f32.mrf.mxu0
    %v6126 = vadd.f32 %v6073, %v6125
    %v6127 = vpop.f32.mrf.mxu0
    %v6128 = vadd.f32 %v6075, %v6127
    %6129 = vmatprep.mubr.bf16.mxu0 %v1300
    %6130 = vmatmul.mubr.bf16.gmra.mxu0 %v1299
    %v6131 = vpop.f32.mrf.mxu0
    %v6132 = vadd.f32 %v6079, %v6131
    %v6133 = vpop.f32.mrf.mxu0
    %v6134 = vadd.f32 %v6081, %v6133
    %v6135 = vpop.f32.mrf.mxu0
    %v6136 = vadd.f32 %v6083, %v6135
    %v6137 = vpop.f32.mrf.mxu0
    %v6138 = vadd.f32 %v6085, %v6137
    %6139 = vdwg.mxu0
    %6140 = vmatprep.subr.bf16.mxu0 %v4102
    %6141 = vmatpush1.bf16.msra.mxu0 %v4101
    %6142 = vmatprep.subr.bf16.mxu0 %v4097
    %6143 = vmatpush1.bf16.msra.mxu0 %v4096
    %6144 = vmatprep.subr.bf16.mxu0 %v4092
    %6145 = vmatpush1.bf16.msra.mxu0 %v4091
    %6146 = vmatprep.subr.bf16.mxu0 %v4087
    %6147 = vmatpush1.bf16.msra.mxu0 %v4086
    %6148 = vmatprep.subr.bf16.mxu0 %v4082
    %6149 = vmatpush1.bf16.msra.mxu0 %v4081
    %6150 = vmatprep.subr.bf16.mxu0 %v4077
    %6151 = vmatpush1.bf16.msra.mxu0 %v4076
    %6152 = vmatprep.subr.bf16.mxu0 %v4072
    %6153 = vmatpush1.bf16.msra.mxu0 %v4071
    %6154 = vmatprep.subr.bf16.mxu0 %v4067
    %6155 = vmatpush1.bf16.msra.mxu0 %v4066
    %6156 = vmatprep.subr.bf16.mxu0 %v4142
    %6157 = vmatpush2.bf16.msra.mxu0 %v4141
    %6158 = vmatprep.subr.bf16.mxu0 %v4137
    %6159 = vmatpush2.bf16.msra.mxu0 %v4136
    %6160 = vmatprep.subr.bf16.mxu0 %v4132
    %6161 = vmatpush2.bf16.msra.mxu0 %v4131
    %6162 = vmatprep.subr.bf16.mxu0 %v4127
    %6163 = vmatpush2.bf16.msra.mxu0 %v4126
    %6164 = vmatprep.subr.bf16.mxu0 %v4122
    %6165 = vmatpush2.bf16.msra.mxu0 %v4121
    %6166 = vmatprep.subr.bf16.mxu0 %v4117
    %6167 = vmatpush2.bf16.msra.mxu0 %v4116
    %6168 = vmatprep.subr.bf16.mxu0 %v4112
    %6169 = vmatpush2.bf16.msra.mxu0 %v4111
    %6170 = vmatprep.subr.bf16.mxu0 %v4107
    %6171 = vmatpush2.bf16.msra.mxu0 %v4106
    %6172 = vmatprep.mubr.bf16.mxu0 %v1282
    %6173 = vmatmul.mubr.bf16.gmra.mxu0 %v1281
    %v6174 = vpop.f32.mrf.mxu0
    %v6175 = vadd.f32 %v6122, %v6174
    %v6176 = vpop.f32.mrf.mxu0
    %v6177 = vadd.f32 %v6124, %v6176
    %v6178 = vpop.f32.mrf.mxu0
    %v6179 = vadd.f32 %v6126, %v6178
    %v6180 = vpop.f32.mrf.mxu0
    %v6181 = vadd.f32 %v6128, %v6180
    %6182 = vmatprep.mubr.bf16.mxu0 %v1302
    %6183 = vmatmul.mubr.bf16.gmra.mxu0 %v1301
    %v6184 = vpop.f32.mrf.mxu0
    %v6185 = vadd.f32 %v6132, %v6184
    %v6186 = vpop.f32.mrf.mxu0
    %v6187 = vadd.f32 %v6134, %v6186
    %v6188 = vpop.f32.mrf.mxu0
    %v6189 = vadd.f32 %v6136, %v6188
    %v6190 = vpop.f32.mrf.mxu0
    %v6191 = vadd.f32 %v6138, %v6190
    %6192 = vdwg.mxu0
    %6193 = vmatprep.subr.bf16.mxu0 %v4182
    %6194 = vmatpush1.bf16.msra.mxu0 %v4181
    %6195 = vmatprep.subr.bf16.mxu0 %v4177
    %6196 = vmatpush1.bf16.msra.mxu0 %v4176
    %6197 = vmatprep.subr.bf16.mxu0 %v4172
    %6198 = vmatpush1.bf16.msra.mxu0 %v4171
    %6199 = vmatprep.subr.bf16.mxu0 %v4167
    %6200 = vmatpush1.bf16.msra.mxu0 %v4166
    %6201 = vmatprep.subr.bf16.mxu0 %v4162
    %6202 = vmatpush1.bf16.msra.mxu0 %v4161
    %6203 = vmatprep.subr.bf16.mxu0 %v4157
    %6204 = vmatpush1.bf16.msra.mxu0 %v4156
    %6205 = vmatprep.subr.bf16.mxu0 %v4152
    %6206 = vmatpush1.bf16.msra.mxu0 %v4151
    %6207 = vmatprep.subr.bf16.mxu0 %v4147
    %6208 = vmatpush1.bf16.msra.mxu0 %v4146
    %6209 = vmatprep.subr.bf16.mxu0 %v4222
    %6210 = vmatpush2.bf16.msra.mxu0 %v4221
    %6211 = vmatprep.subr.bf16.mxu0 %v4217
    %6212 = vmatpush2.bf16.msra.mxu0 %v4216
    %6213 = vmatprep.subr.bf16.mxu0 %v4212
    %6214 = vmatpush2.bf16.msra.mxu0 %v4211
    %6215 = vmatprep.subr.bf16.mxu0 %v4207
    %6216 = vmatpush2.bf16.msra.mxu0 %v4206
    %6217 = vmatprep.subr.bf16.mxu0 %v4202
    %6218 = vmatpush2.bf16.msra.mxu0 %v4201
    %6219 = vmatprep.subr.bf16.mxu0 %v4197
    %6220 = vmatpush2.bf16.msra.mxu0 %v4196
    %6221 = vmatprep.subr.bf16.mxu0 %v4192
    %6222 = vmatpush2.bf16.msra.mxu0 %v4191
    %6223 = vmatprep.subr.bf16.mxu0 %v4187
    %6224 = vmatpush2.bf16.msra.mxu0 %v4186
    %6225 = vmatprep.mubr.bf16.mxu0 %v1284
    %6226 = vmatmul.mubr.bf16.gmra.mxu0 %v1283
    %v6227 = vpop.f32.mrf.mxu0
    %v6228 = vadd.f32 %v6175, %v6227
    %v6229 = vpop.f32.mrf.mxu0
    %v6230 = vadd.f32 %v6177, %v6229
    %v6231 = vpop.f32.mrf.mxu0
    %v6232 = vadd.f32 %v6179, %v6231
    %v6233 = vpop.f32.mrf.mxu0
    %v6234 = vadd.f32 %v6181, %v6233
    %6235 = vmatprep.mubr.bf16.mxu0 %v1304
    %6236 = vmatmul.mubr.bf16.gmra.mxu0 %v1303
    %v6237 = vpop.f32.mrf.mxu0
    %v6238 = vadd.f32 %v6185, %v6237
    %v6239 = vpop.f32.mrf.mxu0
    %v6240 = vadd.f32 %v6187, %v6239
    %v6241 = vpop.f32.mrf.mxu0
    %v6242 = vadd.f32 %v6189, %v6241
    %v6243 = vpop.f32.mrf.mxu0
    %v6244 = vadd.f32 %v6191, %v6243
    %6245 = vdwg.mxu0
    %6246 = vmatprep.subr.bf16.mxu0 %v4262
    %6247 = vmatpush1.bf16.msra.mxu0 %v4261
    %6248 = vmatprep.subr.bf16.mxu0 %v4257
    %6249 = vmatpush1.bf16.msra.mxu0 %v4256
    %6250 = vmatprep.subr.bf16.mxu0 %v4252
    %6251 = vmatpush1.bf16.msra.mxu0 %v4251
    %6252 = vmatprep.subr.bf16.mxu0 %v4247
    %6253 = vmatpush1.bf16.msra.mxu0 %v4246
    %6254 = vmatprep.subr.bf16.mxu0 %v4242
    %6255 = vmatpush1.bf16.msra.mxu0 %v4241
    %6256 = vmatprep.subr.bf16.mxu0 %v4237
    %6257 = vmatpush1.bf16.msra.mxu0 %v4236
    %6258 = vmatprep.subr.bf16.mxu0 %v4232
    %6259 = vmatpush1.bf16.msra.mxu0 %v4231
    %6260 = vmatprep.subr.bf16.mxu0 %v4227
    %6261 = vmatpush1.bf16.msra.mxu0 %v4226
    %6262 = vmatprep.subr.bf16.mxu0 %v4302
    %6263 = vmatpush2.bf16.msra.mxu0 %v4301
    %6264 = vmatprep.subr.bf16.mxu0 %v4297
    %6265 = vmatpush2.bf16.msra.mxu0 %v4296
    %6266 = vmatprep.subr.bf16.mxu0 %v4292
    %6267 = vmatpush2.bf16.msra.mxu0 %v4291
    %6268 = vmatprep.subr.bf16.mxu0 %v4287
    %6269 = vmatpush2.bf16.msra.mxu0 %v4286
    %6270 = vmatprep.subr.bf16.mxu0 %v4282
    %6271 = vmatpush2.bf16.msra.mxu0 %v4281
    %6272 = vmatprep.subr.bf16.mxu0 %v4277
    %6273 = vmatpush2.bf16.msra.mxu0 %v4276
    %6274 = vmatprep.subr.bf16.mxu0 %v4272
    %6275 = vmatpush2.bf16.msra.mxu0 %v4271
    %6276 = vmatprep.subr.bf16.mxu0 %v4267
    %6277 = vmatpush2.bf16.msra.mxu0 %v4266
    %6278 = vmatprep.mubr.bf16.mxu0 %v1286
    %6279 = vmatmul.mubr.bf16.gmra.mxu0 %v1285
    %v6280 = vpop.f32.mrf.mxu0
    %v6281 = vadd.f32 %v6228, %v6280
    %v6282 = vpop.f32.mrf.mxu0
    %v6283 = vadd.f32 %v6230, %v6282
    %v6284 = vpop.f32.mrf.mxu0
    %v6285 = vadd.f32 %v6232, %v6284
    %v6286 = vpop.f32.mrf.mxu0
    %v6287 = vadd.f32 %v6234, %v6286
    %6288 = vmatprep.mubr.bf16.mxu0 %v1306
    %6289 = vmatmul.mubr.bf16.gmra.mxu0 %v1305
    %v6290 = vpop.f32.mrf.mxu0
    %v6291 = vadd.f32 %v6238, %v6290
    %v6292 = vpop.f32.mrf.mxu0
    %v6293 = vadd.f32 %v6240, %v6292
    %v6294 = vpop.f32.mrf.mxu0
    %v6295 = vadd.f32 %v6242, %v6294
    %v6296 = vpop.f32.mrf.mxu0
    %v6297 = vadd.f32 %v6244, %v6296
    %6298 = vdwg.mxu0
    %6299 = vmatprep.subr.bf16.mxu0 %v4342
    %6300 = vmatpush1.bf16.msra.mxu0 %v4341
    %6301 = vmatprep.subr.bf16.mxu0 %v4337
    %6302 = vmatpush1.bf16.msra.mxu0 %v4336
    %6303 = vmatprep.subr.bf16.mxu0 %v4332
    %6304 = vmatpush1.bf16.msra.mxu0 %v4331
    %6305 = vmatprep.subr.bf16.mxu0 %v4327
    %6306 = vmatpush1.bf16.msra.mxu0 %v4326
    %6307 = vmatprep.subr.bf16.mxu0 %v4322
    %6308 = vmatpush1.bf16.msra.mxu0 %v4321
    %6309 = vmatprep.subr.bf16.mxu0 %v4317
    %6310 = vmatpush1.bf16.msra.mxu0 %v4316
    %6311 = vmatprep.subr.bf16.mxu0 %v4312
    %6312 = vmatpush1.bf16.msra.mxu0 %v4311
    %6313 = vmatprep.subr.bf16.mxu0 %v4307
    %6314 = vmatpush1.bf16.msra.mxu0 %v4306
    %6315 = vmatprep.subr.bf16.mxu0 %v4382
    %6316 = vmatpush2.bf16.msra.mxu0 %v4381
    %6317 = vmatprep.subr.bf16.mxu0 %v4377
    %6318 = vmatpush2.bf16.msra.mxu0 %v4376
    %6319 = vmatprep.subr.bf16.mxu0 %v4372
    %6320 = vmatpush2.bf16.msra.mxu0 %v4371
    %6321 = vmatprep.subr.bf16.mxu0 %v4367
    %6322 = vmatpush2.bf16.msra.mxu0 %v4366
    %6323 = vmatprep.subr.bf16.mxu0 %v4362
    %6324 = vmatpush2.bf16.msra.mxu0 %v4361
    %6325 = vmatprep.subr.bf16.mxu0 %v4357
    %6326 = vmatpush2.bf16.msra.mxu0 %v4356
    %6327 = vmatprep.subr.bf16.mxu0 %v4352
    %6328 = vmatpush2.bf16.msra.mxu0 %v4351
    %6329 = vmatprep.subr.bf16.mxu0 %v4347
    %6330 = vmatpush2.bf16.msra.mxu0 %v4346
    %6331 = vmatprep.mubr.bf16.mxu0 %v1288
    %6332 = vmatmul.mubr.bf16.gmra.mxu0 %v1287
    %v6333 = vpop.f32.mrf.mxu0
    %v6334 = vadd.f32 %v6281, %v6333
    %v6335 = vpop.f32.mrf.mxu0
    %v6336 = vadd.f32 %v6283, %v6335
    %v6337 = vpop.f32.mrf.mxu0
    %v6338 = vadd.f32 %v6285, %v6337
    %v6339 = vpop.f32.mrf.mxu0
    %v6340 = vadd.f32 %v6287, %v6339
    %6341 = vmatprep.mubr.bf16.mxu0 %v1308
    %6342 = vmatmul.mubr.bf16.gmra.mxu0 %v1307
    %v6343 = vpop.f32.mrf.mxu0
    %v6344 = vadd.f32 %v6291, %v6343
    %v6345 = vpop.f32.mrf.mxu0
    %v6346 = vadd.f32 %v6293, %v6345
    %v6347 = vpop.f32.mrf.mxu0
    %v6348 = vadd.f32 %v6295, %v6347
    %v6349 = vpop.f32.mrf.mxu0
    %v6350 = vadd.f32 %v6297, %v6349
    %6351 = vdwg.mxu0
    %6352 = vmatprep.subr.bf16.mxu0 %v4422
    %6353 = vmatpush1.bf16.msra.mxu0 %v4421
    %6354 = vmatprep.subr.bf16.mxu0 %v4417
    %6355 = vmatpush1.bf16.msra.mxu0 %v4416
    %6356 = vmatprep.subr.bf16.mxu0 %v4412
    %6357 = vmatpush1.bf16.msra.mxu0 %v4411
    %6358 = vmatprep.subr.bf16.mxu0 %v4407
    %6359 = vmatpush1.bf16.msra.mxu0 %v4406
    %6360 = vmatprep.subr.bf16.mxu0 %v4402
    %6361 = vmatpush1.bf16.msra.mxu0 %v4401
    %6362 = vmatprep.subr.bf16.mxu0 %v4397
    %6363 = vmatpush1.bf16.msra.mxu0 %v4396
    %6364 = vmatprep.subr.bf16.mxu0 %v4392
    %6365 = vmatpush1.bf16.msra.mxu0 %v4391
    %6366 = vmatprep.subr.bf16.mxu0 %v4387
    %6367 = vmatpush1.bf16.msra.mxu0 %v4386
    %6368 = vmatprep.subr.bf16.mxu0 %v4462
    %6369 = vmatpush2.bf16.msra.mxu0 %v4461
    %6370 = vmatprep.subr.bf16.mxu0 %v4457
    %6371 = vmatpush2.bf16.msra.mxu0 %v4456
    %6372 = vmatprep.subr.bf16.mxu0 %v4452
    %6373 = vmatpush2.bf16.msra.mxu0 %v4451
    %6374 = vmatprep.subr.bf16.mxu0 %v4447
    %6375 = vmatpush2.bf16.msra.mxu0 %v4446
    %6376 = vmatprep.subr.bf16.mxu0 %v4442
    %6377 = vmatpush2.bf16.msra.mxu0 %v4441
    %6378 = vmatprep.subr.bf16.mxu0 %v4437
    %6379 = vmatpush2.bf16.msra.mxu0 %v4436
    %6380 = vmatprep.subr.bf16.mxu0 %v4432
    %6381 = vmatpush2.bf16.msra.mxu0 %v4431
    %6382 = vmatprep.subr.bf16.mxu0 %v4427
    %6383 = vmatpush2.bf16.msra.mxu0 %v4426
    %6384 = vmatprep.mubr.bf16.mxu0 %v1290
    %6385 = vmatmul.mubr.bf16.gmra.mxu0 %v1289
    %v6386 = vpop.f32.mrf.mxu0
    %v6387 = vadd.f32 %v6334, %v6386
    %v6388 = vpop.f32.mrf.mxu0
    %v6389 = vadd.f32 %v6336, %v6388
    %v6390 = vpop.f32.mrf.mxu0
    %v6391 = vadd.f32 %v6338, %v6390
    %v6392 = vpop.f32.mrf.mxu0
    %v6393 = vadd.f32 %v6340, %v6392
    %6394 = vmatprep.mubr.bf16.mxu0 %v1310
    %6395 = vmatmul.mubr.bf16.gmra.mxu0 %v1309
    %v6396 = vpop.f32.mrf.mxu0
    %v6397 = vadd.f32 %v6344, %v6396
    %v6398 = vpop.f32.mrf.mxu0
    %v6399 = vadd.f32 %v6346, %v6398
    %v6400 = vpop.f32.mrf.mxu0
    %v6401 = vadd.f32 %v6348, %v6400
    %v6402 = vpop.f32.mrf.mxu0
    %v6403 = vadd.f32 %v6350, %v6402
    %6404 = vdwg.mxu0
    %6405 = vmatprep.subr.bf16.mxu0 %v4502
    %6406 = vmatpush1.bf16.msra.mxu0 %v4501
    %6407 = vmatprep.subr.bf16.mxu0 %v4497
    %6408 = vmatpush1.bf16.msra.mxu0 %v4496
    %6409 = vmatprep.subr.bf16.mxu0 %v4492
    %6410 = vmatpush1.bf16.msra.mxu0 %v4491
    %6411 = vmatprep.subr.bf16.mxu0 %v4487
    %6412 = vmatpush1.bf16.msra.mxu0 %v4486
    %6413 = vmatprep.subr.bf16.mxu0 %v4482
    %6414 = vmatpush1.bf16.msra.mxu0 %v4481
    %6415 = vmatprep.subr.bf16.mxu0 %v4477
    %6416 = vmatpush1.bf16.msra.mxu0 %v4476
    %6417 = vmatprep.subr.bf16.mxu0 %v4472
    %6418 = vmatpush1.bf16.msra.mxu0 %v4471
    %6419 = vmatprep.subr.bf16.mxu0 %v4467
    %6420 = vmatpush1.bf16.msra.mxu0 %v4466
    %6421 = vmatprep.subr.bf16.mxu0 %v4542
    %6422 = vmatpush2.bf16.msra.mxu0 %v4541
    %6423 = vmatprep.subr.bf16.mxu0 %v4537
    %6424 = vmatpush2.bf16.msra.mxu0 %v4536
    %6425 = vmatprep.subr.bf16.mxu0 %v4532
    %6426 = vmatpush2.bf16.msra.mxu0 %v4531
    %6427 = vmatprep.subr.bf16.mxu0 %v4527
    %6428 = vmatpush2.bf16.msra.mxu0 %v4526
    %6429 = vmatprep.subr.bf16.mxu0 %v4522
    %6430 = vmatpush2.bf16.msra.mxu0 %v4521
    %6431 = vmatprep.subr.bf16.mxu0 %v4517
    %6432 = vmatpush2.bf16.msra.mxu0 %v4516
    %6433 = vmatprep.subr.bf16.mxu0 %v4512
    %6434 = vmatpush2.bf16.msra.mxu0 %v4511
    %6435 = vmatprep.subr.bf16.mxu0 %v4507
    %6436 = vmatpush2.bf16.msra.mxu0 %v4506
    %6437 = vmatprep.mubr.bf16.mxu0 %v1292
    %6438 = vmatmul.mubr.bf16.gmra.mxu0 %v1291
    %v6439 = vpop.f32.mrf.mxu0
    %v6440 = vadd.f32 %v6387, %v6439
    %v6441 = vpop.f32.mrf.mxu0
    %v6442 = vadd.f32 %v6389, %v6441
    %v6443 = vpop.f32.mrf.mxu0
    %v6444 = vadd.f32 %v6391, %v6443
    %v6445 = vpop.f32.mrf.mxu0
    %v6446 = vadd.f32 %v6393, %v6445
    %6447 = vmatprep.mubr.bf16.mxu0 %v1312
    %6448 = vmatmul.mubr.bf16.gmra.mxu0 %v1311
    %v6449 = vpop.f32.mrf.mxu0
    %v6450 = vadd.f32 %v6397, %v6449
    %v6451 = vpop.f32.mrf.mxu0
    %v6452 = vadd.f32 %v6399, %v6451
    %v6453 = vpop.f32.mrf.mxu0
    %v6454 = vadd.f32 %v6401, %v6453
    %v6455 = vpop.f32.mrf.mxu0
    %v6456 = vadd.f32 %v6403, %v6455
    %6457 = vdwg.mxu0
    %6458 = vmatprep.subr.bf16.mxu0 %v4582
    %6459 = vmatpush1.bf16.msra.mxu0 %v4581
    %6460 = vmatprep.subr.bf16.mxu0 %v4577
    %6461 = vmatpush1.bf16.msra.mxu0 %v4576
    %6462 = vmatprep.subr.bf16.mxu0 %v4572
    %6463 = vmatpush1.bf16.msra.mxu0 %v4571
    %6464 = vmatprep.subr.bf16.mxu0 %v4567
    %6465 = vmatpush1.bf16.msra.mxu0 %v4566
    %6466 = vmatprep.subr.bf16.mxu0 %v4562
    %6467 = vmatpush1.bf16.msra.mxu0 %v4561
    %6468 = vmatprep.subr.bf16.mxu0 %v4557
    %6469 = vmatpush1.bf16.msra.mxu0 %v4556
    %6470 = vmatprep.subr.bf16.mxu0 %v4552
    %6471 = vmatpush1.bf16.msra.mxu0 %v4551
    %6472 = vmatprep.subr.bf16.mxu0 %v4547
    %6473 = vmatpush1.bf16.msra.mxu0 %v4546
    %6474 = vmatprep.subr.bf16.mxu0 %v4622
    %6475 = vmatpush2.bf16.msra.mxu0 %v4621
    %6476 = vmatprep.subr.bf16.mxu0 %v4617
    %6477 = vmatpush2.bf16.msra.mxu0 %v4616
    %6478 = vmatprep.subr.bf16.mxu0 %v4612
    %6479 = vmatpush2.bf16.msra.mxu0 %v4611
    %6480 = vmatprep.subr.bf16.mxu0 %v4607
    %6481 = vmatpush2.bf16.msra.mxu0 %v4606
    %6482 = vmatprep.subr.bf16.mxu0 %v4602
    %6483 = vmatpush2.bf16.msra.mxu0 %v4601
    %6484 = vmatprep.subr.bf16.mxu0 %v4597
    %6485 = vmatpush2.bf16.msra.mxu0 %v4596
    %6486 = vmatprep.subr.bf16.mxu0 %v4592
    %6487 = vmatpush2.bf16.msra.mxu0 %v4591
    %6488 = vmatprep.subr.bf16.mxu0 %v4587
    %6489 = vmatpush2.bf16.msra.mxu0 %v4586
    %6490 = vmatprep.mubr.bf16.mxu0 %v1294
    %6491 = vmatmul.mubr.bf16.gmra.mxu0 %v1293
    %v6492 = vpop.f32.mrf.mxu0
    %v6493 = vadd.f32 %v6440, %v6492
    %v6494 = vpop.f32.mrf.mxu0
    %v6495 = vadd.f32 %v6442, %v6494
    %v6496 = vpop.f32.mrf.mxu0
    %v6497 = vadd.f32 %v6444, %v6496
    %v6498 = vpop.f32.mrf.mxu0
    %v6499 = vadd.f32 %v6446, %v6498
    %6500 = vmatprep.mubr.bf16.mxu0 %v1314
    %6501 = vmatmul.mubr.bf16.gmra.mxu0 %v1313
    %v6502 = vpop.f32.mrf.mxu0
    %v6503 = vadd.f32 %v6450, %v6502
    %v6504 = vpop.f32.mrf.mxu0
    %v6505 = vadd.f32 %v6452, %v6504
    %v6506 = vpop.f32.mrf.mxu0
    %v6507 = vadd.f32 %v6454, %v6506
    %v6508 = vpop.f32.mrf.mxu0
    %v6509 = vadd.f32 %v6456, %v6508
    %6510 = vdwg.mxu0
    %6511 = vmatprep.subr.bf16.mxu0 %v4662
    %6512 = vmatpush1.bf16.msra.mxu0 %v4661
    %6513 = vmatprep.subr.bf16.mxu0 %v4657
    %6514 = vmatpush1.bf16.msra.mxu0 %v4656
    %6515 = vmatprep.subr.bf16.mxu0 %v4652
    %6516 = vmatpush1.bf16.msra.mxu0 %v4651
    %6517 = vmatprep.subr.bf16.mxu0 %v4647
    %6518 = vmatpush1.bf16.msra.mxu0 %v4646
    %6519 = vmatprep.subr.bf16.mxu0 %v4642
    %6520 = vmatpush1.bf16.msra.mxu0 %v4641
    %6521 = vmatprep.subr.bf16.mxu0 %v4637
    %6522 = vmatpush1.bf16.msra.mxu0 %v4636
    %6523 = vmatprep.subr.bf16.mxu0 %v4632
    %6524 = vmatpush1.bf16.msra.mxu0 %v4631
    %6525 = vmatprep.subr.bf16.mxu0 %v4627
    %6526 = vmatpush1.bf16.msra.mxu0 %v4626
    %6527 = vmatprep.subr.bf16.mxu0 %v4702
    %6528 = vmatpush2.bf16.msra.mxu0 %v4701
    %6529 = vmatprep.subr.bf16.mxu0 %v4697
    %6530 = vmatpush2.bf16.msra.mxu0 %v4696
    %6531 = vmatprep.subr.bf16.mxu0 %v4692
    %6532 = vmatpush2.bf16.msra.mxu0 %v4691
    %6533 = vmatprep.subr.bf16.mxu0 %v4687
    %6534 = vmatpush2.bf16.msra.mxu0 %v4686
    %6535 = vmatprep.subr.bf16.mxu0 %v4682
    %6536 = vmatpush2.bf16.msra.mxu0 %v4681
    %6537 = vmatprep.subr.bf16.mxu0 %v4677
    %6538 = vmatpush2.bf16.msra.mxu0 %v4676
    %6539 = vmatprep.subr.bf16.mxu0 %v4672
    %6540 = vmatpush2.bf16.msra.mxu0 %v4671
    %6541 = vmatprep.subr.bf16.mxu0 %v4667
    %6542 = vmatpush2.bf16.msra.mxu0 %v4666
    %6543 = vmatprep.mubr.bf16.mxu0 %v1296
    %6544 = vmatmul.mubr.bf16.gmra.mxu0 %v1295
    %v6545 = vpop.f32.mrf.mxu0
    %v6546 = vadd.f32 %v6493, %v6545
    %v6547 = vpop.f32.mrf.mxu0
    %v6548 = vadd.f32 %v6495, %v6547
    %v6549 = vpop.f32.mrf.mxu0
    %v6550 = vadd.f32 %v6497, %v6549
    %v6551 = vpop.f32.mrf.mxu0
    %v6552 = vadd.f32 %v6499, %v6551
    %6553 = vmatprep.mubr.bf16.mxu0 %v1316
    %6554 = vmatmul.mubr.bf16.gmra.mxu0 %v1315
    %v6555 = vpop.f32.mrf.mxu0
    %v6556 = vadd.f32 %v6503, %v6555
    %v6557 = vpop.f32.mrf.mxu0
    %v6558 = vadd.f32 %v6505, %v6557
    %v6559 = vpop.f32.mrf.mxu0
    %v6560 = vadd.f32 %v6507, %v6559
    %v6561 = vpop.f32.mrf.mxu0
    %v6562 = vadd.f32 %v6509, %v6561
    %6563 = vdwg.mxu0
    %6564 = vmatprep.subr.bf16.mxu0 0
    %6565 = vmatpush1.bf16.msra.mxu0 %v3943
    %6566 = vmatprep.subr.bf16.mxu0 0
    %6567 = vmatpush1.bf16.msra.mxu0 %v3938
    %6568 = vmatprep.subr.bf16.mxu0 0
    %6569 = vmatpush1.bf16.msra.mxu0 %v3933
    %6570 = vmatprep.subr.bf16.mxu0 0
    %6571 = vmatpush1.bf16.msra.mxu0 %v3928
    %6572 = vmatprep.subr.bf16.mxu0 0
    %6573 = vmatpush1.bf16.msra.mxu0 %v3923
    %6574 = vmatprep.subr.bf16.mxu0 0
    %6575 = vmatpush1.bf16.msra.mxu0 %v3918
    %6576 = vmatprep.subr.bf16.mxu0 0
    %6577 = vmatpush1.bf16.msra.mxu0 %v3913
    %6578 = vmatprep.subr.bf16.mxu0 0
    %6579 = vmatpush1.bf16.msra.mxu0 %v3908
    %6580 = vmatprep.subr.bf16.mxu0 0
    %6581 = vmatpush2.bf16.msra.mxu0 %v3983
    %6582 = vmatprep.subr.bf16.mxu0 0
    %6583 = vmatpush2.bf16.msra.mxu0 %v3978
    %6584 = vmatprep.subr.bf16.mxu0 0
    %6585 = vmatpush2.bf16.msra.mxu0 %v3973
    %6586 = vmatprep.subr.bf16.mxu0 0
    %6587 = vmatpush2.bf16.msra.mxu0 %v3968
    %6588 = vmatprep.subr.bf16.mxu0 0
    %6589 = vmatpush2.bf16.msra.mxu0 %v3963
    %6590 = vmatprep.subr.bf16.mxu0 0
    %6591 = vmatpush2.bf16.msra.mxu0 %v3958
    %6592 = vmatprep.subr.bf16.mxu0 0
    %6593 = vmatpush2.bf16.msra.mxu0 %v3953
    %6594 = vmatprep.subr.bf16.mxu0 0
    %6595 = vmatpush2.bf16.msra.mxu0 %v3948
    %6596 = vmatprep.mubr.bf16.mxu0 %v1278
    %6597 = vmatmul.mubr.bf16.gmra.mxu0 %v1277
    %v6598 = vpop.f32.mrf.mxu0
    %v6599 = vadd.f32 %v1338, %v6598
    %v6600 = vpop.f32.mrf.mxu0
    %v6601 = vpop.f32.mrf.mxu0
    %v6602 = vadd.f32 %v1338, %v6601
    %v6603 = vpop.f32.mrf.mxu0
    %6604 = vmatprep.mubr.bf16.mxu0 %v1298
    %6605 = vmatmul.mubr.bf16.gmra.mxu0 %v1297
    %v6606 = vpop.f32.mrf.mxu0
    %v6607 = vadd.f32 %v1338, %v6606
    %v6608 = vpop.f32.mrf.mxu0
    %v6609 = vpop.f32.mrf.mxu0
    %v6610 = vadd.f32 %v1338, %v6609
    %v6611 = vpop.f32.mrf.mxu0
    %6612 = vdwg.mxu0
    %6613 = vmatprep.subr.bf16.mxu0 0
    %6614 = vmatpush1.bf16.msra.mxu0 %v4023
    %6615 = vmatprep.subr.bf16.mxu0 0
    %6616 = vmatpush1.bf16.msra.mxu0 %v4018
    %6617 = vmatprep.subr.bf16.mxu0 0
    %6618 = vmatpush1.bf16.msra.mxu0 %v4013
    %6619 = vmatprep.subr.bf16.mxu0 0
    %6620 = vmatpush1.bf16.msra.mxu0 %v4008
    %6621 = vmatprep.subr.bf16.mxu0 0
    %6622 = vmatpush1.bf16.msra.mxu0 %v4003
    %6623 = vmatprep.subr.bf16.mxu0 0
    %6624 = vmatpush1.bf16.msra.mxu0 %v3998
    %6625 = vmatprep.subr.bf16.mxu0 0
    %6626 = vmatpush1.bf16.msra.mxu0 %v3993
    %6627 = vmatprep.subr.bf16.mxu0 0
    %6628 = vmatpush1.bf16.msra.mxu0 %v3988
    %6629 = vmatprep.subr.bf16.mxu0 0
    %6630 = vmatpush2.bf16.msra.mxu0 %v4063
    %6631 = vmatprep.subr.bf16.mxu0 0
    %6632 = vmatpush2.bf16.msra.mxu0 %v4058
    %6633 = vmatprep.subr.bf16.mxu0 0
    %6634 = vmatpush2.bf16.msra.mxu0 %v4053
    %6635 = vmatprep.subr.bf16.mxu0 0
    %6636 = vmatpush2.bf16.msra.mxu0 %v4048
    %6637 = vmatprep.subr.bf16.mxu0 0
    %6638 = vmatpush2.bf16.msra.mxu0 %v4043
    %6639 = vmatprep.subr.bf16.mxu0 0
    %6640 = vmatpush2.bf16.msra.mxu0 %v4038
    %6641 = vmatprep.subr.bf16.mxu0 0
    %6642 = vmatpush2.bf16.msra.mxu0 %v4033
    %6643 = vmatprep.subr.bf16.mxu0 0
    %6644 = vmatpush2.bf16.msra.mxu0 %v4028
    %6645 = vmatprep.mubr.bf16.mxu0 %v1280
    %6646 = vmatmul.mubr.bf16.gmra.mxu0 %v1279
    %v6647 = vpop.f32.mrf.mxu0
    %v6648 = vadd.f32 %v6599, %v6647
    %v6649 = vpop.f32.mrf.mxu0
    %v6650 = vpop.f32.mrf.mxu0
    %v6651 = vadd.f32 %v6602, %v6650
    %v6652 = vpop.f32.mrf.mxu0
    %6653 = vmatprep.mubr.bf16.mxu0 %v1300
    %6654 = vmatmul.mubr.bf16.gmra.mxu0 %v1299
    %v6655 = vpop.f32.mrf.mxu0
    %v6656 = vadd.f32 %v6607, %v6655
    %v6657 = vpop.f32.mrf.mxu0
    %v6658 = vpop.f32.mrf.mxu0
    %v6659 = vadd.f32 %v6610, %v6658
    %v6660 = vpop.f32.mrf.mxu0
    %6661 = vdwg.mxu0
    %6662 = vmatprep.subr.bf16.mxu0 0
    %6663 = vmatpush1.bf16.msra.mxu0 %v4103
    %6664 = vmatprep.subr.bf16.mxu0 0
    %6665 = vmatpush1.bf16.msra.mxu0 %v4098
    %6666 = vmatprep.subr.bf16.mxu0 0
    %6667 = vmatpush1.bf16.msra.mxu0 %v4093
    %6668 = vmatprep.subr.bf16.mxu0 0
    %6669 = vmatpush1.bf16.msra.mxu0 %v4088
    %6670 = vmatprep.subr.bf16.mxu0 0
    %6671 = vmatpush1.bf16.msra.mxu0 %v4083
    %6672 = vmatprep.subr.bf16.mxu0 0
    %6673 = vmatpush1.bf16.msra.mxu0 %v4078
    %6674 = vmatprep.subr.bf16.mxu0 0
    %6675 = vmatpush1.bf16.msra.mxu0 %v4073
    %6676 = vmatprep.subr.bf16.mxu0 0
    %6677 = vmatpush1.bf16.msra.mxu0 %v4068
    %6678 = vmatprep.subr.bf16.mxu0 0
    %6679 = vmatpush2.bf16.msra.mxu0 %v4143
    %6680 = vmatprep.subr.bf16.mxu0 0
    %6681 = vmatpush2.bf16.msra.mxu0 %v4138
    %6682 = vmatprep.subr.bf16.mxu0 0
    %6683 = vmatpush2.bf16.msra.mxu0 %v4133
    %6684 = vmatprep.subr.bf16.mxu0 0
    %6685 = vmatpush2.bf16.msra.mxu0 %v4128
    %6686 = vmatprep.subr.bf16.mxu0 0
    %6687 = vmatpush2.bf16.msra.mxu0 %v4123
    %6688 = vmatprep.subr.bf16.mxu0 0
    %6689 = vmatpush2.bf16.msra.mxu0 %v4118
    %6690 = vmatprep.subr.bf16.mxu0 0
    %6691 = vmatpush2.bf16.msra.mxu0 %v4113
    %6692 = vmatprep.subr.bf16.mxu0 0
    %6693 = vmatpush2.bf16.msra.mxu0 %v4108
    %6694 = vmatprep.mubr.bf16.mxu0 %v1282
    %6695 = vmatmul.mubr.bf16.gmra.mxu0 %v1281
    %v6696 = vpop.f32.mrf.mxu0
    %v6697 = vadd.f32 %v6648, %v6696
    %v6698 = vpop.f32.mrf.mxu0
    %v6699 = vpop.f32.mrf.mxu0
    %v6700 = vadd.f32 %v6651, %v6699
    %v6701 = vpop.f32.mrf.mxu0
    %6702 = vmatprep.mubr.bf16.mxu0 %v1302
    %6703 = vmatmul.mubr.bf16.gmra.mxu0 %v1301
    %v6704 = vpop.f32.mrf.mxu0
    %v6705 = vadd.f32 %v6656, %v6704
    %v6706 = vpop.f32.mrf.mxu0
    %v6707 = vpop.f32.mrf.mxu0
    %v6708 = vadd.f32 %v6659, %v6707
    %v6709 = vpop.f32.mrf.mxu0
    %6710 = vdwg.mxu0
    %6711 = vmatprep.subr.bf16.mxu0 0
    %6712 = vmatpush1.bf16.msra.mxu0 %v4183
    %6713 = vmatprep.subr.bf16.mxu0 0
    %6714 = vmatpush1.bf16.msra.mxu0 %v4178
    %6715 = vmatprep.subr.bf16.mxu0 0
    %6716 = vmatpush1.bf16.msra.mxu0 %v4173
    %6717 = vmatprep.subr.bf16.mxu0 0
    %6718 = vmatpush1.bf16.msra.mxu0 %v4168
    %6719 = vmatprep.subr.bf16.mxu0 0
    %6720 = vmatpush1.bf16.msra.mxu0 %v4163
    %6721 = vmatprep.subr.bf16.mxu0 0
    %6722 = vmatpush1.bf16.msra.mxu0 %v4158
    %6723 = vmatprep.subr.bf16.mxu0 0
    %6724 = vmatpush1.bf16.msra.mxu0 %v4153
    %6725 = vmatprep.subr.bf16.mxu0 0
    %6726 = vmatpush1.bf16.msra.mxu0 %v4148
    %6727 = vmatprep.subr.bf16.mxu0 0
    %6728 = vmatpush2.bf16.msra.mxu0 %v4223
    %6729 = vmatprep.subr.bf16.mxu0 0
    %6730 = vmatpush2.bf16.msra.mxu0 %v4218
    %6731 = vmatprep.subr.bf16.mxu0 0
    %6732 = vmatpush2.bf16.msra.mxu0 %v4213
    %6733 = vmatprep.subr.bf16.mxu0 0
    %6734 = vmatpush2.bf16.msra.mxu0 %v4208
    %6735 = vmatprep.subr.bf16.mxu0 0
    %6736 = vmatpush2.bf16.msra.mxu0 %v4203
    %6737 = vmatprep.subr.bf16.mxu0 0
    %6738 = vmatpush2.bf16.msra.mxu0 %v4198
    %6739 = vmatprep.subr.bf16.mxu0 0
    %6740 = vmatpush2.bf16.msra.mxu0 %v4193
    %6741 = vmatprep.subr.bf16.mxu0 0
    %6742 = vmatpush2.bf16.msra.mxu0 %v4188
    %6743 = vmatprep.mubr.bf16.mxu0 %v1284
    %6744 = vmatmul.mubr.bf16.gmra.mxu0 %v1283
    %v6745 = vpop.f32.mrf.mxu0
    %v6746 = vadd.f32 %v6697, %v6745
    %v6747 = vpop.f32.mrf.mxu0
    %v6748 = vpop.f32.mrf.mxu0
    %v6749 = vadd.f32 %v6700, %v6748
    %v6750 = vpop.f32.mrf.mxu0
    %6751 = vmatprep.mubr.bf16.mxu0 %v1304
    %6752 = vmatmul.mubr.bf16.gmra.mxu0 %v1303
    %v6753 = vpop.f32.mrf.mxu0
    %v6754 = vadd.f32 %v6705, %v6753
    %v6755 = vpop.f32.mrf.mxu0
    %v6756 = vpop.f32.mrf.mxu0
    %v6757 = vadd.f32 %v6708, %v6756
    %v6758 = vpop.f32.mrf.mxu0
    %6759 = vdwg.mxu0
    %6760 = vmatprep.subr.bf16.mxu0 0
    %6761 = vmatpush1.bf16.msra.mxu0 %v4263
    %6762 = vmatprep.subr.bf16.mxu0 0
    %6763 = vmatpush1.bf16.msra.mxu0 %v4258
    %6764 = vmatprep.subr.bf16.mxu0 0
    %6765 = vmatpush1.bf16.msra.mxu0 %v4253
    %6766 = vmatprep.subr.bf16.mxu0 0
    %6767 = vmatpush1.bf16.msra.mxu0 %v4248
    %6768 = vmatprep.subr.bf16.mxu0 0
    %6769 = vmatpush1.bf16.msra.mxu0 %v4243
    %6770 = vmatprep.subr.bf16.mxu0 0
    %6771 = vmatpush1.bf16.msra.mxu0 %v4238
    %6772 = vmatprep.subr.bf16.mxu0 0
    %6773 = vmatpush1.bf16.msra.mxu0 %v4233
    %6774 = vmatprep.subr.bf16.mxu0 0
    %6775 = vmatpush1.bf16.msra.mxu0 %v4228
    %6776 = vmatprep.subr.bf16.mxu0 0
    %6777 = vmatpush2.bf16.msra.mxu0 %v4303
    %6778 = vmatprep.subr.bf16.mxu0 0
    %6779 = vmatpush2.bf16.msra.mxu0 %v4298
    %6780 = vmatprep.subr.bf16.mxu0 0
    %6781 = vmatpush2.bf16.msra.mxu0 %v4293
    %6782 = vmatprep.subr.bf16.mxu0 0
    %6783 = vmatpush2.bf16.msra.mxu0 %v4288
    %6784 = vmatprep.subr.bf16.mxu0 0
    %6785 = vmatpush2.bf16.msra.mxu0 %v4283
    %6786 = vmatprep.subr.bf16.mxu0 0
    %6787 = vmatpush2.bf16.msra.mxu0 %v4278
    %6788 = vmatprep.subr.bf16.mxu0 0
    %6789 = vmatpush2.bf16.msra.mxu0 %v4273
    %6790 = vmatprep.subr.bf16.mxu0 0
    %6791 = vmatpush2.bf16.msra.mxu0 %v4268
    %6792 = vmatprep.mubr.bf16.mxu0 %v1286
    %6793 = vmatmul.mubr.bf16.gmra.mxu0 %v1285
    %v6794 = vpop.f32.mrf.mxu0
    %v6795 = vadd.f32 %v6746, %v6794
    %v6796 = vpop.f32.mrf.mxu0
    %v6797 = vpop.f32.mrf.mxu0
    %v6798 = vadd.f32 %v6749, %v6797
    %v6799 = vpop.f32.mrf.mxu0
    %6800 = vmatprep.mubr.bf16.mxu0 %v1306
    %6801 = vmatmul.mubr.bf16.gmra.mxu0 %v1305
    %v6802 = vpop.f32.mrf.mxu0
    %v6803 = vadd.f32 %v6754, %v6802
    %v6804 = vpop.f32.mrf.mxu0
    %v6805 = vpop.f32.mrf.mxu0
    %v6806 = vadd.f32 %v6757, %v6805
    %v6807 = vpop.f32.mrf.mxu0
    %6808 = vdwg.mxu0
    %6809 = vmatprep.subr.bf16.mxu0 0
    %6810 = vmatpush1.bf16.msra.mxu0 %v4343
    %6811 = vmatprep.subr.bf16.mxu0 0
    %6812 = vmatpush1.bf16.msra.mxu0 %v4338
    %6813 = vmatprep.subr.bf16.mxu0 0
    %6814 = vmatpush1.bf16.msra.mxu0 %v4333
    %6815 = vmatprep.subr.bf16.mxu0 0
    %6816 = vmatpush1.bf16.msra.mxu0 %v4328
    %6817 = vmatprep.subr.bf16.mxu0 0
    %6818 = vmatpush1.bf16.msra.mxu0 %v4323
    %6819 = vmatprep.subr.bf16.mxu0 0
    %6820 = vmatpush1.bf16.msra.mxu0 %v4318
    %6821 = vmatprep.subr.bf16.mxu0 0
    %6822 = vmatpush1.bf16.msra.mxu0 %v4313
    %6823 = vmatprep.subr.bf16.mxu0 0
    %6824 = vmatpush1.bf16.msra.mxu0 %v4308
    %6825 = vmatprep.subr.bf16.mxu0 0
    %6826 = vmatpush2.bf16.msra.mxu0 %v4383
    %6827 = vmatprep.subr.bf16.mxu0 0
    %6828 = vmatpush2.bf16.msra.mxu0 %v4378
    %6829 = vmatprep.subr.bf16.mxu0 0
    %6830 = vmatpush2.bf16.msra.mxu0 %v4373
    %6831 = vmatprep.subr.bf16.mxu0 0
    %6832 = vmatpush2.bf16.msra.mxu0 %v4368
    %6833 = vmatprep.subr.bf16.mxu0 0
    %6834 = vmatpush2.bf16.msra.mxu0 %v4363
    %6835 = vmatprep.subr.bf16.mxu0 0
    %6836 = vmatpush2.bf16.msra.mxu0 %v4358
    %6837 = vmatprep.subr.bf16.mxu0 0
    %6838 = vmatpush2.bf16.msra.mxu0 %v4353
    %6839 = vmatprep.subr.bf16.mxu0 0
    %6840 = vmatpush2.bf16.msra.mxu0 %v4348
    %6841 = vmatprep.mubr.bf16.mxu0 %v1288
    %6842 = vmatmul.mubr.bf16.gmra.mxu0 %v1287
    %v6843 = vpop.f32.mrf.mxu0
    %v6844 = vadd.f32 %v6795, %v6843
    %v6845 = vpop.f32.mrf.mxu0
    %v6846 = vpop.f32.mrf.mxu0
    %v6847 = vadd.f32 %v6798, %v6846
    %v6848 = vpop.f32.mrf.mxu0
    %6849 = vmatprep.mubr.bf16.mxu0 %v1308
    %6850 = vmatmul.mubr.bf16.gmra.mxu0 %v1307
    %v6851 = vpop.f32.mrf.mxu0
    %v6852 = vadd.f32 %v6803, %v6851
    %v6853 = vpop.f32.mrf.mxu0
    %v6854 = vpop.f32.mrf.mxu0
    %v6855 = vadd.f32 %v6806, %v6854
    %v6856 = vpop.f32.mrf.mxu0
    %6857 = vdwg.mxu0
    %6858 = vmatprep.subr.bf16.mxu0 0
    %6859 = vmatpush1.bf16.msra.mxu0 %v4423
    %6860 = vmatprep.subr.bf16.mxu0 0
    %6861 = vmatpush1.bf16.msra.mxu0 %v4418
    %6862 = vmatprep.subr.bf16.mxu0 0
    %6863 = vmatpush1.bf16.msra.mxu0 %v4413
    %6864 = vmatprep.subr.bf16.mxu0 0
    %6865 = vmatpush1.bf16.msra.mxu0 %v4408
    %6866 = vmatprep.subr.bf16.mxu0 0
    %6867 = vmatpush1.bf16.msra.mxu0 %v4403
    %6868 = vmatprep.subr.bf16.mxu0 0
    %6869 = vmatpush1.bf16.msra.mxu0 %v4398
    %6870 = vmatprep.subr.bf16.mxu0 0
    %6871 = vmatpush1.bf16.msra.mxu0 %v4393
    %6872 = vmatprep.subr.bf16.mxu0 0
    %6873 = vmatpush1.bf16.msra.mxu0 %v4388
    %6874 = vmatprep.subr.bf16.mxu0 0
    %6875 = vmatpush2.bf16.msra.mxu0 %v4463
    %6876 = vmatprep.subr.bf16.mxu0 0
    %6877 = vmatpush2.bf16.msra.mxu0 %v4458
    %6878 = vmatprep.subr.bf16.mxu0 0
    %6879 = vmatpush2.bf16.msra.mxu0 %v4453
    %6880 = vmatprep.subr.bf16.mxu0 0
    %6881 = vmatpush2.bf16.msra.mxu0 %v4448
    %6882 = vmatprep.subr.bf16.mxu0 0
    %6883 = vmatpush2.bf16.msra.mxu0 %v4443
    %6884 = vmatprep.subr.bf16.mxu0 0
    %6885 = vmatpush2.bf16.msra.mxu0 %v4438
    %6886 = vmatprep.subr.bf16.mxu0 0
    %6887 = vmatpush2.bf16.msra.mxu0 %v4433
    %6888 = vmatprep.subr.bf16.mxu0 0
    %6889 = vmatpush2.bf16.msra.mxu0 %v4428
    %6890 = vmatprep.mubr.bf16.mxu0 %v1290
    %6891 = vmatmul.mubr.bf16.gmra.mxu0 %v1289
    %v6892 = vpop.f32.mrf.mxu0
    %v6893 = vadd.f32 %v6844, %v6892
    %v6894 = vpop.f32.mrf.mxu0
    %v6895 = vpop.f32.mrf.mxu0
    %v6896 = vadd.f32 %v6847, %v6895
    %v6897 = vpop.f32.mrf.mxu0
    %6898 = vmatprep.mubr.bf16.mxu0 %v1310
    %6899 = vmatmul.mubr.bf16.gmra.mxu0 %v1309
    %v6900 = vpop.f32.mrf.mxu0
    %v6901 = vadd.f32 %v6852, %v6900
    %v6902 = vpop.f32.mrf.mxu0
    %v6903 = vpop.f32.mrf.mxu0
    %v6904 = vadd.f32 %v6855, %v6903
    %v6905 = vpop.f32.mrf.mxu0
    %6906 = vdwg.mxu0
    %6907 = vmatprep.subr.bf16.mxu0 0
    %6908 = vmatpush1.bf16.msra.mxu0 %v4503
    %6909 = vmatprep.subr.bf16.mxu0 0
    %6910 = vmatpush1.bf16.msra.mxu0 %v4498
    %6911 = vmatprep.subr.bf16.mxu0 0
    %6912 = vmatpush1.bf16.msra.mxu0 %v4493
    %6913 = vmatprep.subr.bf16.mxu0 0
    %6914 = vmatpush1.bf16.msra.mxu0 %v4488
    %6915 = vmatprep.subr.bf16.mxu0 0
    %6916 = vmatpush1.bf16.msra.mxu0 %v4483
    %6917 = vmatprep.subr.bf16.mxu0 0
    %6918 = vmatpush1.bf16.msra.mxu0 %v4478
    %6919 = vmatprep.subr.bf16.mxu0 0
    %6920 = vmatpush1.bf16.msra.mxu0 %v4473
    %6921 = vmatprep.subr.bf16.mxu0 0
    %6922 = vmatpush1.bf16.msra.mxu0 %v4468
    %6923 = vmatprep.subr.bf16.mxu0 0
    %6924 = vmatpush2.bf16.msra.mxu0 %v4543
    %6925 = vmatprep.subr.bf16.mxu0 0
    %6926 = vmatpush2.bf16.msra.mxu0 %v4538
    %6927 = vmatprep.subr.bf16.mxu0 0
    %6928 = vmatpush2.bf16.msra.mxu0 %v4533
    %6929 = vmatprep.subr.bf16.mxu0 0
    %6930 = vmatpush2.bf16.msra.mxu0 %v4528
    %6931 = vmatprep.subr.bf16.mxu0 0
    %6932 = vmatpush2.bf16.msra.mxu0 %v4523
    %6933 = vmatprep.subr.bf16.mxu0 0
    %6934 = vmatpush2.bf16.msra.mxu0 %v4518
    %6935 = vmatprep.subr.bf16.mxu0 0
    %6936 = vmatpush2.bf16.msra.mxu0 %v4513
    %6937 = vmatprep.subr.bf16.mxu0 0
    %6938 = vmatpush2.bf16.msra.mxu0 %v4508
    %6939 = vmatprep.mubr.bf16.mxu0 %v1292
    %6940 = vmatmul.mubr.bf16.gmra.mxu0 %v1291
    %v6941 = vpop.f32.mrf.mxu0
    %v6942 = vadd.f32 %v6893, %v6941
    %v6943 = vpop.f32.mrf.mxu0
    %v6944 = vpop.f32.mrf.mxu0
    %v6945 = vadd.f32 %v6896, %v6944
    %v6946 = vpop.f32.mrf.mxu0
    %6947 = vmatprep.mubr.bf16.mxu0 %v1312
    %6948 = vmatmul.mubr.bf16.gmra.mxu0 %v1311
    %v6949 = vpop.f32.mrf.mxu0
    %v6950 = vadd.f32 %v6901, %v6949
    %v6951 = vpop.f32.mrf.mxu0
    %v6952 = vpop.f32.mrf.mxu0
    %v6953 = vadd.f32 %v6904, %v6952
    %v6954 = vpop.f32.mrf.mxu0
    %6955 = vdwg.mxu0
    %6956 = vmatprep.subr.bf16.mxu0 0
    %6957 = vmatpush1.bf16.msra.mxu0 %v4583
    %6958 = vmatprep.subr.bf16.mxu0 0
    %6959 = vmatpush1.bf16.msra.mxu0 %v4578
    %6960 = vmatprep.subr.bf16.mxu0 0
    %6961 = vmatpush1.bf16.msra.mxu0 %v4573
    %6962 = vmatprep.subr.bf16.mxu0 0
    %6963 = vmatpush1.bf16.msra.mxu0 %v4568
    %6964 = vmatprep.subr.bf16.mxu0 0
    %6965 = vmatpush1.bf16.msra.mxu0 %v4563
    %6966 = vmatprep.subr.bf16.mxu0 0
    %6967 = vmatpush1.bf16.msra.mxu0 %v4558
    %6968 = vmatprep.subr.bf16.mxu0 0
    %6969 = vmatpush1.bf16.msra.mxu0 %v4553
    %6970 = vmatprep.subr.bf16.mxu0 0
    %6971 = vmatpush1.bf16.msra.mxu0 %v4548
    %6972 = vmatprep.subr.bf16.mxu0 0
    %6973 = vmatpush2.bf16.msra.mxu0 %v4623
    %6974 = vmatprep.subr.bf16.mxu0 0
    %6975 = vmatpush2.bf16.msra.mxu0 %v4618
    %6976 = vmatprep.subr.bf16.mxu0 0
    %6977 = vmatpush2.bf16.msra.mxu0 %v4613
    %6978 = vmatprep.subr.bf16.mxu0 0
    %6979 = vmatpush2.bf16.msra.mxu0 %v4608
    %6980 = vmatprep.subr.bf16.mxu0 0
    %6981 = vmatpush2.bf16.msra.mxu0 %v4603
    %6982 = vmatprep.subr.bf16.mxu0 0
    %6983 = vmatpush2.bf16.msra.mxu0 %v4598
    %6984 = vmatprep.subr.bf16.mxu0 0
    %6985 = vmatpush2.bf16.msra.mxu0 %v4593
    %6986 = vmatprep.subr.bf16.mxu0 0
    %6987 = vmatpush2.bf16.msra.mxu0 %v4588
    %6988 = vmatprep.mubr.bf16.mxu0 %v1294
    %6989 = vmatmul.mubr.bf16.gmra.mxu0 %v1293
    %v6990 = vpop.f32.mrf.mxu0
    %v6991 = vadd.f32 %v6942, %v6990
    %v6992 = vpop.f32.mrf.mxu0
    %v6993 = vpop.f32.mrf.mxu0
    %v6994 = vadd.f32 %v6945, %v6993
    %v6995 = vpop.f32.mrf.mxu0
    %6996 = vmatprep.mubr.bf16.mxu0 %v1314
    %6997 = vmatmul.mubr.bf16.gmra.mxu0 %v1313
    %v6998 = vpop.f32.mrf.mxu0
    %v6999 = vadd.f32 %v6950, %v6998
    %v7000 = vpop.f32.mrf.mxu0
    %v7001 = vpop.f32.mrf.mxu0
    %v7002 = vadd.f32 %v6953, %v7001
    %v7003 = vpop.f32.mrf.mxu0
    %7004 = vdwg.mxu0
    %7005 = vmatprep.subr.bf16.mxu0 0
    %7006 = vmatpush1.bf16.msra.mxu0 %v4663
    %7007 = vmatprep.subr.bf16.mxu0 0
    %7008 = vmatpush1.bf16.msra.mxu0 %v4658
    %7009 = vmatprep.subr.bf16.mxu0 0
    %7010 = vmatpush1.bf16.msra.mxu0 %v4653
    %7011 = vmatprep.subr.bf16.mxu0 0
    %7012 = vmatpush1.bf16.msra.mxu0 %v4648
    %7013 = vmatprep.subr.bf16.mxu0 0
    %7014 = vmatpush1.bf16.msra.mxu0 %v4643
    %7015 = vmatprep.subr.bf16.mxu0 0
    %7016 = vmatpush1.bf16.msra.mxu0 %v4638
    %7017 = vmatprep.subr.bf16.mxu0 0
    %7018 = vmatpush1.bf16.msra.mxu0 %v4633
    %7019 = vmatprep.subr.bf16.mxu0 0
    %7020 = vmatpush1.bf16.msra.mxu0 %v4628
    %7021 = vmatprep.subr.bf16.mxu0 0
    %7022 = vmatpush2.bf16.msra.mxu0 %v4703
    %7023 = vmatprep.subr.bf16.mxu0 0
    %7024 = vmatpush2.bf16.msra.mxu0 %v4698
    %7025 = vmatprep.subr.bf16.mxu0 0
    %7026 = vmatpush2.bf16.msra.mxu0 %v4693
    %7027 = vmatprep.subr.bf16.mxu0 0
    %7028 = vmatpush2.bf16.msra.mxu0 %v4688
    %7029 = vmatprep.subr.bf16.mxu0 0
    %7030 = vmatpush2.bf16.msra.mxu0 %v4683
    %7031 = vmatprep.subr.bf16.mxu0 0
    %7032 = vmatpush2.bf16.msra.mxu0 %v4678
    %7033 = vmatprep.subr.bf16.mxu0 0
    %7034 = vmatpush2.bf16.msra.mxu0 %v4673
    %7035 = vmatprep.subr.bf16.mxu0 0
    %7036 = vmatpush2.bf16.msra.mxu0 %v4668
    %7037 = vmatprep.mubr.bf16.mxu0 %v1296
    %7038 = vmatmul.mubr.bf16.gmra.mxu0 %v1295
    %v7039 = vpop.f32.mrf.mxu0
    %v7040 = vadd.f32 %v6991, %v7039
    %v7041 = vpop.f32.mrf.mxu0
    %v7042 = vpop.f32.mrf.mxu0
    %v7043 = vadd.f32 %v6994, %v7042
    %v7044 = vpop.f32.mrf.mxu0
    %7045 = vmatprep.mubr.bf16.mxu0 %v1316
    %7046 = vmatmul.mubr.bf16.gmra.mxu0 %v1315
    %v7047 = vpop.f32.mrf.mxu0
    %v7048 = vadd.f32 %v6999, %v7047
    %v7049 = vpop.f32.mrf.mxu0
    %v7050 = vpop.f32.mrf.mxu0
    %v7051 = vadd.f32 %v7002, %v7050
    %v7052 = vpop.f32.mrf.mxu0
    %7053 = vdwg.mxu0
    %v7059 = vrot.slane %v6016, 1
    %v7060 = vrot.slane %v6018, 1
    %v7061 = vrot.slane %v6546, 1
    %v7062 = vrot.slane %v6548, 1
    %v7063 = vrot.slane %v7040, 1
    %v7069 = vrot.slane %v6016, 2
    %v7070 = vrot.slane %v6018, 2
    %v7071 = vrot.slane %v6546, 2
    %v7072 = vrot.slane %v6548, 2
    %v7073 = vrot.slane %v7040, 2
    %v7079 = vrot.slane %v6016, 3
    %v7080 = vrot.slane %v6018, 3
    %v7081 = vrot.slane %v6546, 3
    %v7082 = vrot.slane %v6548, 3
    %v7083 = vrot.slane %v7040, 3
    %v7094 = vrot.slane %v6020, 2
    %v7095 = vrot.slane %v6022, 2
    %v7096 = vrot.slane %v6550, 2
    %v7097 = vrot.slane %v6552, 2
    %v7098 = vrot.slane %v7043, 2
    %v7099 = vrot.slane %v6020, 3
    %v7100 = vrot.slane %v6022, 3
    %v7101 = vrot.slane %v6550, 3
    %v7102 = vrot.slane %v6552, 3
    %v7103 = vrot.slane %v7043, 3
    %v7104 = vrot.slane %v6020, 1
    %v7105 = vrot.slane %v6022, 1
    %v7106 = vrot.slane %v6550, 1
    %v7107 = vrot.slane %v6552, 1
    %v7108 = vrot.slane %v7043, 1
    %v7109 = vrot.slane %v7059, 1
    %v7110 = vrot.slane %v7060, 1
    %v7111 = vrot.slane %v7061, 1
    %v7112 = vrot.slane %v7062, 1
    %v7113 = vrot.slane %v7063, 1
    %v7114 = vrot.slane %v7069, 1
    %v7115 = vrot.slane %v7070, 1
    %v7116 = vrot.slane %v7071, 1
    %v7117 = vrot.slane %v7072, 1
    %v7118 = vrot.slane %v7073, 1
    %v7119 = vrot.slane %v7079, 1
    %v7120 = vrot.slane %v7080, 1
    %v7121 = vrot.slane %v7081, 1
    %v7122 = vrot.slane %v7082, 1
    %v7123 = vrot.slane %v7083, 1
    %v7139 = vrot.slane %v7059, 2
    %v7140 = vrot.slane %v7060, 2
    %v7141 = vrot.slane %v7061, 2
    %v7142 = vrot.slane %v7062, 2
    %v7143 = vrot.slane %v7063, 2
    %v7144 = vrot.slane %v7069, 2
    %v7145 = vrot.slane %v7070, 2
    %v7146 = vrot.slane %v7071, 2
    %v7147 = vrot.slane %v7072, 2
    %v7148 = vrot.slane %v7073, 2
    %v7149 = vrot.slane %v7079, 2
    %v7150 = vrot.slane %v7080, 2
    %v7151 = vrot.slane %v7081, 2
    %v7152 = vrot.slane %v7082, 2
    %v7153 = vrot.slane %v7083, 2
    %v7169 = vrot.slane %v7059, 3
    %v7170 = vrot.slane %v7060, 3
    %v7171 = vrot.slane %v7061, 3
    %v7172 = vrot.slane %v7062, 3
    %v7173 = vrot.slane %v7063, 3
    %v7174 = vrot.slane %v7094, 3
    %v7175 = vrot.slane %v7095, 3
    %v7176 = vrot.slane %v7096, 3
    %v7177 = vrot.slane %v7097, 3
    %v7178 = vrot.slane %v7098, 3
    %v7179 = vrot.slane %v7099, 3
    %v7180 = vrot.slane %v7100, 3
    %v7181 = vrot.slane %v7101, 3
    %v7182 = vrot.slane %v7102, 3
    %v7183 = vrot.slane %v7103, 3
    %v7199 = vrot.slane %v6020, 4
    %v7200 = vrot.slane %v6022, 4
    %v7201 = vrot.slane %v6550, 4
    %v7202 = vrot.slane %v6552, 4
    %v7203 = vrot.slane %v7043, 4
    %v7204 = vrot.slane %v7104, 4
    %v7205 = vrot.slane %v7105, 4
    %v7206 = vrot.slane %v7106, 4
    %v7207 = vrot.slane %v7107, 4
    %v7208 = vrot.slane %v7108, 4
    %v7209 = vrot.slane %v7094, 4
    %v7210 = vrot.slane %v7095, 4
    %v7211 = vrot.slane %v7096, 4
    %v7212 = vrot.slane %v7097, 4
    %v7213 = vrot.slane %v7098, 4
    %v7214 = vrot.slane %v7099, 4
    %v7215 = vrot.slane %v7100, 4
    %v7216 = vrot.slane %v7101, 4
    %v7217 = vrot.slane %v7102, 4
    %v7218 = vrot.slane %v7103, 4
    %v7239 = vrot.slane %v6020, 5
    %v7240 = vrot.slane %v6022, 5
    %v7241 = vrot.slane %v6550, 5
    %v7242 = vrot.slane %v6552, 5
    %v7243 = vrot.slane %v7043, 5
    %v7244 = vrot.slane %v7104, 5
    %v7245 = vrot.slane %v7105, 5
    %v7246 = vrot.slane %v7106, 5
    %v7247 = vrot.slane %v7107, 5
    %v7248 = vrot.slane %v7108, 5
    %v7249 = vrot.slane %v7094, 5
    %v7250 = vrot.slane %v7095, 5
    %v7251 = vrot.slane %v7096, 5
    %v7252 = vrot.slane %v7097, 5
    %v7253 = vrot.slane %v7098, 5
    %v7254 = vrot.slane %v7099, 5
    %v7255 = vrot.slane %v7100, 5
    %v7256 = vrot.slane %v7101, 5
    %v7257 = vrot.slane %v7102, 5
    %v7258 = vrot.slane %v7103, 5
    %vm7279 = vcmask 1040384
    %v7280 = vsel %vm7279, %v6016, %v7059
    %v7281 = vsel %vm7279, %v6018, %v7060
    %v7282 = vsel %vm7279, %v6546, %v7061
    %v7283 = vsel %vm7279, %v6548, %v7062
    %v7284 = vsel %vm7279, %v7040, %v7063
    %v7285 = vsel %vm7279, %v7059, %v7109
    %v7286 = vsel %vm7279, %v7060, %v7110
    %v7287 = vsel %vm7279, %v7061, %v7111
    %v7288 = vsel %vm7279, %v7062, %v7112
    %v7289 = vsel %vm7279, %v7063, %v7113
    %v7290 = vsel %vm7279, %v7069, %v7114
    %v7291 = vsel %vm7279, %v7070, %v7115
    %v7292 = vsel %vm7279, %v7071, %v7116
    %v7293 = vsel %vm7279, %v7072, %v7117
    %v7294 = vsel %vm7279, %v7073, %v7118
    %v7295 = vsel %vm7279, %v7079, %v7119
    %v7296 = vsel %vm7279, %v7080, %v7120
    %v7297 = vsel %vm7279, %v7081, %v7121
    %v7298 = vsel %vm7279, %v7082, %v7122
    %v7299 = vsel %vm7279, %v7083, %v7123
    %vm7300 = vcmask 1041408
    %v7301 = vsel %vm7300, %v7280, %v7069
    %v7302 = vsel %vm7300, %v7281, %v7070
    %v7303 = vsel %vm7300, %v7282, %v7071
    %v7304 = vsel %vm7300, %v7283, %v7072
    %v7305 = vsel %vm7300, %v7284, %v7073
    %v7306 = vsel %vm7300, %v7285, %v7139
    %v7307 = vsel %vm7300, %v7286, %v7140
    %v7308 = vsel %vm7300, %v7287, %v7141
    %v7309 = vsel %vm7300, %v7288, %v7142
    %v7310 = vsel %vm7300, %v7289, %v7143
    %v7311 = vsel %vm7300, %v7290, %v7144
    %v7312 = vsel %vm7300, %v7291, %v7145
    %v7313 = vsel %vm7300, %v7292, %v7146
    %v7314 = vsel %vm7300, %v7293, %v7147
    %v7315 = vsel %vm7300, %v7294, %v7148
    %v7316 = vsel %vm7300, %v7295, %v7149
    %v7317 = vsel %vm7300, %v7296, %v7150
    %v7318 = vsel %vm7300, %v7297, %v7151
    %v7319 = vsel %vm7300, %v7298, %v7152
    %v7320 = vsel %vm7300, %v7299, %v7153
    %vm7321 = vcmask 1042432
    %v7322 = vsel %vm7321, %v7301, %v7079
    %v7323 = vsel %vm7321, %v7302, %v7080
    %v7324 = vsel %vm7321, %v7303, %v7081
    %v7325 = vsel %vm7321, %v7304, %v7082
    %v7326 = vsel %vm7321, %v7305, %v7083
    %v7327 = vsel %vm7321, %v7306, %v7169
    %v7328 = vsel %vm7321, %v7307, %v7170
    %v7329 = vsel %vm7321, %v7308, %v7171
    %v7330 = vsel %vm7321, %v7309, %v7172
    %v7331 = vsel %vm7321, %v7310, %v7173
    %v7332 = vsel %vm7321, %v7311, %v7174
    %v7333 = vsel %vm7321, %v7312, %v7175
    %v7334 = vsel %vm7321, %v7313, %v7176
    %v7335 = vsel %vm7321, %v7314, %v7177
    %v7336 = vsel %vm7321, %v7315, %v7178
    %v7337 = vsel %vm7321, %v7316, %v7179
    %v7338 = vsel %vm7321, %v7317, %v7180
    %v7339 = vsel %vm7321, %v7318, %v7181
    %v7340 = vsel %vm7321, %v7319, %v7182
    %v7341 = vsel %vm7321, %v7320, %v7183
    %vm7342 = vcmask 1043456
    %v7343 = vsel %vm7342, %v7322, %v7199
    %v7344 = vsel %vm7342, %v7323, %v7200
    %v7345 = vsel %vm7342, %v7324, %v7201
    %v7346 = vsel %vm7342, %v7325, %v7202
    %v7347 = vsel %vm7342, %v7326, %v7203
    %v7348 = vsel %vm7342, %v7327, %v7204
    %v7349 = vsel %vm7342, %v7328, %v7205
    %v7350 = vsel %vm7342, %v7329, %v7206
    %v7351 = vsel %vm7342, %v7330, %v7207
    %v7352 = vsel %vm7342, %v7331, %v7208
    %v7353 = vsel %vm7342, %v7332, %v7209
    %v7354 = vsel %vm7342, %v7333, %v7210
    %v7355 = vsel %vm7342, %v7334, %v7211
    %v7356 = vsel %vm7342, %v7335, %v7212
    %v7357 = vsel %vm7342, %v7336, %v7213
    %v7358 = vsel %vm7342, %v7337, %v7214
    %v7359 = vsel %vm7342, %v7338, %v7215
    %v7360 = vsel %vm7342, %v7339, %v7216
    %v7361 = vsel %vm7342, %v7340, %v7217
    %v7362 = vsel %vm7342, %v7341, %v7218
    %vm7363 = vcmask 1044480
    %v7364 = vsel %vm7363, %v7343, %v7239
    %v7365 = vsel %vm7363, %v7344, %v7240
    %v7366 = vsel %vm7363, %v7345, %v7241
    %v7367 = vsel %vm7363, %v7346, %v7242
    %v7368 = vsel %vm7363, %v7347, %v7243
    %v7369 = vsel %vm7363, %v7348, %v7244
    %v7370 = vsel %vm7363, %v7349, %v7245
    %v7371 = vsel %vm7363, %v7350, %v7246
    %v7372 = vsel %vm7363, %v7351, %v7247
    %v7373 = vsel %vm7363, %v7352, %v7248
    %v7374 = vsel %vm7363, %v7353, %v7249
    %v7375 = vsel %vm7363, %v7354, %v7250
    %v7376 = vsel %vm7363, %v7355, %v7251
    %v7377 = vsel %vm7363, %v7356, %v7252
    %v7378 = vsel %vm7363, %v7357, %v7253
    %v7379 = vsel %vm7363, %v7358, %v7254
    %v7380 = vsel %vm7363, %v7359, %v7255
    %v7381 = vsel %vm7363, %v7360, %v7256
    %v7382 = vsel %vm7363, %v7361, %v7257
    %v7383 = vsel %vm7363, %v7362, %v7258
    %v7389 = vrot.slane %v6026, 1
    %v7390 = vrot.slane %v6028, 1
    %v7391 = vrot.slane %v6556, 1
    %v7392 = vrot.slane %v6558, 1
    %v7393 = vrot.slane %v7048, 1
    %v7394 = vrot.slane %v6026, 2
    %v7395 = vrot.slane %v6028, 2
    %v7396 = vrot.slane %v6556, 2
    %v7397 = vrot.slane %v6558, 2
    %v7398 = vrot.slane %v7048, 2
    %v7399 = vrot.slane %v6026, 3
    %v7400 = vrot.slane %v6028, 3
    %v7401 = vrot.slane %v6556, 3
    %v7402 = vrot.slane %v6558, 3
    %v7403 = vrot.slane %v7048, 3
    %v7424 = vrot.slane %v6030, 3
    %v7425 = vrot.slane %v6032, 3
    %v7426 = vrot.slane %v6560, 3
    %v7427 = vrot.slane %v6562, 3
    %v7428 = vrot.slane %v7051, 3
    %v7429 = vrot.slane %v6030, 1
    %v7430 = vrot.slane %v6032, 1
    %v7431 = vrot.slane %v6560, 1
    %v7432 = vrot.slane %v6562, 1
    %v7433 = vrot.slane %v7051, 1
    %v7434 = vrot.slane %v6030, 2
    %v7435 = vrot.slane %v6032, 2
    %v7436 = vrot.slane %v6560, 2
    %v7437 = vrot.slane %v6562, 2
    %v7438 = vrot.slane %v7051, 2
    %v7439 = vrot.slane %v6020, 7
    %v7440 = vrot.slane %v6022, 7
    %v7441 = vrot.slane %v6550, 7
    %v7442 = vrot.slane %v6552, 7
    %v7443 = vrot.slane %v7043, 7
    %v7444 = vrot.slane %v7389, 7
    %v7445 = vrot.slane %v7390, 7
    %v7446 = vrot.slane %v7391, 7
    %v7447 = vrot.slane %v7392, 7
    %v7448 = vrot.slane %v7393, 7
    %v7449 = vrot.slane %v7394, 7
    %v7450 = vrot.slane %v7395, 7
    %v7451 = vrot.slane %v7396, 7
    %v7452 = vrot.slane %v7397, 7
    %v7453 = vrot.slane %v7398, 7
    %v7454 = vrot.slane %v7399, 7
    %v7455 = vrot.slane %v7400, 7
    %v7456 = vrot.slane %v7401, 7
    %v7457 = vrot.slane %v7402, 7
    %v7458 = vrot.slane %v7403, 7
    %v7479 = vrot.slane %v7389, 1
    %v7480 = vrot.slane %v7390, 1
    %v7481 = vrot.slane %v7391, 1
    %v7482 = vrot.slane %v7392, 1
    %v7483 = vrot.slane %v7393, 1
    %v7484 = vrot.slane %v7394, 1
    %v7485 = vrot.slane %v7395, 1
    %v7486 = vrot.slane %v7396, 1
    %v7487 = vrot.slane %v7397, 1
    %v7488 = vrot.slane %v7398, 1
    %v7489 = vrot.slane %v7399, 1
    %v7490 = vrot.slane %v7400, 1
    %v7491 = vrot.slane %v7401, 1
    %v7492 = vrot.slane %v7402, 1
    %v7493 = vrot.slane %v7403, 1
    %v7509 = vrot.slane %v7389, 2
    %v7510 = vrot.slane %v7390, 2
    %v7511 = vrot.slane %v7391, 2
    %v7512 = vrot.slane %v7392, 2
    %v7513 = vrot.slane %v7393, 2
    %v7514 = vrot.slane %v7394, 2
    %v7515 = vrot.slane %v7395, 2
    %v7516 = vrot.slane %v7396, 2
    %v7517 = vrot.slane %v7397, 2
    %v7518 = vrot.slane %v7398, 2
    %v7519 = vrot.slane %v7424, 2
    %v7520 = vrot.slane %v7425, 2
    %v7521 = vrot.slane %v7426, 2
    %v7522 = vrot.slane %v7427, 2
    %v7523 = vrot.slane %v7428, 2
    %v7539 = vrot.slane %v7429, 3
    %v7540 = vrot.slane %v7430, 3
    %v7541 = vrot.slane %v7431, 3
    %v7542 = vrot.slane %v7432, 3
    %v7543 = vrot.slane %v7433, 3
    %v7544 = vrot.slane %v7434, 3
    %v7545 = vrot.slane %v7435, 3
    %v7546 = vrot.slane %v7436, 3
    %v7547 = vrot.slane %v7437, 3
    %v7548 = vrot.slane %v7438, 3
    %v7549 = vrot.slane %v7424, 3
    %v7550 = vrot.slane %v7425, 3
    %v7551 = vrot.slane %v7426, 3
    %v7552 = vrot.slane %v7427, 3
    %v7553 = vrot.slane %v7428, 3
    %v7569 = vrot.slane %v6030, 4
    %v7570 = vrot.slane %v6032, 4
    %v7571 = vrot.slane %v6560, 4
    %v7572 = vrot.slane %v6562, 4
    %v7573 = vrot.slane %v7051, 4
    %v7574 = vrot.slane %v7429, 4
    %v7575 = vrot.slane %v7430, 4
    %v7576 = vrot.slane %v7431, 4
    %v7577 = vrot.slane %v7432, 4
    %v7578 = vrot.slane %v7433, 4
    %v7579 = vrot.slane %v7434, 4
    %v7580 = vrot.slane %v7435, 4
    %v7581 = vrot.slane %v7436, 4
    %v7582 = vrot.slane %v7437, 4
    %v7583 = vrot.slane %v7438, 4
    %v7584 = vrot.slane %v7424, 4
    %v7585 = vrot.slane %v7425, 4
    %v7586 = vrot.slane %v7426, 4
    %v7587 = vrot.slane %v7427, 4
    %v7588 = vrot.slane %v7428, 4
    %v7609 = vsel %vm7279, %v7439, %v6026
    %v7610 = vsel %vm7279, %v7440, %v6028
    %v7611 = vsel %vm7279, %v7441, %v6556
    %v7612 = vsel %vm7279, %v7442, %v6558
    %v7613 = vsel %vm7279, %v7443, %v7048
    %v7614 = vsel %vm7279, %v7444, %v7389
    %v7615 = vsel %vm7279, %v7445, %v7390
    %v7616 = vsel %vm7279, %v7446, %v7391
    %v7617 = vsel %vm7279, %v7447, %v7392
    %v7618 = vsel %vm7279, %v7448, %v7393
    %v7619 = vsel %vm7279, %v7449, %v7394
    %v7620 = vsel %vm7279, %v7450, %v7395
    %v7621 = vsel %vm7279, %v7451, %v7396
    %v7622 = vsel %vm7279, %v7452, %v7397
    %v7623 = vsel %vm7279, %v7453, %v7398
    %v7624 = vsel %vm7279, %v7454, %v7399
    %v7625 = vsel %vm7279, %v7455, %v7400
    %v7626 = vsel %vm7279, %v7456, %v7401
    %v7627 = vsel %vm7279, %v7457, %v7402
    %v7628 = vsel %vm7279, %v7458, %v7403
    %v7629 = vsel %vm7300, %v7609, %v7389
    %v7630 = vsel %vm7300, %v7610, %v7390
    %v7631 = vsel %vm7300, %v7611, %v7391
    %v7632 = vsel %vm7300, %v7612, %v7392
    %v7633 = vsel %vm7300, %v7613, %v7393
    %v7634 = vsel %vm7300, %v7614, %v7479
    %v7635 = vsel %vm7300, %v7615, %v7480
    %v7636 = vsel %vm7300, %v7616, %v7481
    %v7637 = vsel %vm7300, %v7617, %v7482
    %v7638 = vsel %vm7300, %v7618, %v7483
    %v7639 = vsel %vm7300, %v7619, %v7484
    %v7640 = vsel %vm7300, %v7620, %v7485
    %v7641 = vsel %vm7300, %v7621, %v7486
    %v7642 = vsel %vm7300, %v7622, %v7487
    %v7643 = vsel %vm7300, %v7623, %v7488
    %v7644 = vsel %vm7300, %v7624, %v7489
    %v7645 = vsel %vm7300, %v7625, %v7490
    %v7646 = vsel %vm7300, %v7626, %v7491
    %v7647 = vsel %vm7300, %v7627, %v7492
    %v7648 = vsel %vm7300, %v7628, %v7493
    %v7649 = vsel %vm7321, %v7629, %v7394
    %v7650 = vsel %vm7321, %v7630, %v7395
    %v7651 = vsel %vm7321, %v7631, %v7396
    %v7652 = vsel %vm7321, %v7632, %v7397
    %v7653 = vsel %vm7321, %v7633, %v7398
    %v7654 = vsel %vm7321, %v7634, %v7509
    %v7655 = vsel %vm7321, %v7635, %v7510
    %v7656 = vsel %vm7321, %v7636, %v7511
    %v7657 = vsel %vm7321, %v7637, %v7512
    %v7658 = vsel %vm7321, %v7638, %v7513
    %v7659 = vsel %vm7321, %v7639, %v7514
    %v7660 = vsel %vm7321, %v7640, %v7515
    %v7661 = vsel %vm7321, %v7641, %v7516
    %v7662 = vsel %vm7321, %v7642, %v7517
    %v7663 = vsel %vm7321, %v7643, %v7518
    %v7664 = vsel %vm7321, %v7644, %v7519
    %v7665 = vsel %vm7321, %v7645, %v7520
    %v7666 = vsel %vm7321, %v7646, %v7521
    %v7667 = vsel %vm7321, %v7647, %v7522
    %v7668 = vsel %vm7321, %v7648, %v7523
    %v7669 = vsel %vm7342, %v7649, %v7399
    %v7670 = vsel %vm7342, %v7650, %v7400
    %v7671 = vsel %vm7342, %v7651, %v7401
    %v7672 = vsel %vm7342, %v7652, %v7402
    %v7673 = vsel %vm7342, %v7653, %v7403
    %v7674 = vsel %vm7342, %v7654, %v7539
    %v7675 = vsel %vm7342, %v7655, %v7540
    %v7676 = vsel %vm7342, %v7656, %v7541
    %v7677 = vsel %vm7342, %v7657, %v7542
    %v7678 = vsel %vm7342, %v7658, %v7543
    %v7679 = vsel %vm7342, %v7659, %v7544
    %v7680 = vsel %vm7342, %v7660, %v7545
    %v7681 = vsel %vm7342, %v7661, %v7546
    %v7682 = vsel %vm7342, %v7662, %v7547
    %v7683 = vsel %vm7342, %v7663, %v7548
    %v7684 = vsel %vm7342, %v7664, %v7549
    %v7685 = vsel %vm7342, %v7665, %v7550
    %v7686 = vsel %vm7342, %v7666, %v7551
    %v7687 = vsel %vm7342, %v7667, %v7552
    %v7688 = vsel %vm7342, %v7668, %v7553
    %v7689 = vsel %vm7363, %v7669, %v7569
    %v7690 = vsel %vm7363, %v7670, %v7570
    %v7691 = vsel %vm7363, %v7671, %v7571
    %v7692 = vsel %vm7363, %v7672, %v7572
    %v7693 = vsel %vm7363, %v7673, %v7573
    %v7694 = vsel %vm7363, %v7674, %v7574
    %v7695 = vsel %vm7363, %v7675, %v7575
    %v7696 = vsel %vm7363, %v7676, %v7576
    %v7697 = vsel %vm7363, %v7677, %v7577
    %v7698 = vsel %vm7363, %v7678, %v7578
    %v7699 = vsel %vm7363, %v7679, %v7579
    %v7700 = vsel %vm7363, %v7680, %v7580
    %v7701 = vsel %vm7363, %v7681, %v7581
    %v7702 = vsel %vm7363, %v7682, %v7582
    %v7703 = vsel %vm7363, %v7683, %v7583
    %v7704 = vsel %vm7363, %v7684, %v7584
    %v7705 = vsel %vm7363, %v7685, %v7585
    %v7706 = vsel %vm7363, %v7686, %v7586
    %v7707 = vsel %vm7363, %v7687, %v7587
    %v7708 = vsel %vm7363, %v7688, %v7588
    %v7729 = vrot.slane %v7689, 2
    %v7730 = vrot.slane %v7690, 2
    %v7731 = vrot.slane %v7691, 2
    %v7732 = vrot.slane %v7692, 2
    %v7733 = vrot.slane %v7693, 2
    %v7734 = vrot.slane %v7694, 2
    %v7735 = vrot.slane %v7695, 2
    %v7736 = vrot.slane %v7696, 2
    %v7737 = vrot.slane %v7697, 2
    %v7738 = vrot.slane %v7698, 2
    %v7739 = vrot.slane %v7699, 2
    %v7740 = vrot.slane %v7700, 2
    %v7741 = vrot.slane %v7701, 2
    %v7742 = vrot.slane %v7702, 2
    %v7743 = vrot.slane %v7703, 2
    %v7744 = vrot.slane %v7704, 2
    %v7745 = vrot.slane %v7705, 2
    %v7746 = vrot.slane %v7706, 2
    %v7747 = vrot.slane %v7707, 2
    %v7748 = vrot.slane %v7708, 2
    %vm7769 = vcmask 1045504
    %v7770 = vsel %vm7769, %v7364, %v7729
    %v7771 = vsel %vm7769, %v7365, %v7730
    %v7772 = vsel %vm7769, %v7366, %v7731
    %v7773 = vsel %vm7769, %v7367, %v7732
    %v7774 = vsel %vm7769, %v7368, %v7733
    %v7775 = vsel %vm7769, %v7369, %v7734
    %v7776 = vsel %vm7769, %v7370, %v7735
    %v7777 = vsel %vm7769, %v7371, %v7736
    %v7778 = vsel %vm7769, %v7372, %v7737
    %v7779 = vsel %vm7769, %v7373, %v7738
    %v7780 = vsel %vm7769, %v7374, %v7739
    %v7781 = vsel %vm7769, %v7375, %v7740
    %v7782 = vsel %vm7769, %v7376, %v7741
    %v7783 = vsel %vm7769, %v7377, %v7742
    %v7784 = vsel %vm7769, %v7378, %v7743
    %v7785 = vsel %vm7769, %v7379, %v7744
    %v7786 = vsel %vm7769, %v7380, %v7745
    %v7787 = vsel %vm7769, %v7381, %v7746
    %v7788 = vsel %vm7769, %v7382, %v7747
    %v7789 = vsel %vm7769, %v7383, %v7748
    %v7790 = vld [vmem:[%s3] sm:$0xff]
    %v7791 = vld [vmem:[%s3 + $0x8] sm:$0xff]
    %v7792 = vld [vmem:[%s3 + $0x10] sm:$0xff]
    %v7793 = vld [vmem:[%s3 + $0x18] sm:$0xff]
    %v7794 = vld [vmem:[%s3 + $0x20] sm:$0xff]
    %v7795 = vld [vmem:[%s3 + $0x28] sm:$0xff]
    %v7796 = vld [vmem:[%s3 + $0x30] sm:$0xff]
    %v7797 = vld [vmem:[%s3 + $0x38] sm:$0xff]
    %v7798 = vld [vmem:[%s3 + $0x40] sm:$0xff]
    %v7799 = vld [vmem:[%s3 + $0x48] sm:$0xff]
    %v7800 = vld [vmem:[%s3 + $0x50] sm:$0xff]
    %v7801 = vld [vmem:[%s3 + $0x58] sm:$0xff]
    %v7802 = vld [vmem:[%s3 + $0x60] sm:$0xff]
    %v7803 = vld [vmem:[%s3 + $0x68] sm:$0xff]
    %v7804 = vld [vmem:[%s3 + $0x70] sm:$0xff]
    %v7805 = vld [vmem:[%s3 + $0x78] sm:$0xff]
    %v7806 = vld [vmem:[%s3 + $0x80] sm:$0xff]
    %v7807 = vld [vmem:[%s3 + $0x88] sm:$0xff]
    %v7808 = vld [vmem:[%s3 + $0x90] sm:$0xff]
    %v7809 = vld [vmem:[%s3 + $0x98] sm:$0xff]
    %v7810 = vld [vmem:[%s3 + $0xa0] sm:$0xff]
    %v7811 = vld [vmem:[%s3 + $0xa8] sm:$0xff]
    %v7812 = vld [vmem:[%s3 + $0xb0] sm:$0xff]
    %v7813 = vld [vmem:[%s3 + $0xb8] sm:$0xff]
    %v7814 = vld [vmem:[%s3 + $0xc0] sm:$0xff]
    %v7815 = vld [vmem:[%s3 + $0xc8] sm:$0xff]
    %v7816 = vld [vmem:[%s3 + $0xd0] sm:$0xff]
    %v7817 = vld [vmem:[%s3 + $0xd8] sm:$0xff]
    %v7818 = vld [vmem:[%s3 + $0xe0] sm:$0xff]
    %v7819 = vld [vmem:[%s3 + $0xe8] sm:$0xff]
    %v7820 = vld [vmem:[%s3 + $0xf0] sm:$0xff]
    %v7821 = vld [vmem:[%s3 + $0xf8] sm:$0xff]
    %v7822 = vld [vmem:[%s3 + $0x100] sm:$0xff]
    %v7823 = vld [vmem:[%s3 + $0x108] sm:$0xff]
    %v7824 = vld [vmem:[%s3 + $0x110] sm:$0xff]
    %v7825 = vld [vmem:[%s3 + $0x118] sm:$0xff]
    %v7826 = vld [vmem:[%s3 + $0x120] sm:$0xff]
    %v7827 = vld [vmem:[%s3 + $0x128] sm:$0xff]
    %v7828 = vld [vmem:[%s3 + $0x130] sm:$0xff]
    %v7829 = vld [vmem:[%s3 + $0x138] sm:$0xff]
    %v7830 = vld [vmem:[%s3 + $0x140] sm:$0xff]
    %v7831 = vld [vmem:[%s3 + $0x148] sm:$0xff]
    %v7832 = vld [vmem:[%s3 + $0x150] sm:$0xff]
    %v7833 = vld [vmem:[%s3 + $0x158] sm:$0xff]
    %v7834 = vld [vmem:[%s3 + $0x160] sm:$0xff]
    %v7835 = vld [vmem:[%s3 + $0x168] sm:$0xff]
    %v7836 = vld [vmem:[%s3 + $0x170] sm:$0xff]
    %v7837 = vld [vmem:[%s3 + $0x178] sm:$0xff]
    %v7838 = vld [vmem:[%s3 + $0x180] sm:$0xff]
    %v7839 = vld [vmem:[%s3 + $0x188] sm:$0xff]
    %v7840 = vld [vmem:[%s3 + $0x190] sm:$0xff]
    %v7841 = vld [vmem:[%s3 + $0x198] sm:$0xff]
    %v7842 = vld [vmem:[%s3 + $0x1a0] sm:$0xff]
    %v7843 = vld [vmem:[%s3 + $0x1a8] sm:$0xff]
    %v7844 = vld [vmem:[%s3 + $0x1b0] sm:$0xff]
    %v7845 = vld [vmem:[%s3 + $0x1b8] sm:$0xff]
    %v7846 = vld [vmem:[%s3 + $0x1c0] sm:$0xff]
    %v7847 = vld [vmem:[%s3 + $0x1c8] sm:$0xff]
    %v7848 = vld [vmem:[%s3 + $0x1d0] sm:$0xff]
    %v7849 = vld [vmem:[%s3 + $0x1d8] sm:$0xff]
    %v7850 = vld [vmem:[%s3 + $0x1e0] sm:$0xff]
    %v7851 = vld [vmem:[%s3 + $0x1e8] sm:$0xff]
    %v7852 = vld [vmem:[%s3 + $0x1f0] sm:$0xff]
    %v7853 = vld [vmem:[%s3 + $0x1f8] sm:$0xff]
    %v7854 = vld [vmem:[%s3 + $0x200] sm:$0xff]
    %v7855 = vld [vmem:[%s3 + $0x208] sm:$0xff]
    %v7856 = vld [vmem:[%s3 + $0x210] sm:$0xff]
    %v7857 = vld [vmem:[%s3 + $0x218] sm:$0xff]
    %v7858 = vld [vmem:[%s3 + $0x220] sm:$0xff]
    %v7859 = vld [vmem:[%s3 + $0x228] sm:$0xff]
    %v7860 = vld [vmem:[%s3 + $0x230] sm:$0xff]
    %v7861 = vld [vmem:[%s3 + $0x238] sm:$0xff]
    %v7862 = vld [vmem:[%s3 + $0x240] sm:$0xff]
    %v7863 = vld [vmem:[%s3 + $0x248] sm:$0xff]
    %v7864 = vld [vmem:[%s3 + $0x250] sm:$0xff]
    %v7865 = vld [vmem:[%s3 + $0x258] sm:$0xff]
    %v7866 = vld [vmem:[%s3 + $0x260] sm:$0xff]
    %v7867 = vld [vmem:[%s3 + $0x268] sm:$0xff]
    %v7868 = vld [vmem:[%s3 + $0x270] sm:$0xff]
    %v7869 = vld [vmem:[%s3 + $0x278] sm:$0xff]
    %v7870 = vld [vmem:[%s3 + $0x280] sm:$0xff]
    %v7871 = vld [vmem:[%s3 + $0x288] sm:$0xff]
    %v7872 = vld [vmem:[%s3 + $0x290] sm:$0xff]
    %v7873 = vld [vmem:[%s3 + $0x298] sm:$0xff]
    %v7874 = vld [vmem:[%s3 + $0x2a0] sm:$0xff]
    %v7875 = vld [vmem:[%s3 + $0x2a8] sm:$0xff]
    %v7876 = vld [vmem:[%s3 + $0x2b0] sm:$0xff]
    %v7877 = vld [vmem:[%s3 + $0x2b8] sm:$0xff]
    %v7878 = vld [vmem:[%s3 + $0x2c0] sm:$0xff]
    %v7879 = vld [vmem:[%s3 + $0x2c8] sm:$0xff]
    %v7880 = vld [vmem:[%s3 + $0x2d0] sm:$0xff]
    %v7881 = vld [vmem:[%s3 + $0x2d8] sm:$0xff]
    %v7882 = vld [vmem:[%s3 + $0x2e0] sm:$0xff]
    %v7883 = vld [vmem:[%s3 + $0x2e8] sm:$0xff]
    %v7884 = vld [vmem:[%s3 + $0x2f0] sm:$0xff]
    %v7885 = vld [vmem:[%s3 + $0x2f8] sm:$0xff]
    %v7886 = vld [vmem:[%s3 + $0x300] sm:$0xff]
    %v7887 = vld [vmem:[%s3 + $0x308] sm:$0xff]
    %v7888 = vld [vmem:[%s3 + $0x310] sm:$0xff]
    %v7889 = vld [vmem:[%s3 + $0x318] sm:$0xff]
    %v7890 = vld [vmem:[%s3 + $0x320] sm:$0xff]
    %v7891 = vld [vmem:[%s3 + $0x328] sm:$0xff]
    %v7892 = vld [vmem:[%s3 + $0x330] sm:$0xff]
    %v7893 = vld [vmem:[%s3 + $0x338] sm:$0xff]
    %v7894 = vld [vmem:[%s3 + $0x340] sm:$0xff]
    %v7895 = vld [vmem:[%s3 + $0x348] sm:$0xff]
    %v7896 = vld [vmem:[%s3 + $0x350] sm:$0xff]
    %v7897 = vld [vmem:[%s3 + $0x358] sm:$0xff]
    %v7898 = vld [vmem:[%s3 + $0x360] sm:$0xff]
    %v7899 = vld [vmem:[%s3 + $0x368] sm:$0xff]
    %v7900 = vld [vmem:[%s3 + $0x370] sm:$0xff]
    %v7901 = vld [vmem:[%s3 + $0x378] sm:$0xff]
    %v7902 = vld [vmem:[%s3 + $0x380] sm:$0xff]
    %v7903 = vld [vmem:[%s3 + $0x388] sm:$0xff]
    %v7904 = vld [vmem:[%s3 + $0x390] sm:$0xff]
    %v7905 = vld [vmem:[%s3 + $0x398] sm:$0xff]
    %v7906 = vld [vmem:[%s3 + $0x3a0] sm:$0xff]
    %v7907 = vld [vmem:[%s3 + $0x3a8] sm:$0xff]
    %v7908 = vld [vmem:[%s3 + $0x3b0] sm:$0xff]
    %v7909 = vld [vmem:[%s3 + $0x3b8] sm:$0xff]
    %v7910 = vld [vmem:[%s3 + $0x3c0] sm:$0xff]
    %v7911 = vld [vmem:[%s3 + $0x3c8] sm:$0xff]
    %v7912 = vld [vmem:[%s3 + $0x3d0] sm:$0xff]
    %v7913 = vld [vmem:[%s3 + $0x3d8] sm:$0xff]
    %v7914 = vld [vmem:[%s3 + $0x3e0] sm:$0xff]
    %v7915 = vld [vmem:[%s3 + $0x3e8] sm:$0xff]
    %v7916 = vld [vmem:[%s3 + $0x3f0] sm:$0xff]
    %v7917 = vld [vmem:[%s3 + $0x3f8] sm:$0xff]
    %v7918 = vld [vmem:[%s3 + $0x400] sm:$0xff]
    %v7919 = vld [vmem:[%s3 + $0x408] sm:$0xff]
    %v7920 = vld [vmem:[%s3 + $0x410] sm:$0xff]
    %v7921 = vld [vmem:[%s3 + $0x418] sm:$0xff]
    %v7922 = vld [vmem:[%s3 + $0x420] sm:$0xff]
    %v7923 = vld [vmem:[%s3 + $0x428] sm:$0xff]
    %v7924 = vld [vmem:[%s3 + $0x430] sm:$0xff]
    %v7925 = vld [vmem:[%s3 + $0x438] sm:$0xff]
    %v7926 = vld [vmem:[%s3 + $0x440] sm:$0xff]
    %v7927 = vld [vmem:[%s3 + $0x448] sm:$0xff]
    %v7928 = vld [vmem:[%s3 + $0x450] sm:$0xff]
    %v7929 = vld [vmem:[%s3 + $0x458] sm:$0xff]
    %v7930 = vld [vmem:[%s3 + $0x460] sm:$0xff]
    %v7931 = vld [vmem:[%s3 + $0x468] sm:$0xff]
    %v7932 = vld [vmem:[%s3 + $0x470] sm:$0xff]
    %v7933 = vld [vmem:[%s3 + $0x478] sm:$0xff]
    %v7934 = vld [vmem:[%s3 + $0x480] sm:$0xff]
    %v7935 = vld [vmem:[%s3 + $0x488] sm:$0xff]
    %v7936 = vld [vmem:[%s3 + $0x490] sm:$0xff]
    %v7937 = vld [vmem:[%s3 + $0x498] sm:$0xff]
    %v7938 = vld [vmem:[%s3 + $0x4a0] sm:$0xff]
    %v7939 = vld [vmem:[%s3 + $0x4a8] sm:$0xff]
    %v7940 = vld [vmem:[%s3 + $0x4b0] sm:$0xff]
    %v7941 = vld [vmem:[%s3 + $0x4b8] sm:$0xff]
    %v7942 = vld [vmem:[%s3 + $0x4c0] sm:$0xff]
    %v7943 = vld [vmem:[%s3 + $0x4c8] sm:$0xff]
    %v7944 = vld [vmem:[%s3 + $0x4d0] sm:$0xff]
    %v7945 = vld [vmem:[%s3 + $0x4d8] sm:$0xff]
    %v7946 = vld [vmem:[%s3 + $0x4e0] sm:$0xff]
    %v7947 = vld [vmem:[%s3 + $0x4e8] sm:$0xff]
    %v7948 = vld [vmem:[%s3 + $0x4f0] sm:$0xff]
    %v7949 = vld [vmem:[%s3 + $0x4f8] sm:$0xff]
    %v7950 = vld [vmem:[%s3 + $0x500] sm:$0xff]
    %v7951 = vld [vmem:[%s3 + $0x508] sm:$0xff]
    %v7952 = vld [vmem:[%s3 + $0x510] sm:$0xff]
    %v7953 = vld [vmem:[%s3 + $0x518] sm:$0xff]
    %v7954 = vld [vmem:[%s3 + $0x520] sm:$0xff]
    %v7955 = vld [vmem:[%s3 + $0x528] sm:$0xff]
    %v7956 = vld [vmem:[%s3 + $0x530] sm:$0xff]
    %v7957 = vld [vmem:[%s3 + $0x538] sm:$0xff]
    %v7958 = vld [vmem:[%s3 + $0x540] sm:$0xff]
    %v7959 = vld [vmem:[%s3 + $0x548] sm:$0xff]
    %v7960 = vld [vmem:[%s3 + $0x550] sm:$0xff]
    %v7961 = vld [vmem:[%s3 + $0x558] sm:$0xff]
    %v7962 = vld [vmem:[%s3 + $0x560] sm:$0xff]
    %v7963 = vld [vmem:[%s3 + $0x568] sm:$0xff]
    %v7964 = vld [vmem:[%s3 + $0x570] sm:$0xff]
    %v7965 = vld [vmem:[%s3 + $0x578] sm:$0xff]
    %v7966 = vld [vmem:[%s3 + $0x580] sm:$0xff]
    %v7967 = vld [vmem:[%s3 + $0x588] sm:$0xff]
    %v7968 = vld [vmem:[%s3 + $0x590] sm:$0xff]
    %v7969 = vld [vmem:[%s3 + $0x598] sm:$0xff]
    %v7970 = vld [vmem:[%s3 + $0x5a0] sm:$0xff]
    %v7971 = vld [vmem:[%s3 + $0x5a8] sm:$0xff]
    %v7972 = vld [vmem:[%s3 + $0x5b0] sm:$0xff]
    %v7973 = vld [vmem:[%s3 + $0x5b8] sm:$0xff]
    %v7974 = vld [vmem:[%s3 + $0x5c0] sm:$0xff]
    %v7975 = vld [vmem:[%s3 + $0x5c8] sm:$0xff]
    %v7976 = vld [vmem:[%s3 + $0x5d0] sm:$0xff]
    %v7977 = vld [vmem:[%s3 + $0x5d8] sm:$0xff]
    %v7978 = vld [vmem:[%s3 + $0x5e0] sm:$0xff]
    %v7979 = vld [vmem:[%s3 + $0x5e8] sm:$0xff]
    %v7980 = vld [vmem:[%s3 + $0x5f0] sm:$0xff]
    %v7981 = vld [vmem:[%s3 + $0x5f8] sm:$0xff]
    %v7982 = vld [vmem:[%s3 + $0x600] sm:$0xff]
    %v7983 = vld [vmem:[%s3 + $0x608] sm:$0xff]
    %v7984 = vld [vmem:[%s3 + $0x610] sm:$0xff]
    %v7985 = vld [vmem:[%s3 + $0x618] sm:$0xff]
    %v7986 = vld [vmem:[%s3 + $0x620] sm:$0xff]
    %v7987 = vld [vmem:[%s3 + $0x628] sm:$0xff]
    %v7988 = vld [vmem:[%s3 + $0x630] sm:$0xff]
    %v7989 = vld [vmem:[%s3 + $0x638] sm:$0xff]
    %v7990 = vld [vmem:[%s3 + $0x640] sm:$0xff]
    %v7991 = vld [vmem:[%s3 + $0x648] sm:$0xff]
    %v7992 = vld [vmem:[%s3 + $0x650] sm:$0xff]
    %v7993 = vld [vmem:[%s3 + $0x658] sm:$0xff]
    %v7994 = vld [vmem:[%s3 + $0x660] sm:$0xff]
    %v7995 = vld [vmem:[%s3 + $0x668] sm:$0xff]
    %v7996 = vld [vmem:[%s3 + $0x670] sm:$0xff]
    %v7997 = vld [vmem:[%s3 + $0x678] sm:$0xff]
    %v7998 = vld [vmem:[%s3 + $0x680] sm:$0xff]
    %v7999 = vld [vmem:[%s3 + $0x688] sm:$0xff]
    %v8000 = vld [vmem:[%s3 + $0x690] sm:$0xff]
    %v8001 = vld [vmem:[%s3 + $0x698] sm:$0xff]
    %v8002 = vld [vmem:[%s3 + $0x6a0] sm:$0xff]
    %v8003 = vld [vmem:[%s3 + $0x6a8] sm:$0xff]
    %v8004 = vld [vmem:[%s3 + $0x6b0] sm:$0xff]
    %v8005 = vld [vmem:[%s3 + $0x6b8] sm:$0xff]
    %v8006 = vld [vmem:[%s3 + $0x6c0] sm:$0xff]
    %v8007 = vld [vmem:[%s3 + $0x6c8] sm:$0xff]
    %v8008 = vld [vmem:[%s3 + $0x6d0] sm:$0xff]
    %v8009 = vld [vmem:[%s3 + $0x6d8] sm:$0xff]
    %v8010 = vld [vmem:[%s3 + $0x6e0] sm:$0xff]
    %v8011 = vld [vmem:[%s3 + $0x6e8] sm:$0xff]
    %v8012 = vld [vmem:[%s3 + $0x6f0] sm:$0xff]
    %v8013 = vld [vmem:[%s3 + $0x6f8] sm:$0xff]
    %v8014 = vld [vmem:[%s3 + $0x700] sm:$0xff]
    %v8015 = vld [vmem:[%s3 + $0x708] sm:$0xff]
    %v8016 = vld [vmem:[%s3 + $0x710] sm:$0xff]
    %v8017 = vld [vmem:[%s3 + $0x718] sm:$0xff]
    %v8018 = vld [vmem:[%s3 + $0x720] sm:$0xff]
    %v8019 = vld [vmem:[%s3 + $0x728] sm:$0xff]
    %v8020 = vld [vmem:[%s3 + $0x730] sm:$0xff]
    %v8021 = vld [vmem:[%s3 + $0x738] sm:$0xff]
    %v8022 = vld [vmem:[%s3 + $0x740] sm:$0xff]
    %v8023 = vld [vmem:[%s3 + $0x748] sm:$0xff]
    %v8024 = vld [vmem:[%s3 + $0x750] sm:$0xff]
    %v8025 = vld [vmem:[%s3 + $0x758] sm:$0xff]
    %v8026 = vld [vmem:[%s3 + $0x760] sm:$0xff]
    %v8027 = vld [vmem:[%s3 + $0x768] sm:$0xff]
    %v8028 = vld [vmem:[%s3 + $0x770] sm:$0xff]
    %v8029 = vld [vmem:[%s3 + $0x778] sm:$0xff]
    %v8030 = vld [vmem:[%s3 + $0x780] sm:$0xff]
    %v8031 = vld [vmem:[%s3 + $0x788] sm:$0xff]
    %v8032 = vld [vmem:[%s3 + $0x790] sm:$0xff]
    %v8033 = vld [vmem:[%s3 + $0x798] sm:$0xff]
    %v8034 = vld [vmem:[%s3 + $0x7a0] sm:$0xff]
    %v8035 = vld [vmem:[%s3 + $0x7a8] sm:$0xff]
    %v8036 = vld [vmem:[%s3 + $0x7b0] sm:$0xff]
    %v8037 = vld [vmem:[%s3 + $0x7b8] sm:$0xff]
    %v8038 = vld [vmem:[%s3 + $0x7c0] sm:$0xff]
    %v8039 = vld [vmem:[%s3 + $0x7c8] sm:$0xff]
    %v8040 = vld [vmem:[%s3 + $0x7d0] sm:$0xff]
    %v8041 = vld [vmem:[%s3 + $0x7d8] sm:$0xff]
    %v8042 = vld [vmem:[%s3 + $0x7e0] sm:$0xff]
    %v8043 = vld [vmem:[%s3 + $0x7e8] sm:$0xff]
    %v8044 = vld [vmem:[%s3 + $0x7f0] sm:$0xff]
    %v8045 = vld [vmem:[%s3 + $0x7f8] sm:$0xff]
    %v8046 = vld [vmem:[%s3 + $0x800] sm:$0xff]
    %v8047 = vld [vmem:[%s3 + $0x808] sm:$0xff]
    %v8048 = vld [vmem:[%s3 + $0x810] sm:$0xff]
    %v8049 = vld [vmem:[%s3 + $0x818] sm:$0xff]
    %v8050 = vld [vmem:[%s3 + $0x820] sm:$0xff]
    %v8051 = vld [vmem:[%s3 + $0x828] sm:$0xff]
    %v8052 = vld [vmem:[%s3 + $0x830] sm:$0xff]
    %v8053 = vld [vmem:[%s3 + $0x838] sm:$0xff]
    %v8054 = vld [vmem:[%s3 + $0x840] sm:$0xff]
    %v8055 = vld [vmem:[%s3 + $0x848] sm:$0xff]
    %v8056 = vld [vmem:[%s3 + $0x850] sm:$0xff]
    %v8057 = vld [vmem:[%s3 + $0x858] sm:$0xff]
    %v8058 = vld [vmem:[%s3 + $0x860] sm:$0xff]
    %v8059 = vld [vmem:[%s3 + $0x868] sm:$0xff]
    %v8060 = vld [vmem:[%s3 + $0x870] sm:$0xff]
    %v8061 = vld [vmem:[%s3 + $0x878] sm:$0xff]
    %v8062 = vld [vmem:[%s3 + $0x880] sm:$0xff]
    %v8063 = vld [vmem:[%s3 + $0x888] sm:$0xff]
    %v8064 = vld [vmem:[%s3 + $0x890] sm:$0xff]
    %v8065 = vld [vmem:[%s3 + $0x898] sm:$0xff]
    %v8066 = vld [vmem:[%s3 + $0x8a0] sm:$0xff]
    %v8067 = vld [vmem:[%s3 + $0x8a8] sm:$0xff]
    %v8068 = vld [vmem:[%s3 + $0x8b0] sm:$0xff]
    %v8069 = vld [vmem:[%s3 + $0x8b8] sm:$0xff]
    %v8070 = vld [vmem:[%s3 + $0x8c0] sm:$0xff]
    %v8071 = vld [vmem:[%s3 + $0x8c8] sm:$0xff]
    %v8072 = vld [vmem:[%s3 + $0x8d0] sm:$0xff]
    %v8073 = vld [vmem:[%s3 + $0x8d8] sm:$0xff]
    %v8074 = vld [vmem:[%s3 + $0x8e0] sm:$0xff]
    %v8075 = vld [vmem:[%s3 + $0x8e8] sm:$0xff]
    %v8076 = vld [vmem:[%s3 + $0x8f0] sm:$0xff]
    %v8077 = vld [vmem:[%s3 + $0x8f8] sm:$0xff]
    %v8078 = vld [vmem:[%s3 + $0x900] sm:$0xff]
    %v8079 = vld [vmem:[%s3 + $0x908] sm:$0xff]
    %v8080 = vld [vmem:[%s3 + $0x910] sm:$0xff]
    %v8081 = vld [vmem:[%s3 + $0x918] sm:$0xff]
    %v8082 = vld [vmem:[%s3 + $0x920] sm:$0xff]
    %v8083 = vld [vmem:[%s3 + $0x928] sm:$0xff]
    %v8084 = vld [vmem:[%s3 + $0x930] sm:$0xff]
    %v8085 = vld [vmem:[%s3 + $0x938] sm:$0xff]
    %v8086 = vld [vmem:[%s3 + $0x940] sm:$0xff]
    %v8087 = vld [vmem:[%s3 + $0x948] sm:$0xff]
    %v8088 = vld [vmem:[%s3 + $0x950] sm:$0xff]
    %v8089 = vld [vmem:[%s3 + $0x958] sm:$0xff]
    %v8090 = vld [vmem:[%s3 + $0x960] sm:$0xff]
    %v8091 = vld [vmem:[%s3 + $0x968] sm:$0xff]
    %v8092 = vld [vmem:[%s3 + $0x970] sm:$0xff]
    %v8093 = vld [vmem:[%s3 + $0x978] sm:$0xff]
    %v8094 = vld [vmem:[%s3 + $0x980] sm:$0xff]
    %v8095 = vld [vmem:[%s3 + $0x988] sm:$0xff]
    %v8096 = vld [vmem:[%s3 + $0x990] sm:$0xff]
    %v8097 = vld [vmem:[%s3 + $0x998] sm:$0xff]
    %v8098 = vld [vmem:[%s3 + $0x9a0] sm:$0xff]
    %v8099 = vld [vmem:[%s3 + $0x9a8] sm:$0xff]
    %v8100 = vld [vmem:[%s3 + $0x9b0] sm:$0xff]
    %v8101 = vld [vmem:[%s3 + $0x9b8] sm:$0xff]
    %v8102 = vld [vmem:[%s3 + $0x9c0] sm:$0xff]
    %v8103 = vld [vmem:[%s3 + $0x9c8] sm:$0xff]
    %v8104 = vld [vmem:[%s3 + $0x9d0] sm:$0xff]
    %v8105 = vld [vmem:[%s3 + $0x9d8] sm:$0xff]
    %v8106 = vld [vmem:[%s3 + $0x9e0] sm:$0xff]
    %v8107 = vld [vmem:[%s3 + $0x9e8] sm:$0xff]
    %v8108 = vld [vmem:[%s3 + $0x9f0] sm:$0xff]
    %v8109 = vld [vmem:[%s3 + $0x9f8] sm:$0xff]
    %v8110 = vpack.c.bf16 %v7729, %v7770
    %v8111 = vpack.c.bf16 %v7730, %v7771
    %v8112 = vpack.c.bf16 %v7731, %v7772
    %v8113 = vpack.c.bf16 %v7732, %v7773
    %v8114 = vpack.c.bf16 %v7733, %v7774
    %v8115 = vpack.c.bf16 %v7734, %v7775
    %v8116 = vpack.c.bf16 %v7735, %v7776
    %v8117 = vpack.c.bf16 %v7736, %v7777
    %v8118 = vpack.c.bf16 %v7737, %v7778
    %v8119 = vpack.c.bf16 %v7738, %v7779
    %v8120 = vpack.c.bf16 %v7739, %v7780
    %v8121 = vpack.c.bf16 %v7740, %v7781
    %v8122 = vpack.c.bf16 %v7741, %v7782
    %v8123 = vpack.c.bf16 %v7742, %v7783
    %v8124 = vpack.c.bf16 %v7743, %v7784
    %v8125 = vpack.c.bf16 %v7744, %v7785
    %v8126 = vpack.c.bf16 %v7745, %v7786
    %v8127 = vpack.c.bf16 %v7746, %v7787
    %v8128 = vpack.c.bf16 %v7747, %v7788
    %v8129 = vpack.c.bf16 %v7748, %v7789
    %v8130 = vld [vmem:[%s4] sm:$0x3]
    %v8132 = vlaneseq
    %v8133 = vshrl.u32 %v8132, 7
    %v8134 = vsub.s32 0, %v8133
    %v8135 = vrot.slane %v8130, %v8134
    %v8136 = vlaneseq
    %v8137 = vshrl.u32 %v8136, 7
    %v8138 = vsub.s32 1, %v8137
    %v8139 = vrot.slane %v8130, %v8138
    %v8462 = vunpack.c.l.b16 %v7790
    %v8463 = vunpack.c.h.b16 %v7790
    %v8464 = vunpack.c.l.b16 %v7791
    %v8465 = vunpack.c.h.b16 %v7791
    %v8466 = vunpack.c.l.b16 %v7792
    %v8467 = vunpack.c.h.b16 %v7792
    %v8468 = vunpack.c.l.b16 %v7793
    %v8469 = vunpack.c.h.b16 %v7793
    %v8470 = vunpack.c.l.b16 %v7794
    %v8471 = vunpack.c.h.b16 %v7794
    %v8472 = vunpack.c.l.b16 %v7795
    %v8473 = vunpack.c.h.b16 %v7795
    %v8474 = vunpack.c.l.b16 %v7796
    %v8475 = vunpack.c.h.b16 %v7796
    %v8476 = vunpack.c.l.b16 %v7797
    %v8477 = vunpack.c.h.b16 %v7797
    %v8478 = vunpack.c.l.b16 %v7798
    %v8479 = vunpack.c.h.b16 %v7798
    %v8480 = vunpack.c.l.b16 %v7799
    %v8481 = vunpack.c.h.b16 %v7799
    %v8482 = vunpack.c.l.b16 %v7800
    %v8483 = vunpack.c.h.b16 %v7800
    %v8484 = vunpack.c.l.b16 %v7801
    %v8485 = vunpack.c.h.b16 %v7801
    %v8486 = vunpack.c.l.b16 %v7802
    %v8487 = vunpack.c.h.b16 %v7802
    %v8488 = vunpack.c.l.b16 %v7803
    %v8489 = vunpack.c.h.b16 %v7803
    %v8490 = vunpack.c.l.b16 %v7804
    %v8491 = vunpack.c.h.b16 %v7804
    %v8492 = vunpack.c.l.b16 %v7805
    %v8493 = vunpack.c.h.b16 %v7805
    %v8494 = vunpack.c.l.b16 %v7806
    %v8495 = vunpack.c.h.b16 %v7806
    %v8496 = vunpack.c.l.b16 %v7807
    %v8497 = vunpack.c.h.b16 %v7807
    %v8498 = vunpack.c.l.b16 %v7808
    %v8499 = vunpack.c.h.b16 %v7808
    %v8500 = vunpack.c.l.b16 %v7809
    %v8501 = vunpack.c.h.b16 %v7809
    %v8502 = vunpack.c.l.b16 %v7810
    %v8503 = vunpack.c.h.b16 %v7810
    %v8504 = vunpack.c.l.b16 %v7811
    %v8505 = vunpack.c.h.b16 %v7811
    %v8506 = vunpack.c.l.b16 %v7812
    %v8507 = vunpack.c.h.b16 %v7812
    %v8508 = vunpack.c.l.b16 %v7813
    %v8509 = vunpack.c.h.b16 %v7813
    %v8510 = vunpack.c.l.b16 %v7814
    %v8511 = vunpack.c.h.b16 %v7814
    %v8512 = vunpack.c.l.b16 %v7815
    %v8513 = vunpack.c.h.b16 %v7815
    %v8514 = vunpack.c.l.b16 %v7816
    %v8515 = vunpack.c.h.b16 %v7816
    %v8516 = vunpack.c.l.b16 %v7817
    %v8517 = vunpack.c.h.b16 %v7817
    %v8518 = vunpack.c.l.b16 %v7818
    %v8519 = vunpack.c.h.b16 %v7818
    %v8520 = vunpack.c.l.b16 %v7819
    %v8521 = vunpack.c.h.b16 %v7819
    %v8522 = vunpack.c.l.b16 %v7820
    %v8523 = vunpack.c.h.b16 %v7820
    %v8524 = vunpack.c.l.b16 %v7821
    %v8525 = vunpack.c.h.b16 %v7821
    %v8526 = vunpack.c.l.b16 %v7822
    %v8527 = vunpack.c.h.b16 %v7822
    %v8528 = vunpack.c.l.b16 %v7823
    %v8529 = vunpack.c.h.b16 %v7823
    %v8530 = vunpack.c.l.b16 %v7824
    %v8531 = vunpack.c.h.b16 %v7824
    %v8532 = vunpack.c.l.b16 %v7825
    %v8533 = vunpack.c.h.b16 %v7825
    %v8534 = vunpack.c.l.b16 %v7826
    %v8535 = vunpack.c.h.b16 %v7826
    %v8536 = vunpack.c.l.b16 %v7827
    %v8537 = vunpack.c.h.b16 %v7827
    %v8538 = vunpack.c.l.b16 %v7828
    %v8539 = vunpack.c.h.b16 %v7828
    %v8540 = vunpack.c.l.b16 %v7829
    %v8541 = vunpack.c.h.b16 %v7829
    %v8542 = vunpack.c.l.b16 %v7830
    %v8543 = vunpack.c.h.b16 %v7830
    %v8544 = vunpack.c.l.b16 %v7831
    %v8545 = vunpack.c.h.b16 %v7831
    %v8546 = vunpack.c.l.b16 %v7832
    %v8547 = vunpack.c.h.b16 %v7832
    %v8548 = vunpack.c.l.b16 %v7833
    %v8549 = vunpack.c.h.b16 %v7833
    %v8550 = vunpack.c.l.b16 %v7834
    %v8551 = vunpack.c.h.b16 %v7834
    %v8552 = vunpack.c.l.b16 %v7835
    %v8553 = vunpack.c.h.b16 %v7835
    %v8554 = vunpack.c.l.b16 %v7836
    %v8555 = vunpack.c.h.b16 %v7836
    %v8556 = vunpack.c.l.b16 %v7837
    %v8557 = vunpack.c.h.b16 %v7837
    %v8558 = vunpack.c.l.b16 %v7838
    %v8559 = vunpack.c.h.b16 %v7838
    %v8560 = vunpack.c.l.b16 %v7839
    %v8561 = vunpack.c.h.b16 %v7839
    %v8562 = vunpack.c.l.b16 %v7840
    %v8563 = vunpack.c.h.b16 %v7840
    %v8564 = vunpack.c.l.b16 %v7841
    %v8565 = vunpack.c.h.b16 %v7841
    %v8566 = vunpack.c.l.b16 %v7842
    %v8567 = vunpack.c.h.b16 %v7842
    %v8568 = vunpack.c.l.b16 %v7843
    %v8569 = vunpack.c.h.b16 %v7843
    %v8570 = vunpack.c.l.b16 %v7844
    %v8571 = vunpack.c.h.b16 %v7844
    %v8572 = vunpack.c.l.b16 %v7845
    %v8573 = vunpack.c.h.b16 %v7845
    %v8574 = vunpack.c.l.b16 %v7846
    %v8575 = vunpack.c.h.b16 %v7846
    %v8576 = vunpack.c.l.b16 %v7847
    %v8577 = vunpack.c.h.b16 %v7847
    %v8578 = vunpack.c.l.b16 %v7848
    %v8579 = vunpack.c.h.b16 %v7848
    %v8580 = vunpack.c.l.b16 %v7849
    %v8581 = vunpack.c.h.b16 %v7849
    %v8582 = vunpack.c.l.b16 %v7850
    %v8583 = vunpack.c.h.b16 %v7850
    %v8584 = vunpack.c.l.b16 %v7851
    %v8585 = vunpack.c.h.b16 %v7851
    %v8586 = vunpack.c.l.b16 %v7852
    %v8587 = vunpack.c.h.b16 %v7852
    %v8588 = vunpack.c.l.b16 %v7853
    %v8589 = vunpack.c.h.b16 %v7853
    %v8590 = vunpack.c.l.b16 %v7854
    %v8591 = vunpack.c.h.b16 %v7854
    %v8592 = vunpack.c.l.b16 %v7855
    %v8593 = vunpack.c.h.b16 %v7855
    %v8594 = vunpack.c.l.b16 %v7856
    %v8595 = vunpack.c.h.b16 %v7856
    %v8596 = vunpack.c.l.b16 %v7857
    %v8597 = vunpack.c.h.b16 %v7857
    %v8598 = vunpack.c.l.b16 %v7858
    %v8599 = vunpack.c.h.b16 %v7858
    %v8600 = vunpack.c.l.b16 %v7859
    %v8601 = vunpack.c.h.b16 %v7859
    %v8602 = vunpack.c.l.b16 %v7860
    %v8603 = vunpack.c.h.b16 %v7860
    %v8604 = vunpack.c.l.b16 %v7861
    %v8605 = vunpack.c.h.b16 %v7861
    %v8606 = vunpack.c.l.b16 %v7862
    %v8607 = vunpack.c.h.b16 %v7862
    %v8608 = vunpack.c.l.b16 %v7863
    %v8609 = vunpack.c.h.b16 %v7863
    %v8610 = vunpack.c.l.b16 %v7864
    %v8611 = vunpack.c.h.b16 %v7864
    %v8612 = vunpack.c.l.b16 %v7865
    %v8613 = vunpack.c.h.b16 %v7865
    %v8614 = vunpack.c.l.b16 %v7866
    %v8615 = vunpack.c.h.b16 %v7866
    %v8616 = vunpack.c.l.b16 %v7867
    %v8617 = vunpack.c.h.b16 %v7867
    %v8618 = vunpack.c.l.b16 %v7868
    %v8619 = vunpack.c.h.b16 %v7868
    %v8620 = vunpack.c.l.b16 %v7869
    %v8621 = vunpack.c.h.b16 %v7869
    %v8622 = vunpack.c.l.b16 %v7870
    %v8623 = vunpack.c.h.b16 %v7870
    %v8624 = vunpack.c.l.b16 %v7871
    %v8625 = vunpack.c.h.b16 %v7871
    %v8626 = vunpack.c.l.b16 %v7872
    %v8627 = vunpack.c.h.b16 %v7872
    %v8628 = vunpack.c.l.b16 %v7873
    %v8629 = vunpack.c.h.b16 %v7873
    %v8630 = vunpack.c.l.b16 %v7874
    %v8631 = vunpack.c.h.b16 %v7874
    %v8632 = vunpack.c.l.b16 %v7875
    %v8633 = vunpack.c.h.b16 %v7875
    %v8634 = vunpack.c.l.b16 %v7876
    %v8635 = vunpack.c.h.b16 %v7876
    %v8636 = vunpack.c.l.b16 %v7877
    %v8637 = vunpack.c.h.b16 %v7877
    %v8638 = vunpack.c.l.b16 %v7878
    %v8639 = vunpack.c.h.b16 %v7878
    %v8640 = vunpack.c.l.b16 %v7879
    %v8641 = vunpack.c.h.b16 %v7879
    %v8642 = vunpack.c.l.b16 %v7880
    %v8643 = vunpack.c.h.b16 %v7880
    %v8644 = vunpack.c.l.b16 %v7881
    %v8645 = vunpack.c.h.b16 %v7881
    %v8646 = vunpack.c.l.b16 %v7882
    %v8647 = vunpack.c.h.b16 %v7882
    %v8648 = vunpack.c.l.b16 %v7883
    %v8649 = vunpack.c.h.b16 %v7883
    %v8650 = vunpack.c.l.b16 %v7884
    %v8651 = vunpack.c.h.b16 %v7884
    %v8652 = vunpack.c.l.b16 %v7885
    %v8653 = vunpack.c.h.b16 %v7885
    %v8654 = vunpack.c.l.b16 %v7886
    %v8655 = vunpack.c.h.b16 %v7886
    %v8656 = vunpack.c.l.b16 %v7887
    %v8657 = vunpack.c.h.b16 %v7887
    %v8658 = vunpack.c.l.b16 %v7888
    %v8659 = vunpack.c.h.b16 %v7888
    %v8660 = vunpack.c.l.b16 %v7889
    %v8661 = vunpack.c.h.b16 %v7889
    %v8662 = vunpack.c.l.b16 %v7890
    %v8663 = vunpack.c.h.b16 %v7890
    %v8664 = vunpack.c.l.b16 %v7891
    %v8665 = vunpack.c.h.b16 %v7891
    %v8666 = vunpack.c.l.b16 %v7892
    %v8667 = vunpack.c.h.b16 %v7892
    %v8668 = vunpack.c.l.b16 %v7893
    %v8669 = vunpack.c.h.b16 %v7893
    %v8670 = vunpack.c.l.b16 %v7894
    %v8671 = vunpack.c.h.b16 %v7894
    %v8672 = vunpack.c.l.b16 %v7895
    %v8673 = vunpack.c.h.b16 %v7895
    %v8674 = vunpack.c.l.b16 %v7896
    %v8675 = vunpack.c.h.b16 %v7896
    %v8676 = vunpack.c.l.b16 %v7897
    %v8677 = vunpack.c.h.b16 %v7897
    %v8678 = vunpack.c.l.b16 %v7898
    %v8679 = vunpack.c.h.b16 %v7898
    %v8680 = vunpack.c.l.b16 %v7899
    %v8681 = vunpack.c.h.b16 %v7899
    %v8682 = vunpack.c.l.b16 %v7900
    %v8683 = vunpack.c.h.b16 %v7900
    %v8684 = vunpack.c.l.b16 %v7901
    %v8685 = vunpack.c.h.b16 %v7901
    %v8686 = vunpack.c.l.b16 %v7902
    %v8687 = vunpack.c.h.b16 %v7902
    %v8688 = vunpack.c.l.b16 %v7903
    %v8689 = vunpack.c.h.b16 %v7903
    %v8690 = vunpack.c.l.b16 %v7904
    %v8691 = vunpack.c.h.b16 %v7904
    %v8692 = vunpack.c.l.b16 %v7905
    %v8693 = vunpack.c.h.b16 %v7905
    %v8694 = vunpack.c.l.b16 %v7906
    %v8695 = vunpack.c.h.b16 %v7906
    %v8696 = vunpack.c.l.b16 %v7907
    %v8697 = vunpack.c.h.b16 %v7907
    %v8698 = vunpack.c.l.b16 %v7908
    %v8699 = vunpack.c.h.b16 %v7908
    %v8700 = vunpack.c.l.b16 %v7909
    %v8701 = vunpack.c.h.b16 %v7909
    %v8702 = vunpack.c.l.b16 %v7910
    %v8703 = vunpack.c.h.b16 %v7910
    %v8704 = vunpack.c.l.b16 %v7911
    %v8705 = vunpack.c.h.b16 %v7911
    %v8706 = vunpack.c.l.b16 %v7912
    %v8707 = vunpack.c.h.b16 %v7912
    %v8708 = vunpack.c.l.b16 %v7913
    %v8709 = vunpack.c.h.b16 %v7913
    %v8710 = vunpack.c.l.b16 %v7914
    %v8711 = vunpack.c.h.b16 %v7914
    %v8712 = vunpack.c.l.b16 %v7915
    %v8713 = vunpack.c.h.b16 %v7915
    %v8714 = vunpack.c.l.b16 %v7916
    %v8715 = vunpack.c.h.b16 %v7916
    %v8716 = vunpack.c.l.b16 %v7917
    %v8717 = vunpack.c.h.b16 %v7917
    %v8718 = vunpack.c.l.b16 %v7918
    %v8719 = vunpack.c.h.b16 %v7918
    %v8720 = vunpack.c.l.b16 %v7919
    %v8721 = vunpack.c.h.b16 %v7919
    %v8722 = vunpack.c.l.b16 %v7920
    %v8723 = vunpack.c.h.b16 %v7920
    %v8724 = vunpack.c.l.b16 %v7921
    %v8725 = vunpack.c.h.b16 %v7921
    %v8726 = vunpack.c.l.b16 %v7922
    %v8727 = vunpack.c.h.b16 %v7922
    %v8728 = vunpack.c.l.b16 %v7923
    %v8729 = vunpack.c.h.b16 %v7923
    %v8730 = vunpack.c.l.b16 %v7924
    %v8731 = vunpack.c.h.b16 %v7924
    %v8732 = vunpack.c.l.b16 %v7925
    %v8733 = vunpack.c.h.b16 %v7925
    %v8734 = vunpack.c.l.b16 %v7926
    %v8735 = vunpack.c.h.b16 %v7926
    %v8736 = vunpack.c.l.b16 %v7927
    %v8737 = vunpack.c.h.b16 %v7927
    %v8738 = vunpack.c.l.b16 %v7928
    %v8739 = vunpack.c.h.b16 %v7928
    %v8740 = vunpack.c.l.b16 %v7929
    %v8741 = vunpack.c.h.b16 %v7929
    %v8742 = vunpack.c.l.b16 %v7930
    %v8743 = vunpack.c.h.b16 %v7930
    %v8744 = vunpack.c.l.b16 %v7931
    %v8745 = vunpack.c.h.b16 %v7931
    %v8746 = vunpack.c.l.b16 %v7932
    %v8747 = vunpack.c.h.b16 %v7932
    %v8748 = vunpack.c.l.b16 %v7933
    %v8749 = vunpack.c.h.b16 %v7933
    %v8750 = vunpack.c.l.b16 %v7934
    %v8751 = vunpack.c.h.b16 %v7934
    %v8752 = vunpack.c.l.b16 %v7935
    %v8753 = vunpack.c.h.b16 %v7935
    %v8754 = vunpack.c.l.b16 %v7936
    %v8755 = vunpack.c.h.b16 %v7936
    %v8756 = vunpack.c.l.b16 %v7937
    %v8757 = vunpack.c.h.b16 %v7937
    %v8758 = vunpack.c.l.b16 %v7938
    %v8759 = vunpack.c.h.b16 %v7938
    %v8760 = vunpack.c.l.b16 %v7939
    %v8761 = vunpack.c.h.b16 %v7939
    %v8762 = vunpack.c.l.b16 %v7940
    %v8763 = vunpack.c.h.b16 %v7940
    %v8764 = vunpack.c.l.b16 %v7941
    %v8765 = vunpack.c.h.b16 %v7941
    %v8766 = vunpack.c.l.b16 %v7942
    %v8767 = vunpack.c.h.b16 %v7942
    %v8768 = vunpack.c.l.b16 %v7943
    %v8769 = vunpack.c.h.b16 %v7943
    %v8770 = vunpack.c.l.b16 %v7944
    %v8771 = vunpack.c.h.b16 %v7944
    %v8772 = vunpack.c.l.b16 %v7945
    %v8773 = vunpack.c.h.b16 %v7945
    %v8774 = vunpack.c.l.b16 %v7946
    %v8775 = vunpack.c.h.b16 %v7946
    %v8776 = vunpack.c.l.b16 %v7947
    %v8777 = vunpack.c.h.b16 %v7947
    %v8778 = vunpack.c.l.b16 %v7948
    %v8779 = vunpack.c.h.b16 %v7948
    %v8780 = vunpack.c.l.b16 %v7949
    %v8781 = vunpack.c.h.b16 %v7949
    %v8782 = vunpack.c.l.b16 %v7950
    %v8783 = vunpack.c.h.b16 %v7950
    %v8784 = vunpack.c.l.b16 %v7951
    %v8785 = vunpack.c.h.b16 %v7951
    %v8786 = vunpack.c.l.b16 %v7952
    %v8787 = vunpack.c.h.b16 %v7952
    %v8788 = vunpack.c.l.b16 %v7953
    %v8789 = vunpack.c.h.b16 %v7953
    %v8790 = vunpack.c.l.b16 %v7954
    %v8791 = vunpack.c.h.b16 %v7954
    %v8792 = vunpack.c.l.b16 %v7955
    %v8793 = vunpack.c.h.b16 %v7955
    %v8794 = vunpack.c.l.b16 %v7956
    %v8795 = vunpack.c.h.b16 %v7956
    %v8796 = vunpack.c.l.b16 %v7957
    %v8797 = vunpack.c.h.b16 %v7957
    %v8798 = vunpack.c.l.b16 %v7958
    %v8799 = vunpack.c.h.b16 %v7958
    %v8800 = vunpack.c.l.b16 %v7959
    %v8801 = vunpack.c.h.b16 %v7959
    %v8802 = vunpack.c.l.b16 %v7960
    %v8803 = vunpack.c.h.b16 %v7960
    %v8804 = vunpack.c.l.b16 %v7961
    %v8805 = vunpack.c.h.b16 %v7961
    %v8806 = vunpack.c.l.b16 %v7962
    %v8807 = vunpack.c.h.b16 %v7962
    %v8808 = vunpack.c.l.b16 %v7963
    %v8809 = vunpack.c.h.b16 %v7963
    %v8810 = vunpack.c.l.b16 %v7964
    %v8811 = vunpack.c.h.b16 %v7964
    %v8812 = vunpack.c.l.b16 %v7965
    %v8813 = vunpack.c.h.b16 %v7965
    %v8814 = vunpack.c.l.b16 %v7966
    %v8815 = vunpack.c.h.b16 %v7966
    %v8816 = vunpack.c.l.b16 %v7967
    %v8817 = vunpack.c.h.b16 %v7967
    %v8818 = vunpack.c.l.b16 %v7968
    %v8819 = vunpack.c.h.b16 %v7968
    %v8820 = vunpack.c.l.b16 %v7969
    %v8821 = vunpack.c.h.b16 %v7969
    %v8822 = vunpack.c.l.b16 %v7970
    %v8823 = vunpack.c.h.b16 %v7970
    %v8824 = vunpack.c.l.b16 %v7971
    %v8825 = vunpack.c.h.b16 %v7971
    %v8826 = vunpack.c.l.b16 %v7972
    %v8827 = vunpack.c.h.b16 %v7972
    %v8828 = vunpack.c.l.b16 %v7973
    %v8829 = vunpack.c.h.b16 %v7973
    %v8830 = vunpack.c.l.b16 %v7974
    %v8831 = vunpack.c.h.b16 %v7974
    %v8832 = vunpack.c.l.b16 %v7975
    %v8833 = vunpack.c.h.b16 %v7975
    %v8834 = vunpack.c.l.b16 %v7976
    %v8835 = vunpack.c.h.b16 %v7976
    %v8836 = vunpack.c.l.b16 %v7977
    %v8837 = vunpack.c.h.b16 %v7977
    %v8838 = vunpack.c.l.b16 %v7978
    %v8839 = vunpack.c.h.b16 %v7978
    %v8840 = vunpack.c.l.b16 %v7979
    %v8841 = vunpack.c.h.b16 %v7979
    %v8842 = vunpack.c.l.b16 %v7980
    %v8843 = vunpack.c.h.b16 %v7980
    %v8844 = vunpack.c.l.b16 %v7981
    %v8845 = vunpack.c.h.b16 %v7981
    %v8846 = vunpack.c.l.b16 %v7982
    %v8847 = vunpack.c.h.b16 %v7982
    %v8848 = vunpack.c.l.b16 %v7983
    %v8849 = vunpack.c.h.b16 %v7983
    %v8850 = vunpack.c.l.b16 %v7984
    %v8851 = vunpack.c.h.b16 %v7984
    %v8852 = vunpack.c.l.b16 %v7985
    %v8853 = vunpack.c.h.b16 %v7985
    %v8854 = vunpack.c.l.b16 %v7986
    %v8855 = vunpack.c.h.b16 %v7986
    %v8856 = vunpack.c.l.b16 %v7987
    %v8857 = vunpack.c.h.b16 %v7987
    %v8858 = vunpack.c.l.b16 %v7988
    %v8859 = vunpack.c.h.b16 %v7988
    %v8860 = vunpack.c.l.b16 %v7989
    %v8861 = vunpack.c.h.b16 %v7989
    %v8862 = vunpack.c.l.b16 %v7990
    %v8863 = vunpack.c.h.b16 %v7990
    %v8864 = vunpack.c.l.b16 %v7991
    %v8865 = vunpack.c.h.b16 %v7991
    %v8866 = vunpack.c.l.b16 %v7992
    %v8867 = vunpack.c.h.b16 %v7992
    %v8868 = vunpack.c.l.b16 %v7993
    %v8869 = vunpack.c.h.b16 %v7993
    %v8870 = vunpack.c.l.b16 %v7994
    %v8871 = vunpack.c.h.b16 %v7994
    %v8872 = vunpack.c.l.b16 %v7995
    %v8873 = vunpack.c.h.b16 %v7995
    %v8874 = vunpack.c.l.b16 %v7996
    %v8875 = vunpack.c.h.b16 %v7996
    %v8876 = vunpack.c.l.b16 %v7997
    %v8877 = vunpack.c.h.b16 %v7997
    %v8878 = vunpack.c.l.b16 %v7998
    %v8879 = vunpack.c.h.b16 %v7998
    %v8880 = vunpack.c.l.b16 %v7999
    %v8881 = vunpack.c.h.b16 %v7999
    %v8882 = vunpack.c.l.b16 %v8000
    %v8883 = vunpack.c.h.b16 %v8000
    %v8884 = vunpack.c.l.b16 %v8001
    %v8885 = vunpack.c.h.b16 %v8001
    %v8886 = vunpack.c.l.b16 %v8002
    %v8887 = vunpack.c.h.b16 %v8002
    %v8888 = vunpack.c.l.b16 %v8003
    %v8889 = vunpack.c.h.b16 %v8003
    %v8890 = vunpack.c.l.b16 %v8004
    %v8891 = vunpack.c.h.b16 %v8004
    %v8892 = vunpack.c.l.b16 %v8005
    %v8893 = vunpack.c.h.b16 %v8005
    %v8894 = vunpack.c.l.b16 %v8006
    %v8895 = vunpack.c.h.b16 %v8006
    %v8896 = vunpack.c.l.b16 %v8007
    %v8897 = vunpack.c.h.b16 %v8007
    %v8898 = vunpack.c.l.b16 %v8008
    %v8899 = vunpack.c.h.b16 %v8008
    %v8900 = vunpack.c.l.b16 %v8009
    %v8901 = vunpack.c.h.b16 %v8009
    %v8902 = vunpack.c.l.b16 %v8010
    %v8903 = vunpack.c.h.b16 %v8010
    %v8904 = vunpack.c.l.b16 %v8011
    %v8905 = vunpack.c.h.b16 %v8011
    %v8906 = vunpack.c.l.b16 %v8012
    %v8907 = vunpack.c.h.b16 %v8012
    %v8908 = vunpack.c.l.b16 %v8013
    %v8909 = vunpack.c.h.b16 %v8013
    %v8910 = vunpack.c.l.b16 %v8014
    %v8911 = vunpack.c.h.b16 %v8014
    %v8912 = vunpack.c.l.b16 %v8015
    %v8913 = vunpack.c.h.b16 %v8015
    %v8914 = vunpack.c.l.b16 %v8016
    %v8915 = vunpack.c.h.b16 %v8016
    %v8916 = vunpack.c.l.b16 %v8017
    %v8917 = vunpack.c.h.b16 %v8017
    %v8918 = vunpack.c.l.b16 %v8018
    %v8919 = vunpack.c.h.b16 %v8018
    %v8920 = vunpack.c.l.b16 %v8019
    %v8921 = vunpack.c.h.b16 %v8019
    %v8922 = vunpack.c.l.b16 %v8020
    %v8923 = vunpack.c.h.b16 %v8020
    %v8924 = vunpack.c.l.b16 %v8021
    %v8925 = vunpack.c.h.b16 %v8021
    %v8926 = vunpack.c.l.b16 %v8022
    %v8927 = vunpack.c.h.b16 %v8022
    %v8928 = vunpack.c.l.b16 %v8023
    %v8929 = vunpack.c.h.b16 %v8023
    %v8930 = vunpack.c.l.b16 %v8024
    %v8931 = vunpack.c.h.b16 %v8024
    %v8932 = vunpack.c.l.b16 %v8025
    %v8933 = vunpack.c.h.b16 %v8025
    %v8934 = vunpack.c.l.b16 %v8026
    %v8935 = vunpack.c.h.b16 %v8026
    %v8936 = vunpack.c.l.b16 %v8027
    %v8937 = vunpack.c.h.b16 %v8027
    %v8938 = vunpack.c.l.b16 %v8028
    %v8939 = vunpack.c.h.b16 %v8028
    %v8940 = vunpack.c.l.b16 %v8029
    %v8941 = vunpack.c.h.b16 %v8029
    %v8942 = vunpack.c.l.b16 %v8030
    %v8943 = vunpack.c.h.b16 %v8030
    %v8944 = vunpack.c.l.b16 %v8031
    %v8945 = vunpack.c.h.b16 %v8031
    %v8946 = vunpack.c.l.b16 %v8032
    %v8947 = vunpack.c.h.b16 %v8032
    %v8948 = vunpack.c.l.b16 %v8033
    %v8949 = vunpack.c.h.b16 %v8033
    %v8950 = vunpack.c.l.b16 %v8034
    %v8951 = vunpack.c.h.b16 %v8034
    %v8952 = vunpack.c.l.b16 %v8035
    %v8953 = vunpack.c.h.b16 %v8035
    %v8954 = vunpack.c.l.b16 %v8036
    %v8955 = vunpack.c.h.b16 %v8036
    %v8956 = vunpack.c.l.b16 %v8037
    %v8957 = vunpack.c.h.b16 %v8037
    %v8958 = vunpack.c.l.b16 %v8038
    %v8959 = vunpack.c.h.b16 %v8038
    %v8960 = vunpack.c.l.b16 %v8039
    %v8961 = vunpack.c.h.b16 %v8039
    %v8962 = vunpack.c.l.b16 %v8040
    %v8963 = vunpack.c.h.b16 %v8040
    %v8964 = vunpack.c.l.b16 %v8041
    %v8965 = vunpack.c.h.b16 %v8041
    %v8966 = vunpack.c.l.b16 %v8042
    %v8967 = vunpack.c.h.b16 %v8042
    %v8968 = vunpack.c.l.b16 %v8043
    %v8969 = vunpack.c.h.b16 %v8043
    %v8970 = vunpack.c.l.b16 %v8044
    %v8971 = vunpack.c.h.b16 %v8044
    %v8972 = vunpack.c.l.b16 %v8045
    %v8973 = vunpack.c.h.b16 %v8045
    %v8974 = vunpack.c.l.b16 %v8046
    %v8975 = vunpack.c.h.b16 %v8046
    %v8976 = vunpack.c.l.b16 %v8047
    %v8977 = vunpack.c.h.b16 %v8047
    %v8978 = vunpack.c.l.b16 %v8048
    %v8979 = vunpack.c.h.b16 %v8048
    %v8980 = vunpack.c.l.b16 %v8049
    %v8981 = vunpack.c.h.b16 %v8049
    %v8982 = vunpack.c.l.b16 %v8050
    %v8983 = vunpack.c.h.b16 %v8050
    %v8984 = vunpack.c.l.b16 %v8051
    %v8985 = vunpack.c.h.b16 %v8051
    %v8986 = vunpack.c.l.b16 %v8052
    %v8987 = vunpack.c.h.b16 %v8052
    %v8988 = vunpack.c.l.b16 %v8053
    %v8989 = vunpack.c.h.b16 %v8053
    %v8990 = vunpack.c.l.b16 %v8054
    %v8991 = vunpack.c.h.b16 %v8054
    %v8992 = vunpack.c.l.b16 %v8055
    %v8993 = vunpack.c.h.b16 %v8055
    %v8994 = vunpack.c.l.b16 %v8056
    %v8995 = vunpack.c.h.b16 %v8056
    %v8996 = vunpack.c.l.b16 %v8057
    %v8997 = vunpack.c.h.b16 %v8057
    %v8998 = vunpack.c.l.b16 %v8058
    %v8999 = vunpack.c.h.b16 %v8058
    %v9000 = vunpack.c.l.b16 %v8059
    %v9001 = vunpack.c.h.b16 %v8059
    %v9002 = vunpack.c.l.b16 %v8060
    %v9003 = vunpack.c.h.b16 %v8060
    %v9004 = vunpack.c.l.b16 %v8061
    %v9005 = vunpack.c.h.b16 %v8061
    %v9006 = vunpack.c.l.b16 %v8062
    %v9007 = vunpack.c.h.b16 %v8062
    %v9008 = vunpack.c.l.b16 %v8063
    %v9009 = vunpack.c.h.b16 %v8063
    %v9010 = vunpack.c.l.b16 %v8064
    %v9011 = vunpack.c.h.b16 %v8064
    %v9012 = vunpack.c.l.b16 %v8065
    %v9013 = vunpack.c.h.b16 %v8065
    %v9014 = vunpack.c.l.b16 %v8066
    %v9015 = vunpack.c.h.b16 %v8066
    %v9016 = vunpack.c.l.b16 %v8067
    %v9017 = vunpack.c.h.b16 %v8067
    %v9018 = vunpack.c.l.b16 %v8068
    %v9019 = vunpack.c.h.b16 %v8068
    %v9020 = vunpack.c.l.b16 %v8069
    %v9021 = vunpack.c.h.b16 %v8069
    %v9022 = vunpack.c.l.b16 %v8070
    %v9023 = vunpack.c.h.b16 %v8070
    %v9024 = vunpack.c.l.b16 %v8071
    %v9025 = vunpack.c.h.b16 %v8071
    %v9026 = vunpack.c.l.b16 %v8072
    %v9027 = vunpack.c.h.b16 %v8072
    %v9028 = vunpack.c.l.b16 %v8073
    %v9029 = vunpack.c.h.b16 %v8073
    %v9030 = vunpack.c.l.b16 %v8074
    %v9031 = vunpack.c.h.b16 %v8074
    %v9032 = vunpack.c.l.b16 %v8075
    %v9033 = vunpack.c.h.b16 %v8075
    %v9034 = vunpack.c.l.b16 %v8076
    %v9035 = vunpack.c.h.b16 %v8076
    %v9036 = vunpack.c.l.b16 %v8077
    %v9037 = vunpack.c.h.b16 %v8077
    %v9038 = vunpack.c.l.b16 %v8078
    %v9039 = vunpack.c.h.b16 %v8078
    %v9040 = vunpack.c.l.b16 %v8079
    %v9041 = vunpack.c.h.b16 %v8079
    %v9042 = vunpack.c.l.b16 %v8080
    %v9043 = vunpack.c.h.b16 %v8080
    %v9044 = vunpack.c.l.b16 %v8081
    %v9045 = vunpack.c.h.b16 %v8081
    %v9046 = vunpack.c.l.b16 %v8082
    %v9047 = vunpack.c.h.b16 %v8082
    %v9048 = vunpack.c.l.b16 %v8083
    %v9049 = vunpack.c.h.b16 %v8083
    %v9050 = vunpack.c.l.b16 %v8084
    %v9051 = vunpack.c.h.b16 %v8084
    %v9052 = vunpack.c.l.b16 %v8085
    %v9053 = vunpack.c.h.b16 %v8085
    %v9054 = vunpack.c.l.b16 %v8086
    %v9055 = vunpack.c.h.b16 %v8086
    %v9056 = vunpack.c.l.b16 %v8087
    %v9057 = vunpack.c.h.b16 %v8087
    %v9058 = vunpack.c.l.b16 %v8088
    %v9059 = vunpack.c.h.b16 %v8088
    %v9060 = vunpack.c.l.b16 %v8089
    %v9061 = vunpack.c.h.b16 %v8089
    %v9062 = vunpack.c.l.b16 %v8090
    %v9063 = vunpack.c.h.b16 %v8090
    %v9064 = vunpack.c.l.b16 %v8091
    %v9065 = vunpack.c.h.b16 %v8091
    %v9066 = vunpack.c.l.b16 %v8092
    %v9067 = vunpack.c.h.b16 %v8092
    %v9068 = vunpack.c.l.b16 %v8093
    %v9069 = vunpack.c.h.b16 %v8093
    %v9070 = vunpack.c.l.b16 %v8094
    %v9071 = vunpack.c.h.b16 %v8094
    %v9072 = vunpack.c.l.b16 %v8095
    %v9073 = vunpack.c.h.b16 %v8095
    %v9074 = vunpack.c.l.b16 %v8096
    %v9075 = vunpack.c.h.b16 %v8096
    %v9076 = vunpack.c.l.b16 %v8097
    %v9077 = vunpack.c.h.b16 %v8097
    %v9078 = vunpack.c.l.b16 %v8098
    %v9079 = vunpack.c.h.b16 %v8098
    %v9080 = vunpack.c.l.b16 %v8099
    %v9081 = vunpack.c.h.b16 %v8099
    %v9082 = vunpack.c.l.b16 %v8100
    %v9083 = vunpack.c.h.b16 %v8100
    %v9084 = vunpack.c.l.b16 %v8101
    %v9085 = vunpack.c.h.b16 %v8101
    %v9086 = vunpack.c.l.b16 %v8102
    %v9087 = vunpack.c.h.b16 %v8102
    %v9088 = vunpack.c.l.b16 %v8103
    %v9089 = vunpack.c.h.b16 %v8103
    %v9090 = vunpack.c.l.b16 %v8104
    %v9091 = vunpack.c.h.b16 %v8104
    %v9092 = vunpack.c.l.b16 %v8105
    %v9093 = vunpack.c.h.b16 %v8105
    %v9094 = vunpack.c.l.b16 %v8106
    %v9095 = vunpack.c.h.b16 %v8106
    %v9096 = vunpack.c.l.b16 %v8107
    %v9097 = vunpack.c.h.b16 %v8107
    %v9098 = vunpack.c.l.b16 %v8108
    %v9099 = vunpack.c.h.b16 %v8108
    %v9100 = vunpack.c.l.b16 %v8109
    %v9101 = vunpack.c.h.b16 %v8109
    %v9102 = vpack.c.b16 %v8464, %v8462
    %v9103 = vpack.c.b16 %v8465, %v8463
    %v9104 = vpack.c.b16 %v8468, %v8466
    %v9105 = vpack.c.b16 %v8469, %v8467
    %v9106 = vpack.c.b16 %v8472, %v8470
    %v9107 = vpack.c.b16 %v8473, %v8471
    %v9108 = vpack.c.b16 %v8476, %v8474
    %v9109 = vpack.c.b16 %v8477, %v8475
    %v9110 = vpack.c.b16 %v8480, %v8478
    %v9111 = vpack.c.b16 %v8481, %v8479
    %v9112 = vpack.c.b16 %v8484, %v8482
    %v9113 = vpack.c.b16 %v8485, %v8483
    %v9114 = vpack.c.b16 %v8488, %v8486
    %v9115 = vpack.c.b16 %v8489, %v8487
    %v9116 = vpack.c.b16 %v8492, %v8490
    %v9117 = vpack.c.b16 %v8493, %v8491
    %v9118 = vpack.c.b16 %v8496, %v8494
    %v9119 = vpack.c.b16 %v8497, %v8495
    %v9120 = vpack.c.b16 %v8500, %v8498
    %v9121 = vpack.c.b16 %v8501, %v8499
    %v9122 = vpack.c.b16 %v8504, %v8502
    %v9123 = vpack.c.b16 %v8505, %v8503
    %v9124 = vpack.c.b16 %v8508, %v8506
    %v9125 = vpack.c.b16 %v8509, %v8507
    %v9126 = vpack.c.b16 %v8512, %v8510
    %v9127 = vpack.c.b16 %v8513, %v8511
    %v9128 = vpack.c.b16 %v8516, %v8514
    %v9129 = vpack.c.b16 %v8517, %v8515
    %v9130 = vpack.c.b16 %v8520, %v8518
    %v9131 = vpack.c.b16 %v8521, %v8519
    %v9132 = vpack.c.b16 %v8524, %v8522
    %v9133 = vpack.c.b16 %v8525, %v8523
    %v9134 = vpack.c.b16 %v8528, %v8526
    %v9135 = vpack.c.b16 %v8529, %v8527
    %v9136 = vpack.c.b16 %v8532, %v8530
    %v9137 = vpack.c.b16 %v8533, %v8531
    %v9138 = vpack.c.b16 %v8536, %v8534
    %v9139 = vpack.c.b16 %v8537, %v8535
    %v9140 = vpack.c.b16 %v8540, %v8538
    %v9141 = vpack.c.b16 %v8541, %v8539
    %v9142 = vpack.c.b16 %v8544, %v8542
    %v9143 = vpack.c.b16 %v8545, %v8543
    %v9144 = vpack.c.b16 %v8548, %v8546
    %v9145 = vpack.c.b16 %v8549, %v8547
    %v9146 = vpack.c.b16 %v8552, %v8550
    %v9147 = vpack.c.b16 %v8553, %v8551
    %v9148 = vpack.c.b16 %v8556, %v8554
    %v9149 = vpack.c.b16 %v8557, %v8555
    %v9150 = vpack.c.b16 %v8560, %v8558
    %v9151 = vpack.c.b16 %v8561, %v8559
    %v9152 = vpack.c.b16 %v8564, %v8562
    %v9153 = vpack.c.b16 %v8565, %v8563
    %v9154 = vpack.c.b16 %v8568, %v8566
    %v9155 = vpack.c.b16 %v8569, %v8567
    %v9156 = vpack.c.b16 %v8572, %v8570
    %v9157 = vpack.c.b16 %v8573, %v8571
    %v9158 = vpack.c.b16 %v8576, %v8574
    %v9159 = vpack.c.b16 %v8577, %v8575
    %v9160 = vpack.c.b16 %v8580, %v8578
    %v9161 = vpack.c.b16 %v8581, %v8579
    %v9162 = vpack.c.b16 %v8584, %v8582
    %v9163 = vpack.c.b16 %v8585, %v8583
    %v9164 = vpack.c.b16 %v8588, %v8586
    %v9165 = vpack.c.b16 %v8589, %v8587
    %v9166 = vpack.c.b16 %v8592, %v8590
    %v9167 = vpack.c.b16 %v8593, %v8591
    %v9168 = vpack.c.b16 %v8596, %v8594
    %v9169 = vpack.c.b16 %v8597, %v8595
    %v9170 = vpack.c.b16 %v8600, %v8598
    %v9171 = vpack.c.b16 %v8601, %v8599
    %v9172 = vpack.c.b16 %v8604, %v8602
    %v9173 = vpack.c.b16 %v8605, %v8603
    %v9174 = vpack.c.b16 %v8608, %v8606
    %v9175 = vpack.c.b16 %v8609, %v8607
    %v9176 = vpack.c.b16 %v8612, %v8610
    %v9177 = vpack.c.b16 %v8613, %v8611
    %v9178 = vpack.c.b16 %v8616, %v8614
    %v9179 = vpack.c.b16 %v8617, %v8615
    %v9180 = vpack.c.b16 %v8620, %v8618
    %v9181 = vpack.c.b16 %v8621, %v8619
    %v9182 = vpack.c.b16 %v8624, %v8622
    %v9183 = vpack.c.b16 %v8625, %v8623
    %v9184 = vpack.c.b16 %v8628, %v8626
    %v9185 = vpack.c.b16 %v8629, %v8627
    %v9186 = vpack.c.b16 %v8632, %v8630
    %v9187 = vpack.c.b16 %v8633, %v8631
    %v9188 = vpack.c.b16 %v8636, %v8634
    %v9189 = vpack.c.b16 %v8637, %v8635
    %v9190 = vpack.c.b16 %v8640, %v8638
    %v9191 = vpack.c.b16 %v8641, %v8639
    %v9192 = vpack.c.b16 %v8644, %v8642
    %v9193 = vpack.c.b16 %v8645, %v8643
    %v9194 = vpack.c.b16 %v8648, %v8646
    %v9195 = vpack.c.b16 %v8649, %v8647
    %v9196 = vpack.c.b16 %v8652, %v8650
    %v9197 = vpack.c.b16 %v8653, %v8651
    %v9198 = vpack.c.b16 %v8656, %v8654
    %v9199 = vpack.c.b16 %v8657, %v8655
    %v9200 = vpack.c.b16 %v8660, %v8658
    %v9201 = vpack.c.b16 %v8661, %v8659
    %v9202 = vpack.c.b16 %v8664, %v8662
    %v9203 = vpack.c.b16 %v8665, %v8663
    %v9204 = vpack.c.b16 %v8668, %v8666
    %v9205 = vpack.c.b16 %v8669, %v8667
    %v9206 = vpack.c.b16 %v8672, %v8670
    %v9207 = vpack.c.b16 %v8673, %v8671
    %v9208 = vpack.c.b16 %v8676, %v8674
    %v9209 = vpack.c.b16 %v8677, %v8675
    %v9210 = vpack.c.b16 %v8680, %v8678
    %v9211 = vpack.c.b16 %v8681, %v8679
    %v9212 = vpack.c.b16 %v8684, %v8682
    %v9213 = vpack.c.b16 %v8685, %v8683
    %v9214 = vpack.c.b16 %v8688, %v8686
    %v9215 = vpack.c.b16 %v8689, %v8687
    %v9216 = vpack.c.b16 %v8692, %v8690
    %v9217 = vpack.c.b16 %v8693, %v8691
    %v9218 = vpack.c.b16 %v8696, %v8694
    %v9219 = vpack.c.b16 %v8697, %v8695
    %v9220 = vpack.c.b16 %v8700, %v8698
    %v9221 = vpack.c.b16 %v8701, %v8699
    %v9222 = vpack.c.b16 %v8704, %v8702
    %v9223 = vpack.c.b16 %v8705, %v8703
    %v9224 = vpack.c.b16 %v8708, %v8706
    %v9225 = vpack.c.b16 %v8709, %v8707
    %v9226 = vpack.c.b16 %v8712, %v8710
    %v9227 = vpack.c.b16 %v8713, %v8711
    %v9228 = vpack.c.b16 %v8716, %v8714
    %v9229 = vpack.c.b16 %v8717, %v8715
    %v9230 = vpack.c.b16 %v8720, %v8718
    %v9231 = vpack.c.b16 %v8721, %v8719
    %v9232 = vpack.c.b16 %v8724, %v8722
    %v9233 = vpack.c.b16 %v8725, %v8723
    %v9234 = vpack.c.b16 %v8728, %v8726
    %v9235 = vpack.c.b16 %v8729, %v8727
    %v9236 = vpack.c.b16 %v8732, %v8730
    %v9237 = vpack.c.b16 %v8733, %v8731
    %v9238 = vpack.c.b16 %v8736, %v8734
    %v9239 = vpack.c.b16 %v8737, %v8735
    %v9240 = vpack.c.b16 %v8740, %v8738
    %v9241 = vpack.c.b16 %v8741, %v8739
    %v9242 = vpack.c.b16 %v8744, %v8742
    %v9243 = vpack.c.b16 %v8745, %v8743
    %v9244 = vpack.c.b16 %v8748, %v8746
    %v9245 = vpack.c.b16 %v8749, %v8747
    %v9246 = vpack.c.b16 %v8752, %v8750
    %v9247 = vpack.c.b16 %v8753, %v8751
    %v9248 = vpack.c.b16 %v8756, %v8754
    %v9249 = vpack.c.b16 %v8757, %v8755
    %v9250 = vpack.c.b16 %v8760, %v8758
    %v9251 = vpack.c.b16 %v8761, %v8759
    %v9252 = vpack.c.b16 %v8764, %v8762
    %v9253 = vpack.c.b16 %v8765, %v8763
    %v9254 = vpack.c.b16 %v8768, %v8766
    %v9255 = vpack.c.b16 %v8769, %v8767
    %v9256 = vpack.c.b16 %v8772, %v8770
    %v9257 = vpack.c.b16 %v8773, %v8771
    %v9258 = vpack.c.b16 %v8776, %v8774
    %v9259 = vpack.c.b16 %v8777, %v8775
    %v9260 = vpack.c.b16 %v8780, %v8778
    %v9261 = vpack.c.b16 %v8781, %v8779
    %v9262 = vpack.c.b16 %v8784, %v8782
    %v9263 = vpack.c.b16 %v8785, %v8783
    %v9264 = vpack.c.b16 %v8788, %v8786
    %v9265 = vpack.c.b16 %v8789, %v8787
    %v9266 = vpack.c.b16 %v8792, %v8790
    %v9267 = vpack.c.b16 %v8793, %v8791
    %v9268 = vpack.c.b16 %v8796, %v8794
    %v9269 = vpack.c.b16 %v8797, %v8795
    %v9270 = vpack.c.b16 %v8800, %v8798
    %v9271 = vpack.c.b16 %v8801, %v8799
    %v9272 = vpack.c.b16 %v8804, %v8802
    %v9273 = vpack.c.b16 %v8805, %v8803
    %v9274 = vpack.c.b16 %v8808, %v8806
    %v9275 = vpack.c.b16 %v8809, %v8807
    %v9276 = vpack.c.b16 %v8812, %v8810
    %v9277 = vpack.c.b16 %v8813, %v8811
    %v9278 = vpack.c.b16 %v8816, %v8814
    %v9279 = vpack.c.b16 %v8817, %v8815
    %v9280 = vpack.c.b16 %v8820, %v8818
    %v9281 = vpack.c.b16 %v8821, %v8819
    %v9282 = vpack.c.b16 %v8824, %v8822
    %v9283 = vpack.c.b16 %v8825, %v8823
    %v9284 = vpack.c.b16 %v8828, %v8826
    %v9285 = vpack.c.b16 %v8829, %v8827
    %v9286 = vpack.c.b16 %v8832, %v8830
    %v9287 = vpack.c.b16 %v8833, %v8831
    %v9288 = vpack.c.b16 %v8836, %v8834
    %v9289 = vpack.c.b16 %v8837, %v8835
    %v9290 = vpack.c.b16 %v8840, %v8838
    %v9291 = vpack.c.b16 %v8841, %v8839
    %v9292 = vpack.c.b16 %v8844, %v8842
    %v9293 = vpack.c.b16 %v8845, %v8843
    %v9294 = vpack.c.b16 %v8848, %v8846
    %v9295 = vpack.c.b16 %v8849, %v8847
    %v9296 = vpack.c.b16 %v8852, %v8850
    %v9297 = vpack.c.b16 %v8853, %v8851
    %v9298 = vpack.c.b16 %v8856, %v8854
    %v9299 = vpack.c.b16 %v8857, %v8855
    %v9300 = vpack.c.b16 %v8860, %v8858
    %v9301 = vpack.c.b16 %v8861, %v8859
    %v9302 = vpack.c.b16 %v8864, %v8862
    %v9303 = vpack.c.b16 %v8865, %v8863
    %v9304 = vpack.c.b16 %v8868, %v8866
    %v9305 = vpack.c.b16 %v8869, %v8867
    %v9306 = vpack.c.b16 %v8872, %v8870
    %v9307 = vpack.c.b16 %v8873, %v8871
    %v9308 = vpack.c.b16 %v8876, %v8874
    %v9309 = vpack.c.b16 %v8877, %v8875
    %v9310 = vpack.c.b16 %v8880, %v8878
    %v9311 = vpack.c.b16 %v8881, %v8879
    %v9312 = vpack.c.b16 %v8884, %v8882
    %v9313 = vpack.c.b16 %v8885, %v8883
    %v9314 = vpack.c.b16 %v8888, %v8886
    %v9315 = vpack.c.b16 %v8889, %v8887
    %v9316 = vpack.c.b16 %v8892, %v8890
    %v9317 = vpack.c.b16 %v8893, %v8891
    %v9318 = vpack.c.b16 %v8896, %v8894
    %v9319 = vpack.c.b16 %v8897, %v8895
    %v9320 = vpack.c.b16 %v8900, %v8898
    %v9321 = vpack.c.b16 %v8901, %v8899
    %v9322 = vpack.c.b16 %v8904, %v8902
    %v9323 = vpack.c.b16 %v8905, %v8903
    %v9324 = vpack.c.b16 %v8908, %v8906
    %v9325 = vpack.c.b16 %v8909, %v8907
    %v9326 = vpack.c.b16 %v8912, %v8910
    %v9327 = vpack.c.b16 %v8913, %v8911
    %v9328 = vpack.c.b16 %v8916, %v8914
    %v9329 = vpack.c.b16 %v8917, %v8915
    %v9330 = vpack.c.b16 %v8920, %v8918
    %v9331 = vpack.c.b16 %v8921, %v8919
    %v9332 = vpack.c.b16 %v8924, %v8922
    %v9333 = vpack.c.b16 %v8925, %v8923
    %v9334 = vpack.c.b16 %v8928, %v8926
    %v9335 = vpack.c.b16 %v8929, %v8927
    %v9336 = vpack.c.b16 %v8932, %v8930
    %v9337 = vpack.c.b16 %v8933, %v8931
    %v9338 = vpack.c.b16 %v8936, %v8934
    %v9339 = vpack.c.b16 %v8937, %v8935
    %v9340 = vpack.c.b16 %v8940, %v8938
    %v9341 = vpack.c.b16 %v8941, %v8939
    %v9342 = vpack.c.b16 %v8944, %v8942
    %v9343 = vpack.c.b16 %v8945, %v8943
    %v9344 = vpack.c.b16 %v8948, %v8946
    %v9345 = vpack.c.b16 %v8949, %v8947
    %v9346 = vpack.c.b16 %v8952, %v8950
    %v9347 = vpack.c.b16 %v8953, %v8951
    %v9348 = vpack.c.b16 %v8956, %v8954
    %v9349 = vpack.c.b16 %v8957, %v8955
    %v9350 = vpack.c.b16 %v8960, %v8958
    %v9351 = vpack.c.b16 %v8961, %v8959
    %v9352 = vpack.c.b16 %v8964, %v8962
    %v9353 = vpack.c.b16 %v8965, %v8963
    %v9354 = vpack.c.b16 %v8968, %v8966
    %v9355 = vpack.c.b16 %v8969, %v8967
    %v9356 = vpack.c.b16 %v8972, %v8970
    %v9357 = vpack.c.b16 %v8973, %v8971
    %v9358 = vpack.c.b16 %v8976, %v8974
    %v9359 = vpack.c.b16 %v8977, %v8975
    %v9360 = vpack.c.b16 %v8980, %v8978
    %v9361 = vpack.c.b16 %v8981, %v8979
    %v9362 = vpack.c.b16 %v8984, %v8982
    %v9363 = vpack.c.b16 %v8985, %v8983
    %v9364 = vpack.c.b16 %v8988, %v8986
    %v9365 = vpack.c.b16 %v8989, %v8987
    %v9366 = vpack.c.b16 %v8992, %v8990
    %v9367 = vpack.c.b16 %v8993, %v8991
    %v9368 = vpack.c.b16 %v8996, %v8994
    %v9369 = vpack.c.b16 %v8997, %v8995
    %v9370 = vpack.c.b16 %v9000, %v8998
    %v9371 = vpack.c.b16 %v9001, %v8999
    %v9372 = vpack.c.b16 %v9004, %v9002
    %v9373 = vpack.c.b16 %v9005, %v9003
    %v9374 = vpack.c.b16 %v9008, %v9006
    %v9375 = vpack.c.b16 %v9009, %v9007
    %v9376 = vpack.c.b16 %v9012, %v9010
    %v9377 = vpack.c.b16 %v9013, %v9011
    %v9378 = vpack.c.b16 %v9016, %v9014
    %v9379 = vpack.c.b16 %v9017, %v9015
    %v9380 = vpack.c.b16 %v9020, %v9018
    %v9381 = vpack.c.b16 %v9021, %v9019
    %v9382 = vpack.c.b16 %v9024, %v9022
    %v9383 = vpack.c.b16 %v9025, %v9023
    %v9384 = vpack.c.b16 %v9028, %v9026
    %v9385 = vpack.c.b16 %v9029, %v9027
    %v9386 = vpack.c.b16 %v9032, %v9030
    %v9387 = vpack.c.b16 %v9033, %v9031
    %v9388 = vpack.c.b16 %v9036, %v9034
    %v9389 = vpack.c.b16 %v9037, %v9035
    %v9390 = vpack.c.b16 %v9040, %v9038
    %v9391 = vpack.c.b16 %v9041, %v9039
    %v9392 = vpack.c.b16 %v9044, %v9042
    %v9393 = vpack.c.b16 %v9045, %v9043
    %v9394 = vpack.c.b16 %v9048, %v9046
    %v9395 = vpack.c.b16 %v9049, %v9047
    %v9396 = vpack.c.b16 %v9052, %v9050
    %v9397 = vpack.c.b16 %v9053, %v9051
    %v9398 = vpack.c.b16 %v9056, %v9054
    %v9399 = vpack.c.b16 %v9057, %v9055
    %v9400 = vpack.c.b16 %v9060, %v9058
    %v9401 = vpack.c.b16 %v9061, %v9059
    %v9402 = vpack.c.b16 %v9064, %v9062
    %v9403 = vpack.c.b16 %v9065, %v9063
    %v9404 = vpack.c.b16 %v9068, %v9066
    %v9405 = vpack.c.b16 %v9069, %v9067
    %v9406 = vpack.c.b16 %v9072, %v9070
    %v9407 = vpack.c.b16 %v9073, %v9071
    %v9408 = vpack.c.b16 %v9076, %v9074
    %v9409 = vpack.c.b16 %v9077, %v9075
    %v9410 = vpack.c.b16 %v9080, %v9078
    %v9411 = vpack.c.b16 %v9081, %v9079
    %v9412 = vpack.c.b16 %v9084, %v9082
    %v9413 = vpack.c.b16 %v9085, %v9083
    %v9414 = vpack.c.b16 %v9088, %v9086
    %v9415 = vpack.c.b16 %v9089, %v9087
    %v9416 = vpack.c.b16 %v9092, %v9090
    %v9417 = vpack.c.b16 %v9093, %v9091
    %v9418 = vpack.c.b16 %v9096, %v9094
    %v9419 = vpack.c.b16 %v9097, %v9095
    %v9420 = vpack.c.b16 %v9100, %v9098
    %v9421 = vpack.c.b16 %v9101, %v9099
    %9742 = vmatprep.subr.bf16.mxu0 %v9117
    %9743 = vmatpush1.bf16.msra.mxu0 %v9116
    %9744 = vmatprep.subr.bf16.mxu0 %v9115
    %9745 = vmatpush1.bf16.msra.mxu0 %v9114
    %9746 = vmatprep.subr.bf16.mxu0 %v9113
    %9747 = vmatpush1.bf16.msra.mxu0 %v9112
    %9748 = vmatprep.subr.bf16.mxu0 %v9111
    %9749 = vmatpush1.bf16.msra.mxu0 %v9110
    %9750 = vmatprep.subr.bf16.mxu0 %v9109
    %9751 = vmatpush1.bf16.msra.mxu0 %v9108
    %9752 = vmatprep.subr.bf16.mxu0 %v9107
    %9753 = vmatpush1.bf16.msra.mxu0 %v9106
    %9754 = vmatprep.subr.bf16.mxu0 %v9105
    %9755 = vmatpush1.bf16.msra.mxu0 %v9104
    %9756 = vmatprep.subr.bf16.mxu0 %v9103
    %9757 = vmatpush1.bf16.msra.mxu0 %v9102
    %9758 = vmatprep.subr.bf16.mxu0 %v9133
    %9759 = vmatpush2.bf16.msra.mxu0 %v9132
    %9760 = vmatprep.subr.bf16.mxu0 %v9131
    %9761 = vmatpush2.bf16.msra.mxu0 %v9130
    %9762 = vmatprep.subr.bf16.mxu0 %v9129
    %9763 = vmatpush2.bf16.msra.mxu0 %v9128
    %9764 = vmatprep.subr.bf16.mxu0 %v9127
    %9765 = vmatpush2.bf16.msra.mxu0 %v9126
    %9766 = vmatprep.subr.bf16.mxu0 %v9125
    %9767 = vmatpush2.bf16.msra.mxu0 %v9124
    %9768 = vmatprep.subr.bf16.mxu0 %v9123
    %9769 = vmatpush2.bf16.msra.mxu0 %v9122
    %9770 = vmatprep.subr.bf16.mxu0 %v9121
    %9771 = vmatpush2.bf16.msra.mxu0 %v9120
    %9772 = vmatprep.subr.bf16.mxu0 %v9119
    %9773 = vmatpush2.bf16.msra.mxu0 %v9118
    %9774 = vmatprep.mubr.bf16.mxu0 %v8111
    %9775 = vmatmul.mubr.bf16.gmra.mxu0 %v8110
    %v9776 = vpop.f32.mrf.mxu0
    %v9777 = vadd.f32 %v8135, %v9776
    %v9778 = vpop.f32.mrf.mxu0
    %v9779 = vadd.f32 %v8139, %v9778
    %v9780 = vpop.f32.mrf.mxu0
    %v9781 = vadd.f32 %v8135, %v9780
    %v9782 = vpop.f32.mrf.mxu0
    %v9783 = vadd.f32 %v8139, %v9782
    %9784 = vdwg.mxu0
    %9785 = vmatprep.subr.bf16.mxu0 %v9149
    %9786 = vmatpush1.bf16.msra.mxu0 %v9148
    %9787 = vmatprep.subr.bf16.mxu0 %v9147
    %9788 = vmatpush1.bf16.msra.mxu0 %v9146
    %9789 = vmatprep.subr.bf16.mxu0 %v9145
    %9790 = vmatpush1.bf16.msra.mxu0 %v9144
    %9791 = vmatprep.subr.bf16.mxu0 %v9143
    %9792 = vmatpush1.bf16.msra.mxu0 %v9142
    %9793 = vmatprep.subr.bf16.mxu0 %v9141
    %9794 = vmatpush1.bf16.msra.mxu0 %v9140
    %9795 = vmatprep.subr.bf16.mxu0 %v9139
    %9796 = vmatpush1.bf16.msra.mxu0 %v9138
    %9797 = vmatprep.subr.bf16.mxu0 %v9137
    %9798 = vmatpush1.bf16.msra.mxu0 %v9136
    %9799 = vmatprep.subr.bf16.mxu0 %v9135
    %9800 = vmatpush1.bf16.msra.mxu0 %v9134
    %9801 = vmatprep.subr.bf16.mxu0 %v9165
    %9802 = vmatpush2.bf16.msra.mxu0 %v9164
    %9803 = vmatprep.subr.bf16.mxu0 %v9163
    %9804 = vmatpush2.bf16.msra.mxu0 %v9162
    %9805 = vmatprep.subr.bf16.mxu0 %v9161
    %9806 = vmatpush2.bf16.msra.mxu0 %v9160
    %9807 = vmatprep.subr.bf16.mxu0 %v9159
    %9808 = vmatpush2.bf16.msra.mxu0 %v9158
    %9809 = vmatprep.subr.bf16.mxu0 %v9157
    %9810 = vmatpush2.bf16.msra.mxu0 %v9156
    %9811 = vmatprep.subr.bf16.mxu0 %v9155
    %9812 = vmatpush2.bf16.msra.mxu0 %v9154
    %9813 = vmatprep.subr.bf16.mxu0 %v9153
    %9814 = vmatpush2.bf16.msra.mxu0 %v9152
    %9815 = vmatprep.subr.bf16.mxu0 %v9151
    %9816 = vmatpush2.bf16.msra.mxu0 %v9150
    %9817 = vmatprep.mubr.bf16.mxu0 %v8113
    %9818 = vmatmul.mubr.bf16.gmra.mxu0 %v8112
    %v9819 = vpop.f32.mrf.mxu0
    %v9820 = vadd.f32 %v9777, %v9819
    %v9821 = vpop.f32.mrf.mxu0
    %v9822 = vadd.f32 %v9779, %v9821
    %v9823 = vpop.f32.mrf.mxu0
    %v9824 = vadd.f32 %v9781, %v9823
    %v9825 = vpop.f32.mrf.mxu0
    %v9826 = vadd.f32 %v9783, %v9825
    %9827 = vdwg.mxu0
    %9828 = vmatprep.subr.bf16.mxu0 %v9181
    %9829 = vmatpush1.bf16.msra.mxu0 %v9180
    %9830 = vmatprep.subr.bf16.mxu0 %v9179
    %9831 = vmatpush1.bf16.msra.mxu0 %v9178
    %9832 = vmatprep.subr.bf16.mxu0 %v9177
    %9833 = vmatpush1.bf16.msra.mxu0 %v9176
    %9834 = vmatprep.subr.bf16.mxu0 %v9175
    %9835 = vmatpush1.bf16.msra.mxu0 %v9174
    %9836 = vmatprep.subr.bf16.mxu0 %v9173
    %9837 = vmatpush1.bf16.msra.mxu0 %v9172
    %9838 = vmatprep.subr.bf16.mxu0 %v9171
    %9839 = vmatpush1.bf16.msra.mxu0 %v9170
    %9840 = vmatprep.subr.bf16.mxu0 %v9169
    %9841 = vmatpush1.bf16.msra.mxu0 %v9168
    %9842 = vmatprep.subr.bf16.mxu0 %v9167
    %9843 = vmatpush1.bf16.msra.mxu0 %v9166
    %9844 = vmatprep.subr.bf16.mxu0 %v9197
    %9845 = vmatpush2.bf16.msra.mxu0 %v9196
    %9846 = vmatprep.subr.bf16.mxu0 %v9195
    %9847 = vmatpush2.bf16.msra.mxu0 %v9194
    %9848 = vmatprep.subr.bf16.mxu0 %v9193
    %9849 = vmatpush2.bf16.msra.mxu0 %v9192
    %9850 = vmatprep.subr.bf16.mxu0 %v9191
    %9851 = vmatpush2.bf16.msra.mxu0 %v9190
    %9852 = vmatprep.subr.bf16.mxu0 %v9189
    %9853 = vmatpush2.bf16.msra.mxu0 %v9188
    %9854 = vmatprep.subr.bf16.mxu0 %v9187
    %9855 = vmatpush2.bf16.msra.mxu0 %v9186
    %9856 = vmatprep.subr.bf16.mxu0 %v9185
    %9857 = vmatpush2.bf16.msra.mxu0 %v9184
    %9858 = vmatprep.subr.bf16.mxu0 %v9183
    %9859 = vmatpush2.bf16.msra.mxu0 %v9182
    %9860 = vmatprep.mubr.bf16.mxu0 %v8115
    %9861 = vmatmul.mubr.bf16.gmra.mxu0 %v8114
    %v9862 = vpop.f32.mrf.mxu0
    %v9863 = vadd.f32 %v9820, %v9862
    %v9864 = vpop.f32.mrf.mxu0
    %v9865 = vadd.f32 %v9822, %v9864
    %v9866 = vpop.f32.mrf.mxu0
    %v9867 = vadd.f32 %v9824, %v9866
    %v9868 = vpop.f32.mrf.mxu0
    %v9869 = vadd.f32 %v9826, %v9868
    %9870 = vdwg.mxu0
    %9871 = vmatprep.subr.bf16.mxu0 %v9213
    %9872 = vmatpush1.bf16.msra.mxu0 %v9212
    %9873 = vmatprep.subr.bf16.mxu0 %v9211
    %9874 = vmatpush1.bf16.msra.mxu0 %v9210
    %9875 = vmatprep.subr.bf16.mxu0 %v9209
    %9876 = vmatpush1.bf16.msra.mxu0 %v9208
    %9877 = vmatprep.subr.bf16.mxu0 %v9207
    %9878 = vmatpush1.bf16.msra.mxu0 %v9206
    %9879 = vmatprep.subr.bf16.mxu0 %v9205
    %9880 = vmatpush1.bf16.msra.mxu0 %v9204
    %9881 = vmatprep.subr.bf16.mxu0 %v9203
    %9882 = vmatpush1.bf16.msra.mxu0 %v9202
    %9883 = vmatprep.subr.bf16.mxu0 %v9201
    %9884 = vmatpush1.bf16.msra.mxu0 %v9200
    %9885 = vmatprep.subr.bf16.mxu0 %v9199
    %9886 = vmatpush1.bf16.msra.mxu0 %v9198
    %9887 = vmatprep.subr.bf16.mxu0 %v9229
    %9888 = vmatpush2.bf16.msra.mxu0 %v9228
    %9889 = vmatprep.subr.bf16.mxu0 %v9227
    %9890 = vmatpush2.bf16.msra.mxu0 %v9226
    %9891 = vmatprep.subr.bf16.mxu0 %v9225
    %9892 = vmatpush2.bf16.msra.mxu0 %v9224
    %9893 = vmatprep.subr.bf16.mxu0 %v9223
    %9894 = vmatpush2.bf16.msra.mxu0 %v9222
    %9895 = vmatprep.subr.bf16.mxu0 %v9221
    %9896 = vmatpush2.bf16.msra.mxu0 %v9220
    %9897 = vmatprep.subr.bf16.mxu0 %v9219
    %9898 = vmatpush2.bf16.msra.mxu0 %v9218
    %9899 = vmatprep.subr.bf16.mxu0 %v9217
    %9900 = vmatpush2.bf16.msra.mxu0 %v9216
    %9901 = vmatprep.subr.bf16.mxu0 %v9215
    %9902 = vmatpush2.bf16.msra.mxu0 %v9214
    %9903 = vmatprep.mubr.bf16.mxu0 %v8117
    %9904 = vmatmul.mubr.bf16.gmra.mxu0 %v8116
    %v9905 = vpop.f32.mrf.mxu0
    %v9906 = vadd.f32 %v9863, %v9905
    %v9907 = vpop.f32.mrf.mxu0
    %v9908 = vadd.f32 %v9865, %v9907
    %v9909 = vpop.f32.mrf.mxu0
    %v9910 = vadd.f32 %v9867, %v9909
    %v9911 = vpop.f32.mrf.mxu0
    %v9912 = vadd.f32 %v9869, %v9911
    %9913 = vdwg.mxu0
    %9914 = vmatprep.subr.bf16.mxu0 %v9245
    %9915 = vmatpush1.bf16.msra.mxu0 %v9244
    %9916 = vmatprep.subr.bf16.mxu0 %v9243
    %9917 = vmatpush1.bf16.msra.mxu0 %v9242
    %9918 = vmatprep.subr.bf16.mxu0 %v9241
    %9919 = vmatpush1.bf16.msra.mxu0 %v9240
    %9920 = vmatprep.subr.bf16.mxu0 %v9239
    %9921 = vmatpush1.bf16.msra.mxu0 %v9238
    %9922 = vmatprep.subr.bf16.mxu0 %v9237
    %9923 = vmatpush1.bf16.msra.mxu0 %v9236
    %9924 = vmatprep.subr.bf16.mxu0 %v9235
    %9925 = vmatpush1.bf16.msra.mxu0 %v9234
    %9926 = vmatprep.subr.bf16.mxu0 %v9233
    %9927 = vmatpush1.bf16.msra.mxu0 %v9232
    %9928 = vmatprep.subr.bf16.mxu0 %v9231
    %9929 = vmatpush1.bf16.msra.mxu0 %v9230
    %9930 = vmatprep.subr.bf16.mxu0 %v9261
    %9931 = vmatpush2.bf16.msra.mxu0 %v9260
    %9932 = vmatprep.subr.bf16.mxu0 %v9259
    %9933 = vmatpush2.bf16.msra.mxu0 %v9258
    %9934 = vmatprep.subr.bf16.mxu0 %v9257
    %9935 = vmatpush2.bf16.msra.mxu0 %v9256
    %9936 = vmatprep.subr.bf16.mxu0 %v9255
    %9937 = vmatpush2.bf16.msra.mxu0 %v9254
    %9938 = vmatprep.subr.bf16.mxu0 %v9253
    %9939 = vmatpush2.bf16.msra.mxu0 %v9252
    %9940 = vmatprep.subr.bf16.mxu0 %v9251
    %9941 = vmatpush2.bf16.msra.mxu0 %v9250
    %9942 = vmatprep.subr.bf16.mxu0 %v9249
    %9943 = vmatpush2.bf16.msra.mxu0 %v9248
    %9944 = vmatprep.subr.bf16.mxu0 %v9247
    %9945 = vmatpush2.bf16.msra.mxu0 %v9246
    %9946 = vmatprep.mubr.bf16.mxu0 %v8119
    %9947 = vmatmul.mubr.bf16.gmra.mxu0 %v8118
    %v9948 = vpop.f32.mrf.mxu0
    %v9949 = vadd.f32 %v9906, %v9948
    %v9950 = vpop.f32.mrf.mxu0
    %v9951 = vadd.f32 %v9908, %v9950
    %v9952 = vpop.f32.mrf.mxu0
    %v9953 = vadd.f32 %v9910, %v9952
    %v9954 = vpop.f32.mrf.mxu0
    %v9955 = vadd.f32 %v9912, %v9954
    %9956 = vdwg.mxu0
    %9957 = vmatprep.subr.bf16.mxu0 %v9277
    %9958 = vmatpush1.bf16.msra.mxu0 %v9276
    %9959 = vmatprep.subr.bf16.mxu0 %v9275
    %9960 = vmatpush1.bf16.msra.mxu0 %v9274
    %9961 = vmatprep.subr.bf16.mxu0 %v9273
    %9962 = vmatpush1.bf16.msra.mxu0 %v9272
    %9963 = vmatprep.subr.bf16.mxu0 %v9271
    %9964 = vmatpush1.bf16.msra.mxu0 %v9270
    %9965 = vmatprep.subr.bf16.mxu0 %v9269
    %9966 = vmatpush1.bf16.msra.mxu0 %v9268
    %9967 = vmatprep.subr.bf16.mxu0 %v9267
    %9968 = vmatpush1.bf16.msra.mxu0 %v9266
    %9969 = vmatprep.subr.bf16.mxu0 %v9265
    %9970 = vmatpush1.bf16.msra.mxu0 %v9264
    %9971 = vmatprep.subr.bf16.mxu0 %v9263
    %9972 = vmatpush1.bf16.msra.mxu0 %v9262
    %9973 = vmatprep.subr.bf16.mxu0 %v9293
    %9974 = vmatpush2.bf16.msra.mxu0 %v9292
    %9975 = vmatprep.subr.bf16.mxu0 %v9291
    %9976 = vmatpush2.bf16.msra.mxu0 %v9290
    %9977 = vmatprep.subr.bf16.mxu0 %v9289
    %9978 = vmatpush2.bf16.msra.mxu0 %v9288
    %9979 = vmatprep.subr.bf16.mxu0 %v9287
    %9980 = vmatpush2.bf16.msra.mxu0 %v9286
    %9981 = vmatprep.subr.bf16.mxu0 %v9285
    %9982 = vmatpush2.bf16.msra.mxu0 %v9284
    %9983 = vmatprep.subr.bf16.mxu0 %v9283
    %9984 = vmatpush2.bf16.msra.mxu0 %v9282
    %9985 = vmatprep.subr.bf16.mxu0 %v9281
    %9986 = vmatpush2.bf16.msra.mxu0 %v9280
    %9987 = vmatprep.subr.bf16.mxu0 %v9279
    %9988 = vmatpush2.bf16.msra.mxu0 %v9278
    %9989 = vmatprep.mubr.bf16.mxu0 %v8121
    %9990 = vmatmul.mubr.bf16.gmra.mxu0 %v8120
    %v9991 = vpop.f32.mrf.mxu0
    %v9992 = vadd.f32 %v9949, %v9991
    %v9993 = vpop.f32.mrf.mxu0
    %v9994 = vadd.f32 %v9951, %v9993
    %v9995 = vpop.f32.mrf.mxu0
    %v9996 = vadd.f32 %v9953, %v9995
    %v9997 = vpop.f32.mrf.mxu0
    %v9998 = vadd.f32 %v9955, %v9997
    %9999 = vdwg.mxu0
    %10000 = vmatprep.subr.bf16.mxu0 %v9309
    %10001 = vmatpush1.bf16.msra.mxu0 %v9308
    %10002 = vmatprep.subr.bf16.mxu0 %v9307
    %10003 = vmatpush1.bf16.msra.mxu0 %v9306
    %10004 = vmatprep.subr.bf16.mxu0 %v9305
    %10005 = vmatpush1.bf16.msra.mxu0 %v9304
    %10006 = vmatprep.subr.bf16.mxu0 %v9303
    %10007 = vmatpush1.bf16.msra.mxu0 %v9302
    %10008 = vmatprep.subr.bf16.mxu0 %v9301
    %10009 = vmatpush1.bf16.msra.mxu0 %v9300
    %10010 = vmatprep.subr.bf16.mxu0 %v9299
    %10011 = vmatpush1.bf16.msra.mxu0 %v9298
    %10012 = vmatprep.subr.bf16.mxu0 %v9297
    %10013 = vmatpush1.bf16.msra.mxu0 %v9296
    %10014 = vmatprep.subr.bf16.mxu0 %v9295
    %10015 = vmatpush1.bf16.msra.mxu0 %v9294
    %10016 = vmatprep.subr.bf16.mxu0 %v9325
    %10017 = vmatpush2.bf16.msra.mxu0 %v9324
    %10018 = vmatprep.subr.bf16.mxu0 %v9323
    %10019 = vmatpush2.bf16.msra.mxu0 %v9322
    %10020 = vmatprep.subr.bf16.mxu0 %v9321
    %10021 = vmatpush2.bf16.msra.mxu0 %v9320
    %10022 = vmatprep.subr.bf16.mxu0 %v9319
    %10023 = vmatpush2.bf16.msra.mxu0 %v9318
    %10024 = vmatprep.subr.bf16.mxu0 %v9317
    %10025 = vmatpush2.bf16.msra.mxu0 %v9316
    %10026 = vmatprep.subr.bf16.mxu0 %v9315
    %10027 = vmatpush2.bf16.msra.mxu0 %v9314
    %10028 = vmatprep.subr.bf16.mxu0 %v9313
    %10029 = vmatpush2.bf16.msra.mxu0 %v9312
    %10030 = vmatprep.subr.bf16.mxu0 %v9311
    %10031 = vmatpush2.bf16.msra.mxu0 %v9310
    %10032 = vmatprep.mubr.bf16.mxu0 %v8123
    %10033 = vmatmul.mubr.bf16.gmra.mxu0 %v8122
    %v10034 = vpop.f32.mrf.mxu0
    %v10035 = vadd.f32 %v9992, %v10034
    %v10036 = vpop.f32.mrf.mxu0
    %v10037 = vadd.f32 %v9994, %v10036
    %v10038 = vpop.f32.mrf.mxu0
    %v10039 = vadd.f32 %v9996, %v10038
    %v10040 = vpop.f32.mrf.mxu0
    %v10041 = vadd.f32 %v9998, %v10040
    %10042 = vdwg.mxu0
    %10043 = vmatprep.subr.bf16.mxu0 %v9341
    %10044 = vmatpush1.bf16.msra.mxu0 %v9340
    %10045 = vmatprep.subr.bf16.mxu0 %v9339
    %10046 = vmatpush1.bf16.msra.mxu0 %v9338
    %10047 = vmatprep.subr.bf16.mxu0 %v9337
    %10048 = vmatpush1.bf16.msra.mxu0 %v9336
    %10049 = vmatprep.subr.bf16.mxu0 %v9335
    %10050 = vmatpush1.bf16.msra.mxu0 %v9334
    %10051 = vmatprep.subr.bf16.mxu0 %v9333
    %10052 = vmatpush1.bf16.msra.mxu0 %v9332
    %10053 = vmatprep.subr.bf16.mxu0 %v9331
    %10054 = vmatpush1.bf16.msra.mxu0 %v9330
    %10055 = vmatprep.subr.bf16.mxu0 %v9329
    %10056 = vmatpush1.bf16.msra.mxu0 %v9328
    %10057 = vmatprep.subr.bf16.mxu0 %v9327
    %10058 = vmatpush1.bf16.msra.mxu0 %v9326
    %10059 = vmatprep.subr.bf16.mxu0 %v9357
    %10060 = vmatpush2.bf16.msra.mxu0 %v9356
    %10061 = vmatprep.subr.bf16.mxu0 %v9355
    %10062 = vmatpush2.bf16.msra.mxu0 %v9354
    %10063 = vmatprep.subr.bf16.mxu0 %v9353
    %10064 = vmatpush2.bf16.msra.mxu0 %v9352
    %10065 = vmatprep.subr.bf16.mxu0 %v9351
    %10066 = vmatpush2.bf16.msra.mxu0 %v9350
    %10067 = vmatprep.subr.bf16.mxu0 %v9349
    %10068 = vmatpush2.bf16.msra.mxu0 %v9348
    %10069 = vmatprep.subr.bf16.mxu0 %v9347
    %10070 = vmatpush2.bf16.msra.mxu0 %v9346
    %10071 = vmatprep.subr.bf16.mxu0 %v9345
    %10072 = vmatpush2.bf16.msra.mxu0 %v9344
    %10073 = vmatprep.subr.bf16.mxu0 %v9343
    %10074 = vmatpush2.bf16.msra.mxu0 %v9342
    %10075 = vmatprep.mubr.bf16.mxu0 %v8125
    %10076 = vmatmul.mubr.bf16.gmra.mxu0 %v8124
    %v10077 = vpop.f32.mrf.mxu0
    %v10078 = vadd.f32 %v10035, %v10077
    %v10079 = vpop.f32.mrf.mxu0
    %v10080 = vadd.f32 %v10037, %v10079
    %v10081 = vpop.f32.mrf.mxu0
    %v10082 = vadd.f32 %v10039, %v10081
    %v10083 = vpop.f32.mrf.mxu0
    %v10084 = vadd.f32 %v10041, %v10083
    %10085 = vdwg.mxu0
    %10086 = vmatprep.subr.bf16.mxu0 %v9373
    %10087 = vmatpush1.bf16.msra.mxu0 %v9372
    %10088 = vmatprep.subr.bf16.mxu0 %v9371
    %10089 = vmatpush1.bf16.msra.mxu0 %v9370
    %10090 = vmatprep.subr.bf16.mxu0 %v9369
    %10091 = vmatpush1.bf16.msra.mxu0 %v9368
    %10092 = vmatprep.subr.bf16.mxu0 %v9367
    %10093 = vmatpush1.bf16.msra.mxu0 %v9366
    %10094 = vmatprep.subr.bf16.mxu0 %v9365
    %10095 = vmatpush1.bf16.msra.mxu0 %v9364
    %10096 = vmatprep.subr.bf16.mxu0 %v9363
    %10097 = vmatpush1.bf16.msra.mxu0 %v9362
    %10098 = vmatprep.subr.bf16.mxu0 %v9361
    %10099 = vmatpush1.bf16.msra.mxu0 %v9360
    %10100 = vmatprep.subr.bf16.mxu0 %v9359
    %10101 = vmatpush1.bf16.msra.mxu0 %v9358
    %10102 = vmatprep.subr.bf16.mxu0 %v9389
    %10103 = vmatpush2.bf16.msra.mxu0 %v9388
    %10104 = vmatprep.subr.bf16.mxu0 %v9387
    %10105 = vmatpush2.bf16.msra.mxu0 %v9386
    %10106 = vmatprep.subr.bf16.mxu0 %v9385
    %10107 = vmatpush2.bf16.msra.mxu0 %v9384
    %10108 = vmatprep.subr.bf16.mxu0 %v9383
    %10109 = vmatpush2.bf16.msra.mxu0 %v9382
    %10110 = vmatprep.subr.bf16.mxu0 %v9381
    %10111 = vmatpush2.bf16.msra.mxu0 %v9380
    %10112 = vmatprep.subr.bf16.mxu0 %v9379
    %10113 = vmatpush2.bf16.msra.mxu0 %v9378
    %10114 = vmatprep.subr.bf16.mxu0 %v9377
    %10115 = vmatpush2.bf16.msra.mxu0 %v9376
    %10116 = vmatprep.subr.bf16.mxu0 %v9375
    %10117 = vmatpush2.bf16.msra.mxu0 %v9374
    %10118 = vmatprep.mubr.bf16.mxu0 %v8127
    %10119 = vmatmul.mubr.bf16.gmra.mxu0 %v8126
    %v10120 = vpop.f32.mrf.mxu0
    %v10121 = vadd.f32 %v10078, %v10120
    %v10122 = vpop.f32.mrf.mxu0
    %v10123 = vadd.f32 %v10080, %v10122
    %v10124 = vpop.f32.mrf.mxu0
    %v10125 = vadd.f32 %v10082, %v10124
    %v10126 = vpop.f32.mrf.mxu0
    %v10127 = vadd.f32 %v10084, %v10126
    %10128 = vdwg.mxu0
    %10129 = vmatprep.subr.bf16.mxu0 %v9405
    %10130 = vmatpush1.bf16.msra.mxu0 %v9404
    %10131 = vmatprep.subr.bf16.mxu0 %v9403
    %10132 = vmatpush1.bf16.msra.mxu0 %v9402
    %10133 = vmatprep.subr.bf16.mxu0 %v9401
    %10134 = vmatpush1.bf16.msra.mxu0 %v9400
    %10135 = vmatprep.subr.bf16.mxu0 %v9399
    %10136 = vmatpush1.bf16.msra.mxu0 %v9398
    %10137 = vmatprep.subr.bf16.mxu0 %v9397
    %10138 = vmatpush1.bf16.msra.mxu0 %v9396
    %10139 = vmatprep.subr.bf16.mxu0 %v9395
    %10140 = vmatpush1.bf16.msra.mxu0 %v9394
    %10141 = vmatprep.subr.bf16.mxu0 %v9393
    %10142 = vmatpush1.bf16.msra.mxu0 %v9392
    %10143 = vmatprep.subr.bf16.mxu0 %v9391
    %10144 = vmatpush1.bf16.msra.mxu0 %v9390
    %10145 = vmatprep.subr.bf16.mxu0 %v9421
    %10146 = vmatpush2.bf16.msra.mxu0 %v9420
    %10147 = vmatprep.subr.bf16.mxu0 %v9419
    %10148 = vmatpush2.bf16.msra.mxu0 %v9418
    %10149 = vmatprep.subr.bf16.mxu0 %v9417
    %10150 = vmatpush2.bf16.msra.mxu0 %v9416
    %10151 = vmatprep.subr.bf16.mxu0 %v9415
    %10152 = vmatpush2.bf16.msra.mxu0 %v9414
    %10153 = vmatprep.subr.bf16.mxu0 %v9413
    %10154 = vmatpush2.bf16.msra.mxu0 %v9412
    %10155 = vmatprep.subr.bf16.mxu0 %v9411
    %10156 = vmatpush2.bf16.msra.mxu0 %v9410
    %10157 = vmatprep.subr.bf16.mxu0 %v9409
    %10158 = vmatpush2.bf16.msra.mxu0 %v9408
    %10159 = vmatprep.subr.bf16.mxu0 %v9407
    %10160 = vmatpush2.bf16.msra.mxu0 %v9406
    %10161 = vmatprep.mubr.bf16.mxu0 %v8129
    %10162 = vmatmul.mubr.bf16.gmra.mxu0 %v8128
    %v10163 = vpop.f32.mrf.mxu0
    %v10164 = vadd.f32 %v10121, %v10163
    %v10165 = vpop.f32.mrf.mxu0
    %v10166 = vadd.f32 %v10123, %v10165
    %v10167 = vpop.f32.mrf.mxu0
    %v10168 = vadd.f32 %v10125, %v10167
    %v10169 = vpop.f32.mrf.mxu0
    %v10170 = vadd.f32 %v10127, %v10169
    %10171 = vdwg.mxu0
    %v10174 = vrot.slane %v10164, 1
    %v10175 = vrot.slane %v10166, 1
    %v10178 = vrot.slane %v10164, 2
    %v10179 = vrot.slane %v10166, 2
    %v10182 = vrot.slane %v10164, 3
    %v10183 = vrot.slane %v10166, 3
    %v10186 = vrot.slane %v10174, 1
    %v10187 = vrot.slane %v10175, 1
    %v10188 = vrot.slane %v10178, 1
    %v10189 = vrot.slane %v10179, 1
    %v10190 = vrot.slane %v10182, 1
    %v10191 = vrot.slane %v10183, 1
    %v10198 = vsel %vm7279, %v10164, %v10174
    %v10199 = vsel %vm7279, %v10166, %v10175
    %v10200 = vsel %vm7279, %v10174, %v10186
    %v10201 = vsel %vm7279, %v10175, %v10187
    %v10202 = vsel %vm7279, %v10178, %v10188
    %v10203 = vsel %vm7279, %v10179, %v10189
    %v10204 = vsel %vm7279, %v10182, %v10190
    %v10205 = vsel %vm7279, %v10183, %v10191
    %v10208 = vrot.slane %v10168, 2
    %v10209 = vrot.slane %v10170, 2
    %v10210 = vrot.slane %v10168, 3
    %v10211 = vrot.slane %v10170, 3
    %v10212 = vrot.slane %v10168, 1
    %v10213 = vrot.slane %v10170, 1
    %v10214 = vrot.slane %v10164, 6
    %v10215 = vrot.slane %v10166, 6
    %v10216 = vrot.slane %v10174, 6
    %v10217 = vrot.slane %v10175, 6
    %v10218 = vrot.slane %v10208, 6
    %v10219 = vrot.slane %v10209, 6
    %v10220 = vrot.slane %v10210, 6
    %v10221 = vrot.slane %v10211, 6
    %v10230 = vrot.slane %v10168, 7
    %v10231 = vrot.slane %v10170, 7
    %v10232 = vrot.slane %v10212, 7
    %v10233 = vrot.slane %v10213, 7
    %v10234 = vrot.slane %v10208, 7
    %v10235 = vrot.slane %v10209, 7
    %v10236 = vrot.slane %v10210, 7
    %v10237 = vrot.slane %v10211, 7
    %v10246 = vsel %vm7279, %v10214, %v10230
    %v10247 = vsel %vm7279, %v10215, %v10231
    %v10248 = vsel %vm7279, %v10216, %v10232
    %v10249 = vsel %vm7279, %v10217, %v10233
    %v10250 = vsel %vm7279, %v10218, %v10234
    %v10251 = vsel %vm7279, %v10219, %v10235
    %v10252 = vsel %vm7279, %v10220, %v10236
    %v10253 = vsel %vm7279, %v10221, %v10237
    %v10262 = vrot.slane %v10246, 6
    %v10263 = vrot.slane %v10247, 6
    %v10264 = vrot.slane %v10248, 6
    %v10265 = vrot.slane %v10249, 6
    %v10266 = vrot.slane %v10250, 6
    %v10267 = vrot.slane %v10251, 6
    %v10268 = vrot.slane %v10252, 6
    %v10269 = vrot.slane %v10253, 6
    %v10278 = vsel %vm7300, %v10198, %v10262
    %v10279 = vsel %vm7300, %v10199, %v10263
    %v10280 = vsel %vm7300, %v10200, %v10264
    %v10281 = vsel %vm7300, %v10201, %v10265
    %v10282 = vsel %vm7300, %v10202, %v10266
    %v10283 = vsel %vm7300, %v10203, %v10267
    %v10284 = vsel %vm7300, %v10204, %v10268
    %v10285 = vsel %vm7300, %v10205, %v10269
    %v10286 = vld [vmem:[%s5] sm:$0xf]
    %v10287 = vld [vmem:[%s5 + $0x4] sm:$0xf]
    %v10288 = vld [vmem:[%s5 + $0x8] sm:$0xf]
    %v10289 = vld [vmem:[%s5 + $0xc] sm:$0xf]
    %v10290 = vld [vmem:[%s5 + $0x10] sm:$0xf]
    %v10291 = vld [vmem:[%s5 + $0x14] sm:$0xf]
    %v10292 = vld [vmem:[%s5 + $0x18] sm:$0xf]
    %v10293 = vld [vmem:[%s5 + $0x1c] sm:$0xf]
    %v10294 = vld [vmem:[%s5 + $0x20] sm:$0xf]
    %v10295 = vld [vmem:[%s5 + $0x24] sm:$0xf]
    %v10296 = vld [vmem:[%s5 + $0x28] sm:$0xf]
    %v10297 = vld [vmem:[%s5 + $0x2c] sm:$0xf]
    %v10298 = vld [vmem:[%s5 + $0x30] sm:$0xf]
    %v10299 = vld [vmem:[%s5 + $0x34] sm:$0xf]
    %v10300 = vld [vmem:[%s5 + $0x38] sm:$0xf]
    %v10301 = vld [vmem:[%s5 + $0x3c] sm:$0xf]
    %v10302 = vld [vmem:[%s5 + $0x40] sm:$0xf]
    %v10303 = vld [vmem:[%s5 + $0x44] sm:$0xf]
    %v10304 = vld [vmem:[%s5 + $0x48] sm:$0xf]
    %v10305 = vld [vmem:[%s5 + $0x4c] sm:$0xf]
    %v10306 = vld [vmem:[%s5 + $0x50] sm:$0xf]
    %v10307 = vld [vmem:[%s5 + $0x54] sm:$0xf]
    %v10308 = vld [vmem:[%s5 + $0x58] sm:$0xf]
    %v10309 = vld [vmem:[%s5 + $0x5c] sm:$0xf]
    %v10310 = vld [vmem:[%s5 + $0x60] sm:$0xf]
    %v10311 = vld [vmem:[%s5 + $0x64] sm:$0xf]
    %v10312 = vld [vmem:[%s5 + $0x68] sm:$0xf]
    %v10313 = vld [vmem:[%s5 + $0x6c] sm:$0xf]
    %v10314 = vld [vmem:[%s5 + $0x70] sm:$0xf]
    %v10315 = vld [vmem:[%s5 + $0x74] sm:$0xf]
    %v10316 = vld [vmem:[%s5 + $0x78] sm:$0xf]
    %v10317 = vld [vmem:[%s5 + $0x7c] sm:$0xf]
    %v10318 = vld [vmem:[%s5 + $0x80] sm:$0xf]
    %v10319 = vld [vmem:[%s5 + $0x84] sm:$0xf]
    %v10320 = vld [vmem:[%s5 + $0x88] sm:$0xf]
    %v10321 = vld [vmem:[%s5 + $0x8c] sm:$0xf]
    %v10322 = vld [vmem:[%s5 + $0x90] sm:$0xf]
    %v10323 = vld [vmem:[%s5 + $0x94] sm:$0xf]
    %v10324 = vld [vmem:[%s5 + $0x98] sm:$0xf]
    %v10325 = vld [vmem:[%s5 + $0x9c] sm:$0xf]
    %v10326 = vld [vmem:[%s5 + $0xa0] sm:$0xf]
    %v10327 = vld [vmem:[%s5 + $0xa4] sm:$0xf]
    %v10328 = vld [vmem:[%s5 + $0xa8] sm:$0xf]
    %v10329 = vld [vmem:[%s5 + $0xac] sm:$0xf]
    %v10330 = vld [vmem:[%s5 + $0xb0] sm:$0xf]
    %v10331 = vld [vmem:[%s5 + $0xb4] sm:$0xf]
    %v10332 = vld [vmem:[%s5 + $0xb8] sm:$0xf]
    %v10333 = vld [vmem:[%s5 + $0xbc] sm:$0xf]
    %v10334 = vld [vmem:[%s5 + $0xc0] sm:$0xf]
    %v10335 = vld [vmem:[%s5 + $0xc4] sm:$0xf]
    %v10336 = vld [vmem:[%s5 + $0xc8] sm:$0xf]
    %v10337 = vld [vmem:[%s5 + $0xcc] sm:$0xf]
    %v10338 = vld [vmem:[%s5 + $0xd0] sm:$0xf]
    %v10339 = vld [vmem:[%s5 + $0xd4] sm:$0xf]
    %v10340 = vld [vmem:[%s5 + $0xd8] sm:$0xf]
    %v10341 = vld [vmem:[%s5 + $0xdc] sm:$0xf]
    %v10342 = vld [vmem:[%s5 + $0xe0] sm:$0xf]
    %v10343 = vld [vmem:[%s5 + $0xe4] sm:$0xf]
    %v10344 = vld [vmem:[%s5 + $0xe8] sm:$0xf]
    %v10345 = vld [vmem:[%s5 + $0xec] sm:$0xf]
    %v10346 = vld [vmem:[%s5 + $0xf0] sm:$0xf]
    %v10347 = vld [vmem:[%s5 + $0xf4] sm:$0xf]
    %v10348 = vld [vmem:[%s5 + $0xf8] sm:$0xf]
    %v10349 = vld [vmem:[%s5 + $0xfc] sm:$0xf]
    %v10350 = vld [vmem:[%s5 + $0x100] sm:$0xf]
    %v10351 = vld [vmem:[%s5 + $0x104] sm:$0xf]
    %v10352 = vld [vmem:[%s5 + $0x108] sm:$0xf]
    %v10353 = vld [vmem:[%s5 + $0x10c] sm:$0xf]
    %v10354 = vld [vmem:[%s5 + $0x110] sm:$0xf]
    %v10355 = vld [vmem:[%s5 + $0x114] sm:$0xf]
    %v10356 = vld [vmem:[%s5 + $0x118] sm:$0xf]
    %v10357 = vld [vmem:[%s5 + $0x11c] sm:$0xf]
    %v10358 = vld [vmem:[%s5 + $0x120] sm:$0xf]
    %v10359 = vld [vmem:[%s5 + $0x124] sm:$0xf]
    %v10360 = vld [vmem:[%s5 + $0x128] sm:$0xf]
    %v10361 = vld [vmem:[%s5 + $0x12c] sm:$0xf]
    %v10362 = vld [vmem:[%s5 + $0x130] sm:$0xf]
    %v10363 = vld [vmem:[%s5 + $0x134] sm:$0xf]
    %v10364 = vld [vmem:[%s5 + $0x138] sm:$0xf]
    %v10365 = vld [vmem:[%s5 + $0x13c] sm:$0xf]
    %v10366 = vld [vmem:[%s5 + $0x140] sm:$0xf]
    %v10367 = vld [vmem:[%s5 + $0x144] sm:$0xf]
    %v10368 = vld [vmem:[%s5 + $0x148] sm:$0xf]
    %v10369 = vld [vmem:[%s5 + $0x14c] sm:$0xf]
    %v10370 = vld [vmem:[%s5 + $0x150] sm:$0xf]
    %v10371 = vld [vmem:[%s5 + $0x154] sm:$0xf]
    %v10372 = vld [vmem:[%s5 + $0x158] sm:$0xf]
    %v10373 = vld [vmem:[%s5 + $0x15c] sm:$0xf]
    %v10374 = vld [vmem:[%s5 + $0x160] sm:$0xf]
    %v10375 = vld [vmem:[%s5 + $0x164] sm:$0xf]
    %v10376 = vld [vmem:[%s5 + $0x168] sm:$0xf]
    %v10377 = vld [vmem:[%s5 + $0x16c] sm:$0xf]
    %v10378 = vld [vmem:[%s5 + $0x170] sm:$0xf]
    %v10379 = vld [vmem:[%s5 + $0x174] sm:$0xf]
    %v10380 = vld [vmem:[%s5 + $0x178] sm:$0xf]
    %v10381 = vld [vmem:[%s5 + $0x17c] sm:$0xf]
    %v10382 = vld [vmem:[%s5 + $0x180] sm:$0xf]
    %v10383 = vld [vmem:[%s5 + $0x184] sm:$0xf]
    %v10384 = vld [vmem:[%s5 + $0x188] sm:$0xf]
    %v10385 = vld [vmem:[%s5 + $0x18c] sm:$0xf]
    %v10386 = vld [vmem:[%s5 + $0x190] sm:$0xf]
    %v10387 = vld [vmem:[%s5 + $0x194] sm:$0xf]
    %v10388 = vld [vmem:[%s5 + $0x198] sm:$0xf]
    %v10389 = vld [vmem:[%s5 + $0x19c] sm:$0xf]
    %v10390 = vld [vmem:[%s5 + $0x1a0] sm:$0xf]
    %v10391 = vld [vmem:[%s5 + $0x1a4] sm:$0xf]
    %v10392 = vld [vmem:[%s5 + $0x1a8] sm:$0xf]
    %v10393 = vld [vmem:[%s5 + $0x1ac] sm:$0xf]
    %v10394 = vld [vmem:[%s5 + $0x1b0] sm:$0xf]
    %v10395 = vld [vmem:[%s5 + $0x1b4] sm:$0xf]
    %v10396 = vld [vmem:[%s5 + $0x1b8] sm:$0xf]
    %v10397 = vld [vmem:[%s5 + $0x1bc] sm:$0xf]
    %v10398 = vld [vmem:[%s5 + $0x1c0] sm:$0xf]
    %v10399 = vld [vmem:[%s5 + $0x1c4] sm:$0xf]
    %v10400 = vld [vmem:[%s5 + $0x1c8] sm:$0xf]
    %v10401 = vld [vmem:[%s5 + $0x1cc] sm:$0xf]
    %v10402 = vld [vmem:[%s5 + $0x1d0] sm:$0xf]
    %v10403 = vld [vmem:[%s5 + $0x1d4] sm:$0xf]
    %v10404 = vld [vmem:[%s5 + $0x1d8] sm:$0xf]
    %v10405 = vld [vmem:[%s5 + $0x1dc] sm:$0xf]
    %v10406 = vld [vmem:[%s5 + $0x1e0] sm:$0xf]
    %v10407 = vld [vmem:[%s5 + $0x1e4] sm:$0xf]
    %v10408 = vld [vmem:[%s5 + $0x1e8] sm:$0xf]
    %v10409 = vld [vmem:[%s5 + $0x1ec] sm:$0xf]
    %v10410 = vld [vmem:[%s5 + $0x1f0] sm:$0xf]
    %v10411 = vld [vmem:[%s5 + $0x1f4] sm:$0xf]
    %v10412 = vld [vmem:[%s5 + $0x1f8] sm:$0xf]
    %v10413 = vld [vmem:[%s5 + $0x1fc] sm:$0xf]
    %v10414 = vpack.c.bf16 %v10278, %v10278
    %v10415 = vpack.c.bf16 %v10279, %v10279
    %v10416 = vpack.c.bf16 %v10280, %v10280
    %v10417 = vpack.c.bf16 %v10281, %v10281
    %v10418 = vpack.c.bf16 %v10282, %v10282
    %v10419 = vpack.c.bf16 %v10283, %v10283
    %v10420 = vpack.c.bf16 %v10284, %v10284
    %v10421 = vpack.c.bf16 %v10285, %v10285
    %v10422 = vld [vmem:[%s6] sm:$0x1]
    %v10424 = vlaneseq
    %v10425 = vshrl.u32 %v10424, 7
    %v10426 = vsub.s32 0, %v10425
    %v10427 = vrot.slane %v10422, %v10426
    %v10557 = vunpack.c.l.b16 %v10286
    %v10558 = vunpack.c.l.b16 %v10287
    %v10559 = vunpack.c.l.b16 %v10288
    %v10560 = vunpack.c.l.b16 %v10289
    %v10561 = vunpack.c.l.b16 %v10290
    %v10562 = vunpack.c.l.b16 %v10291
    %v10563 = vunpack.c.l.b16 %v10292
    %v10564 = vunpack.c.l.b16 %v10293
    %v10565 = vunpack.c.l.b16 %v10294
    %v10566 = vunpack.c.l.b16 %v10295
    %v10567 = vunpack.c.l.b16 %v10296
    %v10568 = vunpack.c.l.b16 %v10297
    %v10569 = vunpack.c.l.b16 %v10298
    %v10570 = vunpack.c.l.b16 %v10299
    %v10571 = vunpack.c.l.b16 %v10300
    %v10572 = vunpack.c.l.b16 %v10301
    %v10573 = vunpack.c.l.b16 %v10302
    %v10574 = vunpack.c.l.b16 %v10303
    %v10575 = vunpack.c.l.b16 %v10304
    %v10576 = vunpack.c.l.b16 %v10305
    %v10577 = vunpack.c.l.b16 %v10306
    %v10578 = vunpack.c.l.b16 %v10307
    %v10579 = vunpack.c.l.b16 %v10308
    %v10580 = vunpack.c.l.b16 %v10309
    %v10581 = vunpack.c.l.b16 %v10310
    %v10582 = vunpack.c.l.b16 %v10311
    %v10583 = vunpack.c.l.b16 %v10312
    %v10584 = vunpack.c.l.b16 %v10313
    %v10585 = vunpack.c.l.b16 %v10314
    %v10586 = vunpack.c.l.b16 %v10315
    %v10587 = vunpack.c.l.b16 %v10316
    %v10588 = vunpack.c.l.b16 %v10317
    %v10589 = vunpack.c.l.b16 %v10318
    %v10590 = vunpack.c.l.b16 %v10319
    %v10591 = vunpack.c.l.b16 %v10320
    %v10592 = vunpack.c.l.b16 %v10321
    %v10593 = vunpack.c.l.b16 %v10322
    %v10594 = vunpack.c.l.b16 %v10323
    %v10595 = vunpack.c.l.b16 %v10324
    %v10596 = vunpack.c.l.b16 %v10325
    %v10597 = vunpack.c.l.b16 %v10326
    %v10598 = vunpack.c.l.b16 %v10327
    %v10599 = vunpack.c.l.b16 %v10328
    %v10600 = vunpack.c.l.b16 %v10329
    %v10601 = vunpack.c.l.b16 %v10330
    %v10602 = vunpack.c.l.b16 %v10331
    %v10603 = vunpack.c.l.b16 %v10332
    %v10604 = vunpack.c.l.b16 %v10333
    %v10605 = vunpack.c.l.b16 %v10334
    %v10606 = vunpack.c.l.b16 %v10335
    %v10607 = vunpack.c.l.b16 %v10336
    %v10608 = vunpack.c.l.b16 %v10337
    %v10609 = vunpack.c.l.b16 %v10338
    %v10610 = vunpack.c.l.b16 %v10339
    %v10611 = vunpack.c.l.b16 %v10340
    %v10612 = vunpack.c.l.b16 %v10341
    %v10613 = vunpack.c.l.b16 %v10342
    %v10614 = vunpack.c.l.b16 %v10343
    %v10615 = vunpack.c.l.b16 %v10344
    %v10616 = vunpack.c.l.b16 %v10345
    %v10617 = vunpack.c.l.b16 %v10346
    %v10618 = vunpack.c.l.b16 %v10347
    %v10619 = vunpack.c.l.b16 %v10348
    %v10620 = vunpack.c.l.b16 %v10349
    %v10621 = vunpack.c.l.b16 %v10350
    %v10622 = vunpack.c.l.b16 %v10351
    %v10623 = vunpack.c.l.b16 %v10352
    %v10624 = vunpack.c.l.b16 %v10353
    %v10625 = vunpack.c.l.b16 %v10354
    %v10626 = vunpack.c.l.b16 %v10355
    %v10627 = vunpack.c.l.b16 %v10356
    %v10628 = vunpack.c.l.b16 %v10357
    %v10629 = vunpack.c.l.b16 %v10358
    %v10630 = vunpack.c.l.b16 %v10359
    %v10631 = vunpack.c.l.b16 %v10360
    %v10632 = vunpack.c.l.b16 %v10361
    %v10633 = vunpack.c.l.b16 %v10362
    %v10634 = vunpack.c.l.b16 %v10363
    %v10635 = vunpack.c.l.b16 %v10364
    %v10636 = vunpack.c.l.b16 %v10365
    %v10637 = vunpack.c.l.b16 %v10366
    %v10638 = vunpack.c.l.b16 %v10367
    %v10639 = vunpack.c.l.b16 %v10368
    %v10640 = vunpack.c.l.b16 %v10369
    %v10641 = vunpack.c.l.b16 %v10370
    %v10642 = vunpack.c.l.b16 %v10371
    %v10643 = vunpack.c.l.b16 %v10372
    %v10644 = vunpack.c.l.b16 %v10373
    %v10645 = vunpack.c.l.b16 %v10374
    %v10646 = vunpack.c.l.b16 %v10375
    %v10647 = vunpack.c.l.b16 %v10376
    %v10648 = vunpack.c.l.b16 %v10377
    %v10649 = vunpack.c.l.b16 %v10378
    %v10650 = vunpack.c.l.b16 %v10379
    %v10651 = vunpack.c.l.b16 %v10380
    %v10652 = vunpack.c.l.b16 %v10381
    %v10653 = vunpack.c.l.b16 %v10382
    %v10654 = vunpack.c.l.b16 %v10383
    %v10655 = vunpack.c.l.b16 %v10384
    %v10656 = vunpack.c.l.b16 %v10385
    %v10657 = vunpack.c.l.b16 %v10386
    %v10658 = vunpack.c.l.b16 %v10387
    %v10659 = vunpack.c.l.b16 %v10388
    %v10660 = vunpack.c.l.b16 %v10389
    %v10661 = vunpack.c.l.b16 %v10390
    %v10662 = vunpack.c.l.b16 %v10391
    %v10663 = vunpack.c.l.b16 %v10392
    %v10664 = vunpack.c.l.b16 %v10393
    %v10665 = vunpack.c.l.b16 %v10394
    %v10666 = vunpack.c.l.b16 %v10395
    %v10667 = vunpack.c.l.b16 %v10396
    %v10668 = vunpack.c.l.b16 %v10397
    %v10669 = vunpack.c.l.b16 %v10398
    %v10670 = vunpack.c.l.b16 %v10399
    %v10671 = vunpack.c.l.b16 %v10400
    %v10672 = vunpack.c.l.b16 %v10401
    %v10673 = vunpack.c.l.b16 %v10402
    %v10674 = vunpack.c.l.b16 %v10403
    %v10675 = vunpack.c.l.b16 %v10404
    %v10676 = vunpack.c.l.b16 %v10405
    %v10677 = vunpack.c.l.b16 %v10406
    %v10678 = vunpack.c.l.b16 %v10407
    %v10679 = vunpack.c.l.b16 %v10408
    %v10680 = vunpack.c.l.b16 %v10409
    %v10681 = vunpack.c.l.b16 %v10410
    %v10682 = vunpack.c.l.b16 %v10411
    %v10683 = vunpack.c.l.b16 %v10412
    %v10684 = vunpack.c.l.b16 %v10413
    %v10685 = vpack.c.b16 %v10558, %v10557
    %v10686 = vpack.c.b16 %v10560, %v10559
    %v10687 = vpack.c.b16 %v10562, %v10561
    %v10688 = vpack.c.b16 %v10564, %v10563
    %v10689 = vpack.c.b16 %v10566, %v10565
    %v10690 = vpack.c.b16 %v10568, %v10567
    %v10691 = vpack.c.b16 %v10570, %v10569
    %v10692 = vpack.c.b16 %v10572, %v10571
    %v10693 = vpack.c.b16 %v10574, %v10573
    %v10694 = vpack.c.b16 %v10576, %v10575
    %v10695 = vpack.c.b16 %v10578, %v10577
    %v10696 = vpack.c.b16 %v10580, %v10579
    %v10697 = vpack.c.b16 %v10582, %v10581
    %v10698 = vpack.c.b16 %v10584, %v10583
    %v10699 = vpack.c.b16 %v10586, %v10585
    %v10700 = vpack.c.b16 %v10588, %v10587
    %v10701 = vpack.c.b16 %v10590, %v10589
    %v10702 = vpack.c.b16 %v10592, %v10591
    %v10703 = vpack.c.b16 %v10594, %v10593
    %v10704 = vpack.c.b16 %v10596, %v10595
    %v10705 = vpack.c.b16 %v10598, %v10597
    %v10706 = vpack.c.b16 %v10600, %v10599
    %v10707 = vpack.c.b16 %v10602, %v10601
    %v10708 = vpack.c.b16 %v10604, %v10603
    %v10709 = vpack.c.b16 %v10606, %v10605
    %v10710 = vpack.c.b16 %v10608, %v10607
    %v10711 = vpack.c.b16 %v10610, %v10609
    %v10712 = vpack.c.b16 %v10612, %v10611
    %v10713 = vpack.c.b16 %v10614, %v10613
    %v10714 = vpack.c.b16 %v10616, %v10615
    %v10715 = vpack.c.b16 %v10618, %v10617
    %v10716 = vpack.c.b16 %v10620, %v10619
    %v10717 = vpack.c.b16 %v10622, %v10621
    %v10718 = vpack.c.b16 %v10624, %v10623
    %v10719 = vpack.c.b16 %v10626, %v10625
    %v10720 = vpack.c.b16 %v10628, %v10627
    %v10721 = vpack.c.b16 %v10630, %v10629
    %v10722 = vpack.c.b16 %v10632, %v10631
    %v10723 = vpack.c.b16 %v10634, %v10633
    %v10724 = vpack.c.b16 %v10636, %v10635
    %v10725 = vpack.c.b16 %v10638, %v10637
    %v10726 = vpack.c.b16 %v10640, %v10639
    %v10727 = vpack.c.b16 %v10642, %v10641
    %v10728 = vpack.c.b16 %v10644, %v10643
    %v10729 = vpack.c.b16 %v10646, %v10645
    %v10730 = vpack.c.b16 %v10648, %v10647
    %v10731 = vpack.c.b16 %v10650, %v10649
    %v10732 = vpack.c.b16 %v10652, %v10651
    %v10733 = vpack.c.b16 %v10654, %v10653
    %v10734 = vpack.c.b16 %v10656, %v10655
    %v10735 = vpack.c.b16 %v10658, %v10657
    %v10736 = vpack.c.b16 %v10660, %v10659
    %v10737 = vpack.c.b16 %v10662, %v10661
    %v10738 = vpack.c.b16 %v10664, %v10663
    %v10739 = vpack.c.b16 %v10666, %v10665
    %v10740 = vpack.c.b16 %v10668, %v10667
    %v10741 = vpack.c.b16 %v10670, %v10669
    %v10742 = vpack.c.b16 %v10672, %v10671
    %v10743 = vpack.c.b16 %v10674, %v10673
    %v10744 = vpack.c.b16 %v10676, %v10675
    %v10745 = vpack.c.b16 %v10678, %v10677
    %v10746 = vpack.c.b16 %v10680, %v10679
    %v10747 = vpack.c.b16 %v10682, %v10681
    %v10748 = vpack.c.b16 %v10684, %v10683
    %10813 = vmatprep.subr.bf16.mxu0 0
    %10814 = vmatpush1.bf16.msra.mxu0 %v10692
    %10815 = vmatprep.subr.bf16.mxu0 0
    %10816 = vmatpush1.bf16.msra.mxu0 %v10691
    %10817 = vmatprep.subr.bf16.mxu0 0
    %10818 = vmatpush1.bf16.msra.mxu0 %v10690
    %10819 = vmatprep.subr.bf16.mxu0 0
    %10820 = vmatpush1.bf16.msra.mxu0 %v10689
    %10821 = vmatprep.subr.bf16.mxu0 0
    %10822 = vmatpush1.bf16.msra.mxu0 %v10688
    %10823 = vmatprep.subr.bf16.mxu0 0
    %10824 = vmatpush1.bf16.msra.mxu0 %v10687
    %10825 = vmatprep.subr.bf16.mxu0 0
    %10826 = vmatpush1.bf16.msra.mxu0 %v10686
    %10827 = vmatprep.subr.bf16.mxu0 0
    %10828 = vmatpush1.bf16.msra.mxu0 %v10685
    %10829 = vmatprep.subr.bf16.mxu0 0
    %10830 = vmatpush2.bf16.msra.mxu0 %v10700
    %10831 = vmatprep.subr.bf16.mxu0 0
    %10832 = vmatpush2.bf16.msra.mxu0 %v10699
    %10833 = vmatprep.subr.bf16.mxu0 0
    %10834 = vmatpush2.bf16.msra.mxu0 %v10698
    %10835 = vmatprep.subr.bf16.mxu0 0
    %10836 = vmatpush2.bf16.msra.mxu0 %v10697
    %10837 = vmatprep.subr.bf16.mxu0 0
    %10838 = vmatpush2.bf16.msra.mxu0 %v10696
    %10839 = vmatprep.subr.bf16.mxu0 0
    %10840 = vmatpush2.bf16.msra.mxu0 %v10695
    %10841 = vmatprep.subr.bf16.mxu0 0
    %10842 = vmatpush2.bf16.msra.mxu0 %v10694
    %10843 = vmatprep.subr.bf16.mxu0 0
    %10844 = vmatpush2.bf16.msra.mxu0 %v10693
    %10845 = vmatprep.mubr.bf16.mxu0 %v10415
    %10846 = vmatmul.mubr.bf16.gmra.mxu0 %v10414
    %v10847 = vpop.f32.mrf.mxu0
    %v10848 = vadd.f32 %v10427, %v10847
    %v10849 = vpop.f32.mrf.mxu0
    %v10850 = vpop.f32.mrf.mxu0
    %v10851 = vpop.f32.mrf.mxu0
    %10852 = vdwg.mxu0
    %10853 = vmatprep.subr.bf16.mxu0 0
    %10854 = vmatpush1.bf16.msra.mxu0 %v10708
    %10855 = vmatprep.subr.bf16.mxu0 0
    %10856 = vmatpush1.bf16.msra.mxu0 %v10707
    %10857 = vmatprep.subr.bf16.mxu0 0
    %10858 = vmatpush1.bf16.msra.mxu0 %v10706
    %10859 = vmatprep.subr.bf16.mxu0 0
    %10860 = vmatpush1.bf16.msra.mxu0 %v10705
    %10861 = vmatprep.subr.bf16.mxu0 0
    %10862 = vmatpush1.bf16.msra.mxu0 %v10704
    %10863 = vmatprep.subr.bf16.mxu0 0
    %10864 = vmatpush1.bf16.msra.mxu0 %v10703
    %10865 = vmatprep.subr.bf16.mxu0 0
    %10866 = vmatpush1.bf16.msra.mxu0 %v10702
    %10867 = vmatprep.subr.bf16.mxu0 0
    %10868 = vmatpush1.bf16.msra.mxu0 %v10701
    %10869 = vmatprep.subr.bf16.mxu0 0
    %10870 = vmatpush2.bf16.msra.mxu0 %v10716
    %10871 = vmatprep.subr.bf16.mxu0 0
    %10872 = vmatpush2.bf16.msra.mxu0 %v10715
    %10873 = vmatprep.subr.bf16.mxu0 0
    %10874 = vmatpush2.bf16.msra.mxu0 %v10714
    %10875 = vmatprep.subr.bf16.mxu0 0
    %10876 = vmatpush2.bf16.msra.mxu0 %v10713
    %10877 = vmatprep.subr.bf16.mxu0 0
    %10878 = vmatpush2.bf16.msra.mxu0 %v10712
    %10879 = vmatprep.subr.bf16.mxu0 0
    %10880 = vmatpush2.bf16.msra.mxu0 %v10711
    %10881 = vmatprep.subr.bf16.mxu0 0
    %10882 = vmatpush2.bf16.msra.mxu0 %v10710
    %10883 = vmatprep.subr.bf16.mxu0 0
    %10884 = vmatpush2.bf16.msra.mxu0 %v10709
    %10885 = vmatprep.mubr.bf16.mxu0 %v10417
    %10886 = vmatmul.mubr.bf16.gmra.mxu0 %v10416
    %v10887 = vpop.f32.mrf.mxu0
    %v10888 = vadd.f32 %v10848, %v10887
    %v10889 = vpop.f32.mrf.mxu0
    %v10890 = vpop.f32.mrf.mxu0
    %v10891 = vpop.f32.mrf.mxu0
    %10892 = vdwg.mxu0
    %10893 = vmatprep.subr.bf16.mxu0 0
    %10894 = vmatpush1.bf16.msra.mxu0 %v10724
    %10895 = vmatprep.subr.bf16.mxu0 0
    %10896 = vmatpush1.bf16.msra.mxu0 %v10723
    %10897 = vmatprep.subr.bf16.mxu0 0
    %10898 = vmatpush1.bf16.msra.mxu0 %v10722
    %10899 = vmatprep.subr.bf16.mxu0 0
    %10900 = vmatpush1.bf16.msra.mxu0 %v10721
    %10901 = vmatprep.subr.bf16.mxu0 0
    %10902 = vmatpush1.bf16.msra.mxu0 %v10720
    %10903 = vmatprep.subr.bf16.mxu0 0
    %10904 = vmatpush1.bf16.msra.mxu0 %v10719
    %10905 = vmatprep.subr.bf16.mxu0 0
    %10906 = vmatpush1.bf16.msra.mxu0 %v10718
    %10907 = vmatprep.subr.bf16.mxu0 0
    %10908 = vmatpush1.bf16.msra.mxu0 %v10717
    %10909 = vmatprep.subr.bf16.mxu0 0
    %10910 = vmatpush2.bf16.msra.mxu0 %v10732
    %10911 = vmatprep.subr.bf16.mxu0 0
    %10912 = vmatpush2.bf16.msra.mxu0 %v10731
    %10913 = vmatprep.subr.bf16.mxu0 0
    %10914 = vmatpush2.bf16.msra.mxu0 %v10730
    %10915 = vmatprep.subr.bf16.mxu0 0
    %10916 = vmatpush2.bf16.msra.mxu0 %v10729
    %10917 = vmatprep.subr.bf16.mxu0 0
    %10918 = vmatpush2.bf16.msra.mxu0 %v10728
    %10919 = vmatprep.subr.bf16.mxu0 0
    %10920 = vmatpush2.bf16.msra.mxu0 %v10727
    %10921 = vmatprep.subr.bf16.mxu0 0
    %10922 = vmatpush2.bf16.msra.mxu0 %v10726
    %10923 = vmatprep.subr.bf16.mxu0 0
    %10924 = vmatpush2.bf16.msra.mxu0 %v10725
    %10925 = vmatprep.mubr.bf16.mxu0 %v10419
    %10926 = vmatmul.mubr.bf16.gmra.mxu0 %v10418
    %v10927 = vpop.f32.mrf.mxu0
    %v10928 = vadd.f32 %v10888, %v10927
    %v10929 = vpop.f32.mrf.mxu0
    %v10930 = vpop.f32.mrf.mxu0
    %v10931 = vpop.f32.mrf.mxu0
    %10932 = vdwg.mxu0
    %10933 = vmatprep.subr.bf16.mxu0 0
    %10934 = vmatpush1.bf16.msra.mxu0 %v10740
    %10935 = vmatprep.subr.bf16.mxu0 0
    %10936 = vmatpush1.bf16.msra.mxu0 %v10739
    %10937 = vmatprep.subr.bf16.mxu0 0
    %10938 = vmatpush1.bf16.msra.mxu0 %v10738
    %10939 = vmatprep.subr.bf16.mxu0 0
    %10940 = vmatpush1.bf16.msra.mxu0 %v10737
    %10941 = vmatprep.subr.bf16.mxu0 0
    %10942 = vmatpush1.bf16.msra.mxu0 %v10736
    %10943 = vmatprep.subr.bf16.mxu0 0
    %10944 = vmatpush1.bf16.msra.mxu0 %v10735
    %10945 = vmatprep.subr.bf16.mxu0 0
    %10946 = vmatpush1.bf16.msra.mxu0 %v10734
    %10947 = vmatprep.subr.bf16.mxu0 0
    %10948 = vmatpush1.bf16.msra.mxu0 %v10733
    %10949 = vmatprep.subr.bf16.mxu0 0
    %10950 = vmatpush2.bf16.msra.mxu0 %v10748
    %10951 = vmatprep.subr.bf16.mxu0 0
    %10952 = vmatpush2.bf16.msra.mxu0 %v10747
    %10953 = vmatprep.subr.bf16.mxu0 0
    %10954 = vmatpush2.bf16.msra.mxu0 %v10746
    %10955 = vmatprep.subr.bf16.mxu0 0
    %10956 = vmatpush2.bf16.msra.mxu0 %v10745
    %10957 = vmatprep.subr.bf16.mxu0 0
    %10958 = vmatpush2.bf16.msra.mxu0 %v10744
    %10959 = vmatprep.subr.bf16.mxu0 0
    %10960 = vmatpush2.bf16.msra.mxu0 %v10743
    %10961 = vmatprep.subr.bf16.mxu0 0
    %10962 = vmatpush2.bf16.msra.mxu0 %v10742
    %10963 = vmatprep.subr.bf16.mxu0 0
    %10964 = vmatpush2.bf16.msra.mxu0 %v10741
    %10965 = vmatprep.mubr.bf16.mxu0 %v10421
    %10966 = vmatmul.mubr.bf16.gmra.mxu0 %v10420
    %v10967 = vpop.f32.mrf.mxu0
    %v10968 = vadd.f32 %v10928, %v10967
    %v10969 = vpop.f32.mrf.mxu0
    %v10970 = vpop.f32.mrf.mxu0
    %v10971 = vpop.f32.mrf.mxu0
    %10972 = vdwg.mxu0
    %v10974 = vrot.slane %v10968, 1
    %v10976 = vrot.slane %v10974, 1
    %v10978 = vsel %vm7279, %v10968, %v10974
    %v10979 = vsel %vm7279, %v10974, %v10976
    %v10980 = vld [vmem:[%s7] sm:$0xf]
    %v10981 = vld [vmem:[%s7 + $0x4] sm:$0xf]
    %v10982 = vld [vmem:[%s7 + $0x8] sm:$0xf]
    %v10983 = vld [vmem:[%s7 + $0xc] sm:$0xf]
    %v10984 = vld [vmem:[%s7 + $0x10] sm:$0xf]
    %v10985 = vld [vmem:[%s7 + $0x14] sm:$0xf]
    %v10986 = vld [vmem:[%s7 + $0x18] sm:$0xf]
    %v10987 = vld [vmem:[%s7 + $0x1c] sm:$0xf]
    %v10988 = vld [vmem:[%s7 + $0x20] sm:$0xf]
    %v10989 = vld [vmem:[%s7 + $0x24] sm:$0xf]
    %v10990 = vld [vmem:[%s7 + $0x28] sm:$0xf]
    %v10991 = vld [vmem:[%s7 + $0x2c] sm:$0xf]
    %v10992 = vld [vmem:[%s7 + $0x30] sm:$0xf]
    %v10993 = vld [vmem:[%s7 + $0x34] sm:$0xf]
    %v10994 = vld [vmem:[%s7 + $0x38] sm:$0xf]
    %v10995 = vld [vmem:[%s7 + $0x3c] sm:$0xf]
    %v10996 = vld [vmem:[%s7 + $0x40] sm:$0xf]
    %v10997 = vld [vmem:[%s7 + $0x44] sm:$0xf]
    %v10998 = vld [vmem:[%s7 + $0x48] sm:$0xf]
    %v10999 = vld [vmem:[%s7 + $0x4c] sm:$0xf]
    %v11000 = vld [vmem:[%s7 + $0x50] sm:$0xf]
    %v11001 = vld [vmem:[%s7 + $0x54] sm:$0xf]
    %v11002 = vld [vmem:[%s7 + $0x58] sm:$0xf]
    %v11003 = vld [vmem:[%s7 + $0x5c] sm:$0xf]
    %v11004 = vld [vmem:[%s7 + $0x60] sm:$0xf]
    %v11005 = vld [vmem:[%s7 + $0x64] sm:$0xf]
    %v11006 = vld [vmem:[%s7 + $0x68] sm:$0xf]
    %v11007 = vld [vmem:[%s7 + $0x6c] sm:$0xf]
    %v11008 = vld [vmem:[%s7 + $0x70] sm:$0xf]
    %v11009 = vld [vmem:[%s7 + $0x74] sm:$0xf]
    %v11010 = vld [vmem:[%s7 + $0x78] sm:$0xf]
    %v11011 = vld [vmem:[%s7 + $0x7c] sm:$0xf]
    %v11012 = vpack.c.bf16 %v10978, %v10978
    %v11013 = vpack.c.bf16 %v10979, %v10979
    %v11014 = vld [vmem:[%s8] sm:$0x1]
    %v11016 = vlaneseq
    %v11017 = vshrl.u32 %v11016, 7
    %v11018 = vsub.s32 0, %v11017
    %v11019 = vrot.slane %v11014, %v11018
    %v11053 = vunpack.c.l.b16 %v10980
    %v11054 = vunpack.c.l.b16 %v10981
    %v11055 = vunpack.c.l.b16 %v10982
    %v11056 = vunpack.c.l.b16 %v10983
    %v11057 = vunpack.c.l.b16 %v10984
    %v11058 = vunpack.c.l.b16 %v10985
    %v11059 = vunpack.c.l.b16 %v10986
    %v11060 = vunpack.c.l.b16 %v10987
    %v11061 = vunpack.c.l.b16 %v10988
    %v11062 = vunpack.c.l.b16 %v10989
    %v11063 = vunpack.c.l.b16 %v10990
    %v11064 = vunpack.c.l.b16 %v10991
    %v11065 = vunpack.c.l.b16 %v10992
    %v11066 = vunpack.c.l.b16 %v10993
    %v11067 = vunpack.c.l.b16 %v10994
    %v11068 = vunpack.c.l.b16 %v10995
    %v11069 = vunpack.c.l.b16 %v10996
    %v11070 = vunpack.c.l.b16 %v10997
    %v11071 = vunpack.c.l.b16 %v10998
    %v11072 = vunpack.c.l.b16 %v10999
    %v11073 = vunpack.c.l.b16 %v11000
    %v11074 = vunpack.c.l.b16 %v11001
    %v11075 = vunpack.c.l.b16 %v11002
    %v11076 = vunpack.c.l.b16 %v11003
    %v11077 = vunpack.c.l.b16 %v11004
    %v11078 = vunpack.c.l.b16 %v11005
    %v11079 = vunpack.c.l.b16 %v11006
    %v11080 = vunpack.c.l.b16 %v11007
    %v11081 = vunpack.c.l.b16 %v11008
    %v11082 = vunpack.c.l.b16 %v11009
    %v11083 = vunpack.c.l.b16 %v11010
    %v11084 = vunpack.c.l.b16 %v11011
    %v11085 = vpack.c.b16 %v11054, %v11053
    %v11086 = vpack.c.b16 %v11056, %v11055
    %v11087 = vpack.c.b16 %v11058, %v11057
    %v11088 = vpack.c.b16 %v11060, %v11059
    %v11089 = vpack.c.b16 %v11062, %v11061
    %v11090 = vpack.c.b16 %v11064, %v11063
    %v11091 = vpack.c.b16 %v11066, %v11065
    %v11092 = vpack.c.b16 %v11068, %v11067
    %v11093 = vpack.c.b16 %v11070, %v11069
    %v11094 = vpack.c.b16 %v11072, %v11071
    %v11095 = vpack.c.b16 %v11074, %v11073
    %v11096 = vpack.c.b16 %v11076, %v11075
    %v11097 = vpack.c.b16 %v11078, %v11077
    %v11098 = vpack.c.b16 %v11080, %v11079
    %v11099 = vpack.c.b16 %v11082, %v11081
    %v11100 = vpack.c.b16 %v11084, %v11083
    %11117 = vmatprep.subr.bf16.mxu0 0
    %11118 = vmatpush1.bf16.msra.mxu0 %v11092
    %11119 = vmatprep.subr.bf16.mxu0 0
    %11120 = vmatpush1.bf16.msra.mxu0 %v11091
    %11121 = vmatprep.subr.bf16.mxu0 0
    %11122 = vmatpush1.bf16.msra.mxu0 %v11090
    %11123 = vmatprep.subr.bf16.mxu0 0
    %11124 = vmatpush1.bf16.msra.mxu0 %v11089
    %11125 = vmatprep.subr.bf16.mxu0 0
    %11126 = vmatpush1.bf16.msra.mxu0 %v11088
    %11127 = vmatprep.subr.bf16.mxu0 0
    %11128 = vmatpush1.bf16.msra.mxu0 %v11087
    %11129 = vmatprep.subr.bf16.mxu0 0
    %11130 = vmatpush1.bf16.msra.mxu0 %v11086
    %11131 = vmatprep.subr.bf16.mxu0 0
    %11132 = vmatpush1.bf16.msra.mxu0 %v11085
    %11133 = vmatprep.subr.bf16.mxu0 0
    %11134 = vmatpush2.bf16.msra.mxu0 %v11100
    %11135 = vmatprep.subr.bf16.mxu0 0
    %11136 = vmatpush2.bf16.msra.mxu0 %v11099
    %11137 = vmatprep.subr.bf16.mxu0 0
    %11138 = vmatpush2.bf16.msra.mxu0 %v11098
    %11139 = vmatprep.subr.bf16.mxu0 0
    %11140 = vmatpush2.bf16.msra.mxu0 %v11097
    %11141 = vmatprep.subr.bf16.mxu0 0
    %11142 = vmatpush2.bf16.msra.mxu0 %v11096
    %11143 = vmatprep.subr.bf16.mxu0 0
    %11144 = vmatpush2.bf16.msra.mxu0 %v11095
    %11145 = vmatprep.subr.bf16.mxu0 0
    %11146 = vmatpush2.bf16.msra.mxu0 %v11094
    %11147 = vmatprep.subr.bf16.mxu0 0
    %11148 = vmatpush2.bf16.msra.mxu0 %v11093
    %11149 = vmatprep.mubr.bf16.mxu0 %v11013
    %11150 = vmatmul.mubr.bf16.gmra.mxu0 %v11012
    %v11151 = vpop.f32.mrf.mxu0
    %v11152 = vadd.f32 %v11019, %v11151
    %v11153 = vpop.f32.mrf.mxu0
    %v11154 = vpop.f32.mrf.mxu0
    %v11155 = vpop.f32.mrf.mxu0
    %11156 = vdwg.mxu0
    %v11157 = vld [vmem:[%s9] sm:$0xff]
    %v11158 = vld [vmem:[%s9 + $0x8] sm:$0xff]
    %v11159 = vld [vmem:[%s9 + $0x10] sm:$0xff]
    %v11160 = vld [vmem:[%s9 + $0x18] sm:$0xff]
    %v11161 = vld [vmem:[%s10] sm:$0x3]
    %v11163 = vlaneseq
    %v11164 = vshrl.u32 %v11163, 7
    %v11165 = vsub.s32 0, %v11164
    %v11166 = vrot.slane %v11161, %v11165
    %v11167 = vlaneseq
    %v11168 = vshrl.u32 %v11167, 7
    %v11169 = vsub.s32 1, %v11168
    %v11170 = vrot.slane %v11161, %v11169
    %vm11173 = vcmask 130048
    %v11175 = vsel %vm11173, %v11152, 0
    %11177 = vmatprep.subr.mxu0 0.0
    %11178 = vmatpush1.msra.mxu0 0.0
    %11179 = vmatprep.subr.mxu0 0.0
    %11180 = vmatpush1.msra.mxu0 0.0
    %11181 = vmatprep.subr.mxu0 0.0
    %11182 = vmatpush1.msra.mxu0 0.0
    %11183 = vmatprep.subr.mxu0 0.0
    %11184 = vmatpush1.msra.mxu0 0.0
    %11185 = vmatprep.subr.mxu0 0.0
    %11186 = vmatpush1.msra.mxu0 0.0
    %11187 = vmatprep.subr.mxu0 0.0
    %11188 = vmatpush1.msra.mxu0 0.0
    %11189 = vmatprep.subr.mxu0 0.0
    %11190 = vmatpush1.msra.mxu0 0.0
    %11191 = vmatprep.subr.mxu0 0.0
    %11192 = vmatpush1.msra.mxu0 0.0
    %11193 = vmatprep.subr.mxu0 0.0
    %11194 = vmatpush1.msra.mxu0 0.0
    %11195 = vmatprep.subr.mxu0 0.0
    %11196 = vmatpush1.msra.mxu0 0.0
    %11197 = vmatprep.subr.mxu0 0.0
    %11198 = vmatpush1.msra.mxu0 0.0
    %11199 = vmatprep.subr.mxu0 0.0
    %11200 = vmatpush1.msra.mxu0 0.0
    %11201 = vmatprep.subr.mxu0 0.0
    %11202 = vmatpush1.msra.mxu0 0.0
    %11203 = vmatprep.subr.mxu0 0.0
    %11204 = vmatpush1.msra.mxu0 0.0
    %11205 = vmatprep.subr.mxu0 %v11160
    %11206 = vmatpush1.msra.mxu0 %v11159
    %11207 = vmatprep.subr.mxu0 %v11158
    %11208 = vmatpush1.msra.mxu0 %v11157
    %11209 = vmatprep.subr.mxu0 0.0
    %11210 = vmatpush2.msra.mxu0 0.0
    %11211 = vmatprep.subr.mxu0 0.0
    %11212 = vmatpush2.msra.mxu0 0.0
    %11213 = vmatprep.subr.mxu0 0.0
    %11214 = vmatpush2.msra.mxu0 0.0
    %11215 = vmatprep.subr.mxu0 0.0
    %11216 = vmatpush2.msra.mxu0 0.0
    %11217 = vmatprep.subr.mxu0 0.0
    %11218 = vmatpush2.msra.mxu0 0.0
    %11219 = vmatprep.subr.mxu0 0.0
    %11220 = vmatpush2.msra.mxu0 0.0
    %11221 = vmatprep.subr.mxu0 0.0
    %11222 = vmatpush2.msra.mxu0 0.0
    %11223 = vmatprep.subr.mxu0 0.0
    %11224 = vmatpush2.msra.mxu0 0.0
    %11225 = vmatprep.subr.mxu0 0.0
    %11226 = vmatpush2.msra.mxu0 0.0
    %11227 = vmatprep.subr.mxu0 0.0
    %11228 = vmatpush2.msra.mxu0 0.0
    %11229 = vmatprep.subr.mxu0 0.0
    %11230 = vmatpush2.msra.mxu0 0.0
    %11231 = vmatprep.subr.mxu0 0.0
    %11232 = vmatpush2.msra.mxu0 0.0
    %11233 = vmatprep.subr.mxu0 0.0
    %11234 = vmatpush2.msra.mxu0 0.0
    %11235 = vmatprep.subr.mxu0 0.0
    %11236 = vmatpush2.msra.mxu0 0.0
    %11237 = vmatprep.subr.mxu0 0.0
    %11238 = vmatpush2.msra.mxu0 0.0
    %11239 = vmatprep.subr.mxu0 0.0
    %11240 = vmatpush2.msra.mxu0 0.0
    %11241 = vmatprep.mubr.f32.mxu0 0.0
    %11242 = vmatmul.mubr.f32.gmra.mxu0 %v11175
    %v11243 = vpop.f32.mrf.mxu0
    %v11244 = vadd.f32 %v11166, %v11243
    %v11245 = vpop.f32.mrf.mxu0
    %v11246 = vadd.f32 %v11170, %v11245
    %11247 = vdwg.mxu0
    %vm11248 = vcmp.ge.f32.partialorder %v11244, 0.0
    %vm11249 = vcmp.ge.f32.partialorder %v11246, 0.0
    %v11250 = vmul.f32 %v11244, 0.01
    %v11251 = vmul.f32 %v11246, 0.01
    %v11252 = vsel %vm11248, %v11244, %v11250
    %v11253 = vsel %vm11249, %v11246, %v11251
    %v11254 = vld [vmem:[%s11] sm:$0xff]
    %v11255 = vld [vmem:[%s11 + $0x8] sm:$0xff]
    %v11256 = vld [vmem:[%s11 + $0x10] sm:$0xff]
    %v11257 = vld [vmem:[%s11 + $0x18] sm:$0xff]
    %v11258 = vld [vmem:[%s11 + $0x20] sm:$0xff]
    %v11259 = vld [vmem:[%s11 + $0x28] sm:$0xff]
    %v11260 = vld [vmem:[%s11 + $0x30] sm:$0xff]
    %v11261 = vld [vmem:[%s11 + $0x38] sm:$0xff]
    %v11262 = vld [vmem:[%s11 + $0x40] sm:$0xff]
    %v11263 = vld [vmem:[%s11 + $0x48] sm:$0xff]
    %v11264 = vld [vmem:[%s11 + $0x50] sm:$0xff]
    %v11265 = vld [vmem:[%s11 + $0x58] sm:$0xff]
    %v11266 = vld [vmem:[%s11 + $0x60] sm:$0xff]
    %v11267 = vld [vmem:[%s11 + $0x68] sm:$0xff]
    %v11268 = vld [vmem:[%s11 + $0x70] sm:$0xff]
    %v11269 = vld [vmem:[%s11 + $0x78] sm:$0xff]
    %v11270 = vld [vmem:[%s11 + $0x80] sm:$0xff]
    %v11271 = vld [vmem:[%s11 + $0x88] sm:$0xff]
    %v11272 = vld [vmem:[%s11 + $0x90] sm:$0xff]
    %v11273 = vld [vmem:[%s11 + $0x98] sm:$0xff]
    %v11274 = vld [vmem:[%s12] sm:$0x1]
    %v11276 = vlaneseq
    %v11277 = vshrl.u32 %v11276, 7
    %v11278 = vsub.s32 0, %v11277
    %v11279 = vrot.slane %v11274, %v11278
    %vm11281 = vcmask 261120
    %v11283 = vsel %vm11281, %v11253, 0
    %11285 = vmatprep.subr.mxu0 0.0
    %11286 = vmatpush1.msra.mxu0 %v11269
    %11287 = vmatprep.subr.mxu0 0.0
    %11288 = vmatpush1.msra.mxu0 %v11268
    %11289 = vmatprep.subr.mxu0 0.0
    %11290 = vmatpush1.msra.mxu0 %v11267
    %11291 = vmatprep.subr.mxu0 0.0
    %11292 = vmatpush1.msra.mxu0 %v11266
    %11293 = vmatprep.subr.mxu0 0.0
    %11294 = vmatpush1.msra.mxu0 %v11265
    %11295 = vmatprep.subr.mxu0 0.0
    %11296 = vmatpush1.msra.mxu0 %v11264
    %11297 = vmatprep.subr.mxu0 0.0
    %11298 = vmatpush1.msra.mxu0 %v11263
    %11299 = vmatprep.subr.mxu0 0.0
    %11300 = vmatpush1.msra.mxu0 %v11262
    %11301 = vmatprep.subr.mxu0 0.0
    %11302 = vmatpush1.msra.mxu0 %v11261
    %11303 = vmatprep.subr.mxu0 0.0
    %11304 = vmatpush1.msra.mxu0 %v11260
    %11305 = vmatprep.subr.mxu0 0.0
    %11306 = vmatpush1.msra.mxu0 %v11259
    %11307 = vmatprep.subr.mxu0 0.0
    %11308 = vmatpush1.msra.mxu0 %v11258
    %11309 = vmatprep.subr.mxu0 0.0
    %11310 = vmatpush1.msra.mxu0 %v11257
    %11311 = vmatprep.subr.mxu0 0.0
    %11312 = vmatpush1.msra.mxu0 %v11256
    %11313 = vmatprep.subr.mxu0 0.0
    %11314 = vmatpush1.msra.mxu0 %v11255
    %11315 = vmatprep.subr.mxu0 0.0
    %11316 = vmatpush1.msra.mxu0 %v11254
    %11317 = vmatprep.subr.mxu0 0.0
    %11318 = vmatpush2.msra.mxu0 0.0
    %11319 = vmatprep.subr.mxu0 0.0
    %11320 = vmatpush2.msra.mxu0 0.0
    %11321 = vmatprep.subr.mxu0 0.0
    %11322 = vmatpush2.msra.mxu0 0.0
    %11323 = vmatprep.subr.mxu0 0.0
    %11324 = vmatpush2.msra.mxu0 0.0
    %11325 = vmatprep.subr.mxu0 0.0
    %11326 = vmatpush2.msra.mxu0 0.0
    %11327 = vmatprep.subr.mxu0 0.0
    %11328 = vmatpush2.msra.mxu0 0.0
    %11329 = vmatprep.subr.mxu0 0.0
    %11330 = vmatpush2.msra.mxu0 0.0
    %11331 = vmatprep.subr.mxu0 0.0
    %11332 = vmatpush2.msra.mxu0 0.0
    %11333 = vmatprep.subr.mxu0 0.0
    %11334 = vmatpush2.msra.mxu0 0.0
    %11335 = vmatprep.subr.mxu0 0.0
    %11336 = vmatpush2.msra.mxu0 0.0
    %11337 = vmatprep.subr.mxu0 0.0
    %11338 = vmatpush2.msra.mxu0 0.0
    %11339 = vmatprep.subr.mxu0 0.0
    %11340 = vmatpush2.msra.mxu0 0.0
    %11341 = vmatprep.subr.mxu0 0.0
    %11342 = vmatpush2.msra.mxu0 %v11273
    %11343 = vmatprep.subr.mxu0 0.0
    %11344 = vmatpush2.msra.mxu0 %v11272
    %11345 = vmatprep.subr.mxu0 0.0
    %11346 = vmatpush2.msra.mxu0 %v11271
    %11347 = vmatprep.subr.mxu0 0.0
    %11348 = vmatpush2.msra.mxu0 %v11270
    %11349 = vmatprep.mubr.f32.mxu0 %v11283
    %11350 = vmatmul.mubr.f32.gmra.mxu0 %v11252
    %v11351 = vpop.f32.mrf.mxu0
    %v11352 = vadd.f32 %v11279, %v11351
    %v11353 = vpop.f32.mrf.mxu0
    %11354 = vdwg.mxu0
    %vm11355 = vcmask 41984
    %v11356 = vsel %vm11355, %v11352, 0.0
    %11357 = vadd.xlane.f32.xlu0 %v11356
    %v11358 = vpop.xlane.xlu0 %11357
    %v11359 = vrot.slane %v11358, 4
    %v11360 = vadd.f32 %v11358, %v11359
    %v11361 = vrot.slane %v11360, 2
    %v11362 = vadd.f32 %v11360, %v11361
    %v11363 = vrot.slane %v11362, 1
    %v11364 = vadd.f32 %v11362, %v11363
    %s11365 = vtos %v11364
    %v11366 = vrcp.pop 12.0
    %s11367 = vtos %v11366
    %s11368 = smul.f32 %s11365, %s11367
    %v11369 = vstv %s11368
    %v11370 = vsub.f32 %v11352, %v11369
    %11372 = vset.pattern.permute.xlu0 6
    %11373 = vperm.xlu0 %11372, %v11352
    %v11374 = vpop.permute.xlu0 %11373
    %v11376 = vadd.f32 %v11374, %v11370
    %11377 = vst.msk [vmem:[#allocation2] sm:$0x3] %vm11355, %v11376
    // Predicated region
    $region54: #{duel_cnn_forward.1} parent=1 // pred_check
      _
    $region55: #{duel_cnn_forward.1} parent=1 // pred_check_branch
      %11379 = sbr.rel (0) target = $region57
    $region56: #{duel_cnn_forward.1} parent=1 // pred_region
      %s11381 = ssub.s32 32, 32
      %11382 = vsyncadd [#allocation3], %s11381
      %s11384 = sshll.u32 [#allocation2], 4
      %s11385 = int_to_ptr.vmem [resolvable:$true] %s11384
      %11387 = dma.vmem_to_hbm [thread:$0]  %s11385, 32, %s13, [#allocation3]
    $region57: #{duel_cnn_forward.1} parent=1 // pred_fallthru
      _
    // Predicated region
    $region58: #{duel_cnn_forward.1} parent=1 // pred_check
      _
    $region59: #{duel_cnn_forward.1} parent=1 // pred_check_branch
      %11389 = sbr.rel (0) target = $region61
    $region60: #{duel_cnn_forward.1} parent=1 // pred_region
      %11390 = dma.done [#allocation3], 32
    $region61: #{duel_cnn_forward.1} parent=1 // pred_fallthru
      _
    %11391 = vsyncpa [#allocation3], 1

</llo_original>
